<compile_context>
chip_gen: v6e
topology: v6e:2x2x1
jax: 0.10.0
libtpu: 0.0.40
codegen_flags: <defaults>
</compile_context>

<pallas_src>
import math
import jax
import jax.numpy as jnp
from jax.experimental import pallas as pl
from jax.experimental.pallas import tpu as pltpu

# ----------------------------- model config ----------------------------------
PATCH = 11                  # patch_size (input_dim % 11 == 0 required)
INPUT_DIM = 88              # small stand-in for 341 (88 = 8 * 11)
NUM_PATCHES = INPUT_DIM // PATCH   # 8
SEQ = NUM_PATCHES + 1       # 9 (+1 for cls token)
EMBED = 32                  # small stand-in for embed_dim=128
HEADS = 4
HEAD_DIM = EMBED // HEADS   # 8
DEPTH = 4
FF = 64                     # small stand-in for dim_feedforward=2048
OUT_DIM = 64                # small stand-in for out_dim=512
TEXT_HIDDEN = 48            # small stand-in for BERT hidden (768)
BATCH = 2
EPS_LN = 1e-5               # PyTorch LayerNorm default eps
EPS_NORM = 1e-12            # PyTorch F.normalize default eps

# ------------------------ lane-padded (device) dims ---------------------------
LANE = 128
D_P = LANE                  # EMBED    32 -> 128
FF_P = LANE                 # FF       64 -> 128
OUT_P = LANE                # OUT_DIM  64 -> 128
PATCH_P = LANE              # PATCH    11 -> 128
TEXT_P = LANE               # TEXT     48 -> 128


# ------------------------------ kernel math -----------------------------------
def _layernorm(x, g, b, feat_mask):
    # Logical feature width is EMBED; padded lanes of x are zero so the mean is
    # exact.  The (x - mu) term is re-masked so padded lanes stay exactly zero
    # and the two-pass variance (no E[x^2]-E[x]^2 cancellation) is exact.
    inv_n = 1.0 / EMBED
    mu = jnp.sum(x, axis=-1, keepdims=True) * inv_n
    d = (x - mu) * feat_mask
    var = jnp.sum(d * d, axis=-1, keepdims=True) * inv_n
    return d * jax.lax.rsqrt(var + EPS_LN) * g + b


def _gelu(x):
    # TODO(synk): PyTorch activation='gelu' is the exact erf GELU; the tanh
    # approximation is used to guarantee Mosaic lowering (small ~1e-3 deviation).
    c = math.sqrt(2.0 / math.pi)
    return 0.5 * x * (1.0 + jnp.tanh(c * (x + 0.044715 * x * x * x)))


def _l2_normalize(x):
    # F.normalize(x, p=2, dim=-1); padded lanes are zero so the norm is exact.
    # Exact rsqrt (single EUP op) - runs once in the epilogue, off the hot path.
    sq = jnp.sum(x * x, axis=-1, keepdims=True)
    return x * jax.lax.rsqrt(jnp.maximum(sq, EPS_NORM * EPS_NORM))


def _fused_clip_kernel(hsi_ref, text_ref, pw_ref, pb_ref, cls_ref, pos_ref,
                       wqkv_ref, wo_ref, w1_ref, w2_ref, vec_ref,
                       projw_ref, projb_ref, tw_ref, tb_ref,
                       hsi_out_ref, text_out_ref, act_ref):
    # Shapes seen by the kernel (batch block = 1, squeezed):
    #   hsi_ref   (NUM_PATCHES, PATCH_P)   text_ref (1, TEXT_P)
    #   pw_ref    (PATCH_P, D_P) bf16      pb_ref   (1, D_P)
    #   cls_ref   (1, D_P)                 pos_ref  (SEQ, D_P)
    #   wqkv_ref  (DEPTH, D_P, LANE) bf16  [Wq | Wk | Wv packed on lanes 0..95]
    #   wo_ref    (DEPTH, LANE, D_P) bf16
    #   w1_ref    (DEPTH, D_P, FF_P) bf16  w2_ref (DEPTH, FF_P, D_P) bf16
    #   vec_ref   (DEPTH, 8, D_P): [bqkv, bo, b1, b2, ln1g, ln1b, ln2g, ln2b]
    #   projw/tw  (128, 128) bf16          projb/tb (1, OUT_P)
    #   outputs   (1, OUT_P)               act_ref  (SEQ, D_P) VMEM scratch
    f32 = jnp.float32

    # lane-id masks (computed once per grid step; loop-invariant)
    lane = jax.lax.broadcasted_iota(jnp.int32, (SEQ, LANE), 1)
    feat_mask = (lane < EMBED).astype(f32)
    head_masks = [((lane >= h * HEAD_DIM) & (lane < (h + 1) * HEAD_DIM)).astype(f32)
                  for h in range(HEADS)]

    # ---- patch embedding + cls/pos (two sub-row stores, no concatenate) ----
    emb = jnp.dot(hsi_ref[...], pw_ref[...].astype(f32),
                  preferred_element_type=f32) + pb_ref[...]
    act_ref[0:1, :] = cls_ref[...] + pos_ref[0:1, :]
    act_ref[1:, :] = emb + pos_ref[1:, :]
    x = act_ref[...]                                     # (SEQ, D_P)

    scale = 1.0 / math.sqrt(HEAD_DIM)

    # ---- DEPTH post-LN TransformerEncoderLayers (static unroll) ----
    for l in range(DEPTH):
        vec = vec_ref[l]                                 # (8, D_P) f32
        bqkv, bo, b1, b2 = vec[0:1], vec[1:2], vec[2:3], vec[3:4]
        g1, be1, g2, be2 = vec[4:5], vec[5:6], vec[6:7], vec[7:8]

        # Single 128-wide MXU dot produces q|k|v for all heads on lane blocks
        # [0,32) | [32,64) | [64,96); lanes >= 96 are zero.
        qkv = jnp.dot(x, wqkv_ref[l].astype(f32),
                      preferred_element_type=f32) + bqkv
        # Rotate k / v lane blocks onto the q lanes (XLU, cheap) so per-head
        # contractions are plain lane-axis dots gated by a VPU mask.
        k_al = pltpu.roll(qkv, shift=LANE - EMBED, axis=1)      # k -> lanes [0, EMBED)
        v_al = pltpu.roll(qkv, shift=LANE - 2 * EMBED, axis=1)  # v -> lanes [0, EMBED)

        ctx = jnp.zeros((SEQ, LANE), f32)
        for h in range(HEADS):                           # static unroll
            m = head_masks[h]
            s = jax.lax.dot_general(qkv * m, k_al, (((1,), (1,)), ((), ())),
                                    preferred_element_type=f32) * scale
            s = s - jnp.max(s, axis=-1, keepdims=True)
            p = jnp.exp(s)
            p = p * pl.reciprocal(jnp.sum(p, axis=-1, keepdims=True), approx=True)
            # (v_al * m) is nonzero only on head h's lanes, so the accumulation
            # lands exactly at the head-concat position - no lane concatenate.
            ctx = ctx + jnp.dot(p, v_al * m, preferred_element_type=f32)

        attn = jnp.dot(ctx, wo_ref[l].astype(f32),
                       preferred_element_type=f32) + bo
        h1 = _layernorm(x + attn, g1, be1, feat_mask)
        ff = _gelu(jnp.dot(h1, w1_ref[l].astype(f32),
                           preferred_element_type=f32) + b1)
        ff = jnp.dot(ff, w2_ref[l].astype(f32),
                     preferred_element_type=f32) + b2
        x = _layernorm(h1 + ff, g2, be2, feat_mask)

    # ---- projectors + exact L2 norms (two outputs) ----
    cls_out = x[0:1, :]
    hsi_feat = jnp.dot(cls_out, projw_ref[...].astype(f32),
                       preferred_element_type=f32) + projb_ref[...]
    text_feat = jnp.dot(text_ref[...], tw_ref[...].astype(f32),
                        preferred_element_type=f32) + tb_ref[...]
    hsi_out_ref[...] = _l2_normalize(hsi_feat)
    text_out_ref[...] = _l2_normalize(text_feat)


# ------------------------------ spec helpers ----------------------------------
def _const_spec(shape):
    # Grid-invariant block: fetched from HBM once, stays resident in VMEM.
    n = len(shape)
    return pl.BlockSpec(tuple(shape), lambda b, _n=n: (0,) * _n)


def _batch_spec(tail):
    # Per-batch-element block (leading batch dim squeezed out of the kernel).
    n = len(tail)
    return pl.BlockSpec((None,) + tuple(tail), lambda b, _n=n: (b,) + (0,) * _n)


# ------------------------------ model forward ---------------------------------
def spectrum_text_clip_forward(hsi_data, text_pooler_output, pp):
    """hsi_data: (B, INPUT_DIM); text_pooler_output: (B, TEXT_HIDDEN)."""
    b = hsi_data.shape[0]

    # Lane-pad the two data inputs with jnp.pad (fusible; pure zeros -> exact).
    hsi_pad = jnp.pad(hsi_data.astype(jnp.float32).reshape(b, NUM_PATCHES, PATCH),
                      ((0, 0), (0, 0), (0, PATCH_P - PATCH)))
    text_pad = jnp.pad(text_pooler_output.astype(jnp.float32).reshape(b, 1, TEXT_HIDDEN),
                       ((0, 0), (0, 0), (0, TEXT_P - TEXT_HIDDEN)))

    # grid=(B,) "parallel": one batch element per step so v7x's 2 TensorCores
    # both work; on single-TC v5e/v6e the extra steps are negligible.  Depth is
    # an in-kernel loop over VMEM-resident whole-depth weight stacks (~0.4 MB
    # bf16 incl. double-buffering - no vmem_limit_bytes needed at these dims).
    hsi_feat_p, text_feat_p = pl.pallas_call(
        _fused_clip_kernel,
        out_shape=(jax.ShapeDtypeStruct((b, 1, OUT_P), jnp.float32),
                   jax.ShapeDtypeStruct((b, 1, OUT_P), jnp.float32)),
        grid=(b,),
        in_specs=[
            _batch_spec((NUM_PATCHES, PATCH_P)),       # hsi patches
            _batch_spec((1, TEXT_P)),                  # text pooler output
            _const_spec((PATCH_P, D_P)),               # patch_w (bf16)
            _const_spec((1, D_P)),                     # patch_b
            _const_spec((1, D_P)),                     # cls token
            _const_spec((SEQ, D_P)),                   # pos embedding
            _const_spec((DEPTH, D_P, LANE)),           # packed qkv weights (bf16)
            _const_spec((DEPTH, LANE, D_P)),           # out-proj weights (bf16)
            _const_spec((DEPTH, D_P, FF_P)),           # ffn w1 (bf16)
            _const_spec((DEPTH, FF_P, D_P)),           # ffn w2 (bf16)
            _const_spec((DEPTH, 8, D_P)),              # [bqkv,bo,b1,b2,ln1g,ln1b,ln2g,ln2b]
            _const_spec((D_P, OUT_P)),                 # hsi projector w (bf16)
            _const_spec((1, OUT_P)),                   # hsi projector b
            _const_spec((TEXT_P, OUT_P)),              # text projector w (bf16)
            _const_spec((1, OUT_P)),                   # text projector b
        ],
        out_specs=(
            _batch_spec((1, OUT_P)),
            _batch_spec((1, OUT_P)),
        ),
        scratch_shapes=[pltpu.VMEM((SEQ, D_P), jnp.float32)],
        compiler_params=pltpu.CompilerParams(
            dimension_semantics=("parallel",)),
    )(hsi_pad, text_pad,
      pp['patch_w'], pp['patch_b'], pp['cls'], pp['pos'],
      pp['wqkv'], pp['wo'], pp['w1'], pp['w2'], pp['vecs'],
      pp['proj_w'], pp['proj_b'], pp['text_w'], pp['text_b'])

    hsi_features = hsi_feat_p[:, 0, :OUT_DIM]
    text_features = text_feat_p[:, 0, :OUT_DIM]
    # TODO(synk): BertModel.from_pretrained('bert-base-uncased') has no Pallas
    # equivalent; text_pooler_output stands in for bert(**text_inputs).pooler_output.
    return hsi_features, text_features, jnp.exp(pp['logit_scale'])


# ------------------------------ parameters ------------------------------------
def init_params(key):
    """Logical (unpadded) parameters matching the PyTorch module."""
    keys = iter(jax.random.split(key, 64))

    def w(shape, scale=0.02):
        return scale * jax.random.normal(next(keys), shape, dtype=jnp.float32)

    layers = []
    for _ in range(DEPTH):
        layers.append(dict(
            wqkv=w((EMBED, 3 * EMBED)), bqkv=jnp.zeros((3 * EMBED,), jnp.float32),
            wo=w((EMBED, EMBED)),       bo=jnp.zeros((EMBED,), jnp.float32),
            w1=w((EMBED, FF)),          b1=jnp.zeros((FF,), jnp.float32),
            w2=w((FF, EMBED)),          b2=jnp.zeros((EMBED,), jnp.float32),
            ln1g=jnp.ones((EMBED,), jnp.float32), ln1b=jnp.zeros((EMBED,), jnp.float32),
            ln2g=jnp.ones((EMBED,), jnp.float32), ln2b=jnp.zeros((EMBED,), jnp.float32),
        ))

    hsi = dict(
        patch_w=w((PATCH, EMBED)), patch_b=jnp.zeros((EMBED,), jnp.float32),
        cls=jax.random.normal(next(keys), (1, 1, EMBED), dtype=jnp.float32),
        pos=jax.random.normal(next(keys), (1, SEQ, EMBED), dtype=jnp.float32),
        layers=layers,
        proj_w=w((EMBED, OUT_DIM)), proj_b=jnp.zeros((OUT_DIM,), jnp.float32),
    )

    return dict(
        hsi=hsi,
        text_proj_w=w((TEXT_HIDDEN, OUT_DIM)),
        text_proj_b=jnp.zeros((OUT_DIM,), jnp.float32),
        logit_scale=jnp.asarray(math.log(1.0 / 0.07), dtype=jnp.float32),
    )


def pack_params(p):
    """One-time re-packing into lane-padded, depth-stacked, bf16 device format.

    All padded weight/bias/gamma/beta lanes are EXACT zeros; the in-kernel math
    relies on this to keep the logical lanes exact.
    """
    def pad2(m, r, c, dtype=jnp.float32):
        m = jnp.asarray(m, jnp.float32)
        out = jnp.pad(m, ((0, r - m.shape[0]), (0, c - m.shape[1])))
        return out.astype(dtype)

    def pad_row(v, n):
        v = jnp.asarray(v, jnp.float32)
        return jnp.pad(v, (0, n - v.shape[0]))

    hsi = p['hsi']
    wqkv_l, wo_l, w1_l, w2_l, vec_l = [], [], [], [], []
    for lp in hsi['layers']:
        # q|k|v for all heads packed into ONE (128,128) tile (lanes 0..95).
        wqkv_l.append(pad2(lp['wqkv'], D_P, LANE, jnp.bfloat16))
        wo_l.append(pad2(lp['wo'], LANE, D_P, jnp.bfloat16))
        w1_l.append(pad2(lp['w1'], D_P, FF_P, jnp.bfloat16))
        w2_l.append(pad2(lp['w2'], FF_P, D_P, jnp.bfloat16))
        vec_l.append(jnp.stack([
            pad_row(lp['bqkv'], D_P), pad_row(lp['bo'], D_P),
            pad_row(lp['b1'], D_P), pad_row(lp['b2'], D_P),
            pad_row(lp['ln1g'], D_P), pad_row(lp['ln1b'], D_P),
            pad_row(lp['ln2g'], D_P), pad_row(lp['ln2b'], D_P)]))   # (8, D_P)

    return dict(
        patch_w=pad2(hsi['patch_w'], PATCH_P, D_P, jnp.bfloat16),
        patch_b=pad_row(hsi['patch_b'], D_P).reshape(1, D_P),
        cls=pad_row(hsi['cls'].reshape(EMBED), D_P).reshape(1, D_P),
        pos=pad2(hsi['pos'].reshape(SEQ, EMBED), SEQ, D_P),
        wqkv=jnp.stack(wqkv_l),          # (DEPTH, D_P, LANE) bf16
        wo=jnp.stack(wo_l),              # (DEPTH, LANE, D_P) bf16
        w1=jnp.stack(w1_l),              # (DEPTH, D_P, FF_P) bf16
        w2=jnp.stack(w2_l),              # (DEPTH, FF_P, D_P) bf16
        vecs=jnp.stack(vec_l),           # (DEPTH, 8, D_P)   f32
        proj_w=pad2(hsi['proj_w'], D_P, OUT_P, jnp.bfloat16),
        proj_b=pad_row(hsi['proj_b'], OUT_P).reshape(1, OUT_P),
        text_w=pad2(p['text_proj_w'], TEXT_P, OUT_P, jnp.bfloat16),
        text_b=pad_row(p['text_proj_b'], OUT_P).reshape(1, OUT_P),
        logit_scale=p['logit_scale'],
    )


# --------------------------------- main ----------------------------------------
if __name__ == "__main__":
    key = jax.random.PRNGKey(0)
    k_param, k_hsi, k_text = jax.random.split(key, 3)

    params = init_params(k_param)
    packed = pack_params(params)

    hsi_data = jax.random.normal(k_hsi, (BATCH, INPUT_DIM), dtype=jnp.float32)
    text_pooler_output = jax.random.normal(
        k_text, (BATCH, TEXT_HIDDEN), dtype=jnp.float32)

    fwd = jax.jit(spectrum_text_clip_forward)
    hsi_feat, text_feat, logit_scale = fwd(hsi_data, text_pooler_output, packed)
    jax.block_until_ready((hsi_feat, text_feat, logit_scale))

    assert hsi_feat.shape == (BATCH, OUT_DIM)
    assert text_feat.shape == (BATCH, OUT_DIM)
    assert logit_scale.shape == ()
    assert bool(jnp.all(jnp.isfinite(hsi_feat)))
    assert bool(jnp.all(jnp.isfinite(text_feat)))
    # features are unit-norm after F.normalize semantics (exact rsqrt epilogue)
    assert bool(jnp.allclose(jnp.linalg.norm(hsi_feat, axis=-1), 1.0, atol=1e-3))
    assert bool(jnp.allclose(jnp.linalg.norm(text_feat, axis=-1), 1.0, atol=1e-3))

    print("KERNEL_OK")
</pallas_src>

<mosaic_0001>
module attributes {stable_mosaic.version = 11 : i64} {
  func.func @_fused_clip_kernel(%arg0: i32, %arg1: memref<1x8x128xf32, #tpu.memory_space<vmem>>, %arg2: memref<1x1x128xf32, #tpu.memory_space<vmem>>, %arg3: memref<128x128xbf16, #tpu.memory_space<vmem>>, %arg4: memref<1x128xf32, #tpu.memory_space<vmem>>, %arg5: memref<1x128xf32, #tpu.memory_space<vmem>>, %arg6: memref<9x128xf32, #tpu.memory_space<vmem>>, %arg7: memref<4x128x128xbf16, #tpu.memory_space<vmem>>, %arg8: memref<4x128x128xbf16, #tpu.memory_space<vmem>>, %arg9: memref<4x128x128xbf16, #tpu.memory_space<vmem>>, %arg10: memref<4x128x128xbf16, #tpu.memory_space<vmem>>, %arg11: memref<4x8x128xf32, #tpu.memory_space<vmem>>, %arg12: memref<128x128xbf16, #tpu.memory_space<vmem>>, %arg13: memref<1x128xf32, #tpu.memory_space<vmem>>, %arg14: memref<128x128xbf16, #tpu.memory_space<vmem>>, %arg15: memref<1x128xf32, #tpu.memory_space<vmem>>, %arg16: memref<1x1x128xf32, #tpu.memory_space<vmem>>, %arg17: memref<1x1x128xf32, #tpu.memory_space<vmem>>, %arg18: memref<9x128xf32, #tpu.memory_space<vmem>>) attributes {dimension_semantics = [#tpu.dimension_semantics<parallel>], iteration_bounds = array<i64: 2>, scalar_prefetch = 0 : i64, scratch_operands = 1 : i64, tpu.core_type = #tpu.core_type<tc>, window_params = [{transform_indices = @transform_0, window_bounds = array<i64: 1, 8, 128>}, {transform_indices = @transform_1, window_bounds = array<i64: 1, 1, 128>}, {pipeline_mode = #tpu.pipeline_mode<synchronous>, transform_indices = @transform_2, window_bounds = array<i64: 128, 128>}, {pipeline_mode = #tpu.pipeline_mode<synchronous>, transform_indices = @transform_3, window_bounds = array<i64: 1, 128>}, {pipeline_mode = #tpu.pipeline_mode<synchronous>, transform_indices = @transform_4, window_bounds = array<i64: 1, 128>}, {pipeline_mode = #tpu.pipeline_mode<synchronous>, transform_indices = @transform_5, window_bounds = array<i64: 9, 128>}, {pipeline_mode = #tpu.pipeline_mode<synchronous>, transform_indices = @transform_6, window_bounds = array<i64: 4, 128, 128>}, {pipeline_mode = #tpu.pipeline_mode<synchronous>, transform_indices = @transform_7, window_bounds = array<i64: 4, 128, 128>}, {pipeline_mode = #tpu.pipeline_mode<synchronous>, transform_indices = @transform_8, window_bounds = array<i64: 4, 128, 128>}, {pipeline_mode = #tpu.pipeline_mode<synchronous>, transform_indices = @transform_9, window_bounds = array<i64: 4, 128, 128>}, {pipeline_mode = #tpu.pipeline_mode<synchronous>, transform_indices = @transform_10, window_bounds = array<i64: 4, 8, 128>}, {pipeline_mode = #tpu.pipeline_mode<synchronous>, transform_indices = @transform_11, window_bounds = array<i64: 128, 128>}, {pipeline_mode = #tpu.pipeline_mode<synchronous>, transform_indices = @transform_12, window_bounds = array<i64: 1, 128>}, {pipeline_mode = #tpu.pipeline_mode<synchronous>, transform_indices = @transform_13, window_bounds = array<i64: 128, 128>}, {pipeline_mode = #tpu.pipeline_mode<synchronous>, transform_indices = @transform_14, window_bounds = array<i64: 1, 128>}, {transform_indices = @transform_15, window_bounds = array<i64: 1, 1, 128>}, {transform_indices = @transform_16, window_bounds = array<i64: 1, 1, 128>}]} {
    %0 = tpu.iota {dimensions = array<i32: 1>} : vector<9x128xi32>
    %c32_i32 = arith.constant 32 : i32
    %1 = vector.broadcast %c32_i32 : i32 to vector<9x128xi32>
    %2 = arith.cmpi slt, %0, %1 : vector<9x128xi32>
    %3 = arith.extui %2 : vector<9x128xi1> to vector<9x128xi32>
    %4 = arith.sitofp %3 : vector<9x128xi32> to vector<9x128xf32>
    %c0_i32 = arith.constant 0 : i32
    %5 = vector.broadcast %c0_i32 : i32 to vector<9x128xi32>
    %6 = arith.cmpi sge, %0, %5 : vector<9x128xi32>
    %c8_i32 = arith.constant 8 : i32
    %7 = vector.broadcast %c8_i32 : i32 to vector<9x128xi32>
    %8 = arith.cmpi slt, %0, %7 : vector<9x128xi32>
    %9 = arith.andi %6, %8 : vector<9x128xi1>
    %10 = arith.extui %9 : vector<9x128xi1> to vector<9x128xi32>
    %11 = arith.sitofp %10 : vector<9x128xi32> to vector<9x128xf32>
    %c8_i32_0 = arith.constant 8 : i32
    %12 = vector.broadcast %c8_i32_0 : i32 to vector<9x128xi32>
    %13 = arith.cmpi sge, %0, %12 : vector<9x128xi32>
    %c16_i32 = arith.constant 16 : i32
    %14 = vector.broadcast %c16_i32 : i32 to vector<9x128xi32>
    %15 = arith.cmpi slt, %0, %14 : vector<9x128xi32>
    %16 = arith.andi %13, %15 : vector<9x128xi1>
    %17 = arith.extui %16 : vector<9x128xi1> to vector<9x128xi32>
    %18 = arith.sitofp %17 : vector<9x128xi32> to vector<9x128xf32>
    %c16_i32_1 = arith.constant 16 : i32
    %19 = vector.broadcast %c16_i32_1 : i32 to vector<9x128xi32>
    %20 = arith.cmpi sge, %0, %19 : vector<9x128xi32>
    %c24_i32 = arith.constant 24 : i32
    %21 = vector.broadcast %c24_i32 : i32 to vector<9x128xi32>
    %22 = arith.cmpi slt, %0, %21 : vector<9x128xi32>
    %23 = arith.andi %20, %22 : vector<9x128xi1>
    %24 = arith.extui %23 : vector<9x128xi1> to vector<9x128xi32>
    %25 = arith.sitofp %24 : vector<9x128xi32> to vector<9x128xf32>
    %c24_i32_2 = arith.constant 24 : i32
    %26 = vector.broadcast %c24_i32_2 : i32 to vector<9x128xi32>
    %27 = arith.cmpi sge, %0, %26 : vector<9x128xi32>
    %c32_i32_3 = arith.constant 32 : i32
    %28 = vector.broadcast %c32_i32_3 : i32 to vector<9x128xi32>
    %29 = arith.cmpi slt, %0, %28 : vector<9x128xi32>
    %30 = arith.andi %27, %29 : vector<9x128xi1>
    %31 = arith.extui %30 : vector<9x128xi1> to vector<9x128xi32>
    %32 = arith.sitofp %31 : vector<9x128xi32> to vector<9x128xf32>
    %c0 = arith.constant 0 : index
    %c0_4 = arith.constant 0 : index
    %c0_5 = arith.constant 0 : index
    %33 = vector.load %arg1[%c0, %c0_4, %c0_5] : memref<1x8x128xf32, #tpu.memory_space<vmem>>, vector<1x8x128xf32>
    %34 = vector.shape_cast %33 : vector<1x8x128xf32> to vector<8x128xf32>
    %c0_6 = arith.constant 0 : index
    %c0_7 = arith.constant 0 : index
    %35 = vector.load %arg3[%c0_6, %c0_7] : memref<128x128xbf16, #tpu.memory_space<vmem>>, vector<128x128xbf16>
    %36 = arith.extf %35 : vector<128x128xbf16> to vector<128x128xf32>
    %cst = arith.constant dense<0.000000e+00> : vector<8x128xf32>
    %37 = tpu.matmul %34, %36, %cst {dimension_numbers = #tpu.dot_dimension_numbers<[1], [0], [0], [1], [0, 0, 1, 1], [], []>} : vector<8x128xf32>, vector<128x128xf32>, vector<8x128xf32> -> vector<8x128xf32>
    %c0_8 = arith.constant 0 : index
    %c0_9 = arith.constant 0 : index
    %38 = vector.load %arg4[%c0_8, %c0_9] : memref<1x128xf32, #tpu.memory_space<vmem>>, vector<1x128xf32>
    %39 = vector.broadcast %38 : vector<1x128xf32> to vector<8x128xf32>
    %40 = arith.addf %37, %39 : vector<8x128xf32>
    %c0_10 = arith.constant 0 : index
    %c0_11 = arith.constant 0 : index
    %41 = vector.load %arg5[%c0_10, %c0_11] : memref<1x128xf32, #tpu.memory_space<vmem>>, vector<1x128xf32>
    %c0_12 = arith.constant 0 : index
    %c0_13 = arith.constant 0 : index
    %42 = vector.load %arg6[%c0_12, %c0_13] : memref<9x128xf32, #tpu.memory_space<vmem>>, vector<1x128xf32>
    %43 = arith.addf %41, %42 : vector<1x128xf32>
    %c0_14 = arith.constant 0 : index
    %c0_15 = arith.constant 0 : index
    %44 = vector.load %arg18[%c0_14, %c0_15] : memref<9x128xf32, #tpu.memory_space<vmem>>, vector<1x128xf32>
    tpu.vector_store %arg18[%c0_14, %c0_15], %43 {strides = array<i32>} : memref<9x128xf32, #tpu.memory_space<vmem>>, vector<1x128xf32>,
    %c1 = arith.constant 1 : index
    %c0_16 = arith.constant 0 : index
    %45 = vector.load %arg6[%c1, %c0_16] : memref<9x128xf32, #tpu.memory_space<vmem>>, vector<8x128xf32>
    %46 = arith.addf %40, %45 : vector<8x128xf32>
    %c1_17 = arith.constant 1 : index
    %c0_18 = arith.constant 0 : index
    %47 = vector.load %arg18[%c1_17, %c0_18] : memref<9x128xf32, #tpu.memory_space<vmem>>, vector<8x128xf32>
    tpu.vector_store %arg18[%c1_17, %c0_18], %46 {strides = array<i32>} : memref<9x128xf32, #tpu.memory_space<vmem>>, vector<8x128xf32>,
    %c0_19 = arith.constant 0 : index
    %c0_20 = arith.constant 0 : index
    %48 = vector.load %arg18[%c0_19, %c0_20] : memref<9x128xf32, #tpu.memory_space<vmem>>, vector<9x128xf32>
    %c0_21 = arith.constant 0 : index
    %c0_22 = arith.constant 0 : index
    %c0_23 = arith.constant 0 : index
    %49 = vector.load %arg11[%c0_21, %c0_22, %c0_23] : memref<4x8x128xf32, #tpu.memory_space<vmem>>, vector<1x8x128xf32>
    %50 = vector.shape_cast %49 : vector<1x8x128xf32> to vector<8x128xf32>
    %51 = vector.extract_strided_slice %50 {offsets = [0, 0], sizes = [1, 128], strides = [1, 1]} : vector<8x128xf32> to vector<1x128xf32>
    %52 = vector.extract_strided_slice %50 {offsets = [1, 0], sizes = [1, 128], strides = [1, 1]} : vector<8x128xf32> to vector<1x128xf32>
    %53 = vector.extract_strided_slice %50 {offsets = [2, 0], sizes = [1, 128], strides = [1, 1]} : vector<8x128xf32> to vector<1x128xf32>
    %54 = vector.extract_strided_slice %50 {offsets = [3, 0], sizes = [1, 128], strides = [1, 1]} : vector<8x128xf32> to vector<1x128xf32>
    %55 = vector.extract_strided_slice %50 {offsets = [4, 0], sizes = [1, 128], strides = [1, 1]} : vector<8x128xf32> to vector<1x128xf32>
    %56 = vector.extract_strided_slice %50 {offsets = [5, 0], sizes = [1, 128], strides = [1, 1]} : vector<8x128xf32> to vector<1x128xf32>
    %57 = vector.extract_strided_slice %50 {offsets = [6, 0], sizes = [1, 128], strides = [1, 1]} : vector<8x128xf32> to vector<1x128xf32>
    %58 = vector.extract_strided_slice %50 {offsets = [7, 0], sizes = [1, 128], strides = [1, 1]} : vector<8x128xf32> to vector<1x128xf32>
    %c0_24 = arith.constant 0 : index
    %c0_25 = arith.constant 0 : index
    %c0_26 = arith.constant 0 : index
    %59 = vector.load %arg7[%c0_24, %c0_25, %c0_26] : memref<4x128x128xbf16, #tpu.memory_space<vmem>>, vector<1x128x128xbf16>
    %60 = vector.shape_cast %59 : vector<1x128x128xbf16> to vector<128x128xbf16>
    %61 = arith.extf %60 : vector<128x128xbf16> to vector<128x128xf32>
    %cst_27 = arith.constant dense<0.000000e+00> : vector<9x128xf32>
    %62 = tpu.matmul %48, %61, %cst_27 {dimension_numbers = #tpu.dot_dimension_numbers<[1], [0], [0], [1], [0, 0, 1, 1], [], []>} : vector<9x128xf32>, vector<128x128xf32>, vector<9x128xf32> -> vector<9x128xf32>
    %63 = vector.broadcast %51 : vector<1x128xf32> to vector<9x128xf32>
    %64 = arith.addf %62, %63 : vector<9x128xf32>
    %c96_i32 = arith.constant 96 : i32
    %65 = tpu.dynamic_rotate %64 by %c96_i32 dim 1 : vector<9x128xf32>, i32 -> vector<9x128xf32>
    %c64_i32 = arith.constant 64 : i32
    %66 = tpu.dynamic_rotate %64 by %c64_i32 dim 1 : vector<9x128xf32>, i32 -> vector<9x128xf32>
    %cst_28 = arith.constant 0.000000e+00 : f32
    %67 = vector.broadcast %cst_28 : f32 to vector<9x128xf32>
    %68 = arith.mulf %64, %11 : vector<9x128xf32>
    %cst_29 = arith.constant dense<0.000000e+00> : vector<9x9xf32>
    %69 = tpu.matmul %68, %65, %cst_29 {dimension_numbers = #tpu.dot_dimension_numbers<[1], [1], [0], [0], [0, 0, 1, 0], [], []>} : vector<9x128xf32>, vector<9x128xf32>, vector<9x9xf32> -> vector<9x9xf32>
    %cst_30 = arith.constant 0.353553385 : f32
    %70 = vector.broadcast %cst_30 : f32 to vector<9x9xf32>
    %71 = arith.mulf %69, %70 : vector<9x9xf32>
    %cst_31 = arith.constant dense<0xFF800000> : vector<9xf32>
    %72 = vector.multi_reduction <maximumf>, %71, %cst_31 [1] : vector<9x9xf32> to vector<9xf32>
    %73 = vector.shape_cast %72 : vector<9xf32> to vector<9x1xf32>
    %74 = vector.broadcast %73 : vector<9x1xf32> to vector<9x9xf32>
    %75 = arith.subf %71, %74 : vector<9x9xf32>
    %76 = math.exp %75 : vector<9x9xf32>
    %cst_32 = arith.constant dense<0.000000e+00> : vector<9xf32>
    %77 = vector.multi_reduction <add>, %76, %cst_32 [1] : vector<9x9xf32> to vector<9xf32>
    %78 = vector.shape_cast %77 : vector<9xf32> to vector<9x1xf32>
    %79 = tpu.reciprocal %78 {approx = true} : vector<9x1xf32> -> vector<9x1xf32>
    %80 = vector.broadcast %79 : vector<9x1xf32> to vector<9x9xf32>
    %81 = arith.mulf %76, %80 : vector<9x9xf32>
    %82 = arith.mulf %66, %11 : vector<9x128xf32>
    %cst_33 = arith.constant dense<0.000000e+00> : vector<9x128xf32>
    %83 = tpu.matmul %81, %82, %cst_33 {dimension_numbers = #tpu.dot_dimension_numbers<[1], [0], [0], [1], [0, 0, 1, 1], [], []>} : vector<9x9xf32>, vector<9x128xf32>, vector<9x128xf32> -> vector<9x128xf32>
    %84 = arith.addf %67, %83 : vector<9x128xf32>
    %85 = arith.mulf %64, %18 : vector<9x128xf32>
    %cst_34 = arith.constant dense<0.000000e+00> : vector<9x9xf32>
    %86 = tpu.matmul %85, %65, %cst_34 {dimension_numbers = #tpu.dot_dimension_numbers<[1], [1], [0], [0], [0, 0, 1, 0], [], []>} : vector<9x128xf32>, vector<9x128xf32>, vector<9x9xf32> -> vector<9x9xf32>
    %cst_35 = arith.constant 0.353553385 : f32
    %87 = vector.broadcast %cst_35 : f32 to vector<9x9xf32>
    %88 = arith.mulf %86, %87 : vector<9x9xf32>
    %cst_36 = arith.constant dense<0xFF800000> : vector<9xf32>
    %89 = vector.multi_reduction <maximumf>, %88, %cst_36 [1] : vector<9x9xf32> to vector<9xf32>
    %90 = vector.shape_cast %89 : vector<9xf32> to vector<9x1xf32>
    %91 = vector.broadcast %90 : vector<9x1xf32> to vector<9x9xf32>
    %92 = arith.subf %88, %91 : vector<9x9xf32>
    %93 = math.exp %92 : vector<9x9xf32>
    %cst_37 = arith.constant dense<0.000000e+00> : vector<9xf32>
    %94 = vector.multi_reduction <add>, %93, %cst_37 [1] : vector<9x9xf32> to vector<9xf32>
    %95 = vector.shape_cast %94 : vector<9xf32> to vector<9x1xf32>
    %96 = tpu.reciprocal %95 {approx = true} : vector<9x1xf32> -> vector<9x1xf32>
    %97 = vector.broadcast %96 : vector<9x1xf32> to vector<9x9xf32>
    %98 = arith.mulf %93, %97 : vector<9x9xf32>
    %99 = arith.mulf %66, %18 : vector<9x128xf32>
    %cst_38 = arith.constant dense<0.000000e+00> : vector<9x128xf32>
    %100 = tpu.matmul %98, %99, %cst_38 {dimension_numbers = #tpu.dot_dimension_numbers<[1], [0], [0], [1], [0, 0, 1, 1], [], []>} : vector<9x9xf32>, vector<9x128xf32>, vector<9x128xf32> -> vector<9x128xf32>
    %101 = arith.addf %84, %100 : vector<9x128xf32>
    %102 = arith.mulf %64, %25 : vector<9x128xf32>
    %cst_39 = arith.constant dense<0.000000e+00> : vector<9x9xf32>
    %103 = tpu.matmul %102, %65, %cst_39 {dimension_numbers = #tpu.dot_dimension_numbers<[1], [1], [0], [0], [0, 0, 1, 0], [], []>} : vector<9x128xf32>, vector<9x128xf32>, vector<9x9xf32> -> vector<9x9xf32>
    %cst_40 = arith.constant 0.353553385 : f32
    %104 = vector.broadcast %cst_40 : f32 to vector<9x9xf32>
    %105 = arith.mulf %103, %104 : vector<9x9xf32>
    %cst_41 = arith.constant dense<0xFF800000> : vector<9xf32>
    %106 = vector.multi_reduction <maximumf>, %105, %cst_41 [1] : vector<9x9xf32> to vector<9xf32>
    %107 = vector.shape_cast %106 : vector<9xf32> to vector<9x1xf32>
    %108 = vector.broadcast %107 : vector<9x1xf32> to vector<9x9xf32>
    %109 = arith.subf %105, %108 : vector<9x9xf32>
    %110 = math.exp %109 : vector<9x9xf32>
    %cst_42 = arith.constant dense<0.000000e+00> : vector<9xf32>
    %111 = vector.multi_reduction <add>, %110, %cst_42 [1] : vector<9x9xf32> to vector<9xf32>
    %112 = vector.shape_cast %111 : vector<9xf32> to vector<9x1xf32>
    %113 = tpu.reciprocal %112 {approx = true} : vector<9x1xf32> -> vector<9x1xf32>
    %114 = vector.broadcast %113 : vector<9x1xf32> to vector<9x9xf32>
    %115 = arith.mulf %110, %114 : vector<9x9xf32>
    %116 = arith.mulf %66, %25 : vector<9x128xf32>
    %cst_43 = arith.constant dense<0.000000e+00> : vector<9x128xf32>
    %117 = tpu.matmul %115, %116, %cst_43 {dimension_numbers = #tpu.dot_dimension_numbers<[1], [0], [0], [1], [0, 0, 1, 1], [], []>} : vector<9x9xf32>, vector<9x128xf32>, vector<9x128xf32> -> vector<9x128xf32>
    %118 = arith.addf %101, %117 : vector<9x128xf32>
    %119 = arith.mulf %64, %32 : vector<9x128xf32>
    %cst_44 = arith.constant dense<0.000000e+00> : vector<9x9xf32>
    %120 = tpu.matmul %119, %65, %cst_44 {dimension_numbers = #tpu.dot_dimension_numbers<[1], [1], [0], [0], [0, 0, 1, 0], [], []>} : vector<9x128xf32>, vector<9x128xf32>, vector<9x9xf32> -> vector<9x9xf32>
    %cst_45 = arith.constant 0.353553385 : f32
    %121 = vector.broadcast %cst_45 : f32 to vector<9x9xf32>
    %122 = arith.mulf %120, %121 : vector<9x9xf32>
    %cst_46 = arith.constant dense<0xFF800000> : vector<9xf32>
    %123 = vector.multi_reduction <maximumf>, %122, %cst_46 [1] : vector<9x9xf32> to vector<9xf32>
    %124 = vector.shape_cast %123 : vector<9xf32> to vector<9x1xf32>
    %125 = vector.broadcast %124 : vector<9x1xf32> to vector<9x9xf32>
    %126 = arith.subf %122, %125 : vector<9x9xf32>
    %127 = math.exp %126 : vector<9x9xf32>
    %cst_47 = arith.constant dense<0.000000e+00> : vector<9xf32>
    %128 = vector.multi_reduction <add>, %127, %cst_47 [1] : vector<9x9xf32> to vector<9xf32>
    %129 = vector.shape_cast %128 : vector<9xf32> to vector<9x1xf32>
    %130 = tpu.reciprocal %129 {approx = true} : vector<9x1xf32> -> vector<9x1xf32>
    %131 = vector.broadcast %130 : vector<9x1xf32> to vector<9x9xf32>
    %132 = arith.mulf %127, %131 : vector<9x9xf32>
    %133 = arith.mulf %66, %32 : vector<9x128xf32>
    %cst_48 = arith.constant dense<0.000000e+00> : vector<9x128xf32>
    %134 = tpu.matmul %132, %133, %cst_48 {dimension_numbers = #tpu.dot_dimension_numbers<[1], [0], [0], [1], [0, 0, 1, 1], [], []>} : vector<9x9xf32>, vector<9x128xf32>, vector<9x128xf32> -> vector<9x128xf32>
    %135 = arith.addf %118, %134 : vector<9x128xf32>
    %c0_49 = arith.constant 0 : index
    %c0_50 = arith.constant 0 : index
    %c0_51 = arith.constant 0 : index
    %136 = vector.load %arg8[%c0_49, %c0_50, %c0_51] : memref<4x128x128xbf16, #tpu.memory_space<vmem>>, vector<1x128x128xbf16>
    %137 = vector.shape_cast %136 : vector<1x128x128xbf16> to vector<128x128xbf16>
    %138 = arith.extf %137 : vector<128x128xbf16> to vector<128x128xf32>
    %cst_52 = arith.constant dense<0.000000e+00> : vector<9x128xf32>
    %139 = tpu.matmul %135, %138, %cst_52 {dimension_numbers = #tpu.dot_dimension_numbers<[1], [0], [0], [1], [0, 0, 1, 1], [], []>} : vector<9x128xf32>, vector<128x128xf32>, vector<9x128xf32> -> vector<9x128xf32>
    %140 = vector.broadcast %52 : vector<1x128xf32> to vector<9x128xf32>
    %141 = arith.addf %139, %140 : vector<9x128xf32>
    %142 = arith.addf %48, %141 : vector<9x128xf32>
    %cst_53 = arith.constant dense<0.000000e+00> : vector<9xf32>
    %143 = vector.multi_reduction <add>, %142, %cst_53 [1] : vector<9x128xf32> to vector<9xf32>
    %144 = vector.shape_cast %143 : vector<9xf32> to vector<9x1xf32>
    %cst_54 = arith.constant 3.125000e-02 : f32
    %145 = vector.broadcast %cst_54 : f32 to vector<9x1xf32>
    %146 = arith.mulf %144, %145 : vector<9x1xf32>
    %147 = vector.broadcast %146 : vector<9x1xf32> to vector<9x128xf32>
    %148 = arith.subf %142, %147 : vector<9x128xf32>
    %149 = arith.mulf %148, %4 : vector<9x128xf32>
    %150 = arith.mulf %149, %149 : vector<9x128xf32>
    %cst_55 = arith.constant dense<0.000000e+00> : vector<9xf32>
    %151 = vector.multi_reduction <add>, %150, %cst_55 [1] : vector<9x128xf32> to vector<9xf32>
    %152 = vector.shape_cast %151 : vector<9xf32> to vector<9x1xf32>
    %cst_56 = arith.constant 3.125000e-02 : f32
    %153 = vector.broadcast %cst_56 : f32 to vector<9x1xf32>
    %154 = arith.mulf %152, %153 : vector<9x1xf32>
    %cst_57 = arith.constant 9.99999974E-6 : f32
    %155 = vector.broadcast %cst_57 : f32 to vector<9x1xf32>
    %156 = arith.addf %154, %155 : vector<9x1xf32>
    %157 = math.rsqrt %156 : vector<9x1xf32>
    %158 = vector.broadcast %157 : vector<9x1xf32> to vector<9x128xf32>
    %159 = arith.mulf %149, %158 : vector<9x128xf32>
    %160 = vector.broadcast %55 : vector<1x128xf32> to vector<9x128xf32>
    %161 = arith.mulf %159, %160 : vector<9x128xf32>
    %162 = vector.broadcast %56 : vector<1x128xf32> to vector<9x128xf32>
    %163 = arith.addf %161, %162 : vector<9x128xf32>
    %c0_58 = arith.constant 0 : index
    %c0_59 = arith.constant 0 : index
    %c0_60 = arith.constant 0 : index
    %164 = vector.load %arg9[%c0_58, %c0_59, %c0_60] : memref<4x128x128xbf16, #tpu.memory_space<vmem>>, vector<1x128x128xbf16>
    %165 = vector.shape_cast %164 : vector<1x128x128xbf16> to vector<128x128xbf16>
    %166 = arith.extf %165 : vector<128x128xbf16> to vector<128x128xf32>
    %cst_61 = arith.constant dense<0.000000e+00> : vector<9x128xf32>
    %167 = tpu.matmul %163, %166, %cst_61 {dimension_numbers = #tpu.dot_dimension_numbers<[1], [0], [0], [1], [0, 0, 1, 1], [], []>} : vector<9x128xf32>, vector<128x128xf32>, vector<9x128xf32> -> vector<9x128xf32>
    %168 = vector.broadcast %53 : vector<1x128xf32> to vector<9x128xf32>
    %169 = arith.addf %167, %168 : vector<9x128xf32>
    %cst_62 = arith.constant 5.000000e-01 : f32
    %170 = vector.broadcast %cst_62 : f32 to vector<9x128xf32>
    %171 = arith.mulf %170, %169 : vector<9x128xf32>
    %cst_63 = arith.constant 4.471500e-02 : f32
    %172 = vector.broadcast %cst_63 : f32 to vector<9x128xf32>
    %173 = arith.mulf %172, %169 : vector<9x128xf32>
    %174 = arith.mulf %173, %169 : vector<9x128xf32>
    %175 = arith.mulf %174, %169 : vector<9x128xf32>
    %176 = arith.addf %169, %175 : vector<9x128xf32>
    %cst_64 = arith.constant 0.797884583 : f32
    %177 = vector.broadcast %cst_64 : f32 to vector<9x128xf32>
    %178 = arith.mulf %177, %176 : vector<9x128xf32>
    %179 = math.tanh %178 : vector<9x128xf32>
    %cst_65 = arith.constant 1.000000e+00 : f32
    %180 = vector.broadcast %cst_65 : f32 to vector<9x128xf32>
    %181 = arith.addf %180, %179 : vector<9x128xf32>
    %182 = arith.mulf %171, %181 : vector<9x128xf32>
    %c0_66 = arith.constant 0 : index
    %c0_67 = arith.constant 0 : index
    %c0_68 = arith.constant 0 : index
    %183 = vector.load %arg10[%c0_66, %c0_67, %c0_68] : memref<4x128x128xbf16, #tpu.memory_space<vmem>>, vector<1x128x128xbf16>
    %184 = vector.shape_cast %183 : vector<1x128x128xbf16> to vector<128x128xbf16>
    %185 = arith.extf %184 : vector<128x128xbf16> to vector<128x128xf32>
    %cst_69 = arith.constant dense<0.000000e+00> : vector<9x128xf32>
    %186 = tpu.matmul %182, %185, %cst_69 {dimension_numbers = #tpu.dot_dimension_numbers<[1], [0], [0], [1], [0, 0, 1, 1], [], []>} : vector<9x128xf32>, vector<128x128xf32>, vector<9x128xf32> -> vector<9x128xf32>
    %187 = vector.broadcast %54 : vector<1x128xf32> to vector<9x128xf32>
    %188 = arith.addf %186, %187 : vector<9x128xf32>
    %189 = arith.addf %163, %188 : vector<9x128xf32>
    %cst_70 = arith.constant dense<0.000000e+00> : vector<9xf32>
    %190 = vector.multi_reduction <add>, %189, %cst_70 [1] : vector<9x128xf32> to vector<9xf32>
    %191 = vector.shape_cast %190 : vector<9xf32> to vector<9x1xf32>
    %cst_71 = arith.constant 3.125000e-02 : f32
    %192 = vector.broadcast %cst_71 : f32 to vector<9x1xf32>
    %193 = arith.mulf %191, %192 : vector<9x1xf32>
    %194 = vector.broadcast %193 : vector<9x1xf32> to vector<9x128xf32>
    %195 = arith.subf %189, %194 : vector<9x128xf32>
    %196 = arith.mulf %195, %4 : vector<9x128xf32>
    %197 = arith.mulf %196, %196 : vector<9x128xf32>
    %cst_72 = arith.constant dense<0.000000e+00> : vector<9xf32>
    %198 = vector.multi_reduction <add>, %197, %cst_72 [1] : vector<9x128xf32> to vector<9xf32>
    %199 = vector.shape_cast %198 : vector<9xf32> to vector<9x1xf32>
    %cst_73 = arith.constant 3.125000e-02 : f32
    %200 = vector.broadcast %cst_73 : f32 to vector<9x1xf32>
    %201 = arith.mulf %199, %200 : vector<9x1xf32>
    %cst_74 = arith.constant 9.99999974E-6 : f32
    %202 = vector.broadcast %cst_74 : f32 to vector<9x1xf32>
    %203 = arith.addf %201, %202 : vector<9x1xf32>
    %204 = math.rsqrt %203 : vector<9x1xf32>
    %205 = vector.broadcast %204 : vector<9x1xf32> to vector<9x128xf32>
    %206 = arith.mulf %196, %205 : vector<9x128xf32>
    %207 = vector.broadcast %57 : vector<1x128xf32> to vector<9x128xf32>
    %208 = arith.mulf %206, %207 : vector<9x128xf32>
    %209 = vector.broadcast %58 : vector<1x128xf32> to vector<9x128xf32>
    %210 = arith.addf %208, %209 : vector<9x128xf32>
    %c1_75 = arith.constant 1 : index
    %c0_76 = arith.constant 0 : index
    %c0_77 = arith.constant 0 : index
    %211 = vector.load %arg11[%c1_75, %c0_76, %c0_77] : memref<4x8x128xf32, #tpu.memory_space<vmem>>, vector<1x8x128xf32>
    %212 = vector.shape_cast %211 : vector<1x8x128xf32> to vector<8x128xf32>
    %213 = vector.extract_strided_slice %212 {offsets = [0, 0], sizes = [1, 128], strides = [1, 1]} : vector<8x128xf32> to vector<1x128xf32>
    %214 = vector.extract_strided_slice %212 {offsets = [1, 0], sizes = [1, 128], strides = [1, 1]} : vector<8x128xf32> to vector<1x128xf32>
    %215 = vector.extract_strided_slice %212 {offsets = [2, 0], sizes = [1, 128], strides = [1, 1]} : vector<8x128xf32> to vector<1x128xf32>
    %216 = vector.extract_strided_slice %212 {offsets = [3, 0], sizes = [1, 128], strides = [1, 1]} : vector<8x128xf32> to vector<1x128xf32>
    %217 = vector.extract_strided_slice %212 {offsets = [4, 0], sizes = [1, 128], strides = [1, 1]} : vector<8x128xf32> to vector<1x128xf32>
    %218 = vector.extract_strided_slice %212 {offsets = [5, 0], sizes = [1, 128], strides = [1, 1]} : vector<8x128xf32> to vector<1x128xf32>
    %219 = vector.extract_strided_slice %212 {offsets = [6, 0], sizes = [1, 128], strides = [1, 1]} : vector<8x128xf32> to vector<1x128xf32>
    %220 = vector.extract_strided_slice %212 {offsets = [7, 0], sizes = [1, 128], strides = [1, 1]} : vector<8x128xf32> to vector<1x128xf32>
    %c1_78 = arith.constant 1 : index
    %c0_79 = arith.constant 0 : index
    %c0_80 = arith.constant 0 : index
    %221 = vector.load %arg7[%c1_78, %c0_79, %c0_80] : memref<4x128x128xbf16, #tpu.memory_space<vmem>>, vector<1x128x128xbf16>
    %222 = vector.shape_cast %221 : vector<1x128x128xbf16> to vector<128x128xbf16>
    %223 = arith.extf %222 : vector<128x128xbf16> to vector<128x128xf32>
    %cst_81 = arith.constant dense<0.000000e+00> : vector<9x128xf32>
    %224 = tpu.matmul %210, %223, %cst_81 {dimension_numbers = #tpu.dot_dimension_numbers<[1], [0], [0], [1], [0, 0, 1, 1], [], []>} : vector<9x128xf32>, vector<128x128xf32>, vector<9x128xf32> -> vector<9x128xf32>
    %225 = vector.broadcast %213 : vector<1x128xf32> to vector<9x128xf32>
    %226 = arith.addf %224, %225 : vector<9x128xf32>
    %c96_i32_82 = arith.constant 96 : i32
    %227 = tpu.dynamic_rotate %226 by %c96_i32_82 dim 1 : vector<9x128xf32>, i32 -> vector<9x128xf32>
    %c64_i32_83 = arith.constant 64 : i32
    %228 = tpu.dynamic_rotate %226 by %c64_i32_83 dim 1 : vector<9x128xf32>, i32 -> vector<9x128xf32>
    %cst_84 = arith.constant 0.000000e+00 : f32
    %229 = vector.broadcast %cst_84 : f32 to vector<9x128xf32>
    %230 = arith.mulf %226, %11 : vector<9x128xf32>
    %cst_85 = arith.constant dense<0.000000e+00> : vector<9x9xf32>
    %231 = tpu.matmul %230, %227, %cst_85 {dimension_numbers = #tpu.dot_dimension_numbers<[1], [1], [0], [0], [0, 0, 1, 0], [], []>} : vector<9x128xf32>, vector<9x128xf32>, vector<9x9xf32> -> vector<9x9xf32>
    %cst_86 = arith.constant 0.353553385 : f32
    %232 = vector.broadcast %cst_86 : f32 to vector<9x9xf32>
    %233 = arith.mulf %231, %232 : vector<9x9xf32>
    %cst_87 = arith.constant dense<0xFF800000> : vector<9xf32>
    %234 = vector.multi_reduction <maximumf>, %233, %cst_87 [1] : vector<9x9xf32> to vector<9xf32>
    %235 = vector.shape_cast %234 : vector<9xf32> to vector<9x1xf32>
    %236 = vector.broadcast %235 : vector<9x1xf32> to vector<9x9xf32>
    %237 = arith.subf %233, %236 : vector<9x9xf32>
    %238 = math.exp %237 : vector<9x9xf32>
    %cst_88 = arith.constant dense<0.000000e+00> : vector<9xf32>
    %239 = vector.multi_reduction <add>, %238, %cst_88 [1] : vector<9x9xf32> to vector<9xf32>
    %240 = vector.shape_cast %239 : vector<9xf32> to vector<9x1xf32>
    %241 = tpu.reciprocal %240 {approx = true} : vector<9x1xf32> -> vector<9x1xf32>
    %242 = vector.broadcast %241 : vector<9x1xf32> to vector<9x9xf32>
    %243 = arith.mulf %238, %242 : vector<9x9xf32>
    %244 = arith.mulf %228, %11 : vector<9x128xf32>
    %cst_89 = arith.constant dense<0.000000e+00> : vector<9x128xf32>
    %245 = tpu.matmul %243, %244, %cst_89 {dimension_numbers = #tpu.dot_dimension_numbers<[1], [0], [0], [1], [0, 0, 1, 1], [], []>} : vector<9x9xf32>, vector<9x128xf32>, vector<9x128xf32> -> vector<9x128xf32>
    %246 = arith.addf %229, %245 : vector<9x128xf32>
    %247 = arith.mulf %226, %18 : vector<9x128xf32>
    %cst_90 = arith.constant dense<0.000000e+00> : vector<9x9xf32>
    %248 = tpu.matmul %247, %227, %cst_90 {dimension_numbers = #tpu.dot_dimension_numbers<[1], [1], [0], [0], [0, 0, 1, 0], [], []>} : vector<9x128xf32>, vector<9x128xf32>, vector<9x9xf32> -> vector<9x9xf32>
    %cst_91 = arith.constant 0.353553385 : f32
    %249 = vector.broadcast %cst_91 : f32 to vector<9x9xf32>
    %250 = arith.mulf %248, %249 : vector<9x9xf32>
    %cst_92 = arith.constant dense<0xFF800000> : vector<9xf32>
    %251 = vector.multi_reduction <maximumf>, %250, %cst_92 [1] : vector<9x9xf32> to vector<9xf32>
    %252 = vector.shape_cast %251 : vector<9xf32> to vector<9x1xf32>
    %253 = vector.broadcast %252 : vector<9x1xf32> to vector<9x9xf32>
    %254 = arith.subf %250, %253 : vector<9x9xf32>
    %255 = math.exp %254 : vector<9x9xf32>
    %cst_93 = arith.constant dense<0.000000e+00> : vector<9xf32>
    %256 = vector.multi_reduction <add>, %255, %cst_93 [1] : vector<9x9xf32> to vector<9xf32>
    %257 = vector.shape_cast %256 : vector<9xf32> to vector<9x1xf32>
    %258 = tpu.reciprocal %257 {approx = true} : vector<9x1xf32> -> vector<9x1xf32>
    %259 = vector.broadcast %258 : vector<9x1xf32> to vector<9x9xf32>
    %260 = arith.mulf %255, %259 : vector<9x9xf32>
    %261 = arith.mulf %228, %18 : vector<9x128xf32>
    %cst_94 = arith.constant dense<0.000000e+00> : vector<9x128xf32>
    %262 = tpu.matmul %260, %261, %cst_94 {dimension_numbers = #tpu.dot_dimension_numbers<[1], [0], [0], [1], [0, 0, 1, 1], [], []>} : vector<9x9xf32>, vector<9x128xf32>, vector<9x128xf32> -> vector<9x128xf32>
    %263 = arith.addf %246, %262 : vector<9x128xf32>
    %264 = arith.mulf %226, %25 : vector<9x128xf32>
    %cst_95 = arith.constant dense<0.000000e+00> : vector<9x9xf32>
    %265 = tpu.matmul %264, %227, %cst_95 {dimension_numbers = #tpu.dot_dimension_numbers<[1], [1], [0], [0], [0, 0, 1, 0], [], []>} : vector<9x128xf32>, vector<9x128xf32>, vector<9x9xf32> -> vector<9x9xf32>
    %cst_96 = arith.constant 0.353553385 : f32
    %266 = vector.broadcast %cst_96 : f32 to vector<9x9xf32>
    %267 = arith.mulf %265, %266 : vector<9x9xf32>
    %cst_97 = arith.constant dense<0xFF800000> : vector<9xf32>
    %268 = vector.multi_reduction <maximumf>, %267, %cst_97 [1] : vector<9x9xf32> to vector<9xf32>
    %269 = vector.shape_cast %268 : vector<9xf32> to vector<9x1xf32>
    %270 = vector.broadcast %269 : vector<9x1xf32> to vector<9x9xf32>
    %271 = arith.subf %267, %270 : vector<9x9xf32>
    %272 = math.exp %271 : vector<9x9xf32>
    %cst_98 = arith.constant dense<0.000000e+00> : vector<9xf32>
    %273 = vector.multi_reduction <add>, %272, %cst_98 [1] : vector<9x9xf32> to vector<9xf32>
    %274 = vector.shape_cast %273 : vector<9xf32> to vector<9x1xf32>
    %275 = tpu.reciprocal %274 {approx = true} : vector<9x1xf32> -> vector<9x1xf32>
    %276 = vector.broadcast %275 : vector<9x1xf32> to vector<9x9xf32>
    %277 = arith.mulf %272, %276 : vector<9x9xf32>
    %278 = arith.mulf %228, %25 : vector<9x128xf32>
    %cst_99 = arith.constant dense<0.000000e+00> : vector<9x128xf32>
    %279 = tpu.matmul %277, %278, %cst_99 {dimension_numbers = #tpu.dot_dimension_numbers<[1], [0], [0], [1], [0, 0, 1, 1], [], []>} : vector<9x9xf32>, vector<9x128xf32>, vector<9x128xf32> -> vector<9x128xf32>
    %280 = arith.addf %263, %279 : vector<9x128xf32>
    %281 = arith.mulf %226, %32 : vector<9x128xf32>
    %cst_100 = arith.constant dense<0.000000e+00> : vector<9x9xf32>
    %282 = tpu.matmul %281, %227, %cst_100 {dimension_numbers = #tpu.dot_dimension_numbers<[1], [1], [0], [0], [0, 0, 1, 0], [], []>} : vector<9x128xf32>, vector<9x128xf32>, vector<9x9xf32> -> vector<9x9xf32>
    %cst_101 = arith.constant 0.353553385 : f32
    %283 = vector.broadcast %cst_101 : f32 to vector<9x9xf32>
    %284 = arith.mulf %282, %283 : vector<9x9xf32>
    %cst_102 = arith.constant dense<0xFF800000> : vector<9xf32>
    %285 = vector.multi_reduction <maximumf>, %284, %cst_102 [1] : vector<9x9xf32> to vector<9xf32>
    %286 = vector.shape_cast %285 : vector<9xf32> to vector<9x1xf32>
    %287 = vector.broadcast %286 : vector<9x1xf32> to vector<9x9xf32>
    %288 = arith.subf %284, %287 : vector<9x9xf32>
    %289 = math.exp %288 : vector<9x9xf32>
    %cst_103 = arith.constant dense<0.000000e+00> : vector<9xf32>
    %290 = vector.multi_reduction <add>, %289, %cst_103 [1] : vector<9x9xf32> to vector<9xf32>
    %291 = vector.shape_cast %290 : vector<9xf32> to vector<9x1xf32>
    %292 = tpu.reciprocal %291 {approx = true} : vector<9x1xf32> -> vector<9x1xf32>
    %293 = vector.broadcast %292 : vector<9x1xf32> to vector<9x9xf32>
    %294 = arith.mulf %289, %293 : vector<9x9xf32>
    %295 = arith.mulf %228, %32 : vector<9x128xf32>
    %cst_104 = arith.constant dense<0.000000e+00> : vector<9x128xf32>
    %296 = tpu.matmul %294, %295, %cst_104 {dimension_numbers = #tpu.dot_dimension_numbers<[1], [0], [0], [1], [0, 0, 1, 1], [], []>} : vector<9x9xf32>, vector<9x128xf32>, vector<9x128xf32> -> vector<9x128xf32>
    %297 = arith.addf %280, %296 : vector<9x128xf32>
    %c1_105 = arith.constant 1 : index
    %c0_106 = arith.constant 0 : index
    %c0_107 = arith.constant 0 : index
    %298 = vector.load %arg8[%c1_105, %c0_106, %c0_107] : memref<4x128x128xbf16, #tpu.memory_space<vmem>>, vector<1x128x128xbf16>
    %299 = vector.shape_cast %298 : vector<1x128x128xbf16> to vector<128x128xbf16>
    %300 = arith.extf %299 : vector<128x128xbf16> to vector<128x128xf32>
    %cst_108 = arith.constant dense<0.000000e+00> : vector<9x128xf32>
    %301 = tpu.matmul %297, %300, %cst_108 {dimension_numbers = #tpu.dot_dimension_numbers<[1], [0], [0], [1], [0, 0, 1, 1], [], []>} : vector<9x128xf32>, vector<128x128xf32>, vector<9x128xf32> -> vector<9x128xf32>
    %302 = vector.broadcast %214 : vector<1x128xf32> to vector<9x128xf32>
    %303 = arith.addf %301, %302 : vector<9x128xf32>
    %304 = arith.addf %210, %303 : vector<9x128xf32>
    %cst_109 = arith.constant dense<0.000000e+00> : vector<9xf32>
    %305 = vector.multi_reduction <add>, %304, %cst_109 [1] : vector<9x128xf32> to vector<9xf32>
    %306 = vector.shape_cast %305 : vector<9xf32> to vector<9x1xf32>
    %cst_110 = arith.constant 3.125000e-02 : f32
    %307 = vector.broadcast %cst_110 : f32 to vector<9x1xf32>
    %308 = arith.mulf %306, %307 : vector<9x1xf32>
    %309 = vector.broadcast %308 : vector<9x1xf32> to vector<9x128xf32>
    %310 = arith.subf %304, %309 : vector<9x128xf32>
    %311 = arith.mulf %310, %4 : vector<9x128xf32>
    %312 = arith.mulf %311, %311 : vector<9x128xf32>
    %cst_111 = arith.constant dense<0.000000e+00> : vector<9xf32>
    %313 = vector.multi_reduction <add>, %312, %cst_111 [1] : vector<9x128xf32> to vector<9xf32>
    %314 = vector.shape_cast %313 : vector<9xf32> to vector<9x1xf32>
    %cst_112 = arith.constant 3.125000e-02 : f32
    %315 = vector.broadcast %cst_112 : f32 to vector<9x1xf32>
    %316 = arith.mulf %314, %315 : vector<9x1xf32>
    %cst_113 = arith.constant 9.99999974E-6 : f32
    %317 = vector.broadcast %cst_113 : f32 to vector<9x1xf32>
    %318 = arith.addf %316, %317 : vector<9x1xf32>
    %319 = math.rsqrt %318 : vector<9x1xf32>
    %320 = vector.broadcast %319 : vector<9x1xf32> to vector<9x128xf32>
    %321 = arith.mulf %311, %320 : vector<9x128xf32>
    %322 = vector.broadcast %217 : vector<1x128xf32> to vector<9x128xf32>
    %323 = arith.mulf %321, %322 : vector<9x128xf32>
    %324 = vector.broadcast %218 : vector<1x128xf32> to vector<9x128xf32>
    %325 = arith.addf %323, %324 : vector<9x128xf32>
    %c1_114 = arith.constant 1 : index
    %c0_115 = arith.constant 0 : index
    %c0_116 = arith.constant 0 : index
    %326 = vector.load %arg9[%c1_114, %c0_115, %c0_116] : memref<4x128x128xbf16, #tpu.memory_space<vmem>>, vector<1x128x128xbf16>
    %327 = vector.shape_cast %326 : vector<1x128x128xbf16> to vector<128x128xbf16>
    %328 = arith.extf %327 : vector<128x128xbf16> to vector<128x128xf32>
    %cst_117 = arith.constant dense<0.000000e+00> : vector<9x128xf32>
    %329 = tpu.matmul %325, %328, %cst_117 {dimension_numbers = #tpu.dot_dimension_numbers<[1], [0], [0], [1], [0, 0, 1, 1], [], []>} : vector<9x128xf32>, vector<128x128xf32>, vector<9x128xf32> -> vector<9x128xf32>
    %330 = vector.broadcast %215 : vector<1x128xf32> to vector<9x128xf32>
    %331 = arith.addf %329, %330 : vector<9x128xf32>
    %cst_118 = arith.constant 5.000000e-01 : f32
    %332 = vector.broadcast %cst_118 : f32 to vector<9x128xf32>
    %333 = arith.mulf %332, %331 : vector<9x128xf32>
    %cst_119 = arith.constant 4.471500e-02 : f32
    %334 = vector.broadcast %cst_119 : f32 to vector<9x128xf32>
    %335 = arith.mulf %334, %331 : vector<9x128xf32>
    %336 = arith.mulf %335, %331 : vector<9x128xf32>
    %337 = arith.mulf %336, %331 : vector<9x128xf32>
    %338 = arith.addf %331, %337 : vector<9x128xf32>
    %cst_120 = arith.constant 0.797884583 : f32
    %339 = vector.broadcast %cst_120 : f32 to vector<9x128xf32>
    %340 = arith.mulf %339, %338 : vector<9x128xf32>
    %341 = math.tanh %340 : vector<9x128xf32>
    %cst_121 = arith.constant 1.000000e+00 : f32
    %342 = vector.broadcast %cst_121 : f32 to vector<9x128xf32>
    %343 = arith.addf %342, %341 : vector<9x128xf32>
    %344 = arith.mulf %333, %343 : vector<9x128xf32>
    %c1_122 = arith.constant 1 : index
    %c0_123 = arith.constant 0 : index
    %c0_124 = arith.constant 0 : index
    %345 = vector.load %arg10[%c1_122, %c0_123, %c0_124] : memref<4x128x128xbf16, #tpu.memory_space<vmem>>, vector<1x128x128xbf16>
    %346 = vector.shape_cast %345 : vector<1x128x128xbf16> to vector<128x128xbf16>
    %347 = arith.extf %346 : vector<128x128xbf16> to vector<128x128xf32>
    %cst_125 = arith.constant dense<0.000000e+00> : vector<9x128xf32>
    %348 = tpu.matmul %344, %347, %cst_125 {dimension_numbers = #tpu.dot_dimension_numbers<[1], [0], [0], [1], [0, 0, 1, 1], [], []>} : vector<9x128xf32>, vector<128x128xf32>, vector<9x128xf32> -> vector<9x128xf32>
    %349 = vector.broadcast %216 : vector<1x128xf32> to vector<9x128xf32>
    %350 = arith.addf %348, %349 : vector<9x128xf32>
    %351 = arith.addf %325, %350 : vector<9x128xf32>
    %cst_126 = arith.constant dense<0.000000e+00> : vector<9xf32>
    %352 = vector.multi_reduction <add>, %351, %cst_126 [1] : vector<9x128xf32> to vector<9xf32>
    %353 = vector.shape_cast %352 : vector<9xf32> to vector<9x1xf32>
    %cst_127 = arith.constant 3.125000e-02 : f32
    %354 = vector.broadcast %cst_127 : f32 to vector<9x1xf32>
    %355 = arith.mulf %353, %354 : vector<9x1xf32>
    %356 = vector.broadcast %355 : vector<9x1xf32> to vector<9x128xf32>
    %357 = arith.subf %351, %356 : vector<9x128xf32>
    %358 = arith.mulf %357, %4 : vector<9x128xf32>
    %359 = arith.mulf %358, %358 : vector<9x128xf32>
    %cst_128 = arith.constant dense<0.000000e+00> : vector<9xf32>
    %360 = vector.multi_reduction <add>, %359, %cst_128 [1] : vector<9x128xf32> to vector<9xf32>
    %361 = vector.shape_cast %360 : vector<9xf32> to vector<9x1xf32>
    %cst_129 = arith.constant 3.125000e-02 : f32
    %362 = vector.broadcast %cst_129 : f32 to vector<9x1xf32>
    %363 = arith.mulf %361, %362 : vector<9x1xf32>
    %cst_130 = arith.constant 9.99999974E-6 : f32
    %364 = vector.broadcast %cst_130 : f32 to vector<9x1xf32>
    %365 = arith.addf %363, %364 : vector<9x1xf32>
    %366 = math.rsqrt %365 : vector<9x1xf32>
    %367 = vector.broadcast %366 : vector<9x1xf32> to vector<9x128xf32>
    %368 = arith.mulf %358, %367 : vector<9x128xf32>
    %369 = vector.broadcast %219 : vector<1x128xf32> to vector<9x128xf32>
    %370 = arith.mulf %368, %369 : vector<9x128xf32>
    %371 = vector.broadcast %220 : vector<1x128xf32> to vector<9x128xf32>
    %372 = arith.addf %370, %371 : vector<9x128xf32>
    %c2 = arith.constant 2 : index
    %c0_131 = arith.constant 0 : index
    %c0_132 = arith.constant 0 : index
    %373 = vector.load %arg11[%c2, %c0_131, %c0_132] : memref<4x8x128xf32, #tpu.memory_space<vmem>>, vector<1x8x128xf32>
    %374 = vector.shape_cast %373 : vector<1x8x128xf32> to vector<8x128xf32>
    %375 = vector.extract_strided_slice %374 {offsets = [0, 0], sizes = [1, 128], strides = [1, 1]} : vector<8x128xf32> to vector<1x128xf32>
    %376 = vector.extract_strided_slice %374 {offsets = [1, 0], sizes = [1, 128], strides = [1, 1]} : vector<8x128xf32> to vector<1x128xf32>
    %377 = vector.extract_strided_slice %374 {offsets = [2, 0], sizes = [1, 128], strides = [1, 1]} : vector<8x128xf32> to vector<1x128xf32>
    %378 = vector.extract_strided_slice %374 {offsets = [3, 0], sizes = [1, 128], strides = [1, 1]} : vector<8x128xf32> to vector<1x128xf32>
    %379 = vector.extract_strided_slice %374 {offsets = [4, 0], sizes = [1, 128], strides = [1, 1]} : vector<8x128xf32> to vector<1x128xf32>
    %380 = vector.extract_strided_slice %374 {offsets = [5, 0], sizes = [1, 128], strides = [1, 1]} : vector<8x128xf32> to vector<1x128xf32>
    %381 = vector.extract_strided_slice %374 {offsets = [6, 0], sizes = [1, 128], strides = [1, 1]} : vector<8x128xf32> to vector<1x128xf32>
    %382 = vector.extract_strided_slice %374 {offsets = [7, 0], sizes = [1, 128], strides = [1, 1]} : vector<8x128xf32> to vector<1x128xf32>
    %c2_133 = arith.constant 2 : index
    %c0_134 = arith.constant 0 : index
    %c0_135 = arith.constant 0 : index
    %383 = vector.load %arg7[%c2_133, %c0_134, %c0_135] : memref<4x128x128xbf16, #tpu.memory_space<vmem>>, vector<1x128x128xbf16>
    %384 = vector.shape_cast %383 : vector<1x128x128xbf16> to vector<128x128xbf16>
    %385 = arith.extf %384 : vector<128x128xbf16> to vector<128x128xf32>
    %cst_136 = arith.constant dense<0.000000e+00> : vector<9x128xf32>
    %386 = tpu.matmul %372, %385, %cst_136 {dimension_numbers = #tpu.dot_dimension_numbers<[1], [0], [0], [1], [0, 0, 1, 1], [], []>} : vector<9x128xf32>, vector<128x128xf32>, vector<9x128xf32> -> vector<9x128xf32>
    %387 = vector.broadcast %375 : vector<1x128xf32> to vector<9x128xf32>
    %388 = arith.addf %386, %387 : vector<9x128xf32>
    %c96_i32_137 = arith.constant 96 : i32
    %389 = tpu.dynamic_rotate %388 by %c96_i32_137 dim 1 : vector<9x128xf32>, i32 -> vector<9x128xf32>
    %c64_i32_138 = arith.constant 64 : i32
    %390 = tpu.dynamic_rotate %388 by %c64_i32_138 dim 1 : vector<9x128xf32>, i32 -> vector<9x128xf32>
    %cst_139 = arith.constant 0.000000e+00 : f32
    %391 = vector.broadcast %cst_139 : f32 to vector<9x128xf32>
    %392 = arith.mulf %388, %11 : vector<9x128xf32>
    %cst_140 = arith.constant dense<0.000000e+00> : vector<9x9xf32>
    %393 = tpu.matmul %392, %389, %cst_140 {dimension_numbers = #tpu.dot_dimension_numbers<[1], [1], [0], [0], [0, 0, 1, 0], [], []>} : vector<9x128xf32>, vector<9x128xf32>, vector<9x9xf32> -> vector<9x9xf32>
    %cst_141 = arith.constant 0.353553385 : f32
    %394 = vector.broadcast %cst_141 : f32 to vector<9x9xf32>
    %395 = arith.mulf %393, %394 : vector<9x9xf32>
    %cst_142 = arith.constant dense<0xFF800000> : vector<9xf32>
    %396 = vector.multi_reduction <maximumf>, %395, %cst_142 [1] : vector<9x9xf32> to vector<9xf32>
    %397 = vector.shape_cast %396 : vector<9xf32> to vector<9x1xf32>
    %398 = vector.broadcast %397 : vector<9x1xf32> to vector<9x9xf32>
    %399 = arith.subf %395, %398 : vector<9x9xf32>
    %400 = math.exp %399 : vector<9x9xf32>
    %cst_143 = arith.constant dense<0.000000e+00> : vector<9xf32>
    %401 = vector.multi_reduction <add>, %400, %cst_143 [1] : vector<9x9xf32> to vector<9xf32>
    %402 = vector.shape_cast %401 : vector<9xf32> to vector<9x1xf32>
    %403 = tpu.reciprocal %402 {approx = true} : vector<9x1xf32> -> vector<9x1xf32>
    %404 = vector.broadcast %403 : vector<9x1xf32> to vector<9x9xf32>
    %405 = arith.mulf %400, %404 : vector<9x9xf32>
    %406 = arith.mulf %390, %11 : vector<9x128xf32>
    %cst_144 = arith.constant dense<0.000000e+00> : vector<9x128xf32>
    %407 = tpu.matmul %405, %406, %cst_144 {dimension_numbers = #tpu.dot_dimension_numbers<[1], [0], [0], [1], [0, 0, 1, 1], [], []>} : vector<9x9xf32>, vector<9x128xf32>, vector<9x128xf32> -> vector<9x128xf32>
    %408 = arith.addf %391, %407 : vector<9x128xf32>
    %409 = arith.mulf %388, %18 : vector<9x128xf32>
    %cst_145 = arith.constant dense<0.000000e+00> : vector<9x9xf32>
    %410 = tpu.matmul %409, %389, %cst_145 {dimension_numbers = #tpu.dot_dimension_numbers<[1], [1], [0], [0], [0, 0, 1, 0], [], []>} : vector<9x128xf32>, vector<9x128xf32>, vector<9x9xf32> -> vector<9x9xf32>
    %cst_146 = arith.constant 0.353553385 : f32
    %411 = vector.broadcast %cst_146 : f32 to vector<9x9xf32>
    %412 = arith.mulf %410, %411 : vector<9x9xf32>
    %cst_147 = arith.constant dense<0xFF800000> : vector<9xf32>
    %413 = vector.multi_reduction <maximumf>, %412, %cst_147 [1] : vector<9x9xf32> to vector<9xf32>
    %414 = vector.shape_cast %413 : vector<9xf32> to vector<9x1xf32>
    %415 = vector.broadcast %414 : vector<9x1xf32> to vector<9x9xf32>
    %416 = arith.subf %412, %415 : vector<9x9xf32>
    %417 = math.exp %416 : vector<9x9xf32>
    %cst_148 = arith.constant dense<0.000000e+00> : vector<9xf32>
    %418 = vector.multi_reduction <add>, %417, %cst_148 [1] : vector<9x9xf32> to vector<9xf32>
    %419 = vector.shape_cast %418 : vector<9xf32> to vector<9x1xf32>
    %420 = tpu.reciprocal %419 {approx = true} : vector<9x1xf32> -> vector<9x1xf32>
    %421 = vector.broadcast %420 : vector<9x1xf32> to vector<9x9xf32>
    %422 = arith.mulf %417, %421 : vector<9x9xf32>
    %423 = arith.mulf %390, %18 : vector<9x128xf32>
    %cst_149 = arith.constant dense<0.000000e+00> : vector<9x128xf32>
    %424 = tpu.matmul %422, %423, %cst_149 {dimension_numbers = #tpu.dot_dimension_numbers<[1], [0], [0], [1], [0, 0, 1, 1], [], []>} : vector<9x9xf32>, vector<9x128xf32>, vector<9x128xf32> -> vector<9x128xf32>
    %425 = arith.addf %408, %424 : vector<9x128xf32>
    %426 = arith.mulf %388, %25 : vector<9x128xf32>
    %cst_150 = arith.constant dense<0.000000e+00> : vector<9x9xf32>
    %427 = tpu.matmul %426, %389, %cst_150 {dimension_numbers = #tpu.dot_dimension_numbers<[1], [1], [0], [0], [0, 0, 1, 0], [], []>} : vector<9x128xf32>, vector<9x128xf32>, vector<9x9xf32> -> vector<9x9xf32>
    %cst_151 = arith.constant 0.353553385 : f32
    %428 = vector.broadcast %cst_151 : f32 to vector<9x9xf32>
    %429 = arith.mulf %427, %428 : vector<9x9xf32>
    %cst_152 = arith.constant dense<0xFF800000> : vector<9xf32>
    %430 = vector.multi_reduction <maximumf>, %429, %cst_152 [1] : vector<9x9xf32> to vector<9xf32>
    %431 = vector.shape_cast %430 : vector<9xf32> to vector<9x1xf32>
    %432 = vector.broadcast %431 : vector<9x1xf32> to vector<9x9xf32>
    %433 = arith.subf %429, %432 : vector<9x9xf32>
    %434 = math.exp %433 : vector<9x9xf32>
    %cst_153 = arith.constant dense<0.000000e+00> : vector<9xf32>
    %435 = vector.multi_reduction <add>, %434, %cst_153 [1] : vector<9x9xf32> to vector<9xf32>
    %436 = vector.shape_cast %435 : vector<9xf32> to vector<9x1xf32>
    %437 = tpu.reciprocal %436 {approx = true} : vector<9x1xf32> -> vector<9x1xf32>
    %438 = vector.broadcast %437 : vector<9x1xf32> to vector<9x9xf32>
    %439 = arith.mulf %434, %438 : vector<9x9xf32>
    %440 = arith.mulf %390, %25 : vector<9x128xf32>
    %cst_154 = arith.constant dense<0.000000e+00> : vector<9x128xf32>
    %441 = tpu.matmul %439, %440, %cst_154 {dimension_numbers = #tpu.dot_dimension_numbers<[1], [0], [0], [1], [0, 0, 1, 1], [], []>} : vector<9x9xf32>, vector<9x128xf32>, vector<9x128xf32> -> vector<9x128xf32>
    %442 = arith.addf %425, %441 : vector<9x128xf32>
    %443 = arith.mulf %388, %32 : vector<9x128xf32>
    %cst_155 = arith.constant dense<0.000000e+00> : vector<9x9xf32>
    %444 = tpu.matmul %443, %389, %cst_155 {dimension_numbers = #tpu.dot_dimension_numbers<[1], [1], [0], [0], [0, 0, 1, 0], [], []>} : vector<9x128xf32>, vector<9x128xf32>, vector<9x9xf32> -> vector<9x9xf32>
    %cst_156 = arith.constant 0.353553385 : f32
    %445 = vector.broadcast %cst_156 : f32 to vector<9x9xf32>
    %446 = arith.mulf %444, %445 : vector<9x9xf32>
    %cst_157 = arith.constant dense<0xFF800000> : vector<9xf32>
    %447 = vector.multi_reduction <maximumf>, %446, %cst_157 [1] : vector<9x9xf32> to vector<9xf32>
    %448 = vector.shape_cast %447 : vector<9xf32> to vector<9x1xf32>
    %449 = vector.broadcast %448 : vector<9x1xf32> to vector<9x9xf32>
    %450 = arith.subf %446, %449 : vector<9x9xf32>
    %451 = math.exp %450 : vector<9x9xf32>
    %cst_158 = arith.constant dense<0.000000e+00> : vector<9xf32>
    %452 = vector.multi_reduction <add>, %451, %cst_158 [1] : vector<9x9xf32> to vector<9xf32>
    %453 = vector.shape_cast %452 : vector<9xf32> to vector<9x1xf32>
    %454 = tpu.reciprocal %453 {approx = true} : vector<9x1xf32> -> vector<9x1xf32>
    %455 = vector.broadcast %454 : vector<9x1xf32> to vector<9x9xf32>
    %456 = arith.mulf %451, %455 : vector<9x9xf32>
    %457 = arith.mulf %390, %32 : vector<9x128xf32>
    %cst_159 = arith.constant dense<0.000000e+00> : vector<9x128xf32>
    %458 = tpu.matmul %456, %457, %cst_159 {dimension_numbers = #tpu.dot_dimension_numbers<[1], [0], [0], [1], [0, 0, 1, 1], [], []>} : vector<9x9xf32>, vector<9x128xf32>, vector<9x128xf32> -> vector<9x128xf32>
    %459 = arith.addf %442, %458 : vector<9x128xf32>
    %c2_160 = arith.constant 2 : index
    %c0_161 = arith.constant 0 : index
    %c0_162 = arith.constant 0 : index
    %460 = vector.load %arg8[%c2_160, %c0_161, %c0_162] : memref<4x128x128xbf16, #tpu.memory_space<vmem>>, vector<1x128x128xbf16>
    %461 = vector.shape_cast %460 : vector<1x128x128xbf16> to vector<128x128xbf16>
    %462 = arith.extf %461 : vector<128x128xbf16> to vector<128x128xf32>
    %cst_163 = arith.constant dense<0.000000e+00> : vector<9x128xf32>
    %463 = tpu.matmul %459, %462, %cst_163 {dimension_numbers = #tpu.dot_dimension_numbers<[1], [0], [0], [1], [0, 0, 1, 1], [], []>} : vector<9x128xf32>, vector<128x128xf32>, vector<9x128xf32> -> vector<9x128xf32>
    %464 = vector.broadcast %376 : vector<1x128xf32> to vector<9x128xf32>
    %465 = arith.addf %463, %464 : vector<9x128xf32>
    %466 = arith.addf %372, %465 : vector<9x128xf32>
    %cst_164 = arith.constant dense<0.000000e+00> : vector<9xf32>
    %467 = vector.multi_reduction <add>, %466, %cst_164 [1] : vector<9x128xf32> to vector<9xf32>
    %468 = vector.shape_cast %467 : vector<9xf32> to vector<9x1xf32>
    %cst_165 = arith.constant 3.125000e-02 : f32
    %469 = vector.broadcast %cst_165 : f32 to vector<9x1xf32>
    %470 = arith.mulf %468, %469 : vector<9x1xf32>
    %471 = vector.broadcast %470 : vector<9x1xf32> to vector<9x128xf32>
    %472 = arith.subf %466, %471 : vector<9x128xf32>
    %473 = arith.mulf %472, %4 : vector<9x128xf32>
    %474 = arith.mulf %473, %473 : vector<9x128xf32>
    %cst_166 = arith.constant dense<0.000000e+00> : vector<9xf32>
    %475 = vector.multi_reduction <add>, %474, %cst_166 [1] : vector<9x128xf32> to vector<9xf32>
    %476 = vector.shape_cast %475 : vector<9xf32> to vector<9x1xf32>
    %cst_167 = arith.constant 3.125000e-02 : f32
    %477 = vector.broadcast %cst_167 : f32 to vector<9x1xf32>
    %478 = arith.mulf %476, %477 : vector<9x1xf32>
    %cst_168 = arith.constant 9.99999974E-6 : f32
    %479 = vector.broadcast %cst_168 : f32 to vector<9x1xf32>
    %480 = arith.addf %478, %479 : vector<9x1xf32>
    %481 = math.rsqrt %480 : vector<9x1xf32>
    %482 = vector.broadcast %481 : vector<9x1xf32> to vector<9x128xf32>
    %483 = arith.mulf %473, %482 : vector<9x128xf32>
    %484 = vector.broadcast %379 : vector<1x128xf32> to vector<9x128xf32>
    %485 = arith.mulf %483, %484 : vector<9x128xf32>
    %486 = vector.broadcast %380 : vector<1x128xf32> to vector<9x128xf32>
    %487 = arith.addf %485, %486 : vector<9x128xf32>
    %c2_169 = arith.constant 2 : index
    %c0_170 = arith.constant 0 : index
    %c0_171 = arith.constant 0 : index
    %488 = vector.load %arg9[%c2_169, %c0_170, %c0_171] : memref<4x128x128xbf16, #tpu.memory_space<vmem>>, vector<1x128x128xbf16>
    %489 = vector.shape_cast %488 : vector<1x128x128xbf16> to vector<128x128xbf16>
    %490 = arith.extf %489 : vector<128x128xbf16> to vector<128x128xf32>
    %cst_172 = arith.constant dense<0.000000e+00> : vector<9x128xf32>
    %491 = tpu.matmul %487, %490, %cst_172 {dimension_numbers = #tpu.dot_dimension_numbers<[1], [0], [0], [1], [0, 0, 1, 1], [], []>} : vector<9x128xf32>, vector<128x128xf32>, vector<9x128xf32> -> vector<9x128xf32>
    %492 = vector.broadcast %377 : vector<1x128xf32> to vector<9x128xf32>
    %493 = arith.addf %491, %492 : vector<9x128xf32>
    %cst_173 = arith.constant 5.000000e-01 : f32
    %494 = vector.broadcast %cst_173 : f32 to vector<9x128xf32>
    %495 = arith.mulf %494, %493 : vector<9x128xf32>
    %cst_174 = arith.constant 4.471500e-02 : f32
    %496 = vector.broadcast %cst_174 : f32 to vector<9x128xf32>
    %497 = arith.mulf %496, %493 : vector<9x128xf32>
    %498 = arith.mulf %497, %493 : vector<9x128xf32>
    %499 = arith.mulf %498, %493 : vector<9x128xf32>
    %500 = arith.addf %493, %499 : vector<9x128xf32>
    %cst_175 = arith.constant 0.797884583 : f32
    %501 = vector.broadcast %cst_175 : f32 to vector<9x128xf32>
    %502 = arith.mulf %501, %500 : vector<9x128xf32>
    %503 = math.tanh %502 : vector<9x128xf32>
    %cst_176 = arith.constant 1.000000e+00 : f32
    %504 = vector.broadcast %cst_176 : f32 to vector<9x128xf32>
    %505 = arith.addf %504, %503 : vector<9x128xf32>
    %506 = arith.mulf %495, %505 : vector<9x128xf32>
    %c2_177 = arith.constant 2 : index
    %c0_178 = arith.constant 0 : index
    %c0_179 = arith.constant 0 : index
    %507 = vector.load %arg10[%c2_177, %c0_178, %c0_179] : memref<4x128x128xbf16, #tpu.memory_space<vmem>>, vector<1x128x128xbf16>
    %508 = vector.shape_cast %507 : vector<1x128x128xbf16> to vector<128x128xbf16>
    %509 = arith.extf %508 : vector<128x128xbf16> to vector<128x128xf32>
    %cst_180 = arith.constant dense<0.000000e+00> : vector<9x128xf32>
    %510 = tpu.matmul %506, %509, %cst_180 {dimension_numbers = #tpu.dot_dimension_numbers<[1], [0], [0], [1], [0, 0, 1, 1], [], []>} : vector<9x128xf32>, vector<128x128xf32>, vector<9x128xf32> -> vector<9x128xf32>
    %511 = vector.broadcast %378 : vector<1x128xf32> to vector<9x128xf32>
    %512 = arith.addf %510, %511 : vector<9x128xf32>
    %513 = arith.addf %487, %512 : vector<9x128xf32>
    %cst_181 = arith.constant dense<0.000000e+00> : vector<9xf32>
    %514 = vector.multi_reduction <add>, %513, %cst_181 [1] : vector<9x128xf32> to vector<9xf32>
    %515 = vector.shape_cast %514 : vector<9xf32> to vector<9x1xf32>
    %cst_182 = arith.constant 3.125000e-02 : f32
    %516 = vector.broadcast %cst_182 : f32 to vector<9x1xf32>
    %517 = arith.mulf %515, %516 : vector<9x1xf32>
    %518 = vector.broadcast %517 : vector<9x1xf32> to vector<9x128xf32>
    %519 = arith.subf %513, %518 : vector<9x128xf32>
    %520 = arith.mulf %519, %4 : vector<9x128xf32>
    %521 = arith.mulf %520, %520 : vector<9x128xf32>
    %cst_183 = arith.constant dense<0.000000e+00> : vector<9xf32>
    %522 = vector.multi_reduction <add>, %521, %cst_183 [1] : vector<9x128xf32> to vector<9xf32>
    %523 = vector.shape_cast %522 : vector<9xf32> to vector<9x1xf32>
    %cst_184 = arith.constant 3.125000e-02 : f32
    %524 = vector.broadcast %cst_184 : f32 to vector<9x1xf32>
    %525 = arith.mulf %523, %524 : vector<9x1xf32>
    %cst_185 = arith.constant 9.99999974E-6 : f32
    %526 = vector.broadcast %cst_185 : f32 to vector<9x1xf32>
    %527 = arith.addf %525, %526 : vector<9x1xf32>
    %528 = math.rsqrt %527 : vector<9x1xf32>
    %529 = vector.broadcast %528 : vector<9x1xf32> to vector<9x128xf32>
    %530 = arith.mulf %520, %529 : vector<9x128xf32>
    %531 = vector.broadcast %381 : vector<1x128xf32> to vector<9x128xf32>
    %532 = arith.mulf %530, %531 : vector<9x128xf32>
    %533 = vector.broadcast %382 : vector<1x128xf32> to vector<9x128xf32>
    %534 = arith.addf %532, %533 : vector<9x128xf32>
    %c3 = arith.constant 3 : index
    %c0_186 = arith.constant 0 : index
    %c0_187 = arith.constant 0 : index
    %535 = vector.load %arg11[%c3, %c0_186, %c0_187] : memref<4x8x128xf32, #tpu.memory_space<vmem>>, vector<1x8x128xf32>
    %536 = vector.shape_cast %535 : vector<1x8x128xf32> to vector<8x128xf32>
    %537 = vector.extract_strided_slice %536 {offsets = [0, 0], sizes = [1, 128], strides = [1, 1]} : vector<8x128xf32> to vector<1x128xf32>
    %538 = vector.extract_strided_slice %536 {offsets = [1, 0], sizes = [1, 128], strides = [1, 1]} : vector<8x128xf32> to vector<1x128xf32>
    %539 = vector.extract_strided_slice %536 {offsets = [2, 0], sizes = [1, 128], strides = [1, 1]} : vector<8x128xf32> to vector<1x128xf32>
    %540 = vector.extract_strided_slice %536 {offsets = [3, 0], sizes = [1, 128], strides = [1, 1]} : vector<8x128xf32> to vector<1x128xf32>
    %541 = vector.extract_strided_slice %536 {offsets = [4, 0], sizes = [1, 128], strides = [1, 1]} : vector<8x128xf32> to vector<1x128xf32>
    %542 = vector.extract_strided_slice %536 {offsets = [5, 0], sizes = [1, 128], strides = [1, 1]} : vector<8x128xf32> to vector<1x128xf32>
    %543 = vector.extract_strided_slice %536 {offsets = [6, 0], sizes = [1, 128], strides = [1, 1]} : vector<8x128xf32> to vector<1x128xf32>
    %544 = vector.extract_strided_slice %536 {offsets = [7, 0], sizes = [1, 128], strides = [1, 1]} : vector<8x128xf32> to vector<1x128xf32>
    %c3_188 = arith.constant 3 : index
    %c0_189 = arith.constant 0 : index
    %c0_190 = arith.constant 0 : index
    %545 = vector.load %arg7[%c3_188, %c0_189, %c0_190] : memref<4x128x128xbf16, #tpu.memory_space<vmem>>, vector<1x128x128xbf16>
    %546 = vector.shape_cast %545 : vector<1x128x128xbf16> to vector<128x128xbf16>
    %547 = arith.extf %546 : vector<128x128xbf16> to vector<128x128xf32>
    %cst_191 = arith.constant dense<0.000000e+00> : vector<9x128xf32>
    %548 = tpu.matmul %534, %547, %cst_191 {dimension_numbers = #tpu.dot_dimension_numbers<[1], [0], [0], [1], [0, 0, 1, 1], [], []>} : vector<9x128xf32>, vector<128x128xf32>, vector<9x128xf32> -> vector<9x128xf32>
    %549 = vector.broadcast %537 : vector<1x128xf32> to vector<9x128xf32>
    %550 = arith.addf %548, %549 : vector<9x128xf32>
    %c96_i32_192 = arith.constant 96 : i32
    %551 = tpu.dynamic_rotate %550 by %c96_i32_192 dim 1 : vector<9x128xf32>, i32 -> vector<9x128xf32>
    %c64_i32_193 = arith.constant 64 : i32
    %552 = tpu.dynamic_rotate %550 by %c64_i32_193 dim 1 : vector<9x128xf32>, i32 -> vector<9x128xf32>
    %cst_194 = arith.constant 0.000000e+00 : f32
    %553 = vector.broadcast %cst_194 : f32 to vector<9x128xf32>
    %554 = arith.mulf %550, %11 : vector<9x128xf32>
    %cst_195 = arith.constant dense<0.000000e+00> : vector<9x9xf32>
    %555 = tpu.matmul %554, %551, %cst_195 {dimension_numbers = #tpu.dot_dimension_numbers<[1], [1], [0], [0], [0, 0, 1, 0], [], []>} : vector<9x128xf32>, vector<9x128xf32>, vector<9x9xf32> -> vector<9x9xf32>
    %cst_196 = arith.constant 0.353553385 : f32
    %556 = vector.broadcast %cst_196 : f32 to vector<9x9xf32>
    %557 = arith.mulf %555, %556 : vector<9x9xf32>
    %cst_197 = arith.constant dense<0xFF800000> : vector<9xf32>
    %558 = vector.multi_reduction <maximumf>, %557, %cst_197 [1] : vector<9x9xf32> to vector<9xf32>
    %559 = vector.shape_cast %558 : vector<9xf32> to vector<9x1xf32>
    %560 = vector.broadcast %559 : vector<9x1xf32> to vector<9x9xf32>
    %561 = arith.subf %557, %560 : vector<9x9xf32>
    %562 = math.exp %561 : vector<9x9xf32>
    %cst_198 = arith.constant dense<0.000000e+00> : vector<9xf32>
    %563 = vector.multi_reduction <add>, %562, %cst_198 [1] : vector<9x9xf32> to vector<9xf32>
    %564 = vector.shape_cast %563 : vector<9xf32> to vector<9x1xf32>
    %565 = tpu.reciprocal %564 {approx = true} : vector<9x1xf32> -> vector<9x1xf32>
    %566 = vector.broadcast %565 : vector<9x1xf32> to vector<9x9xf32>
    %567 = arith.mulf %562, %566 : vector<9x9xf32>
    %568 = arith.mulf %552, %11 : vector<9x128xf32>
    %cst_199 = arith.constant dense<0.000000e+00> : vector<9x128xf32>
    %569 = tpu.matmul %567, %568, %cst_199 {dimension_numbers = #tpu.dot_dimension_numbers<[1], [0], [0], [1], [0, 0, 1, 1], [], []>} : vector<9x9xf32>, vector<9x128xf32>, vector<9x128xf32> -> vector<9x128xf32>
    %570 = arith.addf %553, %569 : vector<9x128xf32>
    %571 = arith.mulf %550, %18 : vector<9x128xf32>
    %cst_200 = arith.constant dense<0.000000e+00> : vector<9x9xf32>
    %572 = tpu.matmul %571, %551, %cst_200 {dimension_numbers = #tpu.dot_dimension_numbers<[1], [1], [0], [0], [0, 0, 1, 0], [], []>} : vector<9x128xf32>, vector<9x128xf32>, vector<9x9xf32> -> vector<9x9xf32>
    %cst_201 = arith.constant 0.353553385 : f32
    %573 = vector.broadcast %cst_201 : f32 to vector<9x9xf32>
    %574 = arith.mulf %572, %573 : vector<9x9xf32>
    %cst_202 = arith.constant dense<0xFF800000> : vector<9xf32>
    %575 = vector.multi_reduction <maximumf>, %574, %cst_202 [1] : vector<9x9xf32> to vector<9xf32>
    %576 = vector.shape_cast %575 : vector<9xf32> to vector<9x1xf32>
    %577 = vector.broadcast %576 : vector<9x1xf32> to vector<9x9xf32>
    %578 = arith.subf %574, %577 : vector<9x9xf32>
    %579 = math.exp %578 : vector<9x9xf32>
    %cst_203 = arith.constant dense<0.000000e+00> : vector<9xf32>
    %580 = vector.multi_reduction <add>, %579, %cst_203 [1] : vector<9x9xf32> to vector<9xf32>
    %581 = vector.shape_cast %580 : vector<9xf32> to vector<9x1xf32>
    %582 = tpu.reciprocal %581 {approx = true} : vector<9x1xf32> -> vector<9x1xf32>
    %583 = vector.broadcast %582 : vector<9x1xf32> to vector<9x9xf32>
    %584 = arith.mulf %579, %583 : vector<9x9xf32>
    %585 = arith.mulf %552, %18 : vector<9x128xf32>
    %cst_204 = arith.constant dense<0.000000e+00> : vector<9x128xf32>
    %586 = tpu.matmul %584, %585, %cst_204 {dimension_numbers = #tpu.dot_dimension_numbers<[1], [0], [0], [1], [0, 0, 1, 1], [], []>} : vector<9x9xf32>, vector<9x128xf32>, vector<9x128xf32> -> vector<9x128xf32>
    %587 = arith.addf %570, %586 : vector<9x128xf32>
    %588 = arith.mulf %550, %25 : vector<9x128xf32>
    %cst_205 = arith.constant dense<0.000000e+00> : vector<9x9xf32>
    %589 = tpu.matmul %588, %551, %cst_205 {dimension_numbers = #tpu.dot_dimension_numbers<[1], [1], [0], [0], [0, 0, 1, 0], [], []>} : vector<9x128xf32>, vector<9x128xf32>, vector<9x9xf32> -> vector<9x9xf32>
    %cst_206 = arith.constant 0.353553385 : f32
    %590 = vector.broadcast %cst_206 : f32 to vector<9x9xf32>
    %591 = arith.mulf %589, %590 : vector<9x9xf32>
    %cst_207 = arith.constant dense<0xFF800000> : vector<9xf32>
    %592 = vector.multi_reduction <maximumf>, %591, %cst_207 [1] : vector<9x9xf32> to vector<9xf32>
    %593 = vector.shape_cast %592 : vector<9xf32> to vector<9x1xf32>
    %594 = vector.broadcast %593 : vector<9x1xf32> to vector<9x9xf32>
    %595 = arith.subf %591, %594 : vector<9x9xf32>
    %596 = math.exp %595 : vector<9x9xf32>
    %cst_208 = arith.constant dense<0.000000e+00> : vector<9xf32>
    %597 = vector.multi_reduction <add>, %596, %cst_208 [1] : vector<9x9xf32> to vector<9xf32>
    %598 = vector.shape_cast %597 : vector<9xf32> to vector<9x1xf32>
    %599 = tpu.reciprocal %598 {approx = true} : vector<9x1xf32> -> vector<9x1xf32>
    %600 = vector.broadcast %599 : vector<9x1xf32> to vector<9x9xf32>
    %601 = arith.mulf %596, %600 : vector<9x9xf32>
    %602 = arith.mulf %552, %25 : vector<9x128xf32>
    %cst_209 = arith.constant dense<0.000000e+00> : vector<9x128xf32>
    %603 = tpu.matmul %601, %602, %cst_209 {dimension_numbers = #tpu.dot_dimension_numbers<[1], [0], [0], [1], [0, 0, 1, 1], [], []>} : vector<9x9xf32>, vector<9x128xf32>, vector<9x128xf32> -> vector<9x128xf32>
    %604 = arith.addf %587, %603 : vector<9x128xf32>
    %605 = arith.mulf %550, %32 : vector<9x128xf32>
    %cst_210 = arith.constant dense<0.000000e+00> : vector<9x9xf32>
    %606 = tpu.matmul %605, %551, %cst_210 {dimension_numbers = #tpu.dot_dimension_numbers<[1], [1], [0], [0], [0, 0, 1, 0], [], []>} : vector<9x128xf32>, vector<9x128xf32>, vector<9x9xf32> -> vector<9x9xf32>
    %cst_211 = arith.constant 0.353553385 : f32
    %607 = vector.broadcast %cst_211 : f32 to vector<9x9xf32>
    %608 = arith.mulf %606, %607 : vector<9x9xf32>
    %cst_212 = arith.constant dense<0xFF800000> : vector<9xf32>
    %609 = vector.multi_reduction <maximumf>, %608, %cst_212 [1] : vector<9x9xf32> to vector<9xf32>
    %610 = vector.shape_cast %609 : vector<9xf32> to vector<9x1xf32>
    %611 = vector.broadcast %610 : vector<9x1xf32> to vector<9x9xf32>
    %612 = arith.subf %608, %611 : vector<9x9xf32>
    %613 = math.exp %612 : vector<9x9xf32>
    %cst_213 = arith.constant dense<0.000000e+00> : vector<9xf32>
    %614 = vector.multi_reduction <add>, %613, %cst_213 [1] : vector<9x9xf32> to vector<9xf32>
    %615 = vector.shape_cast %614 : vector<9xf32> to vector<9x1xf32>
    %616 = tpu.reciprocal %615 {approx = true} : vector<9x1xf32> -> vector<9x1xf32>
    %617 = vector.broadcast %616 : vector<9x1xf32> to vector<9x9xf32>
    %618 = arith.mulf %613, %617 : vector<9x9xf32>
    %619 = arith.mulf %552, %32 : vector<9x128xf32>
    %cst_214 = arith.constant dense<0.000000e+00> : vector<9x128xf32>
    %620 = tpu.matmul %618, %619, %cst_214 {dimension_numbers = #tpu.dot_dimension_numbers<[1], [0], [0], [1], [0, 0, 1, 1], [], []>} : vector<9x9xf32>, vector<9x128xf32>, vector<9x128xf32> -> vector<9x128xf32>
    %621 = arith.addf %604, %620 : vector<9x128xf32>
    %c3_215 = arith.constant 3 : index
    %c0_216 = arith.constant 0 : index
    %c0_217 = arith.constant 0 : index
    %622 = vector.load %arg8[%c3_215, %c0_216, %c0_217] : memref<4x128x128xbf16, #tpu.memory_space<vmem>>, vector<1x128x128xbf16>
    %623 = vector.shape_cast %622 : vector<1x128x128xbf16> to vector<128x128xbf16>
    %624 = arith.extf %623 : vector<128x128xbf16> to vector<128x128xf32>
    %cst_218 = arith.constant dense<0.000000e+00> : vector<9x128xf32>
    %625 = tpu.matmul %621, %624, %cst_218 {dimension_numbers = #tpu.dot_dimension_numbers<[1], [0], [0], [1], [0, 0, 1, 1], [], []>} : vector<9x128xf32>, vector<128x128xf32>, vector<9x128xf32> -> vector<9x128xf32>
    %626 = vector.broadcast %538 : vector<1x128xf32> to vector<9x128xf32>
    %627 = arith.addf %625, %626 : vector<9x128xf32>
    %628 = arith.addf %534, %627 : vector<9x128xf32>
    %cst_219 = arith.constant dense<0.000000e+00> : vector<9xf32>
    %629 = vector.multi_reduction <add>, %628, %cst_219 [1] : vector<9x128xf32> to vector<9xf32>
    %630 = vector.shape_cast %629 : vector<9xf32> to vector<9x1xf32>
    %cst_220 = arith.constant 3.125000e-02 : f32
    %631 = vector.broadcast %cst_220 : f32 to vector<9x1xf32>
    %632 = arith.mulf %630, %631 : vector<9x1xf32>
    %633 = vector.broadcast %632 : vector<9x1xf32> to vector<9x128xf32>
    %634 = arith.subf %628, %633 : vector<9x128xf32>
    %635 = arith.mulf %634, %4 : vector<9x128xf32>
    %636 = arith.mulf %635, %635 : vector<9x128xf32>
    %cst_221 = arith.constant dense<0.000000e+00> : vector<9xf32>
    %637 = vector.multi_reduction <add>, %636, %cst_221 [1] : vector<9x128xf32> to vector<9xf32>
    %638 = vector.shape_cast %637 : vector<9xf32> to vector<9x1xf32>
    %cst_222 = arith.constant 3.125000e-02 : f32
    %639 = vector.broadcast %cst_222 : f32 to vector<9x1xf32>
    %640 = arith.mulf %638, %639 : vector<9x1xf32>
    %cst_223 = arith.constant 9.99999974E-6 : f32
    %641 = vector.broadcast %cst_223 : f32 to vector<9x1xf32>
    %642 = arith.addf %640, %641 : vector<9x1xf32>
    %643 = math.rsqrt %642 : vector<9x1xf32>
    %644 = vector.broadcast %643 : vector<9x1xf32> to vector<9x128xf32>
    %645 = arith.mulf %635, %644 : vector<9x128xf32>
    %646 = vector.broadcast %541 : vector<1x128xf32> to vector<9x128xf32>
    %647 = arith.mulf %645, %646 : vector<9x128xf32>
    %648 = vector.broadcast %542 : vector<1x128xf32> to vector<9x128xf32>
    %649 = arith.addf %647, %648 : vector<9x128xf32>
    %c3_224 = arith.constant 3 : index
    %c0_225 = arith.constant 0 : index
    %c0_226 = arith.constant 0 : index
    %650 = vector.load %arg9[%c3_224, %c0_225, %c0_226] : memref<4x128x128xbf16, #tpu.memory_space<vmem>>, vector<1x128x128xbf16>
    %651 = vector.shape_cast %650 : vector<1x128x128xbf16> to vector<128x128xbf16>
    %652 = arith.extf %651 : vector<128x128xbf16> to vector<128x128xf32>
    %cst_227 = arith.constant dense<0.000000e+00> : vector<9x128xf32>
    %653 = tpu.matmul %649, %652, %cst_227 {dimension_numbers = #tpu.dot_dimension_numbers<[1], [0], [0], [1], [0, 0, 1, 1], [], []>} : vector<9x128xf32>, vector<128x128xf32>, vector<9x128xf32> -> vector<9x128xf32>
    %654 = vector.broadcast %539 : vector<1x128xf32> to vector<9x128xf32>
    %655 = arith.addf %653, %654 : vector<9x128xf32>
    %cst_228 = arith.constant 5.000000e-01 : f32
    %656 = vector.broadcast %cst_228 : f32 to vector<9x128xf32>
    %657 = arith.mulf %656, %655 : vector<9x128xf32>
    %cst_229 = arith.constant 4.471500e-02 : f32
    %658 = vector.broadcast %cst_229 : f32 to vector<9x128xf32>
    %659 = arith.mulf %658, %655 : vector<9x128xf32>
    %660 = arith.mulf %659, %655 : vector<9x128xf32>
    %661 = arith.mulf %660, %655 : vector<9x128xf32>
    %662 = arith.addf %655, %661 : vector<9x128xf32>
    %cst_230 = arith.constant 0.797884583 : f32
    %663 = vector.broadcast %cst_230 : f32 to vector<9x128xf32>
    %664 = arith.mulf %663, %662 : vector<9x128xf32>
    %665 = math.tanh %664 : vector<9x128xf32>
    %cst_231 = arith.constant 1.000000e+00 : f32
    %666 = vector.broadcast %cst_231 : f32 to vector<9x128xf32>
    %667 = arith.addf %666, %665 : vector<9x128xf32>
    %668 = arith.mulf %657, %667 : vector<9x128xf32>
    %c3_232 = arith.constant 3 : index
    %c0_233 = arith.constant 0 : index
    %c0_234 = arith.constant 0 : index
    %669 = vector.load %arg10[%c3_232, %c0_233, %c0_234] : memref<4x128x128xbf16, #tpu.memory_space<vmem>>, vector<1x128x128xbf16>
    %670 = vector.shape_cast %669 : vector<1x128x128xbf16> to vector<128x128xbf16>
    %671 = arith.extf %670 : vector<128x128xbf16> to vector<128x128xf32>
    %cst_235 = arith.constant dense<0.000000e+00> : vector<9x128xf32>
    %672 = tpu.matmul %668, %671, %cst_235 {dimension_numbers = #tpu.dot_dimension_numbers<[1], [0], [0], [1], [0, 0, 1, 1], [], []>} : vector<9x128xf32>, vector<128x128xf32>, vector<9x128xf32> -> vector<9x128xf32>
    %673 = vector.broadcast %540 : vector<1x128xf32> to vector<9x128xf32>
    %674 = arith.addf %672, %673 : vector<9x128xf32>
    %675 = arith.addf %649, %674 : vector<9x128xf32>
    %cst_236 = arith.constant dense<0.000000e+00> : vector<9xf32>
    %676 = vector.multi_reduction <add>, %675, %cst_236 [1] : vector<9x128xf32> to vector<9xf32>
    %677 = vector.shape_cast %676 : vector<9xf32> to vector<9x1xf32>
    %cst_237 = arith.constant 3.125000e-02 : f32
    %678 = vector.broadcast %cst_237 : f32 to vector<9x1xf32>
    %679 = arith.mulf %677, %678 : vector<9x1xf32>
    %680 = vector.broadcast %679 : vector<9x1xf32> to vector<9x128xf32>
    %681 = arith.subf %675, %680 : vector<9x128xf32>
    %682 = arith.mulf %681, %4 : vector<9x128xf32>
    %683 = arith.mulf %682, %682 : vector<9x128xf32>
    %cst_238 = arith.constant dense<0.000000e+00> : vector<9xf32>
    %684 = vector.multi_reduction <add>, %683, %cst_238 [1] : vector<9x128xf32> to vector<9xf32>
    %685 = vector.shape_cast %684 : vector<9xf32> to vector<9x1xf32>
    %cst_239 = arith.constant 3.125000e-02 : f32
    %686 = vector.broadcast %cst_239 : f32 to vector<9x1xf32>
    %687 = arith.mulf %685, %686 : vector<9x1xf32>
    %cst_240 = arith.constant 9.99999974E-6 : f32
    %688 = vector.broadcast %cst_240 : f32 to vector<9x1xf32>
    %689 = arith.addf %687, %688 : vector<9x1xf32>
    %690 = math.rsqrt %689 : vector<9x1xf32>
    %691 = vector.broadcast %690 : vector<9x1xf32> to vector<9x128xf32>
    %692 = arith.mulf %682, %691 : vector<9x128xf32>
    %693 = vector.broadcast %543 : vector<1x128xf32> to vector<9x128xf32>
    %694 = arith.mulf %692, %693 : vector<9x128xf32>
    %695 = vector.broadcast %544 : vector<1x128xf32> to vector<9x128xf32>
    %696 = arith.addf %694, %695 : vector<9x128xf32>
    %697 = vector.extract_strided_slice %696 {offsets = [0, 0], sizes = [1, 128], strides = [1, 1]} : vector<9x128xf32> to vector<1x128xf32>
    %c0_241 = arith.constant 0 : index
    %c0_242 = arith.constant 0 : index
    %698 = vector.load %arg12[%c0_241, %c0_242] : memref<128x128xbf16, #tpu.memory_space<vmem>>, vector<128x128xbf16>
    %699 = arith.extf %698 : vector<128x128xbf16> to vector<128x128xf32>
    %cst_243 = arith.constant dense<0.000000e+00> : vector<1x128xf32>
    %700 = tpu.matmul %697, %699, %cst_243 {dimension_numbers = #tpu.dot_dimension_numbers<[1], [0], [0], [1], [0, 0, 1, 1], [], []>} : vector<1x128xf32>, vector<128x128xf32>, vector<1x128xf32> -> vector<1x128xf32>
    %c0_244 = arith.constant 0 : index
    %c0_245 = arith.constant 0 : index
    %701 = vector.load %arg13[%c0_244, %c0_245] : memref<1x128xf32, #tpu.memory_space<vmem>>, vector<1x128xf32>
    %702 = arith.addf %700, %701 : vector<1x128xf32>
    %c0_246 = arith.constant 0 : index
    %c0_247 = arith.constant 0 : index
    %c0_248 = arith.constant 0 : index
    %703 = vector.load %arg2[%c0_246, %c0_247, %c0_248] : memref<1x1x128xf32, #tpu.memory_space<vmem>>, vector<1x1x128xf32>
    %704 = vector.shape_cast %703 : vector<1x1x128xf32> to vector<1x128xf32>
    %c0_249 = arith.constant 0 : index
    %c0_250 = arith.constant 0 : index
    %705 = vector.load %arg14[%c0_249, %c0_250] : memref<128x128xbf16, #tpu.memory_space<vmem>>, vector<128x128xbf16>
    %706 = arith.extf %705 : vector<128x128xbf16> to vector<128x128xf32>
    %cst_251 = arith.constant dense<0.000000e+00> : vector<1x128xf32>
    %707 = tpu.matmul %704, %706, %cst_251 {dimension_numbers = #tpu.dot_dimension_numbers<[1], [0], [0], [1], [0, 0, 1, 1], [], []>} : vector<1x128xf32>, vector<128x128xf32>, vector<1x128xf32> -> vector<1x128xf32>
    %c0_252 = arith.constant 0 : index
    %c0_253 = arith.constant 0 : index
    %708 = vector.load %arg15[%c0_252, %c0_253] : memref<1x128xf32, #tpu.memory_space<vmem>>, vector<1x128xf32>
    %709 = arith.addf %707, %708 : vector<1x128xf32>
    %710 = arith.mulf %702, %702 : vector<1x128xf32>
    %cst_254 = arith.constant dense<0.000000e+00> : vector<1xf32>
    %711 = vector.multi_reduction <add>, %710, %cst_254 [1] : vector<1x128xf32> to vector<1xf32>
    %712 = vector.shape_cast %711 : vector<1xf32> to vector<1x1xf32>
    %cst_255 = arith.constant 1.000000e-24 : f32
    %713 = vector.broadcast %cst_255 : f32 to vector<1x1xf32>
    %714 = arith.maximumf %712, %713 : vector<1x1xf32>
    %715 = math.rsqrt %714 : vector<1x1xf32>
    %716 = vector.broadcast %715 : vector<1x1xf32> to vector<1x128xf32>
    %717 = arith.mulf %702, %716 : vector<1x128xf32>
    %c0_256 = arith.constant 0 : index
    %c0_257 = arith.constant 0 : index
    %c0_258 = arith.constant 0 : index
    %718 = vector.load %arg16[%c0_256, %c0_257, %c0_258] : memref<1x1x128xf32, #tpu.memory_space<vmem>>, vector<1x1x128xf32>
    %719 = vector.shape_cast %718 : vector<1x1x128xf32> to vector<1x128xf32>
    %720 = vector.shape_cast %717 : vector<1x128xf32> to vector<1x1x128xf32>
    tpu.vector_store %arg16[%c0_256, %c0_257, %c0_258], %720 {strides = array<i32>} : memref<1x1x128xf32, #tpu.memory_space<vmem>>, vector<1x1x128xf32>,
    %721 = arith.mulf %709, %709 : vector<1x128xf32>
    %cst_259 = arith.constant dense<0.000000e+00> : vector<1xf32>
    %722 = vector.multi_reduction <add>, %721, %cst_259 [1] : vector<1x128xf32> to vector<1xf32>
    %723 = vector.shape_cast %722 : vector<1xf32> to vector<1x1xf32>
    %cst_260 = arith.constant 1.000000e-24 : f32
    %724 = vector.broadcast %cst_260 : f32 to vector<1x1xf32>
    %725 = arith.maximumf %723, %724 : vector<1x1xf32>
    %726 = math.rsqrt %725 : vector<1x1xf32>
    %727 = vector.broadcast %726 : vector<1x1xf32> to vector<1x128xf32>
    %728 = arith.mulf %709, %727 : vector<1x128xf32>
    %c0_261 = arith.constant 0 : index
    %c0_262 = arith.constant 0 : index
    %c0_263 = arith.constant 0 : index
    %729 = vector.load %arg17[%c0_261, %c0_262, %c0_263] : memref<1x1x128xf32, #tpu.memory_space<vmem>>, vector<1x1x128xf32>
    %730 = vector.shape_cast %729 : vector<1x1x128xf32> to vector<1x128xf32>
    %731 = vector.shape_cast %728 : vector<1x128xf32> to vector<1x1x128xf32>
    tpu.vector_store %arg17[%c0_261, %c0_262, %c0_263], %731 {strides = array<i32>} : memref<1x1x128xf32, #tpu.memory_space<vmem>>, vector<1x1x128xf32>,
    return
  }
  func.func @transform_0(%arg0: i32) -> (i32, i32, i32) {
    %c0_i32 = arith.constant 0 : i32
    %c0_i32_0 = arith.constant 0 : i32
    %c0_i32_1 = arith.constant 0 : i32
    return %arg0, %c0_i32, %c0_i32_0 : i32, i32, i32
  }
  func.func @transform_1(%arg0: i32) -> (i32, i32, i32) {
    %c0_i32 = arith.constant 0 : i32
    %c0_i32_0 = arith.constant 0 : i32
    %c0_i32_1 = arith.constant 0 : i32
    return %arg0, %c0_i32, %c0_i32_0 : i32, i32, i32
  }
  func.func @transform_2(%arg0: i32) -> (i32, i32) {
    %c0_i32 = arith.constant 0 : i32
    %c0_i32_0 = arith.constant 0 : i32
    %c0_i32_1 = arith.constant 0 : i32
    return %c0_i32, %c0_i32_0 : i32, i32
  }
  func.func @transform_3(%arg0: i32) -> (i32, i32) {
    %c0_i32 = arith.constant 0 : i32
    %c0_i32_0 = arith.constant 0 : i32
    %c0_i32_1 = arith.constant 0 : i32
    return %c0_i32, %c0_i32_0 : i32, i32
  }
  func.func @transform_4(%arg0: i32) -> (i32, i32) {
    %c0_i32 = arith.constant 0 : i32
    %c0_i32_0 = arith.constant 0 : i32
    %c0_i32_1 = arith.constant 0 : i32
    return %c0_i32, %c0_i32_0 : i32, i32
  }
  func.func @transform_5(%arg0: i32) -> (i32, i32) {
    %c0_i32 = arith.constant 0 : i32
    %c0_i32_0 = arith.constant 0 : i32
    %c0_i32_1 = arith.constant 0 : i32
    return %c0_i32, %c0_i32_0 : i32, i32
  }
  func.func @transform_6(%arg0: i32) -> (i32, i32, i32) {
    %c0_i32 = arith.constant 0 : i32
    %c0_i32_0 = arith.constant 0 : i32
    %c0_i32_1 = arith.constant 0 : i32
    %c0_i32_2 = arith.constant 0 : i32
    return %c0_i32, %c0_i32_0, %c0_i32_1 : i32, i32, i32
  }
  func.func @transform_7(%arg0: i32) -> (i32, i32, i32) {
    %c0_i32 = arith.constant 0 : i32
    %c0_i32_0 = arith.constant 0 : i32
    %c0_i32_1 = arith.constant 0 : i32
    %c0_i32_2 = arith.constant 0 : i32
    return %c0_i32, %c0_i32_0, %c0_i32_1 : i32, i32, i32
  }
  func.func @transform_8(%arg0: i32) -> (i32, i32, i32) {
    %c0_i32 = arith.constant 0 : i32
    %c0_i32_0 = arith.constant 0 : i32
    %c0_i32_1 = arith.constant 0 : i32
    %c0_i32_2 = arith.constant 0 : i32
    return %c0_i32, %c0_i32_0, %c0_i32_1 : i32, i32, i32
  }
  func.func @transform_9(%arg0: i32) -> (i32, i32, i32) {
    %c0_i32 = arith.constant 0 : i32
    %c0_i32_0 = arith.constant 0 : i32
    %c0_i32_1 = arith.constant 0 : i32
    %c0_i32_2 = arith.constant 0 : i32
    return %c0_i32, %c0_i32_0, %c0_i32_1 : i32, i32, i32
  }
  func.func @transform_10(%arg0: i32) -> (i32, i32, i32) {
    %c0_i32 = arith.constant 0 : i32
    %c0_i32_0 = arith.constant 0 : i32
    %c0_i32_1 = arith.constant 0 : i32
    %c0_i32_2 = arith.constant 0 : i32
    return %c0_i32, %c0_i32_0, %c0_i32_1 : i32, i32, i32
  }
  func.func @transform_11(%arg0: i32) -> (i32, i32) {
    %c0_i32 = arith.constant 0 : i32
    %c0_i32_0 = arith.constant 0 : i32
    %c0_i32_1 = arith.constant 0 : i32
    return %c0_i32, %c0_i32_0 : i32, i32
  }
  func.func @transform_12(%arg0: i32) -> (i32, i32) {
    %c0_i32 = arith.constant 0 : i32
    %c0_i32_0 = arith.constant 0 : i32
    %c0_i32_1 = arith.constant 0 : i32
    return %c0_i32, %c0_i32_0 : i32, i32
  }
  func.func @transform_13(%arg0: i32) -> (i32, i32) {
    %c0_i32 = arith.constant 0 : i32
    %c0_i32_0 = arith.constant 0 : i32
    %c0_i32_1 = arith.constant 0 : i32
    return %c0_i32, %c0_i32_0 : i32, i32
  }
  func.func @transform_14(%arg0: i32) -> (i32, i32) {
    %c0_i32 = arith.constant 0 : i32
    %c0_i32_0 = arith.constant 0 : i32
    %c0_i32_1 = arith.constant 0 : i32
    return %c0_i32, %c0_i32_0 : i32, i32
  }
  func.func @transform_15(%arg0: i32) -> (i32, i32, i32) {
    %c0_i32 = arith.constant 0 : i32
    %c0_i32_0 = arith.constant 0 : i32
    %c0_i32_1 = arith.constant 0 : i32
    return %arg0, %c0_i32, %c0_i32_0 : i32, i32, i32
  }
  func.func @transform_16(%arg0: i32) -> (i32, i32, i32) {
    %c0_i32 = arith.constant 0 : i32
    %c0_i32_0 = arith.constant 0 : i32
    %c0_i32_1 = arith.constant 0 : i32
    return %arg0, %c0_i32, %c0_i32_0 : i32, i32, i32
  }
}

</mosaic_0001>

<llo_original>
// kernel: spectrum_text_clip_forward.1
$region0: #{spectrum_text_clip_forward.1}
  #allocation0 [shape = 'u32[]', space=smem, size = 0x4, offset = 0x4, fixed_abs, tag = 'smem constant byte address 0x4 - core index']
  #allocation1 [shape = 'u32[144,128]{1,0:T(1,128)}', space=vmem, size = 0x12000, scoped, tag = 'internal scratch']
  #allocation2 [shape = 'f32[9,128]{1,0:T(8,128)}', space=vmem, size = 0x2000, scoped, tag = 'scratch operand']
  %s0 = inlined_call_operand.vmem [shape: f32[2,8,128], index: 0, kind: input, shape index: {}]
  %s1 = inlined_call_operand.vmem [shape: f32[2,1,128], index: 1, kind: input, shape index: {}]
  %s2 = inlined_call_operand.vmem [shape: bf16[128,128], index: 2, kind: input, shape index: {}]
  %s3 = inlined_call_operand.vmem [shape: f32[1,128], index: 3, kind: input, shape index: {}]
  %s4 = inlined_call_operand.vmem [shape: f32[1,128], index: 4, kind: input, shape index: {}]
  %s5 = inlined_call_operand.hbm [shape: f32[9,128], index: 5, kind: input, shape index: {}]
  %s6 = inlined_call_operand.hbm [shape: bf16[4,128,128], index: 6, kind: input, shape index: {}]
  %s7 = inlined_call_operand.hbm [shape: bf16[4,128,128], index: 7, kind: input, shape index: {}]
  %s8 = inlined_call_operand.hbm [shape: bf16[4,128,128], index: 8, kind: input, shape index: {}]
  %s9 = inlined_call_operand.hbm [shape: bf16[4,128,128], index: 9, kind: input, shape index: {}]
  %s10 = inlined_call_operand.hbm [shape: f32[4,8,128], index: 10, kind: input, shape index: {}]
  %s11 = inlined_call_operand.hbm [shape: bf16[128,128], index: 11, kind: input, shape index: {}]
  %s12 = inlined_call_operand.vmem [shape: f32[1,128], index: 12, kind: input, shape index: {}]
  %s13 = inlined_call_operand.hbm [shape: bf16[128,128], index: 13, kind: input, shape index: {}]
  %s14 = inlined_call_operand.vmem [shape: f32[1,128], index: 14, kind: input, shape index: {}]
  %s15 = inlined_call_operand.hbm [shape: f32[2,1,128], index: 15, kind: output, shape index: {0}]
  %s16 = inlined_call_operand.hbm [shape: f32[2,1,128], index: 16, kind: output, shape index: {1}]
  %17 = xla_tuple %s15, %s16
  %s18 = sld [smem:[#allocation0]]
  $region133: #{spectrum_text_clip_forward.1} parent=0
    _
  %s20 = ssub.s32 1, %s18
  %s21 = scalar_select 0, %s20, %s18
  $region1: #{spectrum_text_clip_forward.1} parent=0
    #allocation3 [shape = 'u8[8192]{0}', space=vmem, size = 0x2000, scoped, tag = 'input window, operand 5, single buffered']
    #allocation4 [shape = 's32[2]{0}', space=sflag, size = 0x8, scoped, tag = 'scoped memory for spectrum_text_clip_forward.1']
    #allocation5 [shape = 's32[2]{0}', space=sflag, size = 0x8, scoped, tag = 'scoped memory for spectrum_text_clip_forward.1']
    #allocation6 [shape = 'u8[131072]{0}', space=vmem, size = 0x20000, scoped, tag = 'input window, operand 6, single buffered']
    #allocation7 [shape = 's32[1]{0}', space=sflag, size = 0x4, scoped, tag = 'scoped memory for spectrum_text_clip_forward.1']
    #allocation8 [shape = 'u8[131072]{0}', space=vmem, size = 0x20000, scoped, tag = 'input window, operand 7, single buffered']
    #allocation9 [shape = 'u8[131072]{0}', space=vmem, size = 0x20000, scoped, tag = 'input window, operand 8, single buffered']
    #allocation10 [shape = 's32[1]{0}', space=sflag, size = 0x4, scoped, tag = 'scoped memory for spectrum_text_clip_forward.1']
    #allocation11 [shape = 'u8[131072]{0}', space=vmem, size = 0x20000, scoped, tag = 'input window, operand 9, single buffered']
    #allocation12 [shape = 'u8[16384]{0}', space=vmem, size = 0x4000, scoped, tag = 'input window, operand 10, single buffered']
    #allocation13 [shape = 's32[1]{0}', space=sflag, size = 0x4, scoped, tag = 'scoped memory for spectrum_text_clip_forward.1']
    #allocation14 [shape = 'u8[32768]{0}', space=vmem, size = 0x8000, scoped, tag = 'input window, operand 11, single buffered']
    #allocation15 [shape = 'u8[32768]{0}', space=vmem, size = 0x8000, scoped, tag = 'input window, operand 13, single buffered']
    #allocation16 [shape = 's32[1]{0}', space=sflag, size = 0x4, scoped, tag = 'scoped memory for spectrum_text_clip_forward.1']
    #allocation17 [shape = 'u8[1024]{0}', space=vmem, size = 0x400, scoped, tag = 'output window, operand 0']
    #allocation18 [shape = 'u8[1024]{0}', space=vmem, size = 0x400, scoped, tag = 'output window, operand 1']
    #allocation19 [shape = 's32[2]{0}', space=sflag, size = 0x8, scoped, tag = 'scoped memory for spectrum_text_clip_forward.1']
    %22 = vsyncpa [#allocation4], 0
    %23 = vsyncpa [#allocation7], 0
    %24 = vsyncpa [#allocation10], 0
    %25 = vsyncpa [#allocation13], 0
    %26 = vsyncpa [#allocation16], 0
    %27 = vsyncpa [#allocation5], 0
    %s28 = scalar_lea.sflag [#allocation5], 1
    %29 = vsyncpa %s28, 0
    %30 = vsyncpa [#allocation19], 0
    %s31 = scalar_lea.sflag [#allocation19], 1
    %32 = vsyncpa %s31, 0
    loop: start=0, step=1, limit=4
    $region2: #{spectrum_text_clip_forward.1} parent=1 // loop_pre_header
      _
    $region3: #{spectrum_text_clip_forward.1} parent=1 // loop_header
      %s34 = sphi 0, %s38
      %p35 = scmp.ge.s32.totalorder %s34, 4
      %s44 = sphi 0, %s46
      %s47 = sphi 0, %s44
      %s48 = sphi 0, %s47
      %s64 = sphi 0, %s48
      %s70 = sphi 0, %s72
      %s73 = sphi 0, %s70
      %s74 = sphi 0, %s73
      %s90 = sphi 0, %s74
      %s94 = sphi 0, %s94
      %s96 = sphi 0, %s94
      %s97 = sphi 0, %s96
      %s111 = sphi 0, %s97
      %s115 = sphi 0, %s115
      %s117 = sphi 0, %s115
      %s118 = sphi 0, %s117
      %s132 = sphi 0, %s118
      %s136 = sphi 0, %s136
      %s138 = sphi 0, %s136
      %s139 = sphi 0, %s138
      %s153 = sphi 0, %s139
      %s157 = sphi 0, %s157
      %s159 = sphi 0, %s157
      %s160 = sphi 0, %s159
      %s174 = sphi 0, %s160
      %s178 = sphi 0, %s178
      %s180 = sphi 0, %s178
      %s181 = sphi 0, %s180
      %s195 = sphi 0, %s181
      %s199 = sphi 0, %s199
      %s201 = sphi 0, %s199
      %s202 = sphi 0, %s201
      %s216 = sphi 0, %s202
      %s220 = sphi 0, %s220
      %s222 = sphi 0, %s220
      %s223 = sphi 0, %s222
      %s237 = sphi 0, %s223
      %s241 = sphi 0, %s241
      %s243 = sphi 0, %s241
      %s244 = sphi 0, %s243
      %s258 = sphi 0, %s244
      %s262 = sphi 0, %s262
      %s264 = sphi 0, %s262
      %s265 = sphi 0, %s264
      %s279 = sphi 0, %s265
      %s283 = sphi 0, %s283
      %s285 = sphi 0, %s283
      %s286 = sphi 0, %s285
      %s300 = sphi 0, %s286
      %s304 = sphi 0, %s304
      %s306 = sphi 0, %s304
      %s307 = sphi 0, %s306
      %s321 = sphi 0, %s307
      %s325 = sphi 0, %s325
      %s327 = sphi 0, %s325
      %s328 = sphi 0, %s327
      %s342 = sphi 0, %s328
      %s346 = sphi 0, %s346
      %s348 = sphi 0, %s346
      %s349 = sphi 0, %s348
      %s363 = sphi 0, %s349
      %s369 = sphi 0, %s371
      %s372 = sphi 0, %s369
      %s373 = sphi 0, %s372
      %s389 = sphi 0, %s373
      %s395 = sphi 0, %s397
      %s398 = sphi 0, %s395
      %s399 = sphi 0, %s398
      %s415 = sphi 0, %s399
    $region4: #{spectrum_text_clip_forward.1} parent=1 // loop_header_branch
      %37 = sbr.rel (%p35) target = $region8
    $region5: #{spectrum_text_clip_forward.1} parent=1 // loop_body
      %s39 = ssub.s32 %s34, 1
      %s40 = ssub.s32 %s34, 2
      %s41 = sadd.s32 %s34, 1
      %s42 = ssub.s32 %s34, %s41
      %p43 = scmp.eq.s32.totalorder %s42, 0
      %s45 = sadd.s32 %s44, 1
      %s46 = scalar_select %p43, %s44, %s45
      %p49 = pneg %p43
      %p50 = scmp.eq.s32.totalorder %s34, 1
      %p51 = por %p49, %p50
      %p52 = scmp.ne.s32.totalorder %s44, %s47
      %p53 = scmp.eq.s32.totalorder %s34, 0
      %p54 = por %p52, %p53
      %p55 = scmp.ne.s32.totalorder %s44, %s47
      %p56 = scmp.eq.s32.totalorder %s39, 1
      %p57 = por %p55, %p56
      %p58 = scmp.ne.s32.totalorder %s47, %s48
      %p59 = scmp.eq.s32.totalorder %s39, 0
      %p60 = por %p58, %p59
      %p61 = scmp.ne.s32.totalorder %s47, %s48
      %p62 = scmp.eq.s32.totalorder %s40, 1
      %p63 = por %p61, %p62
      %p65 = scmp.ne.s32.totalorder %s48, %s64
      %p66 = scmp.eq.s32.totalorder %s40, 0
      %p67 = por %p65, %p66
      %s68 = ssub.s32 %s34, %s41
      %p69 = scmp.eq.s32.totalorder %s68, 0
      %s71 = sadd.s32 %s70, 1
      %s72 = scalar_select %p69, %s70, %s71
      %p75 = pneg %p69
      %p76 = scmp.eq.s32.totalorder %s34, 1
      %p77 = por %p75, %p76
      %p78 = scmp.ne.s32.totalorder %s70, %s73
      %p79 = scmp.eq.s32.totalorder %s34, 0
      %p80 = por %p78, %p79
      %p81 = scmp.ne.s32.totalorder %s70, %s73
      %p82 = scmp.eq.s32.totalorder %s39, 1
      %p83 = por %p81, %p82
      %p84 = scmp.ne.s32.totalorder %s73, %s74
      %p85 = scmp.eq.s32.totalorder %s39, 0
      %p86 = por %p84, %p85
      %p87 = scmp.ne.s32.totalorder %s73, %s74
      %p88 = scmp.eq.s32.totalorder %s40, 1
      %p89 = por %p87, %p88
      %p91 = scmp.ne.s32.totalorder %s74, %s90
      %p92 = scmp.eq.s32.totalorder %s40, 0
      %p93 = por %p91, %p92
      %s95 = sadd.s32 %s94, 1
      %p98 = scmp.eq.s32.totalorder %s34, 1
      %p99 = scmp.ne.s32.totalorder %s94, %s96
      %p100 = scmp.eq.s32.totalorder %s34, 0
      %p101 = por %p99, %p100
      %p102 = scmp.ne.s32.totalorder %s94, %s96
      %p103 = scmp.eq.s32.totalorder %s39, 1
      %p104 = por %p102, %p103
      %p105 = scmp.ne.s32.totalorder %s96, %s97
      %p106 = scmp.eq.s32.totalorder %s39, 0
      %p107 = por %p105, %p106
      %p108 = scmp.ne.s32.totalorder %s96, %s97
      %p109 = scmp.eq.s32.totalorder %s40, 1
      %p110 = por %p108, %p109
      %p112 = scmp.ne.s32.totalorder %s97, %s111
      %p113 = scmp.eq.s32.totalorder %s40, 0
      %p114 = por %p112, %p113
      %s116 = sadd.s32 %s115, 1
      %p119 = scmp.eq.s32.totalorder %s34, 1
      %p120 = scmp.ne.s32.totalorder %s115, %s117
      %p121 = scmp.eq.s32.totalorder %s34, 0
      %p122 = por %p120, %p121
      %p123 = scmp.ne.s32.totalorder %s115, %s117
      %p124 = scmp.eq.s32.totalorder %s39, 1
      %p125 = por %p123, %p124
      %p126 = scmp.ne.s32.totalorder %s117, %s118
      %p127 = scmp.eq.s32.totalorder %s39, 0
      %p128 = por %p126, %p127
      %p129 = scmp.ne.s32.totalorder %s117, %s118
      %p130 = scmp.eq.s32.totalorder %s40, 1
      %p131 = por %p129, %p130
      %p133 = scmp.ne.s32.totalorder %s118, %s132
      %p134 = scmp.eq.s32.totalorder %s40, 0
      %p135 = por %p133, %p134
      %s137 = sadd.s32 %s136, 1
      %p140 = scmp.eq.s32.totalorder %s34, 1
      %p141 = scmp.ne.s32.totalorder %s136, %s138
      %p142 = scmp.eq.s32.totalorder %s34, 0
      %p143 = por %p141, %p142
      %p144 = scmp.ne.s32.totalorder %s136, %s138
      %p145 = scmp.eq.s32.totalorder %s39, 1
      %p146 = por %p144, %p145
      %p147 = scmp.ne.s32.totalorder %s138, %s139
      %p148 = scmp.eq.s32.totalorder %s39, 0
      %p149 = por %p147, %p148
      %p150 = scmp.ne.s32.totalorder %s138, %s139
      %p151 = scmp.eq.s32.totalorder %s40, 1
      %p152 = por %p150, %p151
      %p154 = scmp.ne.s32.totalorder %s139, %s153
      %p155 = scmp.eq.s32.totalorder %s40, 0
      %p156 = por %p154, %p155
      %s158 = sadd.s32 %s157, 1
      %p161 = scmp.eq.s32.totalorder %s34, 1
      %p162 = scmp.ne.s32.totalorder %s157, %s159
      %p163 = scmp.eq.s32.totalorder %s34, 0
      %p164 = por %p162, %p163
      %p165 = scmp.ne.s32.totalorder %s157, %s159
      %p166 = scmp.eq.s32.totalorder %s39, 1
      %p167 = por %p165, %p166
      %p168 = scmp.ne.s32.totalorder %s159, %s160
      %p169 = scmp.eq.s32.totalorder %s39, 0
      %p170 = por %p168, %p169
      %p171 = scmp.ne.s32.totalorder %s159, %s160
      %p172 = scmp.eq.s32.totalorder %s40, 1
      %p173 = por %p171, %p172
      %p175 = scmp.ne.s32.totalorder %s160, %s174
      %p176 = scmp.eq.s32.totalorder %s40, 0
      %p177 = por %p175, %p176
      %s179 = sadd.s32 %s178, 1
      %p182 = scmp.eq.s32.totalorder %s34, 1
      %p183 = scmp.ne.s32.totalorder %s178, %s180
      %p184 = scmp.eq.s32.totalorder %s34, 0
      %p185 = por %p183, %p184
      %p186 = scmp.ne.s32.totalorder %s178, %s180
      %p187 = scmp.eq.s32.totalorder %s39, 1
      %p188 = por %p186, %p187
      %p189 = scmp.ne.s32.totalorder %s180, %s181
      %p190 = scmp.eq.s32.totalorder %s39, 0
      %p191 = por %p189, %p190
      %p192 = scmp.ne.s32.totalorder %s180, %s181
      %p193 = scmp.eq.s32.totalorder %s40, 1
      %p194 = por %p192, %p193
      %p196 = scmp.ne.s32.totalorder %s181, %s195
      %p197 = scmp.eq.s32.totalorder %s40, 0
      %p198 = por %p196, %p197
      %s200 = sadd.s32 %s199, 1
      %p203 = scmp.eq.s32.totalorder %s34, 1
      %p204 = scmp.ne.s32.totalorder %s199, %s201
      %p205 = scmp.eq.s32.totalorder %s34, 0
      %p206 = por %p204, %p205
      %p207 = scmp.ne.s32.totalorder %s199, %s201
      %p208 = scmp.eq.s32.totalorder %s39, 1
      %p209 = por %p207, %p208
      %p210 = scmp.ne.s32.totalorder %s201, %s202
      %p211 = scmp.eq.s32.totalorder %s39, 0
      %p212 = por %p210, %p211
      %p213 = scmp.ne.s32.totalorder %s201, %s202
      %p214 = scmp.eq.s32.totalorder %s40, 1
      %p215 = por %p213, %p214
      %p217 = scmp.ne.s32.totalorder %s202, %s216
      %p218 = scmp.eq.s32.totalorder %s40, 0
      %p219 = por %p217, %p218
      %s221 = sadd.s32 %s220, 1
      %p224 = scmp.eq.s32.totalorder %s34, 1
      %p225 = scmp.ne.s32.totalorder %s220, %s222
      %p226 = scmp.eq.s32.totalorder %s34, 0
      %p227 = por %p225, %p226
      %p228 = scmp.ne.s32.totalorder %s220, %s222
      %p229 = scmp.eq.s32.totalorder %s39, 1
      %p230 = por %p228, %p229
      %p231 = scmp.ne.s32.totalorder %s222, %s223
      %p232 = scmp.eq.s32.totalorder %s39, 0
      %p233 = por %p231, %p232
      %p234 = scmp.ne.s32.totalorder %s222, %s223
      %p235 = scmp.eq.s32.totalorder %s40, 1
      %p236 = por %p234, %p235
      %p238 = scmp.ne.s32.totalorder %s223, %s237
      %p239 = scmp.eq.s32.totalorder %s40, 0
      %p240 = por %p238, %p239
      %s242 = sadd.s32 %s241, 1
      %p245 = scmp.eq.s32.totalorder %s34, 1
      %p246 = scmp.ne.s32.totalorder %s241, %s243
      %p247 = scmp.eq.s32.totalorder %s34, 0
      %p248 = por %p246, %p247
      %p249 = scmp.ne.s32.totalorder %s241, %s243
      %p250 = scmp.eq.s32.totalorder %s39, 1
      %p251 = por %p249, %p250
      %p252 = scmp.ne.s32.totalorder %s243, %s244
      %p253 = scmp.eq.s32.totalorder %s39, 0
      %p254 = por %p252, %p253
      %p255 = scmp.ne.s32.totalorder %s243, %s244
      %p256 = scmp.eq.s32.totalorder %s40, 1
      %p257 = por %p255, %p256
      %p259 = scmp.ne.s32.totalorder %s244, %s258
      %p260 = scmp.eq.s32.totalorder %s40, 0
      %p261 = por %p259, %p260
      %s263 = sadd.s32 %s262, 1
      %p266 = scmp.eq.s32.totalorder %s34, 1
      %p267 = scmp.ne.s32.totalorder %s262, %s264
      %p268 = scmp.eq.s32.totalorder %s34, 0
      %p269 = por %p267, %p268
      %p270 = scmp.ne.s32.totalorder %s262, %s264
      %p271 = scmp.eq.s32.totalorder %s39, 1
      %p272 = por %p270, %p271
      %p273 = scmp.ne.s32.totalorder %s264, %s265
      %p274 = scmp.eq.s32.totalorder %s39, 0
      %p275 = por %p273, %p274
      %p276 = scmp.ne.s32.totalorder %s264, %s265
      %p277 = scmp.eq.s32.totalorder %s40, 1
      %p278 = por %p276, %p277
      %p280 = scmp.ne.s32.totalorder %s265, %s279
      %p281 = scmp.eq.s32.totalorder %s40, 0
      %p282 = por %p280, %p281
      %s284 = sadd.s32 %s283, 1
      %p287 = scmp.eq.s32.totalorder %s34, 1
      %p288 = scmp.ne.s32.totalorder %s283, %s285
      %p289 = scmp.eq.s32.totalorder %s34, 0
      %p290 = por %p288, %p289
      %p291 = scmp.ne.s32.totalorder %s283, %s285
      %p292 = scmp.eq.s32.totalorder %s39, 1
      %p293 = por %p291, %p292
      %p294 = scmp.ne.s32.totalorder %s285, %s286
      %p295 = scmp.eq.s32.totalorder %s39, 0
      %p296 = por %p294, %p295
      %p297 = scmp.ne.s32.totalorder %s285, %s286
      %p298 = scmp.eq.s32.totalorder %s40, 1
      %p299 = por %p297, %p298
      %p301 = scmp.ne.s32.totalorder %s286, %s300
      %p302 = scmp.eq.s32.totalorder %s40, 0
      %p303 = por %p301, %p302
      %s305 = sadd.s32 %s304, 1
      %p308 = scmp.eq.s32.totalorder %s34, 1
      %p309 = scmp.ne.s32.totalorder %s304, %s306
      %p310 = scmp.eq.s32.totalorder %s34, 0
      %p311 = por %p309, %p310
      %p312 = scmp.ne.s32.totalorder %s304, %s306
      %p313 = scmp.eq.s32.totalorder %s39, 1
      %p314 = por %p312, %p313
      %p315 = scmp.ne.s32.totalorder %s306, %s307
      %p316 = scmp.eq.s32.totalorder %s39, 0
      %p317 = por %p315, %p316
      %p318 = scmp.ne.s32.totalorder %s306, %s307
      %p319 = scmp.eq.s32.totalorder %s40, 1
      %p320 = por %p318, %p319
      %p322 = scmp.ne.s32.totalorder %s307, %s321
      %p323 = scmp.eq.s32.totalorder %s40, 0
      %p324 = por %p322, %p323
      %s326 = sadd.s32 %s325, 1
      %p329 = scmp.eq.s32.totalorder %s34, 1
      %p330 = scmp.ne.s32.totalorder %s325, %s327
      %p331 = scmp.eq.s32.totalorder %s34, 0
      %p332 = por %p330, %p331
      %p333 = scmp.ne.s32.totalorder %s325, %s327
      %p334 = scmp.eq.s32.totalorder %s39, 1
      %p335 = por %p333, %p334
      %p336 = scmp.ne.s32.totalorder %s327, %s328
      %p337 = scmp.eq.s32.totalorder %s39, 0
      %p338 = por %p336, %p337
      %p339 = scmp.ne.s32.totalorder %s327, %s328
      %p340 = scmp.eq.s32.totalorder %s40, 1
      %p341 = por %p339, %p340
      %p343 = scmp.ne.s32.totalorder %s328, %s342
      %p344 = scmp.eq.s32.totalorder %s40, 0
      %p345 = por %p343, %p344
      %s347 = sadd.s32 %s346, 1
      %p350 = scmp.eq.s32.totalorder %s34, 1
      %p351 = scmp.ne.s32.totalorder %s346, %s348
      %p352 = scmp.eq.s32.totalorder %s34, 0
      %p353 = por %p351, %p352
      %p354 = scmp.ne.s32.totalorder %s346, %s348
      %p355 = scmp.eq.s32.totalorder %s39, 1
      %p356 = por %p354, %p355
      %p357 = scmp.ne.s32.totalorder %s348, %s349
      %p358 = scmp.eq.s32.totalorder %s39, 0
      %p359 = por %p357, %p358
      %p360 = scmp.ne.s32.totalorder %s348, %s349
      %p361 = scmp.eq.s32.totalorder %s40, 1
      %p362 = por %p360, %p361
      %p364 = scmp.ne.s32.totalorder %s349, %s363
      %p365 = scmp.eq.s32.totalorder %s40, 0
      %p366 = por %p364, %p365
      %s367 = ssub.s32 %s34, %s41
      %p368 = scmp.eq.s32.totalorder %s367, 0
      %s370 = sadd.s32 %s369, 1
      %s371 = scalar_select %p368, %s369, %s370
      %p374 = pneg %p368
      %p375 = scmp.eq.s32.totalorder %s34, 1
      %p376 = por %p374, %p375
      %p377 = scmp.ne.s32.totalorder %s369, %s372
      %p378 = scmp.eq.s32.totalorder %s34, 0
      %p379 = por %p377, %p378
      %p380 = scmp.ne.s32.totalorder %s369, %s372
      %p381 = scmp.eq.s32.totalorder %s39, 1
      %p382 = por %p380, %p381
      %p383 = scmp.ne.s32.totalorder %s372, %s373
      %p384 = scmp.eq.s32.totalorder %s39, 0
      %p385 = por %p383, %p384
      %p386 = scmp.ne.s32.totalorder %s372, %s373
      %p387 = scmp.eq.s32.totalorder %s40, 1
      %p388 = por %p386, %p387
      %p390 = scmp.ne.s32.totalorder %s373, %s389
      %p391 = scmp.eq.s32.totalorder %s40, 0
      %p392 = por %p390, %p391
      %s393 = ssub.s32 %s34, %s41
      %p394 = scmp.eq.s32.totalorder %s393, 0
      %s396 = sadd.s32 %s395, 1
      %s397 = scalar_select %p394, %s395, %s396
      %p400 = pneg %p394
      %p401 = scmp.eq.s32.totalorder %s34, 1
      %p402 = por %p400, %p401
      %p403 = scmp.ne.s32.totalorder %s395, %s398
      %p404 = scmp.eq.s32.totalorder %s34, 0
      %p405 = por %p403, %p404
      %p406 = scmp.ne.s32.totalorder %s395, %s398
      %p407 = scmp.eq.s32.totalorder %s39, 1
      %p408 = por %p406, %p407
      %p409 = scmp.ne.s32.totalorder %s398, %s399
      %p410 = scmp.eq.s32.totalorder %s39, 0
      %p411 = por %p409, %p410
      %p412 = scmp.ne.s32.totalorder %s398, %s399
      %p413 = scmp.eq.s32.totalorder %s40, 1
      %p414 = por %p412, %p413
      %p416 = scmp.ne.s32.totalorder %s399, %s415
      %p417 = scmp.eq.s32.totalorder %s40, 0
      %p418 = por %p416, %p417
      %p419 = scmp.le.s32.totalorder 1, %s34
      %p420 = scmp.lt.s32.totalorder %s34, 3
      %p421 = pnand %p419, %p420
      %p422 = pneg %p421
      // Predicated region
      $region9: #{spectrum_text_clip_forward.1} parent=5 // pred_check
        _
      $region10: #{spectrum_text_clip_forward.1} parent=5 // pred_check_branch
        %424 = sbr.rel (%p421) target = $region12
      $region11: #{spectrum_text_clip_forward.1} parent=5 // pred_region
        %s425 = ssub.s32 %s34, 1
        // Predicated region
        $region13: #{spectrum_text_clip_forward.1} parent=11 // pred_check
          %p426 = pneg %p107
        $region14: #{spectrum_text_clip_forward.1} parent=11 // pred_check_branch
          %428 = sbr.rel (%p426) target = $region16
        $region15: #{spectrum_text_clip_forward.1} parent=11 // pred_region
          _
        $region16: #{spectrum_text_clip_forward.1} parent=11 // pred_fallthru
          _
        // Predicated region
        $region17: #{spectrum_text_clip_forward.1} parent=11 // pred_check
          %p429 = pneg %p128
        $region18: #{spectrum_text_clip_forward.1} parent=11 // pred_check_branch
          %431 = sbr.rel (%p429) target = $region20
        $region19: #{spectrum_text_clip_forward.1} parent=11 // pred_region
          _
        $region20: #{spectrum_text_clip_forward.1} parent=11 // pred_fallthru
          _
        // Predicated region
        $region21: #{spectrum_text_clip_forward.1} parent=11 // pred_check
          %p432 = pneg %p149
        $region22: #{spectrum_text_clip_forward.1} parent=11 // pred_check_branch
          %434 = sbr.rel (%p432) target = $region24
        $region23: #{spectrum_text_clip_forward.1} parent=11 // pred_region
          _
        $region24: #{spectrum_text_clip_forward.1} parent=11 // pred_fallthru
          _
        // Predicated region
        $region25: #{spectrum_text_clip_forward.1} parent=11 // pred_check
          %p435 = pneg %p170
        $region26: #{spectrum_text_clip_forward.1} parent=11 // pred_check_branch
          %437 = sbr.rel (%p435) target = $region28
        $region27: #{spectrum_text_clip_forward.1} parent=11 // pred_region
          %s439 = ssub.s32 256, 256
          %440 = vsyncadd [#allocation4], %s439
          %s441 = sshll.u32 [#allocation3], 4
          %s442 = int_to_ptr.vmem [resolvable:$true] %s441
          %447 = dma.hbm_to_vmem [thread:$0]  %s5, 256, %s442, [#allocation4], 128, 128, 8
        $region28: #{spectrum_text_clip_forward.1} parent=11 // pred_fallthru
          _
        // Predicated region
        $region29: #{spectrum_text_clip_forward.1} parent=11 // pred_check
          %p448 = pneg %p191
        $region30: #{spectrum_text_clip_forward.1} parent=11 // pred_check_branch
          %450 = sbr.rel (%p448) target = $region32
        $region31: #{spectrum_text_clip_forward.1} parent=11 // pred_region
          %s452 = ssub.s32 4096, 4096
          %453 = vsyncadd [#allocation7], %s452
          %s454 = sshll.u32 [#allocation6], 4
          %s455 = int_to_ptr.vmem [resolvable:$true] %s454
          %460 = dma.hbm_to_vmem [thread:$0]  %s6, 4096, %s455, [#allocation7], 64, 64, 4
        $region32: #{spectrum_text_clip_forward.1} parent=11 // pred_fallthru
          _
        // Predicated region
        $region33: #{spectrum_text_clip_forward.1} parent=11 // pred_check
          %p461 = pneg %p212
        $region34: #{spectrum_text_clip_forward.1} parent=11 // pred_check_branch
          %463 = sbr.rel (%p461) target = $region36
        $region35: #{spectrum_text_clip_forward.1} parent=11 // pred_region
          %s465 = ssub.s32 4096, 4096
          %466 = vsyncadd [#allocation7], %s465
          %s467 = sshll.u32 [#allocation8], 4
          %s468 = int_to_ptr.vmem [resolvable:$true] %s467
          %473 = dma.hbm_to_vmem [thread:$0]  %s7, 4096, %s468, [#allocation7], 64, 64, 4
        $region36: #{spectrum_text_clip_forward.1} parent=11 // pred_fallthru
          _
        // Predicated region
        $region37: #{spectrum_text_clip_forward.1} parent=11 // pred_check
          %p474 = pneg %p233
        $region38: #{spectrum_text_clip_forward.1} parent=11 // pred_check_branch
          %476 = sbr.rel (%p474) target = $region40
        $region39: #{spectrum_text_clip_forward.1} parent=11 // pred_region
          %s478 = ssub.s32 4096, 4096
          %479 = vsyncadd [#allocation10], %s478
          %s480 = sshll.u32 [#allocation9], 4
          %s481 = int_to_ptr.vmem [resolvable:$true] %s480
          %486 = dma.hbm_to_vmem [thread:$0]  %s8, 4096, %s481, [#allocation10], 64, 64, 4
        $region40: #{spectrum_text_clip_forward.1} parent=11 // pred_fallthru
          _
        // Predicated region
        $region41: #{spectrum_text_clip_forward.1} parent=11 // pred_check
          %p487 = pneg %p254
        $region42: #{spectrum_text_clip_forward.1} parent=11 // pred_check_branch
          %489 = sbr.rel (%p487) target = $region44
        $region43: #{spectrum_text_clip_forward.1} parent=11 // pred_region
          %s491 = ssub.s32 4096, 4096
          %492 = vsyncadd [#allocation10], %s491
          %s493 = sshll.u32 [#allocation11], 4
          %s494 = int_to_ptr.vmem [resolvable:$true] %s493
          %499 = dma.hbm_to_vmem [thread:$0]  %s9, 4096, %s494, [#allocation10], 64, 64, 4
        $region44: #{spectrum_text_clip_forward.1} parent=11 // pred_fallthru
          _
        // Predicated region
        $region45: #{spectrum_text_clip_forward.1} parent=11 // pred_check
          %p500 = pneg %p275
        $region46: #{spectrum_text_clip_forward.1} parent=11 // pred_check_branch
          %502 = sbr.rel (%p500) target = $region48
        $region47: #{spectrum_text_clip_forward.1} parent=11 // pred_region
          %s504 = ssub.s32 512, 512
          %505 = vsyncadd [#allocation13], %s504
          %s506 = sshll.u32 [#allocation12], 4
          %s507 = int_to_ptr.vmem [resolvable:$true] %s506
          %512 = dma.hbm_to_vmem [thread:$0]  %s10, 512, %s507, [#allocation13], 128, 128, 8
        $region48: #{spectrum_text_clip_forward.1} parent=11 // pred_fallthru
          _
        // Predicated region
        $region49: #{spectrum_text_clip_forward.1} parent=11 // pred_check
          %p513 = pneg %p296
        $region50: #{spectrum_text_clip_forward.1} parent=11 // pred_check_branch
          %515 = sbr.rel (%p513) target = $region52
        $region51: #{spectrum_text_clip_forward.1} parent=11 // pred_region
          %s517 = ssub.s32 1024, 1024
          %518 = vsyncadd [#allocation13], %s517
          %s519 = sshll.u32 [#allocation14], 4
          %s520 = int_to_ptr.vmem [resolvable:$true] %s519
          %525 = dma.hbm_to_vmem [thread:$0]  %s11, 1024, %s520, [#allocation13], 64, 64, 4
        $region52: #{spectrum_text_clip_forward.1} parent=11 // pred_fallthru
          _
        // Predicated region
        $region53: #{spectrum_text_clip_forward.1} parent=11 // pred_check
          %p526 = pneg %p317
        $region54: #{spectrum_text_clip_forward.1} parent=11 // pred_check_branch
          %528 = sbr.rel (%p526) target = $region56
        $region55: #{spectrum_text_clip_forward.1} parent=11 // pred_region
          _
        $region56: #{spectrum_text_clip_forward.1} parent=11 // pred_fallthru
          _
        // Predicated region
        $region57: #{spectrum_text_clip_forward.1} parent=11 // pred_check
          %p529 = pneg %p338
        $region58: #{spectrum_text_clip_forward.1} parent=11 // pred_check_branch
          %531 = sbr.rel (%p529) target = $region60
        $region59: #{spectrum_text_clip_forward.1} parent=11 // pred_region
          %s533 = ssub.s32 1024, 1024
          %534 = vsyncadd [#allocation16], %s533
          %s535 = sshll.u32 [#allocation15], 4
          %s536 = int_to_ptr.vmem [resolvable:$true] %s535
          %541 = dma.hbm_to_vmem [thread:$0]  %s13, 1024, %s536, [#allocation16], 64, 64, 4
        $region60: #{spectrum_text_clip_forward.1} parent=11 // pred_fallthru
          _
        // Predicated region
        $region61: #{spectrum_text_clip_forward.1} parent=11 // pred_check
          %p542 = pneg %p359
        $region62: #{spectrum_text_clip_forward.1} parent=11 // pred_check_branch
          %544 = sbr.rel (%p542) target = $region64
        $region63: #{spectrum_text_clip_forward.1} parent=11 // pred_region
          _
        $region64: #{spectrum_text_clip_forward.1} parent=11 // pred_fallthru
          _
      $region12: #{spectrum_text_clip_forward.1} parent=5 // pred_fallthru
        _
      %p545 = scmp.lt.s32.totalorder %s34, 2
      // Predicated region
      $region65: #{spectrum_text_clip_forward.1} parent=5 // pred_check
        %p546 = pneg %p545
      $region66: #{spectrum_text_clip_forward.1} parent=5 // pred_check_branch
        %548 = sbr.rel (%p546) target = $region68
      $region67: #{spectrum_text_clip_forward.1} parent=5 // pred_region
        // Predicated region
        $region69: #{spectrum_text_clip_forward.1} parent=67 // pred_check
          %p549 = pneg %p54
        $region70: #{spectrum_text_clip_forward.1} parent=67 // pred_check_branch
          %551 = sbr.rel (%p549) target = $region72
        $region71: #{spectrum_text_clip_forward.1} parent=67 // pred_region
          %p552 = scmp.lt.s32.totalorder %s34, 1
          %s553 = scalar_select %p552, %s34, 1
          %s554 = smul.addr %s553, 8
          %s555 = scalar_lea.vmem %s0, %s554
        $region72: #{spectrum_text_clip_forward.1} parent=67 // pred_fallthru
          _
        // Predicated region
        $region73: #{spectrum_text_clip_forward.1} parent=67 // pred_check
          %p556 = pneg %p80
        $region74: #{spectrum_text_clip_forward.1} parent=67 // pred_check_branch
          %558 = sbr.rel (%p556) target = $region76
        $region75: #{spectrum_text_clip_forward.1} parent=67 // pred_region
          %p559 = scmp.lt.s32.totalorder %s34, 1
          %s560 = scalar_select %p559, %s34, 1
          %s561 = scalar_lea.vmem %s1, %s560
        $region76: #{spectrum_text_clip_forward.1} parent=67 // pred_fallthru
          _
      $region68: #{spectrum_text_clip_forward.1} parent=5 // pred_fallthru
        _
      %p562 = scmp.le.s32.totalorder 1, %s34
      %p563 = scmp.lt.s32.totalorder %s34, 3
      %p564 = pnand %p562, %p563
      %p565 = pneg %p564
      // Predicated region
      $region77: #{spectrum_text_clip_forward.1} parent=5 // pred_check
        _
      $region78: #{spectrum_text_clip_forward.1} parent=5 // pred_check_branch
        %567 = sbr.rel (%p564) target = $region80
      $region79: #{spectrum_text_clip_forward.1} parent=5 // pred_region
        %s568 = ssub.s32 %s34, 1
        // Predicated region
        $region81: #{spectrum_text_clip_forward.1} parent=79 // pred_check
          %p569 = pneg %p170
        $region82: #{spectrum_text_clip_forward.1} parent=79 // pred_check_branch
          %571 = sbr.rel (%p569) target = $region84
        $region83: #{spectrum_text_clip_forward.1} parent=79 // pred_region
          %572 = dma.done [#allocation4], 256
        $region84: #{spectrum_text_clip_forward.1} parent=79 // pred_fallthru
          _
        // Predicated region
        $region85: #{spectrum_text_clip_forward.1} parent=79 // pred_check
          %p573 = pneg %p191
        $region86: #{spectrum_text_clip_forward.1} parent=79 // pred_check_branch
          %575 = sbr.rel (%p573) target = $region88
        $region87: #{spectrum_text_clip_forward.1} parent=79 // pred_region
          %576 = dma.done [#allocation7], 4096
        $region88: #{spectrum_text_clip_forward.1} parent=79 // pred_fallthru
          _
        // Predicated region
        $region89: #{spectrum_text_clip_forward.1} parent=79 // pred_check
          %p577 = pneg %p212
        $region90: #{spectrum_text_clip_forward.1} parent=79 // pred_check_branch
          %579 = sbr.rel (%p577) target = $region92
        $region91: #{spectrum_text_clip_forward.1} parent=79 // pred_region
          %580 = dma.done [#allocation7], 4096
        $region92: #{spectrum_text_clip_forward.1} parent=79 // pred_fallthru
          _
        // Predicated region
        $region93: #{spectrum_text_clip_forward.1} parent=79 // pred_check
          %p581 = pneg %p233
        $region94: #{spectrum_text_clip_forward.1} parent=79 // pred_check_branch
          %583 = sbr.rel (%p581) target = $region96
        $region95: #{spectrum_text_clip_forward.1} parent=79 // pred_region
          %584 = dma.done [#allocation10], 4096
        $region96: #{spectrum_text_clip_forward.1} parent=79 // pred_fallthru
          _
        // Predicated region
        $region97: #{spectrum_text_clip_forward.1} parent=79 // pred_check
          %p585 = pneg %p254
        $region98: #{spectrum_text_clip_forward.1} parent=79 // pred_check_branch
          %587 = sbr.rel (%p585) target = $region100
        $region99: #{spectrum_text_clip_forward.1} parent=79 // pred_region
          %588 = dma.done [#allocation10], 4096
        $region100: #{spectrum_text_clip_forward.1} parent=79 // pred_fallthru
          _
        // Predicated region
        $region101: #{spectrum_text_clip_forward.1} parent=79 // pred_check
          %p589 = pneg %p275
        $region102: #{spectrum_text_clip_forward.1} parent=79 // pred_check_branch
          %591 = sbr.rel (%p589) target = $region104
        $region103: #{spectrum_text_clip_forward.1} parent=79 // pred_region
          %592 = dma.done [#allocation13], 512
        $region104: #{spectrum_text_clip_forward.1} parent=79 // pred_fallthru
          _
        // Predicated region
        $region105: #{spectrum_text_clip_forward.1} parent=79 // pred_check
          %p593 = pneg %p296
        $region106: #{spectrum_text_clip_forward.1} parent=79 // pred_check_branch
          %595 = sbr.rel (%p593) target = $region108
        $region107: #{spectrum_text_clip_forward.1} parent=79 // pred_region
          %596 = dma.done [#allocation13], 1024
        $region108: #{spectrum_text_clip_forward.1} parent=79 // pred_fallthru
          _
        // Predicated region
        $region109: #{spectrum_text_clip_forward.1} parent=79 // pred_check
          %p597 = pneg %p338
        $region110: #{spectrum_text_clip_forward.1} parent=79 // pred_check_branch
          %599 = sbr.rel (%p597) target = $region112
        $region111: #{spectrum_text_clip_forward.1} parent=79 // pred_region
          %600 = dma.done [#allocation16], 1024
        $region112: #{spectrum_text_clip_forward.1} parent=79 // pred_fallthru
          _
        %p601 = scmp.lt.s32.totalorder %s39, 1
        %s602 = scalar_select %p601, %s39, 1
        %s603 = smul.addr %s602, 8
        %s604 = scalar_lea.vmem %s0, %s603
        %p605 = pneg %p60
        %p606 = pneg %p57
        %p607 = scmp.lt.s32.totalorder %s39, 1
        %s608 = scalar_select %p607, %s39, 1
        %s609 = scalar_lea.vmem %s1, %s608
        %p610 = pneg %p86
        %p611 = pneg %p83
        %p612 = pneg %p107
        %p613 = pneg %p104
        %p614 = pneg %p128
        %p615 = pneg %p125
        %p616 = pneg %p149
        %p617 = pneg %p146
        %p618 = pneg %p170
        %p619 = pneg %p167
        %p620 = pneg %p191
        %p621 = pneg %p188
        %p622 = pneg %p212
        %p623 = pneg %p209
        %p624 = pneg %p233
        %p625 = pneg %p230
        %p626 = pneg %p254
        %p627 = pneg %p251
        %p628 = pneg %p275
        %p629 = pneg %p272
        %p630 = pneg %p296
        %p631 = pneg %p293
        %p632 = pneg %p317
        %p633 = pneg %p314
        %p634 = pneg %p338
        %p635 = pneg %p335
        %p636 = pneg %p359
        %p637 = pneg %p356
        %p638 = pneg %p385
        %p639 = pneg %p382
        %s640 = sand.u32 %s372, 1
        %s641 = scalar_lea.sflag [#allocation5], %s640
        %s642 = sand.u32 %s372, 1
        %s643 = scalar_lea.vmem [#allocation17], %s642
        %p644 = pneg %p411
        %p645 = pneg %p408
        %s646 = sand.u32 %s398, 1
        %s647 = scalar_lea.sflag [#allocation19], %s646
        %s648 = sand.u32 %s398, 1
        %s649 = scalar_lea.vmem [#allocation18], %s648
        %p650 = scmp.lt.s32.totalorder %s39, 1
        %s651 = scalar_select %p650, %s39, 1
        %s652 = smul.addr %s651, 8
        %s653 = scalar_lea.vmem %s0, %s652
        %p654 = scmp.lt.s32.totalorder %s39, 1
        %s655 = scalar_select %p654, %s39, 1
        %s656 = scalar_lea.vmem %s1, %s655
        %v657 = vlaneseq
        %v658 = vand.u32 %v657, 127
        %vm659 = vcmp.lt.s32.totalorder %v658, 32
        %v660 = vsel %vm659, 1, 0
        %v661 = vcvt.s32.f32 %v660
        %vm662 = vcmp.ge.s32.totalorder %v658, 0
        %vm663 = vcmp.lt.s32.totalorder %v658, 8
        %vm664 = vmand %vm662, %vm663
        %v665 = vsel %vm664, 1, 0
        %v666 = vcvt.s32.f32 %v665
        %vm667 = vcmp.ge.s32.totalorder %v658, 8
        %vm668 = vcmp.lt.s32.totalorder %v658, 16
        %vm669 = vmand %vm667, %vm668
        %v670 = vsel %vm669, 1, 0
        %v671 = vcvt.s32.f32 %v670
        %vm672 = vcmp.ge.s32.totalorder %v658, 16
        %vm673 = vcmp.lt.s32.totalorder %v658, 24
        %vm674 = vmand %vm672, %vm673
        %v675 = vsel %vm674, 1, 0
        %v676 = vcvt.s32.f32 %v675
        %vm677 = vcmp.ge.s32.totalorder %v658, 24
        %vm678 = vmand %vm677, %vm659
        %v679 = vsel %vm678, 1, 0
        %v680 = vcvt.s32.f32 %v679
        %v681 = vld [vmem:[%s653] sm:$0xff]
        %v682 = vld [vmem:[%s2] sm:$0xf]
        %v683 = vld [vmem:[%s2 + $0x4] sm:$0xf]
        %v684 = vld [vmem:[%s2 + $0x8] sm:$0xf]
        %v685 = vld [vmem:[%s2 + $0xc] sm:$0xf]
        %v686 = vld [vmem:[%s2 + $0x10] sm:$0xf]
        %v687 = vld [vmem:[%s2 + $0x14] sm:$0xf]
        %v688 = vld [vmem:[%s2 + $0x18] sm:$0xf]
        %v689 = vld [vmem:[%s2 + $0x1c] sm:$0xf]
        %v690 = vld [vmem:[%s2 + $0x20] sm:$0xf]
        %v691 = vld [vmem:[%s2 + $0x24] sm:$0xf]
        %v692 = vld [vmem:[%s2 + $0x28] sm:$0xf]
        %v693 = vld [vmem:[%s2 + $0x2c] sm:$0xf]
        %v694 = vld [vmem:[%s2 + $0x30] sm:$0xf]
        %v695 = vld [vmem:[%s2 + $0x34] sm:$0xf]
        %v696 = vld [vmem:[%s2 + $0x38] sm:$0xf]
        %v697 = vld [vmem:[%s2 + $0x3c] sm:$0xf]
        %v698 = vunpack.c.l.bf16 %v682
        %v699 = vunpack.c.l.bf16 %v683
        %v700 = vunpack.c.l.bf16 %v684
        %v701 = vunpack.c.l.bf16 %v685
        %v702 = vunpack.c.l.bf16 %v686
        %v703 = vunpack.c.l.bf16 %v687
        %v704 = vunpack.c.l.bf16 %v688
        %v705 = vunpack.c.l.bf16 %v689
        %v706 = vunpack.c.l.bf16 %v690
        %v707 = vunpack.c.l.bf16 %v691
        %v708 = vunpack.c.l.bf16 %v692
        %v709 = vunpack.c.l.bf16 %v693
        %v710 = vunpack.c.l.bf16 %v694
        %v711 = vunpack.c.l.bf16 %v695
        %v712 = vunpack.c.l.bf16 %v696
        %v713 = vunpack.c.l.bf16 %v697
        %v714 = vld [vmem:[%s3] sm:$0x1]
        %v716 = vlaneseq
        %v717 = vshrl.u32 %v716, 7
        %v718 = vsub.s32 0, %v717
        %v719 = vrot.slane %v714, %v718
        %721 = vmatprep.subr.mxu0 0.0
        %722 = vmatpush1.msra.mxu0 %v713
        %723 = vmatprep.subr.mxu0 0.0
        %724 = vmatpush1.msra.mxu0 %v712
        %725 = vmatprep.subr.mxu0 0.0
        %726 = vmatpush1.msra.mxu0 %v711
        %727 = vmatprep.subr.mxu0 0.0
        %728 = vmatpush1.msra.mxu0 %v710
        %729 = vmatprep.subr.mxu0 0.0
        %730 = vmatpush1.msra.mxu0 %v709
        %731 = vmatprep.subr.mxu0 0.0
        %732 = vmatpush1.msra.mxu0 %v708
        %733 = vmatprep.subr.mxu0 0.0
        %734 = vmatpush1.msra.mxu0 %v707
        %735 = vmatprep.subr.mxu0 0.0
        %736 = vmatpush1.msra.mxu0 %v706
        %737 = vmatprep.subr.mxu0 0.0
        %738 = vmatpush1.msra.mxu0 %v705
        %739 = vmatprep.subr.mxu0 0.0
        %740 = vmatpush1.msra.mxu0 %v704
        %741 = vmatprep.subr.mxu0 0.0
        %742 = vmatpush1.msra.mxu0 %v703
        %743 = vmatprep.subr.mxu0 0.0
        %744 = vmatpush1.msra.mxu0 %v702
        %745 = vmatprep.subr.mxu0 0.0
        %746 = vmatpush1.msra.mxu0 %v701
        %747 = vmatprep.subr.mxu0 0.0
        %748 = vmatpush1.msra.mxu0 %v700
        %749 = vmatprep.subr.mxu0 0.0
        %750 = vmatpush1.msra.mxu0 %v699
        %751 = vmatprep.subr.mxu0 0.0
        %752 = vmatpush1.msra.mxu0 %v698
        %753 = vmatprep.subr.mxu0 0.0
        %754 = vmatpush2.msra.mxu0 0.0
        %755 = vmatprep.subr.mxu0 0.0
        %756 = vmatpush2.msra.mxu0 0.0
        %757 = vmatprep.subr.mxu0 0.0
        %758 = vmatpush2.msra.mxu0 0.0
        %759 = vmatprep.subr.mxu0 0.0
        %760 = vmatpush2.msra.mxu0 0.0
        %761 = vmatprep.subr.mxu0 0.0
        %762 = vmatpush2.msra.mxu0 0.0
        %763 = vmatprep.subr.mxu0 0.0
        %764 = vmatpush2.msra.mxu0 0.0
        %765 = vmatprep.subr.mxu0 0.0
        %766 = vmatpush2.msra.mxu0 0.0
        %767 = vmatprep.subr.mxu0 0.0
        %768 = vmatpush2.msra.mxu0 0.0
        %769 = vmatprep.subr.mxu0 0.0
        %770 = vmatpush2.msra.mxu0 0.0
        %771 = vmatprep.subr.mxu0 0.0
        %772 = vmatpush2.msra.mxu0 0.0
        %773 = vmatprep.subr.mxu0 0.0
        %774 = vmatpush2.msra.mxu0 0.0
        %775 = vmatprep.subr.mxu0 0.0
        %776 = vmatpush2.msra.mxu0 0.0
        %777 = vmatprep.subr.mxu0 0.0
        %778 = vmatpush2.msra.mxu0 0.0
        %779 = vmatprep.subr.mxu0 0.0
        %780 = vmatpush2.msra.mxu0 0.0
        %781 = vmatprep.subr.mxu0 0.0
        %782 = vmatpush2.msra.mxu0 0.0
        %783 = vmatprep.subr.mxu0 0.0
        %784 = vmatpush2.msra.mxu0 0.0
        %785 = vmatprep.mubr.f32.mxu0 0.0
        %786 = vmatmul.mubr.f32.gmra.mxu0 %v681
        %v787 = vpop.f32.mrf.mxu0
        %v788 = vadd.f32 %v719, %v787
        %v789 = vpop.f32.mrf.mxu0
        %790 = vdwg.mxu0
        %v791 = vld [vmem:[%s4] sm:$0x1]
        %v792 = vld [vmem:[#allocation3] sm:$0x1]
        %v793 = vadd.f32 %v791, %v792
        %794 = vst [vmem:[#allocation2] sm:$0x1] %v793
        %v795 = vld [vmem:[#allocation3 + $0x1] sm:$0xff]
        %v796 = vadd.f32 %v788, %v795
        %797 = vst [vmem:[#allocation2 + $0x1] sm:$0xff] %v796
        %v798 = vld [vmem:[#allocation2] sm:$0xff]
        %v799 = vld [vmem:[#allocation2 + $0x8] sm:$0x1]
        %v800 = vld [vmem:[#allocation12] sm:$0xff]
        %v801 = vld [vmem:[#allocation6] sm:$0xf]
        %v802 = vld [vmem:[#allocation6 + $0x4] sm:$0xf]
        %v803 = vld [vmem:[#allocation6 + $0x8] sm:$0xf]
        %v804 = vld [vmem:[#allocation6 + $0xc] sm:$0xf]
        %v805 = vld [vmem:[#allocation6 + $0x10] sm:$0xf]
        %v806 = vld [vmem:[#allocation6 + $0x14] sm:$0xf]
        %v807 = vld [vmem:[#allocation6 + $0x18] sm:$0xf]
        %v808 = vld [vmem:[#allocation6 + $0x1c] sm:$0xf]
        %v809 = vld [vmem:[#allocation6 + $0x20] sm:$0xf]
        %v810 = vld [vmem:[#allocation6 + $0x24] sm:$0xf]
        %v811 = vld [vmem:[#allocation6 + $0x28] sm:$0xf]
        %v812 = vld [vmem:[#allocation6 + $0x2c] sm:$0xf]
        %v813 = vld [vmem:[#allocation6 + $0x30] sm:$0xf]
        %v814 = vld [vmem:[#allocation6 + $0x34] sm:$0xf]
        %v815 = vld [vmem:[#allocation6 + $0x38] sm:$0xf]
        %v816 = vld [vmem:[#allocation6 + $0x3c] sm:$0xf]
        %v817 = vunpack.c.l.bf16 %v801
        %v818 = vunpack.c.l.bf16 %v802
        %v819 = vunpack.c.l.bf16 %v803
        %v820 = vunpack.c.l.bf16 %v804
        %v821 = vunpack.c.l.bf16 %v805
        %v822 = vunpack.c.l.bf16 %v806
        %v823 = vunpack.c.l.bf16 %v807
        %v824 = vunpack.c.l.bf16 %v808
        %v825 = vunpack.c.l.bf16 %v809
        %v826 = vunpack.c.l.bf16 %v810
        %v827 = vunpack.c.l.bf16 %v811
        %v828 = vunpack.c.l.bf16 %v812
        %v829 = vunpack.c.l.bf16 %v813
        %v830 = vunpack.c.l.bf16 %v814
        %v831 = vunpack.c.l.bf16 %v815
        %v832 = vunpack.c.l.bf16 %v816
        %v833 = vlaneseq
        %v834 = vshrl.u32 %v833, 7
        %v835 = vsub.s32 0, %v834
        %v836 = vrot.slane %v800, %v835
        %837 = vmatprep.subr.mxu0 0.0
        %838 = vmatpush1.msra.mxu0 %v832
        %839 = vmatprep.subr.mxu0 0.0
        %840 = vmatpush1.msra.mxu0 %v831
        %841 = vmatprep.subr.mxu0 0.0
        %842 = vmatpush1.msra.mxu0 %v830
        %843 = vmatprep.subr.mxu0 0.0
        %844 = vmatpush1.msra.mxu0 %v829
        %845 = vmatprep.subr.mxu0 0.0
        %846 = vmatpush1.msra.mxu0 %v828
        %847 = vmatprep.subr.mxu0 0.0
        %848 = vmatpush1.msra.mxu0 %v827
        %849 = vmatprep.subr.mxu0 0.0
        %850 = vmatpush1.msra.mxu0 %v826
        %851 = vmatprep.subr.mxu0 0.0
        %852 = vmatpush1.msra.mxu0 %v825
        %853 = vmatprep.subr.mxu0 0.0
        %854 = vmatpush1.msra.mxu0 %v824
        %855 = vmatprep.subr.mxu0 0.0
        %856 = vmatpush1.msra.mxu0 %v823
        %857 = vmatprep.subr.mxu0 0.0
        %858 = vmatpush1.msra.mxu0 %v822
        %859 = vmatprep.subr.mxu0 0.0
        %860 = vmatpush1.msra.mxu0 %v821
        %861 = vmatprep.subr.mxu0 0.0
        %862 = vmatpush1.msra.mxu0 %v820
        %863 = vmatprep.subr.mxu0 0.0
        %864 = vmatpush1.msra.mxu0 %v819
        %865 = vmatprep.subr.mxu0 0.0
        %866 = vmatpush1.msra.mxu0 %v818
        %867 = vmatprep.subr.mxu0 0.0
        %868 = vmatpush1.msra.mxu0 %v817
        %869 = vmatprep.subr.mxu0 0.0
        %870 = vmatpush2.msra.mxu0 0.0
        %871 = vmatprep.subr.mxu0 0.0
        %872 = vmatpush2.msra.mxu0 0.0
        %873 = vmatprep.subr.mxu0 0.0
        %874 = vmatpush2.msra.mxu0 0.0
        %875 = vmatprep.subr.mxu0 0.0
        %876 = vmatpush2.msra.mxu0 0.0
        %877 = vmatprep.subr.mxu0 0.0
        %878 = vmatpush2.msra.mxu0 0.0
        %879 = vmatprep.subr.mxu0 0.0
        %880 = vmatpush2.msra.mxu0 0.0
        %881 = vmatprep.subr.mxu0 0.0
        %882 = vmatpush2.msra.mxu0 0.0
        %883 = vmatprep.subr.mxu0 0.0
        %884 = vmatpush2.msra.mxu0 0.0
        %885 = vmatprep.subr.mxu0 0.0
        %886 = vmatpush2.msra.mxu0 0.0
        %887 = vmatprep.subr.mxu0 0.0
        %888 = vmatpush2.msra.mxu0 0.0
        %889 = vmatprep.subr.mxu0 0.0
        %890 = vmatpush2.msra.mxu0 0.0
        %891 = vmatprep.subr.mxu0 0.0
        %892 = vmatpush2.msra.mxu0 0.0
        %893 = vmatprep.subr.mxu0 0.0
        %894 = vmatpush2.msra.mxu0 0.0
        %895 = vmatprep.subr.mxu0 0.0
        %896 = vmatpush2.msra.mxu0 0.0
        %897 = vmatprep.subr.mxu0 0.0
        %898 = vmatpush2.msra.mxu0 0.0
        %899 = vmatprep.subr.mxu0 0.0
        %900 = vmatpush2.msra.mxu0 0.0
        %901 = vmatprep.mubr.f32.mxu0 0.0
        %902 = vmatmul.mubr.f32.gmra.mxu0 %v798
        %v903 = vpop.f32.mrf.mxu0
        %v904 = vadd.f32 %v836, %v903
        %v905 = vpop.f32.mrf.mxu0
        %906 = vmatprep.mubr.f32.mxu0 0.0
        %907 = vmatmul.mubr.f32.gmra.mxu0 %v799
        %v908 = vpop.f32.mrf.mxu0
        %v909 = vadd.f32 %v836, %v908
        %v910 = vpop.f32.mrf.mxu0
        %911 = vdwg.mxu0
        %912 = vrot.lane.b32.xlu0 %v904, 96
        %v913 = vpop.permute.xlu0 %912
        %914 = vrot.lane.b32.xlu0 %v909, 96
        %v915 = vpop.permute.xlu0 %914
        %916 = vrot.lane.b32.xlu0 %v904, 64
        %v917 = vpop.permute.xlu0 %916
        %918 = vrot.lane.b32.xlu0 %v909, 64
        %v919 = vpop.permute.xlu0 %918
        %v920 = vmul.f32 %v904, %v666
        %v921 = vmul.f32 %v909, %v666
        %922 = vmatprep.subr.mxu0 0.0
        %923 = vmatpush1.xpose.msra.mxu0 0.0
        %924 = vmatprep.subr.mxu0 0.0
        %925 = vmatpush1.xpose.msra.mxu0 0.0
        %926 = vmatprep.subr.mxu0 0.0
        %927 = vmatpush1.xpose.msra.mxu0 0.0
        %928 = vmatprep.subr.mxu0 0.0
        %929 = vmatpush1.xpose.msra.mxu0 0.0
        %930 = vmatprep.subr.mxu0 0.0
        %931 = vmatpush1.xpose.msra.mxu0 0.0
        %932 = vmatprep.subr.mxu0 0.0
        %933 = vmatpush1.xpose.msra.mxu0 0.0
        %934 = vmatprep.subr.mxu0 0.0
        %935 = vmatpush1.xpose.msra.mxu0 0.0
        %936 = vmatprep.subr.mxu0 0.0
        %937 = vmatpush1.xpose.msra.mxu0 0.0
        %938 = vmatprep.subr.mxu0 0.0
        %939 = vmatpush1.xpose.msra.mxu0 0.0
        %940 = vmatprep.subr.mxu0 0.0
        %941 = vmatpush1.xpose.msra.mxu0 0.0
        %942 = vmatprep.subr.mxu0 0.0
        %943 = vmatpush1.xpose.msra.mxu0 0.0
        %944 = vmatprep.subr.mxu0 0.0
        %945 = vmatpush1.xpose.msra.mxu0 0.0
        %946 = vmatprep.subr.mxu0 0.0
        %947 = vmatpush1.xpose.msra.mxu0 0.0
        %948 = vmatprep.subr.mxu0 0.0
        %949 = vmatpush1.xpose.msra.mxu0 0.0
        %950 = vmatprep.subr.mxu0 0.0
        %951 = vmatpush1.xpose.msra.mxu0 %v915
        %952 = vmatprep.subr.mxu0 0.0
        %953 = vmatpush1.xpose.msra.mxu0 %v913
        %954 = vmatprep.subr.mxu0 0.0
        %955 = vmatpush2.xpose.msra.mxu0 0.0
        %956 = vmatprep.subr.mxu0 0.0
        %957 = vmatpush2.xpose.msra.mxu0 0.0
        %958 = vmatprep.subr.mxu0 0.0
        %959 = vmatpush2.xpose.msra.mxu0 0.0
        %960 = vmatprep.subr.mxu0 0.0
        %961 = vmatpush2.xpose.msra.mxu0 0.0
        %962 = vmatprep.subr.mxu0 0.0
        %963 = vmatpush2.xpose.msra.mxu0 0.0
        %964 = vmatprep.subr.mxu0 0.0
        %965 = vmatpush2.xpose.msra.mxu0 0.0
        %966 = vmatprep.subr.mxu0 0.0
        %967 = vmatpush2.xpose.msra.mxu0 0.0
        %968 = vmatprep.subr.mxu0 0.0
        %969 = vmatpush2.xpose.msra.mxu0 0.0
        %970 = vmatprep.subr.mxu0 0.0
        %971 = vmatpush2.xpose.msra.mxu0 0.0
        %972 = vmatprep.subr.mxu0 0.0
        %973 = vmatpush2.xpose.msra.mxu0 0.0
        %974 = vmatprep.subr.mxu0 0.0
        %975 = vmatpush2.xpose.msra.mxu0 0.0
        %976 = vmatprep.subr.mxu0 0.0
        %977 = vmatpush2.xpose.msra.mxu0 0.0
        %978 = vmatprep.subr.mxu0 0.0
        %979 = vmatpush2.xpose.msra.mxu0 0.0
        %980 = vmatprep.subr.mxu0 0.0
        %981 = vmatpush2.xpose.msra.mxu0 0.0
        %982 = vmatprep.subr.mxu0 0.0
        %983 = vmatpush2.xpose.msra.mxu0 0.0
        %984 = vmatprep.subr.mxu0 0.0
        %985 = vmatpush2.xpose.msra.mxu0 0.0
        %986 = vmatprep.mubr.f32.mxu0 0.0
        %987 = vmatmul.mubr.f32.gmra.mxu0 %v920
        %v988 = vpop.f32.mrf.mxu0
        %v989 = vadd.f32 0.0, %v988
        %v990 = vpop.f32.mrf.mxu0
        %991 = vmatprep.mubr.f32.mxu0 0.0
        %992 = vmatmul.mubr.f32.gmra.mxu0 %v921
        %v993 = vpop.f32.mrf.mxu0
        %v994 = vadd.f32 0.0, %v993
        %v995 = vpop.f32.mrf.mxu0
        %996 = vdwg.mxu0
        %v997 = vmul.f32 %v989, 0.35355338
        %v998 = vmul.f32 %v994, 0.35355338
        %vm999 = vcmask 72704
        %v1000 = vsel %vm999, %v997, -inf
        %1001 = vmax.xlane.f32.xlu0 %v1000
        %v1002 = vpop.xlane.xlu0 %1001
        %vm1003 = vcmask 65536
        %v1004 = vsel %vm1003, %v998, -inf
        %1005 = vmax.xlane.f32.xlu0 %v1004
        %v1006 = vpop.xlane.xlu0 %1005
        %v1007 = vsub.f32 %v997, %v1002
        %v1008 = vsub.f32 %v998, %v1006
        %v1009 = vmul.f32 %v1007, 1.442695
        %v1010 = vpow.pop %v1009
        %v1011 = vmul.f32 %v1008, 1.442695
        %v1012 = vpow.pop %v1011
        %v1013 = vsel %vm999, %v1010, 0.0
        %1014 = vadd.xlane.f32.xlu0 %v1013
        %v1015 = vpop.xlane.xlu0 %1014
        %v1016 = vsel %vm1003, %v1012, 0.0
        %1017 = vadd.xlane.f32.xlu0 %v1016
        %v1018 = vpop.xlane.xlu0 %1017
        %v1019 = vrcp.pop %v1015
        %v1020 = vrcp.pop %v1018
        %v1021 = vmul.f32 %v1010, %v1019
        %v1022 = vmul.f32 %v1012, %v1020
        %v1023 = vmul.f32 %v917, %v666
        %v1024 = vmul.f32 %v919, %v666
        %v1025 = vmul.f32 %v904, %v671
        %v1026 = vmul.f32 %v909, %v671
        %1027 = vmatprep.subr.mxu0 0.0
        %1028 = vmatpush1.xpose.msra.mxu0 0.0
        %1029 = vmatprep.subr.mxu0 0.0
        %1030 = vmatpush1.xpose.msra.mxu0 0.0
        %1031 = vmatprep.subr.mxu0 0.0
        %1032 = vmatpush1.xpose.msra.mxu0 0.0
        %1033 = vmatprep.subr.mxu0 0.0
        %1034 = vmatpush1.xpose.msra.mxu0 0.0
        %1035 = vmatprep.subr.mxu0 0.0
        %1036 = vmatpush1.xpose.msra.mxu0 0.0
        %1037 = vmatprep.subr.mxu0 0.0
        %1038 = vmatpush1.xpose.msra.mxu0 0.0
        %1039 = vmatprep.subr.mxu0 0.0
        %1040 = vmatpush1.xpose.msra.mxu0 0.0
        %1041 = vmatprep.subr.mxu0 0.0
        %1042 = vmatpush1.xpose.msra.mxu0 0.0
        %1043 = vmatprep.subr.mxu0 0.0
        %1044 = vmatpush1.xpose.msra.mxu0 0.0
        %1045 = vmatprep.subr.mxu0 0.0
        %1046 = vmatpush1.xpose.msra.mxu0 0.0
        %1047 = vmatprep.subr.mxu0 0.0
        %1048 = vmatpush1.xpose.msra.mxu0 0.0
        %1049 = vmatprep.subr.mxu0 0.0
        %1050 = vmatpush1.xpose.msra.mxu0 0.0
        %1051 = vmatprep.subr.mxu0 0.0
        %1052 = vmatpush1.xpose.msra.mxu0 0.0
        %1053 = vmatprep.subr.mxu0 0.0
        %1054 = vmatpush1.xpose.msra.mxu0 0.0
        %1055 = vmatprep.subr.mxu0 0.0
        %1056 = vmatpush1.xpose.msra.mxu0 %v915
        %1057 = vmatprep.subr.mxu0 0.0
        %1058 = vmatpush1.xpose.msra.mxu0 %v913
        %1059 = vmatprep.subr.mxu0 0.0
        %1060 = vmatpush2.xpose.msra.mxu0 0.0
        %1061 = vmatprep.subr.mxu0 0.0
        %1062 = vmatpush2.xpose.msra.mxu0 0.0
        %1063 = vmatprep.subr.mxu0 0.0
        %1064 = vmatpush2.xpose.msra.mxu0 0.0
        %1065 = vmatprep.subr.mxu0 0.0
        %1066 = vmatpush2.xpose.msra.mxu0 0.0
        %1067 = vmatprep.subr.mxu0 0.0
        %1068 = vmatpush2.xpose.msra.mxu0 0.0
        %1069 = vmatprep.subr.mxu0 0.0
        %1070 = vmatpush2.xpose.msra.mxu0 0.0
        %1071 = vmatprep.subr.mxu0 0.0
        %1072 = vmatpush2.xpose.msra.mxu0 0.0
        %1073 = vmatprep.subr.mxu0 0.0
        %1074 = vmatpush2.xpose.msra.mxu0 0.0
        %1075 = vmatprep.subr.mxu0 0.0
        %1076 = vmatpush2.xpose.msra.mxu0 0.0
        %1077 = vmatprep.subr.mxu0 0.0
        %1078 = vmatpush2.xpose.msra.mxu0 0.0
        %1079 = vmatprep.subr.mxu0 0.0
        %1080 = vmatpush2.xpose.msra.mxu0 0.0
        %1081 = vmatprep.subr.mxu0 0.0
        %1082 = vmatpush2.xpose.msra.mxu0 0.0
        %1083 = vmatprep.subr.mxu0 0.0
        %1084 = vmatpush2.xpose.msra.mxu0 0.0
        %1085 = vmatprep.subr.mxu0 0.0
        %1086 = vmatpush2.xpose.msra.mxu0 0.0
        %1087 = vmatprep.subr.mxu0 0.0
        %1088 = vmatpush2.xpose.msra.mxu0 0.0
        %1089 = vmatprep.subr.mxu0 0.0
        %1090 = vmatpush2.xpose.msra.mxu0 0.0
        %1091 = vmatprep.mubr.f32.mxu0 0.0
        %1092 = vmatmul.mubr.f32.gmra.mxu0 %v1025
        %v1093 = vpop.f32.mrf.mxu0
        %v1094 = vadd.f32 0.0, %v1093
        %v1095 = vpop.f32.mrf.mxu0
        %1096 = vmatprep.mubr.f32.mxu0 0.0
        %1097 = vmatmul.mubr.f32.gmra.mxu0 %v1026
        %v1098 = vpop.f32.mrf.mxu0
        %v1099 = vadd.f32 0.0, %v1098
        %v1100 = vpop.f32.mrf.mxu0
        %1101 = vdwg.mxu0
        %v1102 = vmul.f32 %v1094, 0.35355338
        %v1103 = vmul.f32 %v1099, 0.35355338
        %v1104 = vsel %vm999, %v1102, -inf
        %1105 = vmax.xlane.f32.xlu0 %v1104
        %v1106 = vpop.xlane.xlu0 %1105
        %v1107 = vsel %vm1003, %v1103, -inf
        %1108 = vmax.xlane.f32.xlu0 %v1107
        %v1109 = vpop.xlane.xlu0 %1108
        %v1110 = vsub.f32 %v1102, %v1106
        %v1111 = vsub.f32 %v1103, %v1109
        %v1112 = vmul.f32 %v1110, 1.442695
        %v1113 = vpow.pop %v1112
        %v1114 = vmul.f32 %v1111, 1.442695
        %v1115 = vpow.pop %v1114
        %v1116 = vsel %vm999, %v1113, 0.0
        %1117 = vadd.xlane.f32.xlu0 %v1116
        %v1118 = vpop.xlane.xlu0 %1117
        %v1119 = vsel %vm1003, %v1115, 0.0
        %1120 = vadd.xlane.f32.xlu0 %v1119
        %v1121 = vpop.xlane.xlu0 %1120
        %v1122 = vrcp.pop %v1118
        %v1123 = vrcp.pop %v1121
        %v1124 = vmul.f32 %v1113, %v1122
        %v1125 = vmul.f32 %v1115, %v1123
        %v1126 = vmul.f32 %v917, %v671
        %v1127 = vmul.f32 %v919, %v671
        %v1129 = vsel %vm999, %v1124, 0
        %v1132 = vsel %vm999, %v1125, 0
        %vm1134 = vcmask 1040384
        %v1136 = vsel %vm1134, %v1127, 0
        %1138 = vmatprep.subr.mxu0 0.0
        %1139 = vmatpush1.msra.mxu0 0.0
        %1140 = vmatprep.subr.mxu0 0.0
        %1141 = vmatpush1.msra.mxu0 0.0
        %1142 = vmatprep.subr.mxu0 0.0
        %1143 = vmatpush1.msra.mxu0 0.0
        %1144 = vmatprep.subr.mxu0 0.0
        %1145 = vmatpush1.msra.mxu0 0.0
        %1146 = vmatprep.subr.mxu0 0.0
        %1147 = vmatpush1.msra.mxu0 0.0
        %1148 = vmatprep.subr.mxu0 0.0
        %1149 = vmatpush1.msra.mxu0 0.0
        %1150 = vmatprep.subr.mxu0 0.0
        %1151 = vmatpush1.msra.mxu0 0.0
        %1152 = vmatprep.subr.mxu0 0.0
        %1153 = vmatpush1.msra.mxu0 0.0
        %1154 = vmatprep.subr.mxu0 0.0
        %1155 = vmatpush1.msra.mxu0 0.0
        %1156 = vmatprep.subr.mxu0 0.0
        %1157 = vmatpush1.msra.mxu0 0.0
        %1158 = vmatprep.subr.mxu0 0.0
        %1159 = vmatpush1.msra.mxu0 0.0
        %1160 = vmatprep.subr.mxu0 0.0
        %1161 = vmatpush1.msra.mxu0 0.0
        %1162 = vmatprep.subr.mxu0 0.0
        %1163 = vmatpush1.msra.mxu0 0.0
        %1164 = vmatprep.subr.mxu0 0.0
        %1165 = vmatpush1.msra.mxu0 0.0
        %1166 = vmatprep.subr.mxu0 0.0
        %1167 = vmatpush1.msra.mxu0 %v1136
        %1168 = vmatprep.subr.mxu0 0.0
        %1169 = vmatpush1.msra.mxu0 %v1126
        %1170 = vmatprep.subr.mxu0 0.0
        %1171 = vmatpush2.msra.mxu0 0.0
        %1172 = vmatprep.subr.mxu0 0.0
        %1173 = vmatpush2.msra.mxu0 0.0
        %1174 = vmatprep.subr.mxu0 0.0
        %1175 = vmatpush2.msra.mxu0 0.0
        %1176 = vmatprep.subr.mxu0 0.0
        %1177 = vmatpush2.msra.mxu0 0.0
        %1178 = vmatprep.subr.mxu0 0.0
        %1179 = vmatpush2.msra.mxu0 0.0
        %1180 = vmatprep.subr.mxu0 0.0
        %1181 = vmatpush2.msra.mxu0 0.0
        %1182 = vmatprep.subr.mxu0 0.0
        %1183 = vmatpush2.msra.mxu0 0.0
        %1184 = vmatprep.subr.mxu0 0.0
        %1185 = vmatpush2.msra.mxu0 0.0
        %1186 = vmatprep.subr.mxu0 0.0
        %1187 = vmatpush2.msra.mxu0 0.0
        %1188 = vmatprep.subr.mxu0 0.0
        %1189 = vmatpush2.msra.mxu0 0.0
        %1190 = vmatprep.subr.mxu0 0.0
        %1191 = vmatpush2.msra.mxu0 0.0
        %1192 = vmatprep.subr.mxu0 0.0
        %1193 = vmatpush2.msra.mxu0 0.0
        %1194 = vmatprep.subr.mxu0 0.0
        %1195 = vmatpush2.msra.mxu0 0.0
        %1196 = vmatprep.subr.mxu0 0.0
        %1197 = vmatpush2.msra.mxu0 0.0
        %1198 = vmatprep.subr.mxu0 0.0
        %1199 = vmatpush2.msra.mxu0 0.0
        %1200 = vmatprep.subr.mxu0 0.0
        %1201 = vmatpush2.msra.mxu0 0.0
        %1202 = vmatprep.mubr.f32.mxu0 0.0
        %1203 = vmatmul.mubr.f32.gmra.mxu0 %v1129
        %v1204 = vpop.f32.mrf.mxu0
        %v1205 = vadd.f32 0.0, %v1204
        %v1206 = vpop.f32.mrf.mxu0
        %1207 = vmatprep.mubr.f32.mxu0 0.0
        %1208 = vmatmul.mubr.f32.gmra.mxu0 %v1132
        %v1209 = vpop.f32.mrf.mxu0
        %v1210 = vadd.f32 0.0, %v1209
        %v1211 = vpop.f32.mrf.mxu0
        %1212 = vdwg.mxu0
        %v1214 = vsel %vm999, %v1021, 0
        %v1217 = vsel %vm999, %v1022, 0
        %v1220 = vsel %vm1134, %v1024, 0
        %1222 = vmatprep.subr.mxu0 0.0
        %1223 = vmatpush1.msra.mxu0 0.0
        %1224 = vmatprep.subr.mxu0 0.0
        %1225 = vmatpush1.msra.mxu0 0.0
        %1226 = vmatprep.subr.mxu0 0.0
        %1227 = vmatpush1.msra.mxu0 0.0
        %1228 = vmatprep.subr.mxu0 0.0
        %1229 = vmatpush1.msra.mxu0 0.0
        %1230 = vmatprep.subr.mxu0 0.0
        %1231 = vmatpush1.msra.mxu0 0.0
        %1232 = vmatprep.subr.mxu0 0.0
        %1233 = vmatpush1.msra.mxu0 0.0
        %1234 = vmatprep.subr.mxu0 0.0
        %1235 = vmatpush1.msra.mxu0 0.0
        %1236 = vmatprep.subr.mxu0 0.0
        %1237 = vmatpush1.msra.mxu0 0.0
        %1238 = vmatprep.subr.mxu0 0.0
        %1239 = vmatpush1.msra.mxu0 0.0
        %1240 = vmatprep.subr.mxu0 0.0
        %1241 = vmatpush1.msra.mxu0 0.0
        %1242 = vmatprep.subr.mxu0 0.0
        %1243 = vmatpush1.msra.mxu0 0.0
        %1244 = vmatprep.subr.mxu0 0.0
        %1245 = vmatpush1.msra.mxu0 0.0
        %1246 = vmatprep.subr.mxu0 0.0
        %1247 = vmatpush1.msra.mxu0 0.0
        %1248 = vmatprep.subr.mxu0 0.0
        %1249 = vmatpush1.msra.mxu0 0.0
        %1250 = vmatprep.subr.mxu0 0.0
        %1251 = vmatpush1.msra.mxu0 %v1220
        %1252 = vmatprep.subr.mxu0 0.0
        %1253 = vmatpush1.msra.mxu0 %v1023
        %1254 = vmatprep.subr.mxu0 0.0
        %1255 = vmatpush2.msra.mxu0 0.0
        %1256 = vmatprep.subr.mxu0 0.0
        %1257 = vmatpush2.msra.mxu0 0.0
        %1258 = vmatprep.subr.mxu0 0.0
        %1259 = vmatpush2.msra.mxu0 0.0
        %1260 = vmatprep.subr.mxu0 0.0
        %1261 = vmatpush2.msra.mxu0 0.0
        %1262 = vmatprep.subr.mxu0 0.0
        %1263 = vmatpush2.msra.mxu0 0.0
        %1264 = vmatprep.subr.mxu0 0.0
        %1265 = vmatpush2.msra.mxu0 0.0
        %1266 = vmatprep.subr.mxu0 0.0
        %1267 = vmatpush2.msra.mxu0 0.0
        %1268 = vmatprep.subr.mxu0 0.0
        %1269 = vmatpush2.msra.mxu0 0.0
        %1270 = vmatprep.subr.mxu0 0.0
        %1271 = vmatpush2.msra.mxu0 0.0
        %1272 = vmatprep.subr.mxu0 0.0
        %1273 = vmatpush2.msra.mxu0 0.0
        %1274 = vmatprep.subr.mxu0 0.0
        %1275 = vmatpush2.msra.mxu0 0.0
        %1276 = vmatprep.subr.mxu0 0.0
        %1277 = vmatpush2.msra.mxu0 0.0
        %1278 = vmatprep.subr.mxu0 0.0
        %1279 = vmatpush2.msra.mxu0 0.0
        %1280 = vmatprep.subr.mxu0 0.0
        %1281 = vmatpush2.msra.mxu0 0.0
        %1282 = vmatprep.subr.mxu0 0.0
        %1283 = vmatpush2.msra.mxu0 0.0
        %1284 = vmatprep.subr.mxu0 0.0
        %1285 = vmatpush2.msra.mxu0 0.0
        %1286 = vmatprep.mubr.f32.mxu0 0.0
        %1287 = vmatmul.mubr.f32.gmra.mxu0 %v1214
        %v1288 = vpop.f32.mrf.mxu0
        %v1289 = vadd.f32 %v1205, %v1288
        %v1290 = vpop.f32.mrf.mxu0
        %1291 = vmatprep.mubr.f32.mxu0 0.0
        %1292 = vmatmul.mubr.f32.gmra.mxu0 %v1217
        %v1293 = vpop.f32.mrf.mxu0
        %v1294 = vadd.f32 %v1210, %v1293
        %v1295 = vpop.f32.mrf.mxu0
        %1296 = vdwg.mxu0
        %v1297 = vmul.f32 %v904, %v676
        %v1298 = vmul.f32 %v909, %v676
        %1299 = vmatprep.subr.mxu0 0.0
        %1300 = vmatpush1.xpose.msra.mxu0 0.0
        %1301 = vmatprep.subr.mxu0 0.0
        %1302 = vmatpush1.xpose.msra.mxu0 0.0
        %1303 = vmatprep.subr.mxu0 0.0
        %1304 = vmatpush1.xpose.msra.mxu0 0.0
        %1305 = vmatprep.subr.mxu0 0.0
        %1306 = vmatpush1.xpose.msra.mxu0 0.0
        %1307 = vmatprep.subr.mxu0 0.0
        %1308 = vmatpush1.xpose.msra.mxu0 0.0
        %1309 = vmatprep.subr.mxu0 0.0
        %1310 = vmatpush1.xpose.msra.mxu0 0.0
        %1311 = vmatprep.subr.mxu0 0.0
        %1312 = vmatpush1.xpose.msra.mxu0 0.0
        %1313 = vmatprep.subr.mxu0 0.0
        %1314 = vmatpush1.xpose.msra.mxu0 0.0
        %1315 = vmatprep.subr.mxu0 0.0
        %1316 = vmatpush1.xpose.msra.mxu0 0.0
        %1317 = vmatprep.subr.mxu0 0.0
        %1318 = vmatpush1.xpose.msra.mxu0 0.0
        %1319 = vmatprep.subr.mxu0 0.0
        %1320 = vmatpush1.xpose.msra.mxu0 0.0
        %1321 = vmatprep.subr.mxu0 0.0
        %1322 = vmatpush1.xpose.msra.mxu0 0.0
        %1323 = vmatprep.subr.mxu0 0.0
        %1324 = vmatpush1.xpose.msra.mxu0 0.0
        %1325 = vmatprep.subr.mxu0 0.0
        %1326 = vmatpush1.xpose.msra.mxu0 0.0
        %1327 = vmatprep.subr.mxu0 0.0
        %1328 = vmatpush1.xpose.msra.mxu0 %v915
        %1329 = vmatprep.subr.mxu0 0.0
        %1330 = vmatpush1.xpose.msra.mxu0 %v913
        %1331 = vmatprep.subr.mxu0 0.0
        %1332 = vmatpush2.xpose.msra.mxu0 0.0
        %1333 = vmatprep.subr.mxu0 0.0
        %1334 = vmatpush2.xpose.msra.mxu0 0.0
        %1335 = vmatprep.subr.mxu0 0.0
        %1336 = vmatpush2.xpose.msra.mxu0 0.0
        %1337 = vmatprep.subr.mxu0 0.0
        %1338 = vmatpush2.xpose.msra.mxu0 0.0
        %1339 = vmatprep.subr.mxu0 0.0
        %1340 = vmatpush2.xpose.msra.mxu0 0.0
        %1341 = vmatprep.subr.mxu0 0.0
        %1342 = vmatpush2.xpose.msra.mxu0 0.0
        %1343 = vmatprep.subr.mxu0 0.0
        %1344 = vmatpush2.xpose.msra.mxu0 0.0
        %1345 = vmatprep.subr.mxu0 0.0
        %1346 = vmatpush2.xpose.msra.mxu0 0.0
        %1347 = vmatprep.subr.mxu0 0.0
        %1348 = vmatpush2.xpose.msra.mxu0 0.0
        %1349 = vmatprep.subr.mxu0 0.0
        %1350 = vmatpush2.xpose.msra.mxu0 0.0
        %1351 = vmatprep.subr.mxu0 0.0
        %1352 = vmatpush2.xpose.msra.mxu0 0.0
        %1353 = vmatprep.subr.mxu0 0.0
        %1354 = vmatpush2.xpose.msra.mxu0 0.0
        %1355 = vmatprep.subr.mxu0 0.0
        %1356 = vmatpush2.xpose.msra.mxu0 0.0
        %1357 = vmatprep.subr.mxu0 0.0
        %1358 = vmatpush2.xpose.msra.mxu0 0.0
        %1359 = vmatprep.subr.mxu0 0.0
        %1360 = vmatpush2.xpose.msra.mxu0 0.0
        %1361 = vmatprep.subr.mxu0 0.0
        %1362 = vmatpush2.xpose.msra.mxu0 0.0
        %1363 = vmatprep.mubr.f32.mxu0 0.0
        %1364 = vmatmul.mubr.f32.gmra.mxu0 %v1297
        %v1365 = vpop.f32.mrf.mxu0
        %v1366 = vadd.f32 0.0, %v1365
        %v1367 = vpop.f32.mrf.mxu0
        %1368 = vmatprep.mubr.f32.mxu0 0.0
        %1369 = vmatmul.mubr.f32.gmra.mxu0 %v1298
        %v1370 = vpop.f32.mrf.mxu0
        %v1371 = vadd.f32 0.0, %v1370
        %v1372 = vpop.f32.mrf.mxu0
        %1373 = vdwg.mxu0
        %v1374 = vmul.f32 %v1366, 0.35355338
        %v1375 = vmul.f32 %v1371, 0.35355338
        %v1376 = vsel %vm999, %v1374, -inf
        %1377 = vmax.xlane.f32.xlu0 %v1376
        %v1378 = vpop.xlane.xlu0 %1377
        %v1379 = vsel %vm1003, %v1375, -inf
        %1380 = vmax.xlane.f32.xlu0 %v1379
        %v1381 = vpop.xlane.xlu0 %1380
        %v1382 = vsub.f32 %v1374, %v1378
        %v1383 = vsub.f32 %v1375, %v1381
        %v1384 = vmul.f32 %v1382, 1.442695
        %v1385 = vpow.pop %v1384
        %v1386 = vmul.f32 %v1383, 1.442695
        %v1387 = vpow.pop %v1386
        %v1388 = vsel %vm999, %v1385, 0.0
        %1389 = vadd.xlane.f32.xlu0 %v1388
        %v1390 = vpop.xlane.xlu0 %1389
        %v1391 = vsel %vm1003, %v1387, 0.0
        %1392 = vadd.xlane.f32.xlu0 %v1391
        %v1393 = vpop.xlane.xlu0 %1392
        %v1394 = vrcp.pop %v1390
        %v1395 = vrcp.pop %v1393
        %v1396 = vmul.f32 %v1385, %v1394
        %v1397 = vmul.f32 %v1387, %v1395
        %v1398 = vmul.f32 %v917, %v676
        %v1399 = vmul.f32 %v919, %v676
        %v1401 = vsel %vm999, %v1396, 0
        %v1404 = vsel %vm999, %v1397, 0
        %v1407 = vsel %vm1134, %v1399, 0
        %1409 = vmatprep.subr.mxu0 0.0
        %1410 = vmatpush1.msra.mxu0 0.0
        %1411 = vmatprep.subr.mxu0 0.0
        %1412 = vmatpush1.msra.mxu0 0.0
        %1413 = vmatprep.subr.mxu0 0.0
        %1414 = vmatpush1.msra.mxu0 0.0
        %1415 = vmatprep.subr.mxu0 0.0
        %1416 = vmatpush1.msra.mxu0 0.0
        %1417 = vmatprep.subr.mxu0 0.0
        %1418 = vmatpush1.msra.mxu0 0.0
        %1419 = vmatprep.subr.mxu0 0.0
        %1420 = vmatpush1.msra.mxu0 0.0
        %1421 = vmatprep.subr.mxu0 0.0
        %1422 = vmatpush1.msra.mxu0 0.0
        %1423 = vmatprep.subr.mxu0 0.0
        %1424 = vmatpush1.msra.mxu0 0.0
        %1425 = vmatprep.subr.mxu0 0.0
        %1426 = vmatpush1.msra.mxu0 0.0
        %1427 = vmatprep.subr.mxu0 0.0
        %1428 = vmatpush1.msra.mxu0 0.0
        %1429 = vmatprep.subr.mxu0 0.0
        %1430 = vmatpush1.msra.mxu0 0.0
        %1431 = vmatprep.subr.mxu0 0.0
        %1432 = vmatpush1.msra.mxu0 0.0
        %1433 = vmatprep.subr.mxu0 0.0
        %1434 = vmatpush1.msra.mxu0 0.0
        %1435 = vmatprep.subr.mxu0 0.0
        %1436 = vmatpush1.msra.mxu0 0.0
        %1437 = vmatprep.subr.mxu0 0.0
        %1438 = vmatpush1.msra.mxu0 %v1407
        %1439 = vmatprep.subr.mxu0 0.0
        %1440 = vmatpush1.msra.mxu0 %v1398
        %1441 = vmatprep.subr.mxu0 0.0
        %1442 = vmatpush2.msra.mxu0 0.0
        %1443 = vmatprep.subr.mxu0 0.0
        %1444 = vmatpush2.msra.mxu0 0.0
        %1445 = vmatprep.subr.mxu0 0.0
        %1446 = vmatpush2.msra.mxu0 0.0
        %1447 = vmatprep.subr.mxu0 0.0
        %1448 = vmatpush2.msra.mxu0 0.0
        %1449 = vmatprep.subr.mxu0 0.0
        %1450 = vmatpush2.msra.mxu0 0.0
        %1451 = vmatprep.subr.mxu0 0.0
        %1452 = vmatpush2.msra.mxu0 0.0
        %1453 = vmatprep.subr.mxu0 0.0
        %1454 = vmatpush2.msra.mxu0 0.0
        %1455 = vmatprep.subr.mxu0 0.0
        %1456 = vmatpush2.msra.mxu0 0.0
        %1457 = vmatprep.subr.mxu0 0.0
        %1458 = vmatpush2.msra.mxu0 0.0
        %1459 = vmatprep.subr.mxu0 0.0
        %1460 = vmatpush2.msra.mxu0 0.0
        %1461 = vmatprep.subr.mxu0 0.0
        %1462 = vmatpush2.msra.mxu0 0.0
        %1463 = vmatprep.subr.mxu0 0.0
        %1464 = vmatpush2.msra.mxu0 0.0
        %1465 = vmatprep.subr.mxu0 0.0
        %1466 = vmatpush2.msra.mxu0 0.0
        %1467 = vmatprep.subr.mxu0 0.0
        %1468 = vmatpush2.msra.mxu0 0.0
        %1469 = vmatprep.subr.mxu0 0.0
        %1470 = vmatpush2.msra.mxu0 0.0
        %1471 = vmatprep.subr.mxu0 0.0
        %1472 = vmatpush2.msra.mxu0 0.0
        %1473 = vmatprep.mubr.f32.mxu0 0.0
        %1474 = vmatmul.mubr.f32.gmra.mxu0 %v1401
        %v1475 = vpop.f32.mrf.mxu0
        %v1476 = vadd.f32 0.0, %v1475
        %v1477 = vpop.f32.mrf.mxu0
        %1478 = vmatprep.mubr.f32.mxu0 0.0
        %1479 = vmatmul.mubr.f32.gmra.mxu0 %v1404
        %v1480 = vpop.f32.mrf.mxu0
        %v1481 = vadd.f32 0.0, %v1480
        %v1482 = vpop.f32.mrf.mxu0
        %1483 = vdwg.mxu0
        %v1484 = vadd.f32 %v1289, %v1476
        %v1485 = vadd.f32 %v1294, %v1481
        %v1486 = vmul.f32 %v904, %v680
        %v1487 = vmul.f32 %v909, %v680
        %1488 = vmatprep.subr.mxu0 0.0
        %1489 = vmatpush1.xpose.msra.mxu0 0.0
        %1490 = vmatprep.subr.mxu0 0.0
        %1491 = vmatpush1.xpose.msra.mxu0 0.0
        %1492 = vmatprep.subr.mxu0 0.0
        %1493 = vmatpush1.xpose.msra.mxu0 0.0
        %1494 = vmatprep.subr.mxu0 0.0
        %1495 = vmatpush1.xpose.msra.mxu0 0.0
        %1496 = vmatprep.subr.mxu0 0.0
        %1497 = vmatpush1.xpose.msra.mxu0 0.0
        %1498 = vmatprep.subr.mxu0 0.0
        %1499 = vmatpush1.xpose.msra.mxu0 0.0
        %1500 = vmatprep.subr.mxu0 0.0
        %1501 = vmatpush1.xpose.msra.mxu0 0.0
        %1502 = vmatprep.subr.mxu0 0.0
        %1503 = vmatpush1.xpose.msra.mxu0 0.0
        %1504 = vmatprep.subr.mxu0 0.0
        %1505 = vmatpush1.xpose.msra.mxu0 0.0
        %1506 = vmatprep.subr.mxu0 0.0
        %1507 = vmatpush1.xpose.msra.mxu0 0.0
        %1508 = vmatprep.subr.mxu0 0.0
        %1509 = vmatpush1.xpose.msra.mxu0 0.0
        %1510 = vmatprep.subr.mxu0 0.0
        %1511 = vmatpush1.xpose.msra.mxu0 0.0
        %1512 = vmatprep.subr.mxu0 0.0
        %1513 = vmatpush1.xpose.msra.mxu0 0.0
        %1514 = vmatprep.subr.mxu0 0.0
        %1515 = vmatpush1.xpose.msra.mxu0 0.0
        %1516 = vmatprep.subr.mxu0 0.0
        %1517 = vmatpush1.xpose.msra.mxu0 %v915
        %1518 = vmatprep.subr.mxu0 0.0
        %1519 = vmatpush1.xpose.msra.mxu0 %v913
        %1520 = vmatprep.subr.mxu0 0.0
        %1521 = vmatpush2.xpose.msra.mxu0 0.0
        %1522 = vmatprep.subr.mxu0 0.0
        %1523 = vmatpush2.xpose.msra.mxu0 0.0
        %1524 = vmatprep.subr.mxu0 0.0
        %1525 = vmatpush2.xpose.msra.mxu0 0.0
        %1526 = vmatprep.subr.mxu0 0.0
        %1527 = vmatpush2.xpose.msra.mxu0 0.0
        %1528 = vmatprep.subr.mxu0 0.0
        %1529 = vmatpush2.xpose.msra.mxu0 0.0
        %1530 = vmatprep.subr.mxu0 0.0
        %1531 = vmatpush2.xpose.msra.mxu0 0.0
        %1532 = vmatprep.subr.mxu0 0.0
        %1533 = vmatpush2.xpose.msra.mxu0 0.0
        %1534 = vmatprep.subr.mxu0 0.0
        %1535 = vmatpush2.xpose.msra.mxu0 0.0
        %1536 = vmatprep.subr.mxu0 0.0
        %1537 = vmatpush2.xpose.msra.mxu0 0.0
        %1538 = vmatprep.subr.mxu0 0.0
        %1539 = vmatpush2.xpose.msra.mxu0 0.0
        %1540 = vmatprep.subr.mxu0 0.0
        %1541 = vmatpush2.xpose.msra.mxu0 0.0
        %1542 = vmatprep.subr.mxu0 0.0
        %1543 = vmatpush2.xpose.msra.mxu0 0.0
        %1544 = vmatprep.subr.mxu0 0.0
        %1545 = vmatpush2.xpose.msra.mxu0 0.0
        %1546 = vmatprep.subr.mxu0 0.0
        %1547 = vmatpush2.xpose.msra.mxu0 0.0
        %1548 = vmatprep.subr.mxu0 0.0
        %1549 = vmatpush2.xpose.msra.mxu0 0.0
        %1550 = vmatprep.subr.mxu0 0.0
        %1551 = vmatpush2.xpose.msra.mxu0 0.0
        %1552 = vmatprep.mubr.f32.mxu0 0.0
        %1553 = vmatmul.mubr.f32.gmra.mxu0 %v1486
        %v1554 = vpop.f32.mrf.mxu0
        %v1555 = vadd.f32 0.0, %v1554
        %v1556 = vpop.f32.mrf.mxu0
        %1557 = vmatprep.mubr.f32.mxu0 0.0
        %1558 = vmatmul.mubr.f32.gmra.mxu0 %v1487
        %v1559 = vpop.f32.mrf.mxu0
        %v1560 = vadd.f32 0.0, %v1559
        %v1561 = vpop.f32.mrf.mxu0
        %1562 = vdwg.mxu0
        %v1563 = vmul.f32 %v1555, 0.35355338
        %v1564 = vmul.f32 %v1560, 0.35355338
        %v1565 = vsel %vm999, %v1563, -inf
        %1566 = vmax.xlane.f32.xlu0 %v1565
        %v1567 = vpop.xlane.xlu0 %1566
        %v1568 = vsel %vm1003, %v1564, -inf
        %1569 = vmax.xlane.f32.xlu0 %v1568
        %v1570 = vpop.xlane.xlu0 %1569
        %v1571 = vsub.f32 %v1563, %v1567
        %v1572 = vsub.f32 %v1564, %v1570
        %v1573 = vmul.f32 %v1571, 1.442695
        %v1574 = vpow.pop %v1573
        %v1575 = vmul.f32 %v1572, 1.442695
        %v1576 = vpow.pop %v1575
        %v1577 = vsel %vm999, %v1574, 0.0
        %1578 = vadd.xlane.f32.xlu0 %v1577
        %v1579 = vpop.xlane.xlu0 %1578
        %v1580 = vsel %vm1003, %v1576, 0.0
        %1581 = vadd.xlane.f32.xlu0 %v1580
        %v1582 = vpop.xlane.xlu0 %1581
        %v1583 = vrcp.pop %v1579
        %v1584 = vrcp.pop %v1582
        %v1585 = vmul.f32 %v1574, %v1583
        %v1586 = vmul.f32 %v1576, %v1584
        %v1587 = vmul.f32 %v917, %v680
        %v1588 = vmul.f32 %v919, %v680
        %v1590 = vsel %vm999, %v1585, 0
        %v1593 = vsel %vm999, %v1586, 0
        %v1596 = vsel %vm1134, %v1588, 0
        %1598 = vmatprep.subr.mxu0 0.0
        %1599 = vmatpush1.msra.mxu0 0.0
        %1600 = vmatprep.subr.mxu0 0.0
        %1601 = vmatpush1.msra.mxu0 0.0
        %1602 = vmatprep.subr.mxu0 0.0
        %1603 = vmatpush1.msra.mxu0 0.0
        %1604 = vmatprep.subr.mxu0 0.0
        %1605 = vmatpush1.msra.mxu0 0.0
        %1606 = vmatprep.subr.mxu0 0.0
        %1607 = vmatpush1.msra.mxu0 0.0
        %1608 = vmatprep.subr.mxu0 0.0
        %1609 = vmatpush1.msra.mxu0 0.0
        %1610 = vmatprep.subr.mxu0 0.0
        %1611 = vmatpush1.msra.mxu0 0.0
        %1612 = vmatprep.subr.mxu0 0.0
        %1613 = vmatpush1.msra.mxu0 0.0
        %1614 = vmatprep.subr.mxu0 0.0
        %1615 = vmatpush1.msra.mxu0 0.0
        %1616 = vmatprep.subr.mxu0 0.0
        %1617 = vmatpush1.msra.mxu0 0.0
        %1618 = vmatprep.subr.mxu0 0.0
        %1619 = vmatpush1.msra.mxu0 0.0
        %1620 = vmatprep.subr.mxu0 0.0
        %1621 = vmatpush1.msra.mxu0 0.0
        %1622 = vmatprep.subr.mxu0 0.0
        %1623 = vmatpush1.msra.mxu0 0.0
        %1624 = vmatprep.subr.mxu0 0.0
        %1625 = vmatpush1.msra.mxu0 0.0
        %1626 = vmatprep.subr.mxu0 0.0
        %1627 = vmatpush1.msra.mxu0 %v1596
        %1628 = vmatprep.subr.mxu0 0.0
        %1629 = vmatpush1.msra.mxu0 %v1587
        %1630 = vmatprep.subr.mxu0 0.0
        %1631 = vmatpush2.msra.mxu0 0.0
        %1632 = vmatprep.subr.mxu0 0.0
        %1633 = vmatpush2.msra.mxu0 0.0
        %1634 = vmatprep.subr.mxu0 0.0
        %1635 = vmatpush2.msra.mxu0 0.0
        %1636 = vmatprep.subr.mxu0 0.0
        %1637 = vmatpush2.msra.mxu0 0.0
        %1638 = vmatprep.subr.mxu0 0.0
        %1639 = vmatpush2.msra.mxu0 0.0
        %1640 = vmatprep.subr.mxu0 0.0
        %1641 = vmatpush2.msra.mxu0 0.0
        %1642 = vmatprep.subr.mxu0 0.0
        %1643 = vmatpush2.msra.mxu0 0.0
        %1644 = vmatprep.subr.mxu0 0.0
        %1645 = vmatpush2.msra.mxu0 0.0
        %1646 = vmatprep.subr.mxu0 0.0
        %1647 = vmatpush2.msra.mxu0 0.0
        %1648 = vmatprep.subr.mxu0 0.0
        %1649 = vmatpush2.msra.mxu0 0.0
        %1650 = vmatprep.subr.mxu0 0.0
        %1651 = vmatpush2.msra.mxu0 0.0
        %1652 = vmatprep.subr.mxu0 0.0
        %1653 = vmatpush2.msra.mxu0 0.0
        %1654 = vmatprep.subr.mxu0 0.0
        %1655 = vmatpush2.msra.mxu0 0.0
        %1656 = vmatprep.subr.mxu0 0.0
        %1657 = vmatpush2.msra.mxu0 0.0
        %1658 = vmatprep.subr.mxu0 0.0
        %1659 = vmatpush2.msra.mxu0 0.0
        %1660 = vmatprep.subr.mxu0 0.0
        %1661 = vmatpush2.msra.mxu0 0.0
        %1662 = vmatprep.mubr.f32.mxu0 0.0
        %1663 = vmatmul.mubr.f32.gmra.mxu0 %v1590
        %v1664 = vpop.f32.mrf.mxu0
        %v1665 = vadd.f32 0.0, %v1664
        %v1666 = vpop.f32.mrf.mxu0
        %1667 = vmatprep.mubr.f32.mxu0 0.0
        %1668 = vmatmul.mubr.f32.gmra.mxu0 %v1593
        %v1669 = vpop.f32.mrf.mxu0
        %v1670 = vadd.f32 0.0, %v1669
        %v1671 = vpop.f32.mrf.mxu0
        %1672 = vdwg.mxu0
        %v1673 = vadd.f32 %v1484, %v1665
        %v1674 = vadd.f32 %v1485, %v1670
        %v1675 = vld [vmem:[#allocation8] sm:$0xf]
        %v1676 = vld [vmem:[#allocation8 + $0x4] sm:$0xf]
        %v1677 = vld [vmem:[#allocation8 + $0x8] sm:$0xf]
        %v1678 = vld [vmem:[#allocation8 + $0xc] sm:$0xf]
        %v1679 = vld [vmem:[#allocation8 + $0x10] sm:$0xf]
        %v1680 = vld [vmem:[#allocation8 + $0x14] sm:$0xf]
        %v1681 = vld [vmem:[#allocation8 + $0x18] sm:$0xf]
        %v1682 = vld [vmem:[#allocation8 + $0x1c] sm:$0xf]
        %v1683 = vld [vmem:[#allocation8 + $0x20] sm:$0xf]
        %v1684 = vld [vmem:[#allocation8 + $0x24] sm:$0xf]
        %v1685 = vld [vmem:[#allocation8 + $0x28] sm:$0xf]
        %v1686 = vld [vmem:[#allocation8 + $0x2c] sm:$0xf]
        %v1687 = vld [vmem:[#allocation8 + $0x30] sm:$0xf]
        %v1688 = vld [vmem:[#allocation8 + $0x34] sm:$0xf]
        %v1689 = vld [vmem:[#allocation8 + $0x38] sm:$0xf]
        %v1690 = vld [vmem:[#allocation8 + $0x3c] sm:$0xf]
        %v1691 = vunpack.c.l.bf16 %v1675
        %v1692 = vunpack.c.l.bf16 %v1676
        %v1693 = vunpack.c.l.bf16 %v1677
        %v1694 = vunpack.c.l.bf16 %v1678
        %v1695 = vunpack.c.l.bf16 %v1679
        %v1696 = vunpack.c.l.bf16 %v1680
        %v1697 = vunpack.c.l.bf16 %v1681
        %v1698 = vunpack.c.l.bf16 %v1682
        %v1699 = vunpack.c.l.bf16 %v1683
        %v1700 = vunpack.c.l.bf16 %v1684
        %v1701 = vunpack.c.l.bf16 %v1685
        %v1702 = vunpack.c.l.bf16 %v1686
        %v1703 = vunpack.c.l.bf16 %v1687
        %v1704 = vunpack.c.l.bf16 %v1688
        %v1705 = vunpack.c.l.bf16 %v1689
        %v1706 = vunpack.c.l.bf16 %v1690
        %v1707 = vlaneseq
        %v1708 = vshrl.u32 %v1707, 7
        %v1709 = vsub.s32 1, %v1708
        %v1710 = vrot.slane %v800, %v1709
        %1711 = vmatprep.subr.mxu0 0.0
        %1712 = vmatpush1.msra.mxu0 %v1706
        %1713 = vmatprep.subr.mxu0 0.0
        %1714 = vmatpush1.msra.mxu0 %v1705
        %1715 = vmatprep.subr.mxu0 0.0
        %1716 = vmatpush1.msra.mxu0 %v1704
        %1717 = vmatprep.subr.mxu0 0.0
        %1718 = vmatpush1.msra.mxu0 %v1703
        %1719 = vmatprep.subr.mxu0 0.0
        %1720 = vmatpush1.msra.mxu0 %v1702
        %1721 = vmatprep.subr.mxu0 0.0
        %1722 = vmatpush1.msra.mxu0 %v1701
        %1723 = vmatprep.subr.mxu0 0.0
        %1724 = vmatpush1.msra.mxu0 %v1700
        %1725 = vmatprep.subr.mxu0 0.0
        %1726 = vmatpush1.msra.mxu0 %v1699
        %1727 = vmatprep.subr.mxu0 0.0
        %1728 = vmatpush1.msra.mxu0 %v1698
        %1729 = vmatprep.subr.mxu0 0.0
        %1730 = vmatpush1.msra.mxu0 %v1697
        %1731 = vmatprep.subr.mxu0 0.0
        %1732 = vmatpush1.msra.mxu0 %v1696
        %1733 = vmatprep.subr.mxu0 0.0
        %1734 = vmatpush1.msra.mxu0 %v1695
        %1735 = vmatprep.subr.mxu0 0.0
        %1736 = vmatpush1.msra.mxu0 %v1694
        %1737 = vmatprep.subr.mxu0 0.0
        %1738 = vmatpush1.msra.mxu0 %v1693
        %1739 = vmatprep.subr.mxu0 0.0
        %1740 = vmatpush1.msra.mxu0 %v1692
        %1741 = vmatprep.subr.mxu0 0.0
        %1742 = vmatpush1.msra.mxu0 %v1691
        %1743 = vmatprep.subr.mxu0 0.0
        %1744 = vmatpush2.msra.mxu0 0.0
        %1745 = vmatprep.subr.mxu0 0.0
        %1746 = vmatpush2.msra.mxu0 0.0
        %1747 = vmatprep.subr.mxu0 0.0
        %1748 = vmatpush2.msra.mxu0 0.0
        %1749 = vmatprep.subr.mxu0 0.0
        %1750 = vmatpush2.msra.mxu0 0.0
        %1751 = vmatprep.subr.mxu0 0.0
        %1752 = vmatpush2.msra.mxu0 0.0
        %1753 = vmatprep.subr.mxu0 0.0
        %1754 = vmatpush2.msra.mxu0 0.0
        %1755 = vmatprep.subr.mxu0 0.0
        %1756 = vmatpush2.msra.mxu0 0.0
        %1757 = vmatprep.subr.mxu0 0.0
        %1758 = vmatpush2.msra.mxu0 0.0
        %1759 = vmatprep.subr.mxu0 0.0
        %1760 = vmatpush2.msra.mxu0 0.0
        %1761 = vmatprep.subr.mxu0 0.0
        %1762 = vmatpush2.msra.mxu0 0.0
        %1763 = vmatprep.subr.mxu0 0.0
        %1764 = vmatpush2.msra.mxu0 0.0
        %1765 = vmatprep.subr.mxu0 0.0
        %1766 = vmatpush2.msra.mxu0 0.0
        %1767 = vmatprep.subr.mxu0 0.0
        %1768 = vmatpush2.msra.mxu0 0.0
        %1769 = vmatprep.subr.mxu0 0.0
        %1770 = vmatpush2.msra.mxu0 0.0
        %1771 = vmatprep.subr.mxu0 0.0
        %1772 = vmatpush2.msra.mxu0 0.0
        %1773 = vmatprep.subr.mxu0 0.0
        %1774 = vmatpush2.msra.mxu0 0.0
        %1775 = vmatprep.mubr.f32.mxu0 0.0
        %1776 = vmatmul.mubr.f32.gmra.mxu0 %v1673
        %v1777 = vpop.f32.mrf.mxu0
        %v1778 = vadd.f32 %v1710, %v1777
        %v1779 = vpop.f32.mrf.mxu0
        %1780 = vmatprep.mubr.f32.mxu0 0.0
        %1781 = vmatmul.mubr.f32.gmra.mxu0 %v1674
        %v1782 = vpop.f32.mrf.mxu0
        %v1783 = vadd.f32 %v1710, %v1782
        %v1784 = vpop.f32.mrf.mxu0
        %1785 = vdwg.mxu0
        %v1786 = vadd.f32 %v798, %v1778
        %v1787 = vadd.f32 %v799, %v1783
        %1788 = vadd.xlane.f32.xlu0 %v1786
        %v1789 = vpop.xlane.xlu0 %1788
        %v1790 = vsel %vm1134, %v1787, 0.0
        %1791 = vadd.xlane.f32.xlu0 %v1790
        %v1792 = vpop.xlane.xlu0 %1791
        %v1793 = vmul.f32 %v1789, 0.03125
        %v1794 = vmul.f32 %v1792, 0.03125
        %v1795 = vsub.f32 %v1786, %v1793
        %v1796 = vsub.f32 %v1787, %v1794
        %v1797 = vmul.f32 %v1795, %v661
        %v1798 = vmul.f32 %v1796, %v661
        %v1799 = vmul.f32 %v1797, %v1797
        %v1800 = vmul.f32 %v1798, %v1798
        %1801 = vadd.xlane.f32.xlu0 %v1799
        %v1802 = vpop.xlane.xlu0 %1801
        %v1803 = vsel %vm1134, %v1800, 0.0
        %1804 = vadd.xlane.f32.xlu0 %v1803
        %v1805 = vpop.xlane.xlu0 %1804
        %v1806 = vmul.f32 %v1802, 0.03125
        %v1807 = vmul.f32 %v1805, 0.03125
        %v1808 = vadd.f32 %v1806, 1e-05
        %v1809 = vadd.f32 %v1807, 1e-05
        %v1810 = vrsqrt.pop %v1808
        %v1811 = vrsqrt.pop %v1809
        %v1812 = vmul.f32 %v1797, %v1810
        %v1813 = vmul.f32 %v1798, %v1811
        %v1814 = vlaneseq
        %v1815 = vshrl.u32 %v1814, 7
        %v1816 = vsub.s32 4, %v1815
        %v1817 = vrot.slane %v800, %v1816
        %v1818 = vmul.f32 %v1812, %v1817
        %v1819 = vmul.f32 %v1813, %v1817
        %v1820 = vlaneseq
        %v1821 = vshrl.u32 %v1820, 7
        %v1822 = vsub.s32 5, %v1821
        %v1823 = vrot.slane %v800, %v1822
        %v1824 = vadd.f32 %v1818, %v1823
        %v1825 = vadd.f32 %v1819, %v1823
        %v1826 = vld [vmem:[#allocation9] sm:$0xf]
        %v1827 = vld [vmem:[#allocation9 + $0x4] sm:$0xf]
        %v1828 = vld [vmem:[#allocation9 + $0x8] sm:$0xf]
        %v1829 = vld [vmem:[#allocation9 + $0xc] sm:$0xf]
        %v1830 = vld [vmem:[#allocation9 + $0x10] sm:$0xf]
        %v1831 = vld [vmem:[#allocation9 + $0x14] sm:$0xf]
        %v1832 = vld [vmem:[#allocation9 + $0x18] sm:$0xf]
        %v1833 = vld [vmem:[#allocation9 + $0x1c] sm:$0xf]
        %v1834 = vld [vmem:[#allocation9 + $0x20] sm:$0xf]
        %v1835 = vld [vmem:[#allocation9 + $0x24] sm:$0xf]
        %v1836 = vld [vmem:[#allocation9 + $0x28] sm:$0xf]
        %v1837 = vld [vmem:[#allocation9 + $0x2c] sm:$0xf]
        %v1838 = vld [vmem:[#allocation9 + $0x30] sm:$0xf]
        %v1839 = vld [vmem:[#allocation9 + $0x34] sm:$0xf]
        %v1840 = vld [vmem:[#allocation9 + $0x38] sm:$0xf]
        %v1841 = vld [vmem:[#allocation9 + $0x3c] sm:$0xf]
        %v1842 = vunpack.c.l.bf16 %v1826
        %v1843 = vunpack.c.l.bf16 %v1827
        %v1844 = vunpack.c.l.bf16 %v1828
        %v1845 = vunpack.c.l.bf16 %v1829
        %v1846 = vunpack.c.l.bf16 %v1830
        %v1847 = vunpack.c.l.bf16 %v1831
        %v1848 = vunpack.c.l.bf16 %v1832
        %v1849 = vunpack.c.l.bf16 %v1833
        %v1850 = vunpack.c.l.bf16 %v1834
        %v1851 = vunpack.c.l.bf16 %v1835
        %v1852 = vunpack.c.l.bf16 %v1836
        %v1853 = vunpack.c.l.bf16 %v1837
        %v1854 = vunpack.c.l.bf16 %v1838
        %v1855 = vunpack.c.l.bf16 %v1839
        %v1856 = vunpack.c.l.bf16 %v1840
        %v1857 = vunpack.c.l.bf16 %v1841
        %v1858 = vlaneseq
        %v1859 = vshrl.u32 %v1858, 7
        %v1860 = vsub.s32 2, %v1859
        %v1861 = vrot.slane %v800, %v1860
        %1862 = vmatprep.subr.mxu0 0.0
        %1863 = vmatpush1.msra.mxu0 %v1857
        %1864 = vmatprep.subr.mxu0 0.0
        %1865 = vmatpush1.msra.mxu0 %v1856
        %1866 = vmatprep.subr.mxu0 0.0
        %1867 = vmatpush1.msra.mxu0 %v1855
        %1868 = vmatprep.subr.mxu0 0.0
        %1869 = vmatpush1.msra.mxu0 %v1854
        %1870 = vmatprep.subr.mxu0 0.0
        %1871 = vmatpush1.msra.mxu0 %v1853
        %1872 = vmatprep.subr.mxu0 0.0
        %1873 = vmatpush1.msra.mxu0 %v1852
        %1874 = vmatprep.subr.mxu0 0.0
        %1875 = vmatpush1.msra.mxu0 %v1851
        %1876 = vmatprep.subr.mxu0 0.0
        %1877 = vmatpush1.msra.mxu0 %v1850
        %1878 = vmatprep.subr.mxu0 0.0
        %1879 = vmatpush1.msra.mxu0 %v1849
        %1880 = vmatprep.subr.mxu0 0.0
        %1881 = vmatpush1.msra.mxu0 %v1848
        %1882 = vmatprep.subr.mxu0 0.0
        %1883 = vmatpush1.msra.mxu0 %v1847
        %1884 = vmatprep.subr.mxu0 0.0
        %1885 = vmatpush1.msra.mxu0 %v1846
        %1886 = vmatprep.subr.mxu0 0.0
        %1887 = vmatpush1.msra.mxu0 %v1845
        %1888 = vmatprep.subr.mxu0 0.0
        %1889 = vmatpush1.msra.mxu0 %v1844
        %1890 = vmatprep.subr.mxu0 0.0
        %1891 = vmatpush1.msra.mxu0 %v1843
        %1892 = vmatprep.subr.mxu0 0.0
        %1893 = vmatpush1.msra.mxu0 %v1842
        %1894 = vmatprep.subr.mxu0 0.0
        %1895 = vmatpush2.msra.mxu0 0.0
        %1896 = vmatprep.subr.mxu0 0.0
        %1897 = vmatpush2.msra.mxu0 0.0
        %1898 = vmatprep.subr.mxu0 0.0
        %1899 = vmatpush2.msra.mxu0 0.0
        %1900 = vmatprep.subr.mxu0 0.0
        %1901 = vmatpush2.msra.mxu0 0.0
        %1902 = vmatprep.subr.mxu0 0.0
        %1903 = vmatpush2.msra.mxu0 0.0
        %1904 = vmatprep.subr.mxu0 0.0
        %1905 = vmatpush2.msra.mxu0 0.0
        %1906 = vmatprep.subr.mxu0 0.0
        %1907 = vmatpush2.msra.mxu0 0.0
        %1908 = vmatprep.subr.mxu0 0.0
        %1909 = vmatpush2.msra.mxu0 0.0
        %1910 = vmatprep.subr.mxu0 0.0
        %1911 = vmatpush2.msra.mxu0 0.0
        %1912 = vmatprep.subr.mxu0 0.0
        %1913 = vmatpush2.msra.mxu0 0.0
        %1914 = vmatprep.subr.mxu0 0.0
        %1915 = vmatpush2.msra.mxu0 0.0
        %1916 = vmatprep.subr.mxu0 0.0
        %1917 = vmatpush2.msra.mxu0 0.0
        %1918 = vmatprep.subr.mxu0 0.0
        %1919 = vmatpush2.msra.mxu0 0.0
        %1920 = vmatprep.subr.mxu0 0.0
        %1921 = vmatpush2.msra.mxu0 0.0
        %1922 = vmatprep.subr.mxu0 0.0
        %1923 = vmatpush2.msra.mxu0 0.0
        %1924 = vmatprep.subr.mxu0 0.0
        %1925 = vmatpush2.msra.mxu0 0.0
        %1926 = vmatprep.mubr.f32.mxu0 0.0
        %1927 = vmatmul.mubr.f32.gmra.mxu0 %v1824
        %v1928 = vpop.f32.mrf.mxu0
        %v1929 = vadd.f32 %v1861, %v1928
        %v1930 = vpop.f32.mrf.mxu0
        %1931 = vmatprep.mubr.f32.mxu0 0.0
        %1932 = vmatmul.mubr.f32.gmra.mxu0 %v1825
        %v1933 = vpop.f32.mrf.mxu0
        %v1934 = vadd.f32 %v1861, %v1933
        %v1935 = vpop.f32.mrf.mxu0
        %1936 = vdwg.mxu0
        %v1937 = vmul.f32 %v1929, 0.5
        %v1938 = vmul.f32 %v1934, 0.5
        %v1939 = vmul.f32 %v1929, 0.044715
        %v1940 = vmul.f32 %v1934, 0.044715
        %v1941 = vmul.f32 %v1939, %v1929
        %v1942 = vmul.f32 %v1940, %v1934
        %v1943 = vmul.f32 %v1941, %v1929
        %v1944 = vmul.f32 %v1942, %v1934
        %v1945 = vadd.f32 %v1929, %v1943
        %v1946 = vadd.f32 %v1934, %v1944
        %v1947 = vmul.f32 %v1945, 0.7978846
        %v1948 = vmul.f32 %v1946, 0.7978846
        %v1949 = vtanh.pop %v1947
        %v1950 = vtanh.pop %v1948
        %v1951 = vadd.f32 %v1949, 1.0
        %v1952 = vadd.f32 %v1950, 1.0
        %v1953 = vmul.f32 %v1937, %v1951
        %v1954 = vmul.f32 %v1938, %v1952
        %v1955 = vld [vmem:[#allocation11] sm:$0xf]
        %v1956 = vld [vmem:[#allocation11 + $0x4] sm:$0xf]
        %v1957 = vld [vmem:[#allocation11 + $0x8] sm:$0xf]
        %v1958 = vld [vmem:[#allocation11 + $0xc] sm:$0xf]
        %v1959 = vld [vmem:[#allocation11 + $0x10] sm:$0xf]
        %v1960 = vld [vmem:[#allocation11 + $0x14] sm:$0xf]
        %v1961 = vld [vmem:[#allocation11 + $0x18] sm:$0xf]
        %v1962 = vld [vmem:[#allocation11 + $0x1c] sm:$0xf]
        %v1963 = vld [vmem:[#allocation11 + $0x20] sm:$0xf]
        %v1964 = vld [vmem:[#allocation11 + $0x24] sm:$0xf]
        %v1965 = vld [vmem:[#allocation11 + $0x28] sm:$0xf]
        %v1966 = vld [vmem:[#allocation11 + $0x2c] sm:$0xf]
        %v1967 = vld [vmem:[#allocation11 + $0x30] sm:$0xf]
        %v1968 = vld [vmem:[#allocation11 + $0x34] sm:$0xf]
        %v1969 = vld [vmem:[#allocation11 + $0x38] sm:$0xf]
        %v1970 = vld [vmem:[#allocation11 + $0x3c] sm:$0xf]
        %v1971 = vunpack.c.l.bf16 %v1955
        %v1972 = vunpack.c.l.bf16 %v1956
        %v1973 = vunpack.c.l.bf16 %v1957
        %v1974 = vunpack.c.l.bf16 %v1958
        %v1975 = vunpack.c.l.bf16 %v1959
        %v1976 = vunpack.c.l.bf16 %v1960
        %v1977 = vunpack.c.l.bf16 %v1961
        %v1978 = vunpack.c.l.bf16 %v1962
        %v1979 = vunpack.c.l.bf16 %v1963
        %v1980 = vunpack.c.l.bf16 %v1964
        %v1981 = vunpack.c.l.bf16 %v1965
        %v1982 = vunpack.c.l.bf16 %v1966
        %v1983 = vunpack.c.l.bf16 %v1967
        %v1984 = vunpack.c.l.bf16 %v1968
        %v1985 = vunpack.c.l.bf16 %v1969
        %v1986 = vunpack.c.l.bf16 %v1970
        %v1987 = vlaneseq
        %v1988 = vshrl.u32 %v1987, 7
        %v1989 = vsub.s32 3, %v1988
        %v1990 = vrot.slane %v800, %v1989
        %1991 = vmatprep.subr.mxu0 0.0
        %1992 = vmatpush1.msra.mxu0 %v1986
        %1993 = vmatprep.subr.mxu0 0.0
        %1994 = vmatpush1.msra.mxu0 %v1985
        %1995 = vmatprep.subr.mxu0 0.0
        %1996 = vmatpush1.msra.mxu0 %v1984
        %1997 = vmatprep.subr.mxu0 0.0
        %1998 = vmatpush1.msra.mxu0 %v1983
        %1999 = vmatprep.subr.mxu0 0.0
        %2000 = vmatpush1.msra.mxu0 %v1982
        %2001 = vmatprep.subr.mxu0 0.0
        %2002 = vmatpush1.msra.mxu0 %v1981
        %2003 = vmatprep.subr.mxu0 0.0
        %2004 = vmatpush1.msra.mxu0 %v1980
        %2005 = vmatprep.subr.mxu0 0.0
        %2006 = vmatpush1.msra.mxu0 %v1979
        %2007 = vmatprep.subr.mxu0 0.0
        %2008 = vmatpush1.msra.mxu0 %v1978
        %2009 = vmatprep.subr.mxu0 0.0
        %2010 = vmatpush1.msra.mxu0 %v1977
        %2011 = vmatprep.subr.mxu0 0.0
        %2012 = vmatpush1.msra.mxu0 %v1976
        %2013 = vmatprep.subr.mxu0 0.0
        %2014 = vmatpush1.msra.mxu0 %v1975
        %2015 = vmatprep.subr.mxu0 0.0
        %2016 = vmatpush1.msra.mxu0 %v1974
        %2017 = vmatprep.subr.mxu0 0.0
        %2018 = vmatpush1.msra.mxu0 %v1973
        %2019 = vmatprep.subr.mxu0 0.0
        %2020 = vmatpush1.msra.mxu0 %v1972
        %2021 = vmatprep.subr.mxu0 0.0
        %2022 = vmatpush1.msra.mxu0 %v1971
        %2023 = vmatprep.subr.mxu0 0.0
        %2024 = vmatpush2.msra.mxu0 0.0
        %2025 = vmatprep.subr.mxu0 0.0
        %2026 = vmatpush2.msra.mxu0 0.0
        %2027 = vmatprep.subr.mxu0 0.0
        %2028 = vmatpush2.msra.mxu0 0.0
        %2029 = vmatprep.subr.mxu0 0.0
        %2030 = vmatpush2.msra.mxu0 0.0
        %2031 = vmatprep.subr.mxu0 0.0
        %2032 = vmatpush2.msra.mxu0 0.0
        %2033 = vmatprep.subr.mxu0 0.0
        %2034 = vmatpush2.msra.mxu0 0.0
        %2035 = vmatprep.subr.mxu0 0.0
        %2036 = vmatpush2.msra.mxu0 0.0
        %2037 = vmatprep.subr.mxu0 0.0
        %2038 = vmatpush2.msra.mxu0 0.0
        %2039 = vmatprep.subr.mxu0 0.0
        %2040 = vmatpush2.msra.mxu0 0.0
        %2041 = vmatprep.subr.mxu0 0.0
        %2042 = vmatpush2.msra.mxu0 0.0
        %2043 = vmatprep.subr.mxu0 0.0
        %2044 = vmatpush2.msra.mxu0 0.0
        %2045 = vmatprep.subr.mxu0 0.0
        %2046 = vmatpush2.msra.mxu0 0.0
        %2047 = vmatprep.subr.mxu0 0.0
        %2048 = vmatpush2.msra.mxu0 0.0
        %2049 = vmatprep.subr.mxu0 0.0
        %2050 = vmatpush2.msra.mxu0 0.0
        %2051 = vmatprep.subr.mxu0 0.0
        %2052 = vmatpush2.msra.mxu0 0.0
        %2053 = vmatprep.subr.mxu0 0.0
        %2054 = vmatpush2.msra.mxu0 0.0
        %2055 = vmatprep.mubr.f32.mxu0 0.0
        %2056 = vmatmul.mubr.f32.gmra.mxu0 %v1953
        %v2057 = vpop.f32.mrf.mxu0
        %v2058 = vadd.f32 %v1990, %v2057
        %v2059 = vpop.f32.mrf.mxu0
        %2060 = vmatprep.mubr.f32.mxu0 0.0
        %2061 = vmatmul.mubr.f32.gmra.mxu0 %v1954
        %v2062 = vpop.f32.mrf.mxu0
        %v2063 = vadd.f32 %v1990, %v2062
        %v2064 = vpop.f32.mrf.mxu0
        %2065 = vdwg.mxu0
        %v2066 = vadd.f32 %v1824, %v2058
        %v2067 = vadd.f32 %v1825, %v2063
        %2068 = vadd.xlane.f32.xlu0 %v2066
        %v2069 = vpop.xlane.xlu0 %2068
        %v2070 = vsel %vm1134, %v2067, 0.0
        %2071 = vadd.xlane.f32.xlu0 %v2070
        %v2072 = vpop.xlane.xlu0 %2071
        %v2073 = vmul.f32 %v2069, 0.03125
        %v2074 = vmul.f32 %v2072, 0.03125
        %v2075 = vsub.f32 %v2066, %v2073
        %v2076 = vsub.f32 %v2067, %v2074
        %v2077 = vmul.f32 %v2075, %v661
        %v2078 = vmul.f32 %v2076, %v661
        %v2079 = vmul.f32 %v2077, %v2077
        %v2080 = vmul.f32 %v2078, %v2078
        %2081 = vadd.xlane.f32.xlu0 %v2079
        %v2082 = vpop.xlane.xlu0 %2081
        %v2083 = vsel %vm1134, %v2080, 0.0
        %2084 = vadd.xlane.f32.xlu0 %v2083
        %v2085 = vpop.xlane.xlu0 %2084
        %v2086 = vmul.f32 %v2082, 0.03125
        %v2087 = vmul.f32 %v2085, 0.03125
        %v2088 = vadd.f32 %v2086, 1e-05
        %v2089 = vadd.f32 %v2087, 1e-05
        %v2090 = vrsqrt.pop %v2088
        %v2091 = vrsqrt.pop %v2089
        %v2092 = vmul.f32 %v2077, %v2090
        %v2093 = vmul.f32 %v2078, %v2091
        %v2094 = vlaneseq
        %v2095 = vshrl.u32 %v2094, 7
        %v2096 = vsub.s32 6, %v2095
        %v2097 = vrot.slane %v800, %v2096
        %v2098 = vmul.f32 %v2092, %v2097
        %v2099 = vmul.f32 %v2093, %v2097
        %v2100 = vlaneseq
        %v2101 = vshrl.u32 %v2100, 7
        %v2102 = vsub.s32 7, %v2101
        %v2103 = vrot.slane %v800, %v2102
        %v2104 = vadd.f32 %v2098, %v2103
        %v2105 = vadd.f32 %v2099, %v2103
        %s2106 = scalar_lea.vmem [#allocation12], 8
        %v2107 = vld [vmem:[%s2106] sm:$0xff]
        %s2108 = scalar_lea.vmem [#allocation6], 64
        %v2109 = vld [vmem:[%s2108] sm:$0xf]
        %v2110 = vld [vmem:[%s2108 + $0x4] sm:$0xf]
        %v2111 = vld [vmem:[%s2108 + $0x8] sm:$0xf]
        %v2112 = vld [vmem:[%s2108 + $0xc] sm:$0xf]
        %v2113 = vld [vmem:[%s2108 + $0x10] sm:$0xf]
        %v2114 = vld [vmem:[%s2108 + $0x14] sm:$0xf]
        %v2115 = vld [vmem:[%s2108 + $0x18] sm:$0xf]
        %v2116 = vld [vmem:[%s2108 + $0x1c] sm:$0xf]
        %v2117 = vld [vmem:[%s2108 + $0x20] sm:$0xf]
        %v2118 = vld [vmem:[%s2108 + $0x24] sm:$0xf]
        %v2119 = vld [vmem:[%s2108 + $0x28] sm:$0xf]
        %v2120 = vld [vmem:[%s2108 + $0x2c] sm:$0xf]
        %v2121 = vld [vmem:[%s2108 + $0x30] sm:$0xf]
        %v2122 = vld [vmem:[%s2108 + $0x34] sm:$0xf]
        %v2123 = vld [vmem:[%s2108 + $0x38] sm:$0xf]
        %v2124 = vld [vmem:[%s2108 + $0x3c] sm:$0xf]
        %v2125 = vunpack.c.l.bf16 %v2109
        %v2126 = vunpack.c.l.bf16 %v2110
        %v2127 = vunpack.c.l.bf16 %v2111
        %v2128 = vunpack.c.l.bf16 %v2112
        %v2129 = vunpack.c.l.bf16 %v2113
        %v2130 = vunpack.c.l.bf16 %v2114
        %v2131 = vunpack.c.l.bf16 %v2115
        %v2132 = vunpack.c.l.bf16 %v2116
        %v2133 = vunpack.c.l.bf16 %v2117
        %v2134 = vunpack.c.l.bf16 %v2118
        %v2135 = vunpack.c.l.bf16 %v2119
        %v2136 = vunpack.c.l.bf16 %v2120
        %v2137 = vunpack.c.l.bf16 %v2121
        %v2138 = vunpack.c.l.bf16 %v2122
        %v2139 = vunpack.c.l.bf16 %v2123
        %v2140 = vunpack.c.l.bf16 %v2124
        %v2141 = vlaneseq
        %v2142 = vshrl.u32 %v2141, 7
        %v2143 = vsub.s32 0, %v2142
        %v2144 = vrot.slane %v2107, %v2143
        %2145 = vmatprep.subr.mxu0 0.0
        %2146 = vmatpush1.msra.mxu0 %v2140
        %2147 = vmatprep.subr.mxu0 0.0
        %2148 = vmatpush1.msra.mxu0 %v2139
        %2149 = vmatprep.subr.mxu0 0.0
        %2150 = vmatpush1.msra.mxu0 %v2138
        %2151 = vmatprep.subr.mxu0 0.0
        %2152 = vmatpush1.msra.mxu0 %v2137
        %2153 = vmatprep.subr.mxu0 0.0
        %2154 = vmatpush1.msra.mxu0 %v2136
        %2155 = vmatprep.subr.mxu0 0.0
        %2156 = vmatpush1.msra.mxu0 %v2135
        %2157 = vmatprep.subr.mxu0 0.0
        %2158 = vmatpush1.msra.mxu0 %v2134
        %2159 = vmatprep.subr.mxu0 0.0
        %2160 = vmatpush1.msra.mxu0 %v2133
        %2161 = vmatprep.subr.mxu0 0.0
        %2162 = vmatpush1.msra.mxu0 %v2132
        %2163 = vmatprep.subr.mxu0 0.0
        %2164 = vmatpush1.msra.mxu0 %v2131
        %2165 = vmatprep.subr.mxu0 0.0
        %2166 = vmatpush1.msra.mxu0 %v2130
        %2167 = vmatprep.subr.mxu0 0.0
        %2168 = vmatpush1.msra.mxu0 %v2129
        %2169 = vmatprep.subr.mxu0 0.0
        %2170 = vmatpush1.msra.mxu0 %v2128
        %2171 = vmatprep.subr.mxu0 0.0
        %2172 = vmatpush1.msra.mxu0 %v2127
        %2173 = vmatprep.subr.mxu0 0.0
        %2174 = vmatpush1.msra.mxu0 %v2126
        %2175 = vmatprep.subr.mxu0 0.0
        %2176 = vmatpush1.msra.mxu0 %v2125
        %2177 = vmatprep.subr.mxu0 0.0
        %2178 = vmatpush2.msra.mxu0 0.0
        %2179 = vmatprep.subr.mxu0 0.0
        %2180 = vmatpush2.msra.mxu0 0.0
        %2181 = vmatprep.subr.mxu0 0.0
        %2182 = vmatpush2.msra.mxu0 0.0
        %2183 = vmatprep.subr.mxu0 0.0
        %2184 = vmatpush2.msra.mxu0 0.0
        %2185 = vmatprep.subr.mxu0 0.0
        %2186 = vmatpush2.msra.mxu0 0.0
        %2187 = vmatprep.subr.mxu0 0.0
        %2188 = vmatpush2.msra.mxu0 0.0
        %2189 = vmatprep.subr.mxu0 0.0
        %2190 = vmatpush2.msra.mxu0 0.0
        %2191 = vmatprep.subr.mxu0 0.0
        %2192 = vmatpush2.msra.mxu0 0.0
        %2193 = vmatprep.subr.mxu0 0.0
        %2194 = vmatpush2.msra.mxu0 0.0
        %2195 = vmatprep.subr.mxu0 0.0
        %2196 = vmatpush2.msra.mxu0 0.0
        %2197 = vmatprep.subr.mxu0 0.0
        %2198 = vmatpush2.msra.mxu0 0.0
        %2199 = vmatprep.subr.mxu0 0.0
        %2200 = vmatpush2.msra.mxu0 0.0
        %2201 = vmatprep.subr.mxu0 0.0
        %2202 = vmatpush2.msra.mxu0 0.0
        %2203 = vmatprep.subr.mxu0 0.0
        %2204 = vmatpush2.msra.mxu0 0.0
        %2205 = vmatprep.subr.mxu0 0.0
        %2206 = vmatpush2.msra.mxu0 0.0
        %2207 = vmatprep.subr.mxu0 0.0
        %2208 = vmatpush2.msra.mxu0 0.0
        %2209 = vmatprep.mubr.f32.mxu0 0.0
        %2210 = vmatmul.mubr.f32.gmra.mxu0 %v2104
        %v2211 = vpop.f32.mrf.mxu0
        %v2212 = vadd.f32 %v2144, %v2211
        %v2213 = vpop.f32.mrf.mxu0
        %2214 = vmatprep.mubr.f32.mxu0 0.0
        %2215 = vmatmul.mubr.f32.gmra.mxu0 %v2105
        %v2216 = vpop.f32.mrf.mxu0
        %v2217 = vadd.f32 %v2144, %v2216
        %v2218 = vpop.f32.mrf.mxu0
        %2219 = vdwg.mxu0
        %2220 = vrot.lane.b32.xlu0 %v2212, 96
        %v2221 = vpop.permute.xlu0 %2220
        %2222 = vrot.lane.b32.xlu0 %v2217, 96
        %v2223 = vpop.permute.xlu0 %2222
        %2224 = vrot.lane.b32.xlu0 %v2212, 64
        %v2225 = vpop.permute.xlu0 %2224
        %2226 = vrot.lane.b32.xlu0 %v2217, 64
        %v2227 = vpop.permute.xlu0 %2226
        %v2228 = vmul.f32 %v2212, %v666
        %v2229 = vmul.f32 %v2217, %v666
        %2230 = vmatprep.subr.mxu0 0.0
        %2231 = vmatpush1.xpose.msra.mxu0 0.0
        %2232 = vmatprep.subr.mxu0 0.0
        %2233 = vmatpush1.xpose.msra.mxu0 0.0
        %2234 = vmatprep.subr.mxu0 0.0
        %2235 = vmatpush1.xpose.msra.mxu0 0.0
        %2236 = vmatprep.subr.mxu0 0.0
        %2237 = vmatpush1.xpose.msra.mxu0 0.0
        %2238 = vmatprep.subr.mxu0 0.0
        %2239 = vmatpush1.xpose.msra.mxu0 0.0
        %2240 = vmatprep.subr.mxu0 0.0
        %2241 = vmatpush1.xpose.msra.mxu0 0.0
        %2242 = vmatprep.subr.mxu0 0.0
        %2243 = vmatpush1.xpose.msra.mxu0 0.0
        %2244 = vmatprep.subr.mxu0 0.0
        %2245 = vmatpush1.xpose.msra.mxu0 0.0
        %2246 = vmatprep.subr.mxu0 0.0
        %2247 = vmatpush1.xpose.msra.mxu0 0.0
        %2248 = vmatprep.subr.mxu0 0.0
        %2249 = vmatpush1.xpose.msra.mxu0 0.0
        %2250 = vmatprep.subr.mxu0 0.0
        %2251 = vmatpush1.xpose.msra.mxu0 0.0
        %2252 = vmatprep.subr.mxu0 0.0
        %2253 = vmatpush1.xpose.msra.mxu0 0.0
        %2254 = vmatprep.subr.mxu0 0.0
        %2255 = vmatpush1.xpose.msra.mxu0 0.0
        %2256 = vmatprep.subr.mxu0 0.0
        %2257 = vmatpush1.xpose.msra.mxu0 0.0
        %2258 = vmatprep.subr.mxu0 0.0
        %2259 = vmatpush1.xpose.msra.mxu0 %v2223
        %2260 = vmatprep.subr.mxu0 0.0
        %2261 = vmatpush1.xpose.msra.mxu0 %v2221
        %2262 = vmatprep.subr.mxu0 0.0
        %2263 = vmatpush2.xpose.msra.mxu0 0.0
        %2264 = vmatprep.subr.mxu0 0.0
        %2265 = vmatpush2.xpose.msra.mxu0 0.0
        %2266 = vmatprep.subr.mxu0 0.0
        %2267 = vmatpush2.xpose.msra.mxu0 0.0
        %2268 = vmatprep.subr.mxu0 0.0
        %2269 = vmatpush2.xpose.msra.mxu0 0.0
        %2270 = vmatprep.subr.mxu0 0.0
        %2271 = vmatpush2.xpose.msra.mxu0 0.0
        %2272 = vmatprep.subr.mxu0 0.0
        %2273 = vmatpush2.xpose.msra.mxu0 0.0
        %2274 = vmatprep.subr.mxu0 0.0
        %2275 = vmatpush2.xpose.msra.mxu0 0.0
        %2276 = vmatprep.subr.mxu0 0.0
        %2277 = vmatpush2.xpose.msra.mxu0 0.0
        %2278 = vmatprep.subr.mxu0 0.0
        %2279 = vmatpush2.xpose.msra.mxu0 0.0
        %2280 = vmatprep.subr.mxu0 0.0
        %2281 = vmatpush2.xpose.msra.mxu0 0.0
        %2282 = vmatprep.subr.mxu0 0.0
        %2283 = vmatpush2.xpose.msra.mxu0 0.0
        %2284 = vmatprep.subr.mxu0 0.0
        %2285 = vmatpush2.xpose.msra.mxu0 0.0
        %2286 = vmatprep.subr.mxu0 0.0
        %2287 = vmatpush2.xpose.msra.mxu0 0.0
        %2288 = vmatprep.subr.mxu0 0.0
        %2289 = vmatpush2.xpose.msra.mxu0 0.0
        %2290 = vmatprep.subr.mxu0 0.0
        %2291 = vmatpush2.xpose.msra.mxu0 0.0
        %2292 = vmatprep.subr.mxu0 0.0
        %2293 = vmatpush2.xpose.msra.mxu0 0.0
        %2294 = vmatprep.mubr.f32.mxu0 0.0
        %2295 = vmatmul.mubr.f32.gmra.mxu0 %v2228
        %v2296 = vpop.f32.mrf.mxu0
        %v2297 = vadd.f32 0.0, %v2296
        %v2298 = vpop.f32.mrf.mxu0
        %2299 = vmatprep.mubr.f32.mxu0 0.0
        %2300 = vmatmul.mubr.f32.gmra.mxu0 %v2229
        %v2301 = vpop.f32.mrf.mxu0
        %v2302 = vadd.f32 0.0, %v2301
        %v2303 = vpop.f32.mrf.mxu0
        %2304 = vdwg.mxu0
        %v2305 = vmul.f32 %v2297, 0.35355338
        %v2306 = vmul.f32 %v2302, 0.35355338
        %v2307 = vsel %vm999, %v2305, -inf
        %2308 = vmax.xlane.f32.xlu0 %v2307
        %v2309 = vpop.xlane.xlu0 %2308
        %v2310 = vsel %vm1003, %v2306, -inf
        %2311 = vmax.xlane.f32.xlu0 %v2310
        %v2312 = vpop.xlane.xlu0 %2311
        %v2313 = vsub.f32 %v2305, %v2309
        %v2314 = vsub.f32 %v2306, %v2312
        %v2315 = vmul.f32 %v2313, 1.442695
        %v2316 = vpow.pop %v2315
        %v2317 = vmul.f32 %v2314, 1.442695
        %v2318 = vpow.pop %v2317
        %v2319 = vsel %vm999, %v2316, 0.0
        %2320 = vadd.xlane.f32.xlu0 %v2319
        %v2321 = vpop.xlane.xlu0 %2320
        %v2322 = vsel %vm1003, %v2318, 0.0
        %2323 = vadd.xlane.f32.xlu0 %v2322
        %v2324 = vpop.xlane.xlu0 %2323
        %v2325 = vrcp.pop %v2321
        %v2326 = vrcp.pop %v2324
        %v2327 = vmul.f32 %v2316, %v2325
        %v2328 = vmul.f32 %v2318, %v2326
        %v2329 = vmul.f32 %v2225, %v666
        %v2330 = vmul.f32 %v2227, %v666
        %v2331 = vmul.f32 %v2212, %v671
        %v2332 = vmul.f32 %v2217, %v671
        %2333 = vmatprep.subr.mxu0 0.0
        %2334 = vmatpush1.xpose.msra.mxu0 0.0
        %2335 = vmatprep.subr.mxu0 0.0
        %2336 = vmatpush1.xpose.msra.mxu0 0.0
        %2337 = vmatprep.subr.mxu0 0.0
        %2338 = vmatpush1.xpose.msra.mxu0 0.0
        %2339 = vmatprep.subr.mxu0 0.0
        %2340 = vmatpush1.xpose.msra.mxu0 0.0
        %2341 = vmatprep.subr.mxu0 0.0
        %2342 = vmatpush1.xpose.msra.mxu0 0.0
        %2343 = vmatprep.subr.mxu0 0.0
        %2344 = vmatpush1.xpose.msra.mxu0 0.0
        %2345 = vmatprep.subr.mxu0 0.0
        %2346 = vmatpush1.xpose.msra.mxu0 0.0
        %2347 = vmatprep.subr.mxu0 0.0
        %2348 = vmatpush1.xpose.msra.mxu0 0.0
        %2349 = vmatprep.subr.mxu0 0.0
        %2350 = vmatpush1.xpose.msra.mxu0 0.0
        %2351 = vmatprep.subr.mxu0 0.0
        %2352 = vmatpush1.xpose.msra.mxu0 0.0
        %2353 = vmatprep.subr.mxu0 0.0
        %2354 = vmatpush1.xpose.msra.mxu0 0.0
        %2355 = vmatprep.subr.mxu0 0.0
        %2356 = vmatpush1.xpose.msra.mxu0 0.0
        %2357 = vmatprep.subr.mxu0 0.0
        %2358 = vmatpush1.xpose.msra.mxu0 0.0
        %2359 = vmatprep.subr.mxu0 0.0
        %2360 = vmatpush1.xpose.msra.mxu0 0.0
        %2361 = vmatprep.subr.mxu0 0.0
        %2362 = vmatpush1.xpose.msra.mxu0 %v2223
        %2363 = vmatprep.subr.mxu0 0.0
        %2364 = vmatpush1.xpose.msra.mxu0 %v2221
        %2365 = vmatprep.subr.mxu0 0.0
        %2366 = vmatpush2.xpose.msra.mxu0 0.0
        %2367 = vmatprep.subr.mxu0 0.0
        %2368 = vmatpush2.xpose.msra.mxu0 0.0
        %2369 = vmatprep.subr.mxu0 0.0
        %2370 = vmatpush2.xpose.msra.mxu0 0.0
        %2371 = vmatprep.subr.mxu0 0.0
        %2372 = vmatpush2.xpose.msra.mxu0 0.0
        %2373 = vmatprep.subr.mxu0 0.0
        %2374 = vmatpush2.xpose.msra.mxu0 0.0
        %2375 = vmatprep.subr.mxu0 0.0
        %2376 = vmatpush2.xpose.msra.mxu0 0.0
        %2377 = vmatprep.subr.mxu0 0.0
        %2378 = vmatpush2.xpose.msra.mxu0 0.0
        %2379 = vmatprep.subr.mxu0 0.0
        %2380 = vmatpush2.xpose.msra.mxu0 0.0
        %2381 = vmatprep.subr.mxu0 0.0
        %2382 = vmatpush2.xpose.msra.mxu0 0.0
        %2383 = vmatprep.subr.mxu0 0.0
        %2384 = vmatpush2.xpose.msra.mxu0 0.0
        %2385 = vmatprep.subr.mxu0 0.0
        %2386 = vmatpush2.xpose.msra.mxu0 0.0
        %2387 = vmatprep.subr.mxu0 0.0
        %2388 = vmatpush2.xpose.msra.mxu0 0.0
        %2389 = vmatprep.subr.mxu0 0.0
        %2390 = vmatpush2.xpose.msra.mxu0 0.0
        %2391 = vmatprep.subr.mxu0 0.0
        %2392 = vmatpush2.xpose.msra.mxu0 0.0
        %2393 = vmatprep.subr.mxu0 0.0
        %2394 = vmatpush2.xpose.msra.mxu0 0.0
        %2395 = vmatprep.subr.mxu0 0.0
        %2396 = vmatpush2.xpose.msra.mxu0 0.0
        %2397 = vmatprep.mubr.f32.mxu0 0.0
        %2398 = vmatmul.mubr.f32.gmra.mxu0 %v2331
        %v2399 = vpop.f32.mrf.mxu0
        %v2400 = vadd.f32 0.0, %v2399
        %v2401 = vpop.f32.mrf.mxu0
        %2402 = vmatprep.mubr.f32.mxu0 0.0
        %2403 = vmatmul.mubr.f32.gmra.mxu0 %v2332
        %v2404 = vpop.f32.mrf.mxu0
        %v2405 = vadd.f32 0.0, %v2404
        %v2406 = vpop.f32.mrf.mxu0
        %2407 = vdwg.mxu0
        %v2408 = vmul.f32 %v2400, 0.35355338
        %v2409 = vmul.f32 %v2405, 0.35355338
        %v2410 = vsel %vm999, %v2408, -inf
        %2411 = vmax.xlane.f32.xlu0 %v2410
        %v2412 = vpop.xlane.xlu0 %2411
        %v2413 = vsel %vm1003, %v2409, -inf
        %2414 = vmax.xlane.f32.xlu0 %v2413
        %v2415 = vpop.xlane.xlu0 %2414
        %v2416 = vsub.f32 %v2408, %v2412
        %v2417 = vsub.f32 %v2409, %v2415
        %v2418 = vmul.f32 %v2416, 1.442695
        %v2419 = vpow.pop %v2418
        %v2420 = vmul.f32 %v2417, 1.442695
        %v2421 = vpow.pop %v2420
        %v2422 = vsel %vm999, %v2419, 0.0
        %2423 = vadd.xlane.f32.xlu0 %v2422
        %v2424 = vpop.xlane.xlu0 %2423
        %v2425 = vsel %vm1003, %v2421, 0.0
        %2426 = vadd.xlane.f32.xlu0 %v2425
        %v2427 = vpop.xlane.xlu0 %2426
        %v2428 = vrcp.pop %v2424
        %v2429 = vrcp.pop %v2427
        %v2430 = vmul.f32 %v2419, %v2428
        %v2431 = vmul.f32 %v2421, %v2429
        %v2432 = vmul.f32 %v2225, %v671
        %v2433 = vmul.f32 %v2227, %v671
        %v2435 = vsel %vm999, %v2430, 0
        %v2438 = vsel %vm999, %v2431, 0
        %v2441 = vsel %vm1134, %v2433, 0
        %2443 = vmatprep.subr.mxu0 0.0
        %2444 = vmatpush1.msra.mxu0 0.0
        %2445 = vmatprep.subr.mxu0 0.0
        %2446 = vmatpush1.msra.mxu0 0.0
        %2447 = vmatprep.subr.mxu0 0.0
        %2448 = vmatpush1.msra.mxu0 0.0
        %2449 = vmatprep.subr.mxu0 0.0
        %2450 = vmatpush1.msra.mxu0 0.0
        %2451 = vmatprep.subr.mxu0 0.0
        %2452 = vmatpush1.msra.mxu0 0.0
        %2453 = vmatprep.subr.mxu0 0.0
        %2454 = vmatpush1.msra.mxu0 0.0
        %2455 = vmatprep.subr.mxu0 0.0
        %2456 = vmatpush1.msra.mxu0 0.0
        %2457 = vmatprep.subr.mxu0 0.0
        %2458 = vmatpush1.msra.mxu0 0.0
        %2459 = vmatprep.subr.mxu0 0.0
        %2460 = vmatpush1.msra.mxu0 0.0
        %2461 = vmatprep.subr.mxu0 0.0
        %2462 = vmatpush1.msra.mxu0 0.0
        %2463 = vmatprep.subr.mxu0 0.0
        %2464 = vmatpush1.msra.mxu0 0.0
        %2465 = vmatprep.subr.mxu0 0.0
        %2466 = vmatpush1.msra.mxu0 0.0
        %2467 = vmatprep.subr.mxu0 0.0
        %2468 = vmatpush1.msra.mxu0 0.0
        %2469 = vmatprep.subr.mxu0 0.0
        %2470 = vmatpush1.msra.mxu0 0.0
        %2471 = vmatprep.subr.mxu0 0.0
        %2472 = vmatpush1.msra.mxu0 %v2441
        %2473 = vmatprep.subr.mxu0 0.0
        %2474 = vmatpush1.msra.mxu0 %v2432
        %2475 = vmatprep.subr.mxu0 0.0
        %2476 = vmatpush2.msra.mxu0 0.0
        %2477 = vmatprep.subr.mxu0 0.0
        %2478 = vmatpush2.msra.mxu0 0.0
        %2479 = vmatprep.subr.mxu0 0.0
        %2480 = vmatpush2.msra.mxu0 0.0
        %2481 = vmatprep.subr.mxu0 0.0
        %2482 = vmatpush2.msra.mxu0 0.0
        %2483 = vmatprep.subr.mxu0 0.0
        %2484 = vmatpush2.msra.mxu0 0.0
        %2485 = vmatprep.subr.mxu0 0.0
        %2486 = vmatpush2.msra.mxu0 0.0
        %2487 = vmatprep.subr.mxu0 0.0
        %2488 = vmatpush2.msra.mxu0 0.0
        %2489 = vmatprep.subr.mxu0 0.0
        %2490 = vmatpush2.msra.mxu0 0.0
        %2491 = vmatprep.subr.mxu0 0.0
        %2492 = vmatpush2.msra.mxu0 0.0
        %2493 = vmatprep.subr.mxu0 0.0
        %2494 = vmatpush2.msra.mxu0 0.0
        %2495 = vmatprep.subr.mxu0 0.0
        %2496 = vmatpush2.msra.mxu0 0.0
        %2497 = vmatprep.subr.mxu0 0.0
        %2498 = vmatpush2.msra.mxu0 0.0
        %2499 = vmatprep.subr.mxu0 0.0
        %2500 = vmatpush2.msra.mxu0 0.0
        %2501 = vmatprep.subr.mxu0 0.0
        %2502 = vmatpush2.msra.mxu0 0.0
        %2503 = vmatprep.subr.mxu0 0.0
        %2504 = vmatpush2.msra.mxu0 0.0
        %2505 = vmatprep.subr.mxu0 0.0
        %2506 = vmatpush2.msra.mxu0 0.0
        %2507 = vmatprep.mubr.f32.mxu0 0.0
        %2508 = vmatmul.mubr.f32.gmra.mxu0 %v2435
        %v2509 = vpop.f32.mrf.mxu0
        %v2510 = vadd.f32 0.0, %v2509
        %v2511 = vpop.f32.mrf.mxu0
        %2512 = vmatprep.mubr.f32.mxu0 0.0
        %2513 = vmatmul.mubr.f32.gmra.mxu0 %v2438
        %v2514 = vpop.f32.mrf.mxu0
        %v2515 = vadd.f32 0.0, %v2514
        %v2516 = vpop.f32.mrf.mxu0
        %2517 = vdwg.mxu0
        %v2519 = vsel %vm999, %v2327, 0
        %v2522 = vsel %vm999, %v2328, 0
        %v2525 = vsel %vm1134, %v2330, 0
        %2527 = vmatprep.subr.mxu0 0.0
        %2528 = vmatpush1.msra.mxu0 0.0
        %2529 = vmatprep.subr.mxu0 0.0
        %2530 = vmatpush1.msra.mxu0 0.0
        %2531 = vmatprep.subr.mxu0 0.0
        %2532 = vmatpush1.msra.mxu0 0.0
        %2533 = vmatprep.subr.mxu0 0.0
        %2534 = vmatpush1.msra.mxu0 0.0
        %2535 = vmatprep.subr.mxu0 0.0
        %2536 = vmatpush1.msra.mxu0 0.0
        %2537 = vmatprep.subr.mxu0 0.0
        %2538 = vmatpush1.msra.mxu0 0.0
        %2539 = vmatprep.subr.mxu0 0.0
        %2540 = vmatpush1.msra.mxu0 0.0
        %2541 = vmatprep.subr.mxu0 0.0
        %2542 = vmatpush1.msra.mxu0 0.0
        %2543 = vmatprep.subr.mxu0 0.0
        %2544 = vmatpush1.msra.mxu0 0.0
        %2545 = vmatprep.subr.mxu0 0.0
        %2546 = vmatpush1.msra.mxu0 0.0
        %2547 = vmatprep.subr.mxu0 0.0
        %2548 = vmatpush1.msra.mxu0 0.0
        %2549 = vmatprep.subr.mxu0 0.0
        %2550 = vmatpush1.msra.mxu0 0.0
        %2551 = vmatprep.subr.mxu0 0.0
        %2552 = vmatpush1.msra.mxu0 0.0
        %2553 = vmatprep.subr.mxu0 0.0
        %2554 = vmatpush1.msra.mxu0 0.0
        %2555 = vmatprep.subr.mxu0 0.0
        %2556 = vmatpush1.msra.mxu0 %v2525
        %2557 = vmatprep.subr.mxu0 0.0
        %2558 = vmatpush1.msra.mxu0 %v2329
        %2559 = vmatprep.subr.mxu0 0.0
        %2560 = vmatpush2.msra.mxu0 0.0
        %2561 = vmatprep.subr.mxu0 0.0
        %2562 = vmatpush2.msra.mxu0 0.0
        %2563 = vmatprep.subr.mxu0 0.0
        %2564 = vmatpush2.msra.mxu0 0.0
        %2565 = vmatprep.subr.mxu0 0.0
        %2566 = vmatpush2.msra.mxu0 0.0
        %2567 = vmatprep.subr.mxu0 0.0
        %2568 = vmatpush2.msra.mxu0 0.0
        %2569 = vmatprep.subr.mxu0 0.0
        %2570 = vmatpush2.msra.mxu0 0.0
        %2571 = vmatprep.subr.mxu0 0.0
        %2572 = vmatpush2.msra.mxu0 0.0
        %2573 = vmatprep.subr.mxu0 0.0
        %2574 = vmatpush2.msra.mxu0 0.0
        %2575 = vmatprep.subr.mxu0 0.0
        %2576 = vmatpush2.msra.mxu0 0.0
        %2577 = vmatprep.subr.mxu0 0.0
        %2578 = vmatpush2.msra.mxu0 0.0
        %2579 = vmatprep.subr.mxu0 0.0
        %2580 = vmatpush2.msra.mxu0 0.0
        %2581 = vmatprep.subr.mxu0 0.0
        %2582 = vmatpush2.msra.mxu0 0.0
        %2583 = vmatprep.subr.mxu0 0.0
        %2584 = vmatpush2.msra.mxu0 0.0
        %2585 = vmatprep.subr.mxu0 0.0
        %2586 = vmatpush2.msra.mxu0 0.0
        %2587 = vmatprep.subr.mxu0 0.0
        %2588 = vmatpush2.msra.mxu0 0.0
        %2589 = vmatprep.subr.mxu0 0.0
        %2590 = vmatpush2.msra.mxu0 0.0
        %2591 = vmatprep.mubr.f32.mxu0 0.0
        %2592 = vmatmul.mubr.f32.gmra.mxu0 %v2519
        %v2593 = vpop.f32.mrf.mxu0
        %v2594 = vadd.f32 %v2510, %v2593
        %v2595 = vpop.f32.mrf.mxu0
        %2596 = vmatprep.mubr.f32.mxu0 0.0
        %2597 = vmatmul.mubr.f32.gmra.mxu0 %v2522
        %v2598 = vpop.f32.mrf.mxu0
        %v2599 = vadd.f32 %v2515, %v2598
        %v2600 = vpop.f32.mrf.mxu0
        %2601 = vdwg.mxu0
        %v2602 = vmul.f32 %v2212, %v676
        %v2603 = vmul.f32 %v2217, %v676
        %2604 = vmatprep.subr.mxu0 0.0
        %2605 = vmatpush1.xpose.msra.mxu0 0.0
        %2606 = vmatprep.subr.mxu0 0.0
        %2607 = vmatpush1.xpose.msra.mxu0 0.0
        %2608 = vmatprep.subr.mxu0 0.0
        %2609 = vmatpush1.xpose.msra.mxu0 0.0
        %2610 = vmatprep.subr.mxu0 0.0
        %2611 = vmatpush1.xpose.msra.mxu0 0.0
        %2612 = vmatprep.subr.mxu0 0.0
        %2613 = vmatpush1.xpose.msra.mxu0 0.0
        %2614 = vmatprep.subr.mxu0 0.0
        %2615 = vmatpush1.xpose.msra.mxu0 0.0
        %2616 = vmatprep.subr.mxu0 0.0
        %2617 = vmatpush1.xpose.msra.mxu0 0.0
        %2618 = vmatprep.subr.mxu0 0.0
        %2619 = vmatpush1.xpose.msra.mxu0 0.0
        %2620 = vmatprep.subr.mxu0 0.0
        %2621 = vmatpush1.xpose.msra.mxu0 0.0
        %2622 = vmatprep.subr.mxu0 0.0
        %2623 = vmatpush1.xpose.msra.mxu0 0.0
        %2624 = vmatprep.subr.mxu0 0.0
        %2625 = vmatpush1.xpose.msra.mxu0 0.0
        %2626 = vmatprep.subr.mxu0 0.0
        %2627 = vmatpush1.xpose.msra.mxu0 0.0
        %2628 = vmatprep.subr.mxu0 0.0
        %2629 = vmatpush1.xpose.msra.mxu0 0.0
        %2630 = vmatprep.subr.mxu0 0.0
        %2631 = vmatpush1.xpose.msra.mxu0 0.0
        %2632 = vmatprep.subr.mxu0 0.0
        %2633 = vmatpush1.xpose.msra.mxu0 %v2223
        %2634 = vmatprep.subr.mxu0 0.0
        %2635 = vmatpush1.xpose.msra.mxu0 %v2221
        %2636 = vmatprep.subr.mxu0 0.0
        %2637 = vmatpush2.xpose.msra.mxu0 0.0
        %2638 = vmatprep.subr.mxu0 0.0
        %2639 = vmatpush2.xpose.msra.mxu0 0.0
        %2640 = vmatprep.subr.mxu0 0.0
        %2641 = vmatpush2.xpose.msra.mxu0 0.0
        %2642 = vmatprep.subr.mxu0 0.0
        %2643 = vmatpush2.xpose.msra.mxu0 0.0
        %2644 = vmatprep.subr.mxu0 0.0
        %2645 = vmatpush2.xpose.msra.mxu0 0.0
        %2646 = vmatprep.subr.mxu0 0.0
        %2647 = vmatpush2.xpose.msra.mxu0 0.0
        %2648 = vmatprep.subr.mxu0 0.0
        %2649 = vmatpush2.xpose.msra.mxu0 0.0
        %2650 = vmatprep.subr.mxu0 0.0
        %2651 = vmatpush2.xpose.msra.mxu0 0.0
        %2652 = vmatprep.subr.mxu0 0.0
        %2653 = vmatpush2.xpose.msra.mxu0 0.0
        %2654 = vmatprep.subr.mxu0 0.0
        %2655 = vmatpush2.xpose.msra.mxu0 0.0
        %2656 = vmatprep.subr.mxu0 0.0
        %2657 = vmatpush2.xpose.msra.mxu0 0.0
        %2658 = vmatprep.subr.mxu0 0.0
        %2659 = vmatpush2.xpose.msra.mxu0 0.0
        %2660 = vmatprep.subr.mxu0 0.0
        %2661 = vmatpush2.xpose.msra.mxu0 0.0
        %2662 = vmatprep.subr.mxu0 0.0
        %2663 = vmatpush2.xpose.msra.mxu0 0.0
        %2664 = vmatprep.subr.mxu0 0.0
        %2665 = vmatpush2.xpose.msra.mxu0 0.0
        %2666 = vmatprep.subr.mxu0 0.0
        %2667 = vmatpush2.xpose.msra.mxu0 0.0
        %2668 = vmatprep.mubr.f32.mxu0 0.0
        %2669 = vmatmul.mubr.f32.gmra.mxu0 %v2602
        %v2670 = vpop.f32.mrf.mxu0
        %v2671 = vadd.f32 0.0, %v2670
        %v2672 = vpop.f32.mrf.mxu0
        %2673 = vmatprep.mubr.f32.mxu0 0.0
        %2674 = vmatmul.mubr.f32.gmra.mxu0 %v2603
        %v2675 = vpop.f32.mrf.mxu0
        %v2676 = vadd.f32 0.0, %v2675
        %v2677 = vpop.f32.mrf.mxu0
        %2678 = vdwg.mxu0
        %v2679 = vmul.f32 %v2671, 0.35355338
        %v2680 = vmul.f32 %v2676, 0.35355338
        %v2681 = vsel %vm999, %v2679, -inf
        %2682 = vmax.xlane.f32.xlu0 %v2681
        %v2683 = vpop.xlane.xlu0 %2682
        %v2684 = vsel %vm1003, %v2680, -inf
        %2685 = vmax.xlane.f32.xlu0 %v2684
        %v2686 = vpop.xlane.xlu0 %2685
        %v2687 = vsub.f32 %v2679, %v2683
        %v2688 = vsub.f32 %v2680, %v2686
        %v2689 = vmul.f32 %v2687, 1.442695
        %v2690 = vpow.pop %v2689
        %v2691 = vmul.f32 %v2688, 1.442695
        %v2692 = vpow.pop %v2691
        %v2693 = vsel %vm999, %v2690, 0.0
        %2694 = vadd.xlane.f32.xlu0 %v2693
        %v2695 = vpop.xlane.xlu0 %2694
        %v2696 = vsel %vm1003, %v2692, 0.0
        %2697 = vadd.xlane.f32.xlu0 %v2696
        %v2698 = vpop.xlane.xlu0 %2697
        %v2699 = vrcp.pop %v2695
        %v2700 = vrcp.pop %v2698
        %v2701 = vmul.f32 %v2690, %v2699
        %v2702 = vmul.f32 %v2692, %v2700
        %v2703 = vmul.f32 %v2225, %v676
        %v2704 = vmul.f32 %v2227, %v676
        %v2706 = vsel %vm999, %v2701, 0
        %v2709 = vsel %vm999, %v2702, 0
        %v2712 = vsel %vm1134, %v2704, 0
        %2714 = vmatprep.subr.mxu0 0.0
        %2715 = vmatpush1.msra.mxu0 0.0
        %2716 = vmatprep.subr.mxu0 0.0
        %2717 = vmatpush1.msra.mxu0 0.0
        %2718 = vmatprep.subr.mxu0 0.0
        %2719 = vmatpush1.msra.mxu0 0.0
        %2720 = vmatprep.subr.mxu0 0.0
        %2721 = vmatpush1.msra.mxu0 0.0
        %2722 = vmatprep.subr.mxu0 0.0
        %2723 = vmatpush1.msra.mxu0 0.0
        %2724 = vmatprep.subr.mxu0 0.0
        %2725 = vmatpush1.msra.mxu0 0.0
        %2726 = vmatprep.subr.mxu0 0.0
        %2727 = vmatpush1.msra.mxu0 0.0
        %2728 = vmatprep.subr.mxu0 0.0
        %2729 = vmatpush1.msra.mxu0 0.0
        %2730 = vmatprep.subr.mxu0 0.0
        %2731 = vmatpush1.msra.mxu0 0.0
        %2732 = vmatprep.subr.mxu0 0.0
        %2733 = vmatpush1.msra.mxu0 0.0
        %2734 = vmatprep.subr.mxu0 0.0
        %2735 = vmatpush1.msra.mxu0 0.0
        %2736 = vmatprep.subr.mxu0 0.0
        %2737 = vmatpush1.msra.mxu0 0.0
        %2738 = vmatprep.subr.mxu0 0.0
        %2739 = vmatpush1.msra.mxu0 0.0
        %2740 = vmatprep.subr.mxu0 0.0
        %2741 = vmatpush1.msra.mxu0 0.0
        %2742 = vmatprep.subr.mxu0 0.0
        %2743 = vmatpush1.msra.mxu0 %v2712
        %2744 = vmatprep.subr.mxu0 0.0
        %2745 = vmatpush1.msra.mxu0 %v2703
        %2746 = vmatprep.subr.mxu0 0.0
        %2747 = vmatpush2.msra.mxu0 0.0
        %2748 = vmatprep.subr.mxu0 0.0
        %2749 = vmatpush2.msra.mxu0 0.0
        %2750 = vmatprep.subr.mxu0 0.0
        %2751 = vmatpush2.msra.mxu0 0.0
        %2752 = vmatprep.subr.mxu0 0.0
        %2753 = vmatpush2.msra.mxu0 0.0
        %2754 = vmatprep.subr.mxu0 0.0
        %2755 = vmatpush2.msra.mxu0 0.0
        %2756 = vmatprep.subr.mxu0 0.0
        %2757 = vmatpush2.msra.mxu0 0.0
        %2758 = vmatprep.subr.mxu0 0.0
        %2759 = vmatpush2.msra.mxu0 0.0
        %2760 = vmatprep.subr.mxu0 0.0
        %2761 = vmatpush2.msra.mxu0 0.0
        %2762 = vmatprep.subr.mxu0 0.0
        %2763 = vmatpush2.msra.mxu0 0.0
        %2764 = vmatprep.subr.mxu0 0.0
        %2765 = vmatpush2.msra.mxu0 0.0
        %2766 = vmatprep.subr.mxu0 0.0
        %2767 = vmatpush2.msra.mxu0 0.0
        %2768 = vmatprep.subr.mxu0 0.0
        %2769 = vmatpush2.msra.mxu0 0.0
        %2770 = vmatprep.subr.mxu0 0.0
        %2771 = vmatpush2.msra.mxu0 0.0
        %2772 = vmatprep.subr.mxu0 0.0
        %2773 = vmatpush2.msra.mxu0 0.0
        %2774 = vmatprep.subr.mxu0 0.0
        %2775 = vmatpush2.msra.mxu0 0.0
        %2776 = vmatprep.subr.mxu0 0.0
        %2777 = vmatpush2.msra.mxu0 0.0
        %2778 = vmatprep.mubr.f32.mxu0 0.0
        %2779 = vmatmul.mubr.f32.gmra.mxu0 %v2706
        %v2780 = vpop.f32.mrf.mxu0
        %v2781 = vadd.f32 0.0, %v2780
        %v2782 = vpop.f32.mrf.mxu0
        %2783 = vmatprep.mubr.f32.mxu0 0.0
        %2784 = vmatmul.mubr.f32.gmra.mxu0 %v2709
        %v2785 = vpop.f32.mrf.mxu0
        %v2786 = vadd.f32 0.0, %v2785
        %v2787 = vpop.f32.mrf.mxu0
        %2788 = vdwg.mxu0
        %v2789 = vadd.f32 %v2594, %v2781
        %v2790 = vadd.f32 %v2599, %v2786
        %v2791 = vmul.f32 %v2212, %v680
        %v2792 = vmul.f32 %v2217, %v680
        %2793 = vmatprep.subr.mxu0 0.0
        %2794 = vmatpush1.xpose.msra.mxu0 0.0
        %2795 = vmatprep.subr.mxu0 0.0
        %2796 = vmatpush1.xpose.msra.mxu0 0.0
        %2797 = vmatprep.subr.mxu0 0.0
        %2798 = vmatpush1.xpose.msra.mxu0 0.0
        %2799 = vmatprep.subr.mxu0 0.0
        %2800 = vmatpush1.xpose.msra.mxu0 0.0
        %2801 = vmatprep.subr.mxu0 0.0
        %2802 = vmatpush1.xpose.msra.mxu0 0.0
        %2803 = vmatprep.subr.mxu0 0.0
        %2804 = vmatpush1.xpose.msra.mxu0 0.0
        %2805 = vmatprep.subr.mxu0 0.0
        %2806 = vmatpush1.xpose.msra.mxu0 0.0
        %2807 = vmatprep.subr.mxu0 0.0
        %2808 = vmatpush1.xpose.msra.mxu0 0.0
        %2809 = vmatprep.subr.mxu0 0.0
        %2810 = vmatpush1.xpose.msra.mxu0 0.0
        %2811 = vmatprep.subr.mxu0 0.0
        %2812 = vmatpush1.xpose.msra.mxu0 0.0
        %2813 = vmatprep.subr.mxu0 0.0
        %2814 = vmatpush1.xpose.msra.mxu0 0.0
        %2815 = vmatprep.subr.mxu0 0.0
        %2816 = vmatpush1.xpose.msra.mxu0 0.0
        %2817 = vmatprep.subr.mxu0 0.0
        %2818 = vmatpush1.xpose.msra.mxu0 0.0
        %2819 = vmatprep.subr.mxu0 0.0
        %2820 = vmatpush1.xpose.msra.mxu0 0.0
        %2821 = vmatprep.subr.mxu0 0.0
        %2822 = vmatpush1.xpose.msra.mxu0 %v2223
        %2823 = vmatprep.subr.mxu0 0.0
        %2824 = vmatpush1.xpose.msra.mxu0 %v2221
        %2825 = vmatprep.subr.mxu0 0.0
        %2826 = vmatpush2.xpose.msra.mxu0 0.0
        %2827 = vmatprep.subr.mxu0 0.0
        %2828 = vmatpush2.xpose.msra.mxu0 0.0
        %2829 = vmatprep.subr.mxu0 0.0
        %2830 = vmatpush2.xpose.msra.mxu0 0.0
        %2831 = vmatprep.subr.mxu0 0.0
        %2832 = vmatpush2.xpose.msra.mxu0 0.0
        %2833 = vmatprep.subr.mxu0 0.0
        %2834 = vmatpush2.xpose.msra.mxu0 0.0
        %2835 = vmatprep.subr.mxu0 0.0
        %2836 = vmatpush2.xpose.msra.mxu0 0.0
        %2837 = vmatprep.subr.mxu0 0.0
        %2838 = vmatpush2.xpose.msra.mxu0 0.0
        %2839 = vmatprep.subr.mxu0 0.0
        %2840 = vmatpush2.xpose.msra.mxu0 0.0
        %2841 = vmatprep.subr.mxu0 0.0
        %2842 = vmatpush2.xpose.msra.mxu0 0.0
        %2843 = vmatprep.subr.mxu0 0.0
        %2844 = vmatpush2.xpose.msra.mxu0 0.0
        %2845 = vmatprep.subr.mxu0 0.0
        %2846 = vmatpush2.xpose.msra.mxu0 0.0
        %2847 = vmatprep.subr.mxu0 0.0
        %2848 = vmatpush2.xpose.msra.mxu0 0.0
        %2849 = vmatprep.subr.mxu0 0.0
        %2850 = vmatpush2.xpose.msra.mxu0 0.0
        %2851 = vmatprep.subr.mxu0 0.0
        %2852 = vmatpush2.xpose.msra.mxu0 0.0
        %2853 = vmatprep.subr.mxu0 0.0
        %2854 = vmatpush2.xpose.msra.mxu0 0.0
        %2855 = vmatprep.subr.mxu0 0.0
        %2856 = vmatpush2.xpose.msra.mxu0 0.0
        %2857 = vmatprep.mubr.f32.mxu0 0.0
        %2858 = vmatmul.mubr.f32.gmra.mxu0 %v2791
        %v2859 = vpop.f32.mrf.mxu0
        %v2860 = vadd.f32 0.0, %v2859
        %v2861 = vpop.f32.mrf.mxu0
        %2862 = vmatprep.mubr.f32.mxu0 0.0
        %2863 = vmatmul.mubr.f32.gmra.mxu0 %v2792
        %v2864 = vpop.f32.mrf.mxu0
        %v2865 = vadd.f32 0.0, %v2864
        %v2866 = vpop.f32.mrf.mxu0
        %2867 = vdwg.mxu0
        %v2868 = vmul.f32 %v2860, 0.35355338
        %v2869 = vmul.f32 %v2865, 0.35355338
        %v2870 = vsel %vm999, %v2868, -inf
        %2871 = vmax.xlane.f32.xlu0 %v2870
        %v2872 = vpop.xlane.xlu0 %2871
        %v2873 = vsel %vm1003, %v2869, -inf
        %2874 = vmax.xlane.f32.xlu0 %v2873
        %v2875 = vpop.xlane.xlu0 %2874
        %v2876 = vsub.f32 %v2868, %v2872
        %v2877 = vsub.f32 %v2869, %v2875
        %v2878 = vmul.f32 %v2876, 1.442695
        %v2879 = vpow.pop %v2878
        %v2880 = vmul.f32 %v2877, 1.442695
        %v2881 = vpow.pop %v2880
        %v2882 = vsel %vm999, %v2879, 0.0
        %2883 = vadd.xlane.f32.xlu0 %v2882
        %v2884 = vpop.xlane.xlu0 %2883
        %v2885 = vsel %vm1003, %v2881, 0.0
        %2886 = vadd.xlane.f32.xlu0 %v2885
        %v2887 = vpop.xlane.xlu0 %2886
        %v2888 = vrcp.pop %v2884
        %v2889 = vrcp.pop %v2887
        %v2890 = vmul.f32 %v2879, %v2888
        %v2891 = vmul.f32 %v2881, %v2889
        %v2892 = vmul.f32 %v2225, %v680
        %v2893 = vmul.f32 %v2227, %v680
        %v2895 = vsel %vm999, %v2890, 0
        %v2898 = vsel %vm999, %v2891, 0
        %v2901 = vsel %vm1134, %v2893, 0
        %2903 = vmatprep.subr.mxu0 0.0
        %2904 = vmatpush1.msra.mxu0 0.0
        %2905 = vmatprep.subr.mxu0 0.0
        %2906 = vmatpush1.msra.mxu0 0.0
        %2907 = vmatprep.subr.mxu0 0.0
        %2908 = vmatpush1.msra.mxu0 0.0
        %2909 = vmatprep.subr.mxu0 0.0
        %2910 = vmatpush1.msra.mxu0 0.0
        %2911 = vmatprep.subr.mxu0 0.0
        %2912 = vmatpush1.msra.mxu0 0.0
        %2913 = vmatprep.subr.mxu0 0.0
        %2914 = vmatpush1.msra.mxu0 0.0
        %2915 = vmatprep.subr.mxu0 0.0
        %2916 = vmatpush1.msra.mxu0 0.0
        %2917 = vmatprep.subr.mxu0 0.0
        %2918 = vmatpush1.msra.mxu0 0.0
        %2919 = vmatprep.subr.mxu0 0.0
        %2920 = vmatpush1.msra.mxu0 0.0
        %2921 = vmatprep.subr.mxu0 0.0
        %2922 = vmatpush1.msra.mxu0 0.0
        %2923 = vmatprep.subr.mxu0 0.0
        %2924 = vmatpush1.msra.mxu0 0.0
        %2925 = vmatprep.subr.mxu0 0.0
        %2926 = vmatpush1.msra.mxu0 0.0
        %2927 = vmatprep.subr.mxu0 0.0
        %2928 = vmatpush1.msra.mxu0 0.0
        %2929 = vmatprep.subr.mxu0 0.0
        %2930 = vmatpush1.msra.mxu0 0.0
        %2931 = vmatprep.subr.mxu0 0.0
        %2932 = vmatpush1.msra.mxu0 %v2901
        %2933 = vmatprep.subr.mxu0 0.0
        %2934 = vmatpush1.msra.mxu0 %v2892
        %2935 = vmatprep.subr.mxu0 0.0
        %2936 = vmatpush2.msra.mxu0 0.0
        %2937 = vmatprep.subr.mxu0 0.0
        %2938 = vmatpush2.msra.mxu0 0.0
        %2939 = vmatprep.subr.mxu0 0.0
        %2940 = vmatpush2.msra.mxu0 0.0
        %2941 = vmatprep.subr.mxu0 0.0
        %2942 = vmatpush2.msra.mxu0 0.0
        %2943 = vmatprep.subr.mxu0 0.0
        %2944 = vmatpush2.msra.mxu0 0.0
        %2945 = vmatprep.subr.mxu0 0.0
        %2946 = vmatpush2.msra.mxu0 0.0
        %2947 = vmatprep.subr.mxu0 0.0
        %2948 = vmatpush2.msra.mxu0 0.0
        %2949 = vmatprep.subr.mxu0 0.0
        %2950 = vmatpush2.msra.mxu0 0.0
        %2951 = vmatprep.subr.mxu0 0.0
        %2952 = vmatpush2.msra.mxu0 0.0
        %2953 = vmatprep.subr.mxu0 0.0
        %2954 = vmatpush2.msra.mxu0 0.0
        %2955 = vmatprep.subr.mxu0 0.0
        %2956 = vmatpush2.msra.mxu0 0.0
        %2957 = vmatprep.subr.mxu0 0.0
        %2958 = vmatpush2.msra.mxu0 0.0
        %2959 = vmatprep.subr.mxu0 0.0
        %2960 = vmatpush2.msra.mxu0 0.0
        %2961 = vmatprep.subr.mxu0 0.0
        %2962 = vmatpush2.msra.mxu0 0.0
        %2963 = vmatprep.subr.mxu0 0.0
        %2964 = vmatpush2.msra.mxu0 0.0
        %2965 = vmatprep.subr.mxu0 0.0
        %2966 = vmatpush2.msra.mxu0 0.0
        %2967 = vmatprep.mubr.f32.mxu0 0.0
        %2968 = vmatmul.mubr.f32.gmra.mxu0 %v2895
        %v2969 = vpop.f32.mrf.mxu0
        %v2970 = vadd.f32 0.0, %v2969
        %v2971 = vpop.f32.mrf.mxu0
        %2972 = vmatprep.mubr.f32.mxu0 0.0
        %2973 = vmatmul.mubr.f32.gmra.mxu0 %v2898
        %v2974 = vpop.f32.mrf.mxu0
        %v2975 = vadd.f32 0.0, %v2974
        %v2976 = vpop.f32.mrf.mxu0
        %2977 = vdwg.mxu0
        %v2978 = vadd.f32 %v2789, %v2970
        %v2979 = vadd.f32 %v2790, %v2975
        %s2980 = scalar_lea.vmem [#allocation8], 64
        %v2981 = vld [vmem:[%s2980] sm:$0xf]
        %v2982 = vld [vmem:[%s2980 + $0x4] sm:$0xf]
        %v2983 = vld [vmem:[%s2980 + $0x8] sm:$0xf]
        %v2984 = vld [vmem:[%s2980 + $0xc] sm:$0xf]
        %v2985 = vld [vmem:[%s2980 + $0x10] sm:$0xf]
        %v2986 = vld [vmem:[%s2980 + $0x14] sm:$0xf]
        %v2987 = vld [vmem:[%s2980 + $0x18] sm:$0xf]
        %v2988 = vld [vmem:[%s2980 + $0x1c] sm:$0xf]
        %v2989 = vld [vmem:[%s2980 + $0x20] sm:$0xf]
        %v2990 = vld [vmem:[%s2980 + $0x24] sm:$0xf]
        %v2991 = vld [vmem:[%s2980 + $0x28] sm:$0xf]
        %v2992 = vld [vmem:[%s2980 + $0x2c] sm:$0xf]
        %v2993 = vld [vmem:[%s2980 + $0x30] sm:$0xf]
        %v2994 = vld [vmem:[%s2980 + $0x34] sm:$0xf]
        %v2995 = vld [vmem:[%s2980 + $0x38] sm:$0xf]
        %v2996 = vld [vmem:[%s2980 + $0x3c] sm:$0xf]
        %v2997 = vunpack.c.l.bf16 %v2981
        %v2998 = vunpack.c.l.bf16 %v2982
        %v2999 = vunpack.c.l.bf16 %v2983
        %v3000 = vunpack.c.l.bf16 %v2984
        %v3001 = vunpack.c.l.bf16 %v2985
        %v3002 = vunpack.c.l.bf16 %v2986
        %v3003 = vunpack.c.l.bf16 %v2987
        %v3004 = vunpack.c.l.bf16 %v2988
        %v3005 = vunpack.c.l.bf16 %v2989
        %v3006 = vunpack.c.l.bf16 %v2990
        %v3007 = vunpack.c.l.bf16 %v2991
        %v3008 = vunpack.c.l.bf16 %v2992
        %v3009 = vunpack.c.l.bf16 %v2993
        %v3010 = vunpack.c.l.bf16 %v2994
        %v3011 = vunpack.c.l.bf16 %v2995
        %v3012 = vunpack.c.l.bf16 %v2996
        %v3013 = vlaneseq
        %v3014 = vshrl.u32 %v3013, 7
        %v3015 = vsub.s32 1, %v3014
        %v3016 = vrot.slane %v2107, %v3015
        %3017 = vmatprep.subr.mxu0 0.0
        %3018 = vmatpush1.msra.mxu0 %v3012
        %3019 = vmatprep.subr.mxu0 0.0
        %3020 = vmatpush1.msra.mxu0 %v3011
        %3021 = vmatprep.subr.mxu0 0.0
        %3022 = vmatpush1.msra.mxu0 %v3010
        %3023 = vmatprep.subr.mxu0 0.0
        %3024 = vmatpush1.msra.mxu0 %v3009
        %3025 = vmatprep.subr.mxu0 0.0
        %3026 = vmatpush1.msra.mxu0 %v3008
        %3027 = vmatprep.subr.mxu0 0.0
        %3028 = vmatpush1.msra.mxu0 %v3007
        %3029 = vmatprep.subr.mxu0 0.0
        %3030 = vmatpush1.msra.mxu0 %v3006
        %3031 = vmatprep.subr.mxu0 0.0
        %3032 = vmatpush1.msra.mxu0 %v3005
        %3033 = vmatprep.subr.mxu0 0.0
        %3034 = vmatpush1.msra.mxu0 %v3004
        %3035 = vmatprep.subr.mxu0 0.0
        %3036 = vmatpush1.msra.mxu0 %v3003
        %3037 = vmatprep.subr.mxu0 0.0
        %3038 = vmatpush1.msra.mxu0 %v3002
        %3039 = vmatprep.subr.mxu0 0.0
        %3040 = vmatpush1.msra.mxu0 %v3001
        %3041 = vmatprep.subr.mxu0 0.0
        %3042 = vmatpush1.msra.mxu0 %v3000
        %3043 = vmatprep.subr.mxu0 0.0
        %3044 = vmatpush1.msra.mxu0 %v2999
        %3045 = vmatprep.subr.mxu0 0.0
        %3046 = vmatpush1.msra.mxu0 %v2998
        %3047 = vmatprep.subr.mxu0 0.0
        %3048 = vmatpush1.msra.mxu0 %v2997
        %3049 = vmatprep.subr.mxu0 0.0
        %3050 = vmatpush2.msra.mxu0 0.0
        %3051 = vmatprep.subr.mxu0 0.0
        %3052 = vmatpush2.msra.mxu0 0.0
        %3053 = vmatprep.subr.mxu0 0.0
        %3054 = vmatpush2.msra.mxu0 0.0
        %3055 = vmatprep.subr.mxu0 0.0
        %3056 = vmatpush2.msra.mxu0 0.0
        %3057 = vmatprep.subr.mxu0 0.0
        %3058 = vmatpush2.msra.mxu0 0.0
        %3059 = vmatprep.subr.mxu0 0.0
        %3060 = vmatpush2.msra.mxu0 0.0
        %3061 = vmatprep.subr.mxu0 0.0
        %3062 = vmatpush2.msra.mxu0 0.0
        %3063 = vmatprep.subr.mxu0 0.0
        %3064 = vmatpush2.msra.mxu0 0.0
        %3065 = vmatprep.subr.mxu0 0.0
        %3066 = vmatpush2.msra.mxu0 0.0
        %3067 = vmatprep.subr.mxu0 0.0
        %3068 = vmatpush2.msra.mxu0 0.0
        %3069 = vmatprep.subr.mxu0 0.0
        %3070 = vmatpush2.msra.mxu0 0.0
        %3071 = vmatprep.subr.mxu0 0.0
        %3072 = vmatpush2.msra.mxu0 0.0
        %3073 = vmatprep.subr.mxu0 0.0
        %3074 = vmatpush2.msra.mxu0 0.0
        %3075 = vmatprep.subr.mxu0 0.0
        %3076 = vmatpush2.msra.mxu0 0.0
        %3077 = vmatprep.subr.mxu0 0.0
        %3078 = vmatpush2.msra.mxu0 0.0
        %3079 = vmatprep.subr.mxu0 0.0
        %3080 = vmatpush2.msra.mxu0 0.0
        %3081 = vmatprep.mubr.f32.mxu0 0.0
        %3082 = vmatmul.mubr.f32.gmra.mxu0 %v2978
        %v3083 = vpop.f32.mrf.mxu0
        %v3084 = vadd.f32 %v3016, %v3083
        %v3085 = vpop.f32.mrf.mxu0
        %3086 = vmatprep.mubr.f32.mxu0 0.0
        %3087 = vmatmul.mubr.f32.gmra.mxu0 %v2979
        %v3088 = vpop.f32.mrf.mxu0
        %v3089 = vadd.f32 %v3016, %v3088
        %v3090 = vpop.f32.mrf.mxu0
        %3091 = vdwg.mxu0
        %v3092 = vadd.f32 %v2104, %v3084
        %v3093 = vadd.f32 %v2105, %v3089
        %3094 = vadd.xlane.f32.xlu0 %v3092
        %v3095 = vpop.xlane.xlu0 %3094
        %v3096 = vsel %vm1134, %v3093, 0.0
        %3097 = vadd.xlane.f32.xlu0 %v3096
        %v3098 = vpop.xlane.xlu0 %3097
        %v3099 = vmul.f32 %v3095, 0.03125
        %v3100 = vmul.f32 %v3098, 0.03125
        %v3101 = vsub.f32 %v3092, %v3099
        %v3102 = vsub.f32 %v3093, %v3100
        %v3103 = vmul.f32 %v3101, %v661
        %v3104 = vmul.f32 %v3102, %v661
        %v3105 = vmul.f32 %v3103, %v3103
        %v3106 = vmul.f32 %v3104, %v3104
        %3107 = vadd.xlane.f32.xlu0 %v3105
        %v3108 = vpop.xlane.xlu0 %3107
        %v3109 = vsel %vm1134, %v3106, 0.0
        %3110 = vadd.xlane.f32.xlu0 %v3109
        %v3111 = vpop.xlane.xlu0 %3110
        %v3112 = vmul.f32 %v3108, 0.03125
        %v3113 = vmul.f32 %v3111, 0.03125
        %v3114 = vadd.f32 %v3112, 1e-05
        %v3115 = vadd.f32 %v3113, 1e-05
        %v3116 = vrsqrt.pop %v3114
        %v3117 = vrsqrt.pop %v3115
        %v3118 = vmul.f32 %v3103, %v3116
        %v3119 = vmul.f32 %v3104, %v3117
        %v3120 = vlaneseq
        %v3121 = vshrl.u32 %v3120, 7
        %v3122 = vsub.s32 4, %v3121
        %v3123 = vrot.slane %v2107, %v3122
        %v3124 = vmul.f32 %v3118, %v3123
        %v3125 = vmul.f32 %v3119, %v3123
        %v3126 = vlaneseq
        %v3127 = vshrl.u32 %v3126, 7
        %v3128 = vsub.s32 5, %v3127
        %v3129 = vrot.slane %v2107, %v3128
        %v3130 = vadd.f32 %v3124, %v3129
        %v3131 = vadd.f32 %v3125, %v3129
        %s3132 = scalar_lea.vmem [#allocation9], 64
        %v3133 = vld [vmem:[%s3132] sm:$0xf]
        %v3134 = vld [vmem:[%s3132 + $0x4] sm:$0xf]
        %v3135 = vld [vmem:[%s3132 + $0x8] sm:$0xf]
        %v3136 = vld [vmem:[%s3132 + $0xc] sm:$0xf]
        %v3137 = vld [vmem:[%s3132 + $0x10] sm:$0xf]
        %v3138 = vld [vmem:[%s3132 + $0x14] sm:$0xf]
        %v3139 = vld [vmem:[%s3132 + $0x18] sm:$0xf]
        %v3140 = vld [vmem:[%s3132 + $0x1c] sm:$0xf]
        %v3141 = vld [vmem:[%s3132 + $0x20] sm:$0xf]
        %v3142 = vld [vmem:[%s3132 + $0x24] sm:$0xf]
        %v3143 = vld [vmem:[%s3132 + $0x28] sm:$0xf]
        %v3144 = vld [vmem:[%s3132 + $0x2c] sm:$0xf]
        %v3145 = vld [vmem:[%s3132 + $0x30] sm:$0xf]
        %v3146 = vld [vmem:[%s3132 + $0x34] sm:$0xf]
        %v3147 = vld [vmem:[%s3132 + $0x38] sm:$0xf]
        %v3148 = vld [vmem:[%s3132 + $0x3c] sm:$0xf]
        %v3149 = vunpack.c.l.bf16 %v3133
        %v3150 = vunpack.c.l.bf16 %v3134
        %v3151 = vunpack.c.l.bf16 %v3135
        %v3152 = vunpack.c.l.bf16 %v3136
        %v3153 = vunpack.c.l.bf16 %v3137
        %v3154 = vunpack.c.l.bf16 %v3138
        %v3155 = vunpack.c.l.bf16 %v3139
        %v3156 = vunpack.c.l.bf16 %v3140
        %v3157 = vunpack.c.l.bf16 %v3141
        %v3158 = vunpack.c.l.bf16 %v3142
        %v3159 = vunpack.c.l.bf16 %v3143
        %v3160 = vunpack.c.l.bf16 %v3144
        %v3161 = vunpack.c.l.bf16 %v3145
        %v3162 = vunpack.c.l.bf16 %v3146
        %v3163 = vunpack.c.l.bf16 %v3147
        %v3164 = vunpack.c.l.bf16 %v3148
        %v3165 = vlaneseq
        %v3166 = vshrl.u32 %v3165, 7
        %v3167 = vsub.s32 2, %v3166
        %v3168 = vrot.slane %v2107, %v3167
        %3169 = vmatprep.subr.mxu0 0.0
        %3170 = vmatpush1.msra.mxu0 %v3164
        %3171 = vmatprep.subr.mxu0 0.0
        %3172 = vmatpush1.msra.mxu0 %v3163
        %3173 = vmatprep.subr.mxu0 0.0
        %3174 = vmatpush1.msra.mxu0 %v3162
        %3175 = vmatprep.subr.mxu0 0.0
        %3176 = vmatpush1.msra.mxu0 %v3161
        %3177 = vmatprep.subr.mxu0 0.0
        %3178 = vmatpush1.msra.mxu0 %v3160
        %3179 = vmatprep.subr.mxu0 0.0
        %3180 = vmatpush1.msra.mxu0 %v3159
        %3181 = vmatprep.subr.mxu0 0.0
        %3182 = vmatpush1.msra.mxu0 %v3158
        %3183 = vmatprep.subr.mxu0 0.0
        %3184 = vmatpush1.msra.mxu0 %v3157
        %3185 = vmatprep.subr.mxu0 0.0
        %3186 = vmatpush1.msra.mxu0 %v3156
        %3187 = vmatprep.subr.mxu0 0.0
        %3188 = vmatpush1.msra.mxu0 %v3155
        %3189 = vmatprep.subr.mxu0 0.0
        %3190 = vmatpush1.msra.mxu0 %v3154
        %3191 = vmatprep.subr.mxu0 0.0
        %3192 = vmatpush1.msra.mxu0 %v3153
        %3193 = vmatprep.subr.mxu0 0.0
        %3194 = vmatpush1.msra.mxu0 %v3152
        %3195 = vmatprep.subr.mxu0 0.0
        %3196 = vmatpush1.msra.mxu0 %v3151
        %3197 = vmatprep.subr.mxu0 0.0
        %3198 = vmatpush1.msra.mxu0 %v3150
        %3199 = vmatprep.subr.mxu0 0.0
        %3200 = vmatpush1.msra.mxu0 %v3149
        %3201 = vmatprep.subr.mxu0 0.0
        %3202 = vmatpush2.msra.mxu0 0.0
        %3203 = vmatprep.subr.mxu0 0.0
        %3204 = vmatpush2.msra.mxu0 0.0
        %3205 = vmatprep.subr.mxu0 0.0
        %3206 = vmatpush2.msra.mxu0 0.0
        %3207 = vmatprep.subr.mxu0 0.0
        %3208 = vmatpush2.msra.mxu0 0.0
        %3209 = vmatprep.subr.mxu0 0.0
        %3210 = vmatpush2.msra.mxu0 0.0
        %3211 = vmatprep.subr.mxu0 0.0
        %3212 = vmatpush2.msra.mxu0 0.0
        %3213 = vmatprep.subr.mxu0 0.0
        %3214 = vmatpush2.msra.mxu0 0.0
        %3215 = vmatprep.subr.mxu0 0.0
        %3216 = vmatpush2.msra.mxu0 0.0
        %3217 = vmatprep.subr.mxu0 0.0
        %3218 = vmatpush2.msra.mxu0 0.0
        %3219 = vmatprep.subr.mxu0 0.0
        %3220 = vmatpush2.msra.mxu0 0.0
        %3221 = vmatprep.subr.mxu0 0.0
        %3222 = vmatpush2.msra.mxu0 0.0
        %3223 = vmatprep.subr.mxu0 0.0
        %3224 = vmatpush2.msra.mxu0 0.0
        %3225 = vmatprep.subr.mxu0 0.0
        %3226 = vmatpush2.msra.mxu0 0.0
        %3227 = vmatprep.subr.mxu0 0.0
        %3228 = vmatpush2.msra.mxu0 0.0
        %3229 = vmatprep.subr.mxu0 0.0
        %3230 = vmatpush2.msra.mxu0 0.0
        %3231 = vmatprep.subr.mxu0 0.0
        %3232 = vmatpush2.msra.mxu0 0.0
        %3233 = vmatprep.mubr.f32.mxu0 0.0
        %3234 = vmatmul.mubr.f32.gmra.mxu0 %v3130
        %v3235 = vpop.f32.mrf.mxu0
        %v3236 = vadd.f32 %v3168, %v3235
        %v3237 = vpop.f32.mrf.mxu0
        %3238 = vmatprep.mubr.f32.mxu0 0.0
        %3239 = vmatmul.mubr.f32.gmra.mxu0 %v3131
        %v3240 = vpop.f32.mrf.mxu0
        %v3241 = vadd.f32 %v3168, %v3240
        %v3242 = vpop.f32.mrf.mxu0
        %3243 = vdwg.mxu0
        %v3244 = vmul.f32 %v3236, 0.5
        %v3245 = vmul.f32 %v3241, 0.5
        %v3246 = vmul.f32 %v3236, 0.044715
        %v3247 = vmul.f32 %v3241, 0.044715
        %v3248 = vmul.f32 %v3246, %v3236
        %v3249 = vmul.f32 %v3247, %v3241
        %v3250 = vmul.f32 %v3248, %v3236
        %v3251 = vmul.f32 %v3249, %v3241
        %v3252 = vadd.f32 %v3236, %v3250
        %v3253 = vadd.f32 %v3241, %v3251
        %v3254 = vmul.f32 %v3252, 0.7978846
        %v3255 = vmul.f32 %v3253, 0.7978846
        %v3256 = vtanh.pop %v3254
        %v3257 = vtanh.pop %v3255
        %v3258 = vadd.f32 %v3256, 1.0
        %v3259 = vadd.f32 %v3257, 1.0
        %v3260 = vmul.f32 %v3244, %v3258
        %v3261 = vmul.f32 %v3245, %v3259
        %s3262 = scalar_lea.vmem [#allocation11], 64
        %v3263 = vld [vmem:[%s3262] sm:$0xf]
        %v3264 = vld [vmem:[%s3262 + $0x4] sm:$0xf]
        %v3265 = vld [vmem:[%s3262 + $0x8] sm:$0xf]
        %v3266 = vld [vmem:[%s3262 + $0xc] sm:$0xf]
        %v3267 = vld [vmem:[%s3262 + $0x10] sm:$0xf]
        %v3268 = vld [vmem:[%s3262 + $0x14] sm:$0xf]
        %v3269 = vld [vmem:[%s3262 + $0x18] sm:$0xf]
        %v3270 = vld [vmem:[%s3262 + $0x1c] sm:$0xf]
        %v3271 = vld [vmem:[%s3262 + $0x20] sm:$0xf]
        %v3272 = vld [vmem:[%s3262 + $0x24] sm:$0xf]
        %v3273 = vld [vmem:[%s3262 + $0x28] sm:$0xf]
        %v3274 = vld [vmem:[%s3262 + $0x2c] sm:$0xf]
        %v3275 = vld [vmem:[%s3262 + $0x30] sm:$0xf]
        %v3276 = vld [vmem:[%s3262 + $0x34] sm:$0xf]
        %v3277 = vld [vmem:[%s3262 + $0x38] sm:$0xf]
        %v3278 = vld [vmem:[%s3262 + $0x3c] sm:$0xf]
        %v3279 = vunpack.c.l.bf16 %v3263
        %v3280 = vunpack.c.l.bf16 %v3264
        %v3281 = vunpack.c.l.bf16 %v3265
        %v3282 = vunpack.c.l.bf16 %v3266
        %v3283 = vunpack.c.l.bf16 %v3267
        %v3284 = vunpack.c.l.bf16 %v3268
        %v3285 = vunpack.c.l.bf16 %v3269
        %v3286 = vunpack.c.l.bf16 %v3270
        %v3287 = vunpack.c.l.bf16 %v3271
        %v3288 = vunpack.c.l.bf16 %v3272
        %v3289 = vunpack.c.l.bf16 %v3273
        %v3290 = vunpack.c.l.bf16 %v3274
        %v3291 = vunpack.c.l.bf16 %v3275
        %v3292 = vunpack.c.l.bf16 %v3276
        %v3293 = vunpack.c.l.bf16 %v3277
        %v3294 = vunpack.c.l.bf16 %v3278
        %v3295 = vlaneseq
        %v3296 = vshrl.u32 %v3295, 7
        %v3297 = vsub.s32 3, %v3296
        %v3298 = vrot.slane %v2107, %v3297
        %3299 = vmatprep.subr.mxu0 0.0
        %3300 = vmatpush1.msra.mxu0 %v3294
        %3301 = vmatprep.subr.mxu0 0.0
        %3302 = vmatpush1.msra.mxu0 %v3293
        %3303 = vmatprep.subr.mxu0 0.0
        %3304 = vmatpush1.msra.mxu0 %v3292
        %3305 = vmatprep.subr.mxu0 0.0
        %3306 = vmatpush1.msra.mxu0 %v3291
        %3307 = vmatprep.subr.mxu0 0.0
        %3308 = vmatpush1.msra.mxu0 %v3290
        %3309 = vmatprep.subr.mxu0 0.0
        %3310 = vmatpush1.msra.mxu0 %v3289
        %3311 = vmatprep.subr.mxu0 0.0
        %3312 = vmatpush1.msra.mxu0 %v3288
        %3313 = vmatprep.subr.mxu0 0.0
        %3314 = vmatpush1.msra.mxu0 %v3287
        %3315 = vmatprep.subr.mxu0 0.0
        %3316 = vmatpush1.msra.mxu0 %v3286
        %3317 = vmatprep.subr.mxu0 0.0
        %3318 = vmatpush1.msra.mxu0 %v3285
        %3319 = vmatprep.subr.mxu0 0.0
        %3320 = vmatpush1.msra.mxu0 %v3284
        %3321 = vmatprep.subr.mxu0 0.0
        %3322 = vmatpush1.msra.mxu0 %v3283
        %3323 = vmatprep.subr.mxu0 0.0
        %3324 = vmatpush1.msra.mxu0 %v3282
        %3325 = vmatprep.subr.mxu0 0.0
        %3326 = vmatpush1.msra.mxu0 %v3281
        %3327 = vmatprep.subr.mxu0 0.0
        %3328 = vmatpush1.msra.mxu0 %v3280
        %3329 = vmatprep.subr.mxu0 0.0
        %3330 = vmatpush1.msra.mxu0 %v3279
        %3331 = vmatprep.subr.mxu0 0.0
        %3332 = vmatpush2.msra.mxu0 0.0
        %3333 = vmatprep.subr.mxu0 0.0
        %3334 = vmatpush2.msra.mxu0 0.0
        %3335 = vmatprep.subr.mxu0 0.0
        %3336 = vmatpush2.msra.mxu0 0.0
        %3337 = vmatprep.subr.mxu0 0.0
        %3338 = vmatpush2.msra.mxu0 0.0
        %3339 = vmatprep.subr.mxu0 0.0
        %3340 = vmatpush2.msra.mxu0 0.0
        %3341 = vmatprep.subr.mxu0 0.0
        %3342 = vmatpush2.msra.mxu0 0.0
        %3343 = vmatprep.subr.mxu0 0.0
        %3344 = vmatpush2.msra.mxu0 0.0
        %3345 = vmatprep.subr.mxu0 0.0
        %3346 = vmatpush2.msra.mxu0 0.0
        %3347 = vmatprep.subr.mxu0 0.0
        %3348 = vmatpush2.msra.mxu0 0.0
        %3349 = vmatprep.subr.mxu0 0.0
        %3350 = vmatpush2.msra.mxu0 0.0
        %3351 = vmatprep.subr.mxu0 0.0
        %3352 = vmatpush2.msra.mxu0 0.0
        %3353 = vmatprep.subr.mxu0 0.0
        %3354 = vmatpush2.msra.mxu0 0.0
        %3355 = vmatprep.subr.mxu0 0.0
        %3356 = vmatpush2.msra.mxu0 0.0
        %3357 = vmatprep.subr.mxu0 0.0
        %3358 = vmatpush2.msra.mxu0 0.0
        %3359 = vmatprep.subr.mxu0 0.0
        %3360 = vmatpush2.msra.mxu0 0.0
        %3361 = vmatprep.subr.mxu0 0.0
        %3362 = vmatpush2.msra.mxu0 0.0
        %3363 = vmatprep.mubr.f32.mxu0 0.0
        %3364 = vmatmul.mubr.f32.gmra.mxu0 %v3260
        %v3365 = vpop.f32.mrf.mxu0
        %v3366 = vadd.f32 %v3298, %v3365
        %v3367 = vpop.f32.mrf.mxu0
        %3368 = vmatprep.mubr.f32.mxu0 0.0
        %3369 = vmatmul.mubr.f32.gmra.mxu0 %v3261
        %v3370 = vpop.f32.mrf.mxu0
        %v3371 = vadd.f32 %v3298, %v3370
        %v3372 = vpop.f32.mrf.mxu0
        %3373 = vdwg.mxu0
        %v3374 = vadd.f32 %v3130, %v3366
        %v3375 = vadd.f32 %v3131, %v3371
        %3376 = vadd.xlane.f32.xlu0 %v3374
        %v3377 = vpop.xlane.xlu0 %3376
        %v3378 = vsel %vm1134, %v3375, 0.0
        %3379 = vadd.xlane.f32.xlu0 %v3378
        %v3380 = vpop.xlane.xlu0 %3379
        %v3381 = vmul.f32 %v3377, 0.03125
        %v3382 = vmul.f32 %v3380, 0.03125
        %v3383 = vsub.f32 %v3374, %v3381
        %v3384 = vsub.f32 %v3375, %v3382
        %v3385 = vmul.f32 %v3383, %v661
        %v3386 = vmul.f32 %v3384, %v661
        %v3387 = vmul.f32 %v3385, %v3385
        %v3388 = vmul.f32 %v3386, %v3386
        %3389 = vadd.xlane.f32.xlu0 %v3387
        %v3390 = vpop.xlane.xlu0 %3389
        %v3391 = vsel %vm1134, %v3388, 0.0
        %3392 = vadd.xlane.f32.xlu0 %v3391
        %v3393 = vpop.xlane.xlu0 %3392
        %v3394 = vmul.f32 %v3390, 0.03125
        %v3395 = vmul.f32 %v3393, 0.03125
        %v3396 = vadd.f32 %v3394, 1e-05
        %v3397 = vadd.f32 %v3395, 1e-05
        %v3398 = vrsqrt.pop %v3396
        %v3399 = vrsqrt.pop %v3397
        %v3400 = vmul.f32 %v3385, %v3398
        %v3401 = vmul.f32 %v3386, %v3399
        %v3402 = vlaneseq
        %v3403 = vshrl.u32 %v3402, 7
        %v3404 = vsub.s32 6, %v3403
        %v3405 = vrot.slane %v2107, %v3404
        %v3406 = vmul.f32 %v3400, %v3405
        %v3407 = vmul.f32 %v3401, %v3405
        %v3408 = vlaneseq
        %v3409 = vshrl.u32 %v3408, 7
        %v3410 = vsub.s32 7, %v3409
        %v3411 = vrot.slane %v2107, %v3410
        %v3412 = vadd.f32 %v3406, %v3411
        %v3413 = vadd.f32 %v3407, %v3411
        %s3414 = scalar_lea.vmem [#allocation12], 16
        %v3415 = vld [vmem:[%s3414] sm:$0xff]
        %s3416 = scalar_lea.vmem [#allocation6], 128
        %v3417 = vld [vmem:[%s3416] sm:$0xf]
        %v3418 = vld [vmem:[%s3416 + $0x4] sm:$0xf]
        %v3419 = vld [vmem:[%s3416 + $0x8] sm:$0xf]
        %v3420 = vld [vmem:[%s3416 + $0xc] sm:$0xf]
        %v3421 = vld [vmem:[%s3416 + $0x10] sm:$0xf]
        %v3422 = vld [vmem:[%s3416 + $0x14] sm:$0xf]
        %v3423 = vld [vmem:[%s3416 + $0x18] sm:$0xf]
        %v3424 = vld [vmem:[%s3416 + $0x1c] sm:$0xf]
        %v3425 = vld [vmem:[%s3416 + $0x20] sm:$0xf]
        %v3426 = vld [vmem:[%s3416 + $0x24] sm:$0xf]
        %v3427 = vld [vmem:[%s3416 + $0x28] sm:$0xf]
        %v3428 = vld [vmem:[%s3416 + $0x2c] sm:$0xf]
        %v3429 = vld [vmem:[%s3416 + $0x30] sm:$0xf]
        %v3430 = vld [vmem:[%s3416 + $0x34] sm:$0xf]
        %v3431 = vld [vmem:[%s3416 + $0x38] sm:$0xf]
        %v3432 = vld [vmem:[%s3416 + $0x3c] sm:$0xf]
        %v3433 = vunpack.c.l.bf16 %v3417
        %v3434 = vunpack.c.l.bf16 %v3418
        %v3435 = vunpack.c.l.bf16 %v3419
        %v3436 = vunpack.c.l.bf16 %v3420
        %v3437 = vunpack.c.l.bf16 %v3421
        %v3438 = vunpack.c.l.bf16 %v3422
        %v3439 = vunpack.c.l.bf16 %v3423
        %v3440 = vunpack.c.l.bf16 %v3424
        %v3441 = vunpack.c.l.bf16 %v3425
        %v3442 = vunpack.c.l.bf16 %v3426
        %v3443 = vunpack.c.l.bf16 %v3427
        %v3444 = vunpack.c.l.bf16 %v3428
        %v3445 = vunpack.c.l.bf16 %v3429
        %v3446 = vunpack.c.l.bf16 %v3430
        %v3447 = vunpack.c.l.bf16 %v3431
        %v3448 = vunpack.c.l.bf16 %v3432
        %v3449 = vlaneseq
        %v3450 = vshrl.u32 %v3449, 7
        %v3451 = vsub.s32 0, %v3450
        %v3452 = vrot.slane %v3415, %v3451
        %3453 = vmatprep.subr.mxu0 0.0
        %3454 = vmatpush1.msra.mxu0 %v3448
        %3455 = vmatprep.subr.mxu0 0.0
        %3456 = vmatpush1.msra.mxu0 %v3447
        %3457 = vmatprep.subr.mxu0 0.0
        %3458 = vmatpush1.msra.mxu0 %v3446
        %3459 = vmatprep.subr.mxu0 0.0
        %3460 = vmatpush1.msra.mxu0 %v3445
        %3461 = vmatprep.subr.mxu0 0.0
        %3462 = vmatpush1.msra.mxu0 %v3444
        %3463 = vmatprep.subr.mxu0 0.0
        %3464 = vmatpush1.msra.mxu0 %v3443
        %3465 = vmatprep.subr.mxu0 0.0
        %3466 = vmatpush1.msra.mxu0 %v3442
        %3467 = vmatprep.subr.mxu0 0.0
        %3468 = vmatpush1.msra.mxu0 %v3441
        %3469 = vmatprep.subr.mxu0 0.0
        %3470 = vmatpush1.msra.mxu0 %v3440
        %3471 = vmatprep.subr.mxu0 0.0
        %3472 = vmatpush1.msra.mxu0 %v3439
        %3473 = vmatprep.subr.mxu0 0.0
        %3474 = vmatpush1.msra.mxu0 %v3438
        %3475 = vmatprep.subr.mxu0 0.0
        %3476 = vmatpush1.msra.mxu0 %v3437
        %3477 = vmatprep.subr.mxu0 0.0
        %3478 = vmatpush1.msra.mxu0 %v3436
        %3479 = vmatprep.subr.mxu0 0.0
        %3480 = vmatpush1.msra.mxu0 %v3435
        %3481 = vmatprep.subr.mxu0 0.0
        %3482 = vmatpush1.msra.mxu0 %v3434
        %3483 = vmatprep.subr.mxu0 0.0
        %3484 = vmatpush1.msra.mxu0 %v3433
        %3485 = vmatprep.subr.mxu0 0.0
        %3486 = vmatpush2.msra.mxu0 0.0
        %3487 = vmatprep.subr.mxu0 0.0
        %3488 = vmatpush2.msra.mxu0 0.0
        %3489 = vmatprep.subr.mxu0 0.0
        %3490 = vmatpush2.msra.mxu0 0.0
        %3491 = vmatprep.subr.mxu0 0.0
        %3492 = vmatpush2.msra.mxu0 0.0
        %3493 = vmatprep.subr.mxu0 0.0
        %3494 = vmatpush2.msra.mxu0 0.0
        %3495 = vmatprep.subr.mxu0 0.0
        %3496 = vmatpush2.msra.mxu0 0.0
        %3497 = vmatprep.subr.mxu0 0.0
        %3498 = vmatpush2.msra.mxu0 0.0
        %3499 = vmatprep.subr.mxu0 0.0
        %3500 = vmatpush2.msra.mxu0 0.0
        %3501 = vmatprep.subr.mxu0 0.0
        %3502 = vmatpush2.msra.mxu0 0.0
        %3503 = vmatprep.subr.mxu0 0.0
        %3504 = vmatpush2.msra.mxu0 0.0
        %3505 = vmatprep.subr.mxu0 0.0
        %3506 = vmatpush2.msra.mxu0 0.0
        %3507 = vmatprep.subr.mxu0 0.0
        %3508 = vmatpush2.msra.mxu0 0.0
        %3509 = vmatprep.subr.mxu0 0.0
        %3510 = vmatpush2.msra.mxu0 0.0
        %3511 = vmatprep.subr.mxu0 0.0
        %3512 = vmatpush2.msra.mxu0 0.0
        %3513 = vmatprep.subr.mxu0 0.0
        %3514 = vmatpush2.msra.mxu0 0.0
        %3515 = vmatprep.subr.mxu0 0.0
        %3516 = vmatpush2.msra.mxu0 0.0
        %3517 = vmatprep.mubr.f32.mxu0 0.0
        %3518 = vmatmul.mubr.f32.gmra.mxu0 %v3412
        %v3519 = vpop.f32.mrf.mxu0
        %v3520 = vadd.f32 %v3452, %v3519
        %v3521 = vpop.f32.mrf.mxu0
        %3522 = vmatprep.mubr.f32.mxu0 0.0
        %3523 = vmatmul.mubr.f32.gmra.mxu0 %v3413
        %v3524 = vpop.f32.mrf.mxu0
        %v3525 = vadd.f32 %v3452, %v3524
        %v3526 = vpop.f32.mrf.mxu0
        %3527 = vdwg.mxu0
        %3528 = vrot.lane.b32.xlu0 %v3520, 96
        %v3529 = vpop.permute.xlu0 %3528
        %3530 = vrot.lane.b32.xlu0 %v3525, 96
        %v3531 = vpop.permute.xlu0 %3530
        %3532 = vrot.lane.b32.xlu0 %v3520, 64
        %v3533 = vpop.permute.xlu0 %3532
        %3534 = vrot.lane.b32.xlu0 %v3525, 64
        %v3535 = vpop.permute.xlu0 %3534
        %v3536 = vmul.f32 %v3520, %v666
        %v3537 = vmul.f32 %v3525, %v666
        %3538 = vmatprep.subr.mxu0 0.0
        %3539 = vmatpush1.xpose.msra.mxu0 0.0
        %3540 = vmatprep.subr.mxu0 0.0
        %3541 = vmatpush1.xpose.msra.mxu0 0.0
        %3542 = vmatprep.subr.mxu0 0.0
        %3543 = vmatpush1.xpose.msra.mxu0 0.0
        %3544 = vmatprep.subr.mxu0 0.0
        %3545 = vmatpush1.xpose.msra.mxu0 0.0
        %3546 = vmatprep.subr.mxu0 0.0
        %3547 = vmatpush1.xpose.msra.mxu0 0.0
        %3548 = vmatprep.subr.mxu0 0.0
        %3549 = vmatpush1.xpose.msra.mxu0 0.0
        %3550 = vmatprep.subr.mxu0 0.0
        %3551 = vmatpush1.xpose.msra.mxu0 0.0
        %3552 = vmatprep.subr.mxu0 0.0
        %3553 = vmatpush1.xpose.msra.mxu0 0.0
        %3554 = vmatprep.subr.mxu0 0.0
        %3555 = vmatpush1.xpose.msra.mxu0 0.0
        %3556 = vmatprep.subr.mxu0 0.0
        %3557 = vmatpush1.xpose.msra.mxu0 0.0
        %3558 = vmatprep.subr.mxu0 0.0
        %3559 = vmatpush1.xpose.msra.mxu0 0.0
        %3560 = vmatprep.subr.mxu0 0.0
        %3561 = vmatpush1.xpose.msra.mxu0 0.0
        %3562 = vmatprep.subr.mxu0 0.0
        %3563 = vmatpush1.xpose.msra.mxu0 0.0
        %3564 = vmatprep.subr.mxu0 0.0
        %3565 = vmatpush1.xpose.msra.mxu0 0.0
        %3566 = vmatprep.subr.mxu0 0.0
        %3567 = vmatpush1.xpose.msra.mxu0 %v3531
        %3568 = vmatprep.subr.mxu0 0.0
        %3569 = vmatpush1.xpose.msra.mxu0 %v3529
        %3570 = vmatprep.subr.mxu0 0.0
        %3571 = vmatpush2.xpose.msra.mxu0 0.0
        %3572 = vmatprep.subr.mxu0 0.0
        %3573 = vmatpush2.xpose.msra.mxu0 0.0
        %3574 = vmatprep.subr.mxu0 0.0
        %3575 = vmatpush2.xpose.msra.mxu0 0.0
        %3576 = vmatprep.subr.mxu0 0.0
        %3577 = vmatpush2.xpose.msra.mxu0 0.0
        %3578 = vmatprep.subr.mxu0 0.0
        %3579 = vmatpush2.xpose.msra.mxu0 0.0
        %3580 = vmatprep.subr.mxu0 0.0
        %3581 = vmatpush2.xpose.msra.mxu0 0.0
        %3582 = vmatprep.subr.mxu0 0.0
        %3583 = vmatpush2.xpose.msra.mxu0 0.0
        %3584 = vmatprep.subr.mxu0 0.0
        %3585 = vmatpush2.xpose.msra.mxu0 0.0
        %3586 = vmatprep.subr.mxu0 0.0
        %3587 = vmatpush2.xpose.msra.mxu0 0.0
        %3588 = vmatprep.subr.mxu0 0.0
        %3589 = vmatpush2.xpose.msra.mxu0 0.0
        %3590 = vmatprep.subr.mxu0 0.0
        %3591 = vmatpush2.xpose.msra.mxu0 0.0
        %3592 = vmatprep.subr.mxu0 0.0
        %3593 = vmatpush2.xpose.msra.mxu0 0.0
        %3594 = vmatprep.subr.mxu0 0.0
        %3595 = vmatpush2.xpose.msra.mxu0 0.0
        %3596 = vmatprep.subr.mxu0 0.0
        %3597 = vmatpush2.xpose.msra.mxu0 0.0
        %3598 = vmatprep.subr.mxu0 0.0
        %3599 = vmatpush2.xpose.msra.mxu0 0.0
        %3600 = vmatprep.subr.mxu0 0.0
        %3601 = vmatpush2.xpose.msra.mxu0 0.0
        %3602 = vmatprep.mubr.f32.mxu0 0.0
        %3603 = vmatmul.mubr.f32.gmra.mxu0 %v3536
        %v3604 = vpop.f32.mrf.mxu0
        %v3605 = vadd.f32 0.0, %v3604
        %v3606 = vpop.f32.mrf.mxu0
        %3607 = vmatprep.mubr.f32.mxu0 0.0
        %3608 = vmatmul.mubr.f32.gmra.mxu0 %v3537
        %v3609 = vpop.f32.mrf.mxu0
        %v3610 = vadd.f32 0.0, %v3609
        %v3611 = vpop.f32.mrf.mxu0
        %3612 = vdwg.mxu0
        %v3613 = vmul.f32 %v3605, 0.35355338
        %v3614 = vmul.f32 %v3610, 0.35355338
        %v3615 = vsel %vm999, %v3613, -inf
        %3616 = vmax.xlane.f32.xlu0 %v3615
        %v3617 = vpop.xlane.xlu0 %3616
        %v3618 = vsel %vm1003, %v3614, -inf
        %3619 = vmax.xlane.f32.xlu0 %v3618
        %v3620 = vpop.xlane.xlu0 %3619
        %v3621 = vsub.f32 %v3613, %v3617
        %v3622 = vsub.f32 %v3614, %v3620
        %v3623 = vmul.f32 %v3621, 1.442695
        %v3624 = vpow.pop %v3623
        %v3625 = vmul.f32 %v3622, 1.442695
        %v3626 = vpow.pop %v3625
        %v3627 = vsel %vm999, %v3624, 0.0
        %3628 = vadd.xlane.f32.xlu0 %v3627
        %v3629 = vpop.xlane.xlu0 %3628
        %v3630 = vsel %vm1003, %v3626, 0.0
        %3631 = vadd.xlane.f32.xlu0 %v3630
        %v3632 = vpop.xlane.xlu0 %3631
        %v3633 = vrcp.pop %v3629
        %v3634 = vrcp.pop %v3632
        %v3635 = vmul.f32 %v3624, %v3633
        %v3636 = vmul.f32 %v3626, %v3634
        %v3637 = vmul.f32 %v3533, %v666
        %v3638 = vmul.f32 %v3535, %v666
        %v3639 = vmul.f32 %v3520, %v671
        %v3640 = vmul.f32 %v3525, %v671
        %3641 = vmatprep.subr.mxu0 0.0
        %3642 = vmatpush1.xpose.msra.mxu0 0.0
        %3643 = vmatprep.subr.mxu0 0.0
        %3644 = vmatpush1.xpose.msra.mxu0 0.0
        %3645 = vmatprep.subr.mxu0 0.0
        %3646 = vmatpush1.xpose.msra.mxu0 0.0
        %3647 = vmatprep.subr.mxu0 0.0
        %3648 = vmatpush1.xpose.msra.mxu0 0.0
        %3649 = vmatprep.subr.mxu0 0.0
        %3650 = vmatpush1.xpose.msra.mxu0 0.0
        %3651 = vmatprep.subr.mxu0 0.0
        %3652 = vmatpush1.xpose.msra.mxu0 0.0
        %3653 = vmatprep.subr.mxu0 0.0
        %3654 = vmatpush1.xpose.msra.mxu0 0.0
        %3655 = vmatprep.subr.mxu0 0.0
        %3656 = vmatpush1.xpose.msra.mxu0 0.0
        %3657 = vmatprep.subr.mxu0 0.0
        %3658 = vmatpush1.xpose.msra.mxu0 0.0
        %3659 = vmatprep.subr.mxu0 0.0
        %3660 = vmatpush1.xpose.msra.mxu0 0.0
        %3661 = vmatprep.subr.mxu0 0.0
        %3662 = vmatpush1.xpose.msra.mxu0 0.0
        %3663 = vmatprep.subr.mxu0 0.0
        %3664 = vmatpush1.xpose.msra.mxu0 0.0
        %3665 = vmatprep.subr.mxu0 0.0
        %3666 = vmatpush1.xpose.msra.mxu0 0.0
        %3667 = vmatprep.subr.mxu0 0.0
        %3668 = vmatpush1.xpose.msra.mxu0 0.0
        %3669 = vmatprep.subr.mxu0 0.0
        %3670 = vmatpush1.xpose.msra.mxu0 %v3531
        %3671 = vmatprep.subr.mxu0 0.0
        %3672 = vmatpush1.xpose.msra.mxu0 %v3529
        %3673 = vmatprep.subr.mxu0 0.0
        %3674 = vmatpush2.xpose.msra.mxu0 0.0
        %3675 = vmatprep.subr.mxu0 0.0
        %3676 = vmatpush2.xpose.msra.mxu0 0.0
        %3677 = vmatprep.subr.mxu0 0.0
        %3678 = vmatpush2.xpose.msra.mxu0 0.0
        %3679 = vmatprep.subr.mxu0 0.0
        %3680 = vmatpush2.xpose.msra.mxu0 0.0
        %3681 = vmatprep.subr.mxu0 0.0
        %3682 = vmatpush2.xpose.msra.mxu0 0.0
        %3683 = vmatprep.subr.mxu0 0.0
        %3684 = vmatpush2.xpose.msra.mxu0 0.0
        %3685 = vmatprep.subr.mxu0 0.0
        %3686 = vmatpush2.xpose.msra.mxu0 0.0
        %3687 = vmatprep.subr.mxu0 0.0
        %3688 = vmatpush2.xpose.msra.mxu0 0.0
        %3689 = vmatprep.subr.mxu0 0.0
        %3690 = vmatpush2.xpose.msra.mxu0 0.0
        %3691 = vmatprep.subr.mxu0 0.0
        %3692 = vmatpush2.xpose.msra.mxu0 0.0
        %3693 = vmatprep.subr.mxu0 0.0
        %3694 = vmatpush2.xpose.msra.mxu0 0.0
        %3695 = vmatprep.subr.mxu0 0.0
        %3696 = vmatpush2.xpose.msra.mxu0 0.0
        %3697 = vmatprep.subr.mxu0 0.0
        %3698 = vmatpush2.xpose.msra.mxu0 0.0
        %3699 = vmatprep.subr.mxu0 0.0
        %3700 = vmatpush2.xpose.msra.mxu0 0.0
        %3701 = vmatprep.subr.mxu0 0.0
        %3702 = vmatpush2.xpose.msra.mxu0 0.0
        %3703 = vmatprep.subr.mxu0 0.0
        %3704 = vmatpush2.xpose.msra.mxu0 0.0
        %3705 = vmatprep.mubr.f32.mxu0 0.0
        %3706 = vmatmul.mubr.f32.gmra.mxu0 %v3639
        %v3707 = vpop.f32.mrf.mxu0
        %v3708 = vadd.f32 0.0, %v3707
        %v3709 = vpop.f32.mrf.mxu0
        %3710 = vmatprep.mubr.f32.mxu0 0.0
        %3711 = vmatmul.mubr.f32.gmra.mxu0 %v3640
        %v3712 = vpop.f32.mrf.mxu0
        %v3713 = vadd.f32 0.0, %v3712
        %v3714 = vpop.f32.mrf.mxu0
        %3715 = vdwg.mxu0
        %v3716 = vmul.f32 %v3708, 0.35355338
        %v3717 = vmul.f32 %v3713, 0.35355338
        %v3718 = vsel %vm999, %v3716, -inf
        %3719 = vmax.xlane.f32.xlu0 %v3718
        %v3720 = vpop.xlane.xlu0 %3719
        %v3721 = vsel %vm1003, %v3717, -inf
        %3722 = vmax.xlane.f32.xlu0 %v3721
        %v3723 = vpop.xlane.xlu0 %3722
        %v3724 = vsub.f32 %v3716, %v3720
        %v3725 = vsub.f32 %v3717, %v3723
        %v3726 = vmul.f32 %v3724, 1.442695
        %v3727 = vpow.pop %v3726
        %v3728 = vmul.f32 %v3725, 1.442695
        %v3729 = vpow.pop %v3728
        %v3730 = vsel %vm999, %v3727, 0.0
        %3731 = vadd.xlane.f32.xlu0 %v3730
        %v3732 = vpop.xlane.xlu0 %3731
        %v3733 = vsel %vm1003, %v3729, 0.0
        %3734 = vadd.xlane.f32.xlu0 %v3733
        %v3735 = vpop.xlane.xlu0 %3734
        %v3736 = vrcp.pop %v3732
        %v3737 = vrcp.pop %v3735
        %v3738 = vmul.f32 %v3727, %v3736
        %v3739 = vmul.f32 %v3729, %v3737
        %v3740 = vmul.f32 %v3533, %v671
        %v3741 = vmul.f32 %v3535, %v671
        %v3743 = vsel %vm999, %v3738, 0
        %v3746 = vsel %vm999, %v3739, 0
        %v3749 = vsel %vm1134, %v3741, 0
        %3751 = vmatprep.subr.mxu0 0.0
        %3752 = vmatpush1.msra.mxu0 0.0
        %3753 = vmatprep.subr.mxu0 0.0
        %3754 = vmatpush1.msra.mxu0 0.0
        %3755 = vmatprep.subr.mxu0 0.0
        %3756 = vmatpush1.msra.mxu0 0.0
        %3757 = vmatprep.subr.mxu0 0.0
        %3758 = vmatpush1.msra.mxu0 0.0
        %3759 = vmatprep.subr.mxu0 0.0
        %3760 = vmatpush1.msra.mxu0 0.0
        %3761 = vmatprep.subr.mxu0 0.0
        %3762 = vmatpush1.msra.mxu0 0.0
        %3763 = vmatprep.subr.mxu0 0.0
        %3764 = vmatpush1.msra.mxu0 0.0
        %3765 = vmatprep.subr.mxu0 0.0
        %3766 = vmatpush1.msra.mxu0 0.0
        %3767 = vmatprep.subr.mxu0 0.0
        %3768 = vmatpush1.msra.mxu0 0.0
        %3769 = vmatprep.subr.mxu0 0.0
        %3770 = vmatpush1.msra.mxu0 0.0
        %3771 = vmatprep.subr.mxu0 0.0
        %3772 = vmatpush1.msra.mxu0 0.0
        %3773 = vmatprep.subr.mxu0 0.0
        %3774 = vmatpush1.msra.mxu0 0.0
        %3775 = vmatprep.subr.mxu0 0.0
        %3776 = vmatpush1.msra.mxu0 0.0
        %3777 = vmatprep.subr.mxu0 0.0
        %3778 = vmatpush1.msra.mxu0 0.0
        %3779 = vmatprep.subr.mxu0 0.0
        %3780 = vmatpush1.msra.mxu0 %v3749
        %3781 = vmatprep.subr.mxu0 0.0
        %3782 = vmatpush1.msra.mxu0 %v3740
        %3783 = vmatprep.subr.mxu0 0.0
        %3784 = vmatpush2.msra.mxu0 0.0
        %3785 = vmatprep.subr.mxu0 0.0
        %3786 = vmatpush2.msra.mxu0 0.0
        %3787 = vmatprep.subr.mxu0 0.0
        %3788 = vmatpush2.msra.mxu0 0.0
        %3789 = vmatprep.subr.mxu0 0.0
        %3790 = vmatpush2.msra.mxu0 0.0
        %3791 = vmatprep.subr.mxu0 0.0
        %3792 = vmatpush2.msra.mxu0 0.0
        %3793 = vmatprep.subr.mxu0 0.0
        %3794 = vmatpush2.msra.mxu0 0.0
        %3795 = vmatprep.subr.mxu0 0.0
        %3796 = vmatpush2.msra.mxu0 0.0
        %3797 = vmatprep.subr.mxu0 0.0
        %3798 = vmatpush2.msra.mxu0 0.0
        %3799 = vmatprep.subr.mxu0 0.0
        %3800 = vmatpush2.msra.mxu0 0.0
        %3801 = vmatprep.subr.mxu0 0.0
        %3802 = vmatpush2.msra.mxu0 0.0
        %3803 = vmatprep.subr.mxu0 0.0
        %3804 = vmatpush2.msra.mxu0 0.0
        %3805 = vmatprep.subr.mxu0 0.0
        %3806 = vmatpush2.msra.mxu0 0.0
        %3807 = vmatprep.subr.mxu0 0.0
        %3808 = vmatpush2.msra.mxu0 0.0
        %3809 = vmatprep.subr.mxu0 0.0
        %3810 = vmatpush2.msra.mxu0 0.0
        %3811 = vmatprep.subr.mxu0 0.0
        %3812 = vmatpush2.msra.mxu0 0.0
        %3813 = vmatprep.subr.mxu0 0.0
        %3814 = vmatpush2.msra.mxu0 0.0
        %3815 = vmatprep.mubr.f32.mxu0 0.0
        %3816 = vmatmul.mubr.f32.gmra.mxu0 %v3743
        %v3817 = vpop.f32.mrf.mxu0
        %v3818 = vadd.f32 0.0, %v3817
        %v3819 = vpop.f32.mrf.mxu0
        %3820 = vmatprep.mubr.f32.mxu0 0.0
        %3821 = vmatmul.mubr.f32.gmra.mxu0 %v3746
        %v3822 = vpop.f32.mrf.mxu0
        %v3823 = vadd.f32 0.0, %v3822
        %v3824 = vpop.f32.mrf.mxu0
        %3825 = vdwg.mxu0
        %v3827 = vsel %vm999, %v3635, 0
        %v3830 = vsel %vm999, %v3636, 0
        %v3833 = vsel %vm1134, %v3638, 0
        %3835 = vmatprep.subr.mxu0 0.0
        %3836 = vmatpush1.msra.mxu0 0.0
        %3837 = vmatprep.subr.mxu0 0.0
        %3838 = vmatpush1.msra.mxu0 0.0
        %3839 = vmatprep.subr.mxu0 0.0
        %3840 = vmatpush1.msra.mxu0 0.0
        %3841 = vmatprep.subr.mxu0 0.0
        %3842 = vmatpush1.msra.mxu0 0.0
        %3843 = vmatprep.subr.mxu0 0.0
        %3844 = vmatpush1.msra.mxu0 0.0
        %3845 = vmatprep.subr.mxu0 0.0
        %3846 = vmatpush1.msra.mxu0 0.0
        %3847 = vmatprep.subr.mxu0 0.0
        %3848 = vmatpush1.msra.mxu0 0.0
        %3849 = vmatprep.subr.mxu0 0.0
        %3850 = vmatpush1.msra.mxu0 0.0
        %3851 = vmatprep.subr.mxu0 0.0
        %3852 = vmatpush1.msra.mxu0 0.0
        %3853 = vmatprep.subr.mxu0 0.0
        %3854 = vmatpush1.msra.mxu0 0.0
        %3855 = vmatprep.subr.mxu0 0.0
        %3856 = vmatpush1.msra.mxu0 0.0
        %3857 = vmatprep.subr.mxu0 0.0
        %3858 = vmatpush1.msra.mxu0 0.0
        %3859 = vmatprep.subr.mxu0 0.0
        %3860 = vmatpush1.msra.mxu0 0.0
        %3861 = vmatprep.subr.mxu0 0.0
        %3862 = vmatpush1.msra.mxu0 0.0
        %3863 = vmatprep.subr.mxu0 0.0
        %3864 = vmatpush1.msra.mxu0 %v3833
        %3865 = vmatprep.subr.mxu0 0.0
        %3866 = vmatpush1.msra.mxu0 %v3637
        %3867 = vmatprep.subr.mxu0 0.0
        %3868 = vmatpush2.msra.mxu0 0.0
        %3869 = vmatprep.subr.mxu0 0.0
        %3870 = vmatpush2.msra.mxu0 0.0
        %3871 = vmatprep.subr.mxu0 0.0
        %3872 = vmatpush2.msra.mxu0 0.0
        %3873 = vmatprep.subr.mxu0 0.0
        %3874 = vmatpush2.msra.mxu0 0.0
        %3875 = vmatprep.subr.mxu0 0.0
        %3876 = vmatpush2.msra.mxu0 0.0
        %3877 = vmatprep.subr.mxu0 0.0
        %3878 = vmatpush2.msra.mxu0 0.0
        %3879 = vmatprep.subr.mxu0 0.0
        %3880 = vmatpush2.msra.mxu0 0.0
        %3881 = vmatprep.subr.mxu0 0.0
        %3882 = vmatpush2.msra.mxu0 0.0
        %3883 = vmatprep.subr.mxu0 0.0
        %3884 = vmatpush2.msra.mxu0 0.0
        %3885 = vmatprep.subr.mxu0 0.0
        %3886 = vmatpush2.msra.mxu0 0.0
        %3887 = vmatprep.subr.mxu0 0.0
        %3888 = vmatpush2.msra.mxu0 0.0
        %3889 = vmatprep.subr.mxu0 0.0
        %3890 = vmatpush2.msra.mxu0 0.0
        %3891 = vmatprep.subr.mxu0 0.0
        %3892 = vmatpush2.msra.mxu0 0.0
        %3893 = vmatprep.subr.mxu0 0.0
        %3894 = vmatpush2.msra.mxu0 0.0
        %3895 = vmatprep.subr.mxu0 0.0
        %3896 = vmatpush2.msra.mxu0 0.0
        %3897 = vmatprep.subr.mxu0 0.0
        %3898 = vmatpush2.msra.mxu0 0.0
        %3899 = vmatprep.mubr.f32.mxu0 0.0
        %3900 = vmatmul.mubr.f32.gmra.mxu0 %v3827
        %v3901 = vpop.f32.mrf.mxu0
        %v3902 = vadd.f32 %v3818, %v3901
        %v3903 = vpop.f32.mrf.mxu0
        %3904 = vmatprep.mubr.f32.mxu0 0.0
        %3905 = vmatmul.mubr.f32.gmra.mxu0 %v3830
        %v3906 = vpop.f32.mrf.mxu0
        %v3907 = vadd.f32 %v3823, %v3906
        %v3908 = vpop.f32.mrf.mxu0
        %3909 = vdwg.mxu0
        %v3910 = vmul.f32 %v3520, %v676
        %v3911 = vmul.f32 %v3525, %v676
        %3912 = vmatprep.subr.mxu0 0.0
        %3913 = vmatpush1.xpose.msra.mxu0 0.0
        %3914 = vmatprep.subr.mxu0 0.0
        %3915 = vmatpush1.xpose.msra.mxu0 0.0
        %3916 = vmatprep.subr.mxu0 0.0
        %3917 = vmatpush1.xpose.msra.mxu0 0.0
        %3918 = vmatprep.subr.mxu0 0.0
        %3919 = vmatpush1.xpose.msra.mxu0 0.0
        %3920 = vmatprep.subr.mxu0 0.0
        %3921 = vmatpush1.xpose.msra.mxu0 0.0
        %3922 = vmatprep.subr.mxu0 0.0
        %3923 = vmatpush1.xpose.msra.mxu0 0.0
        %3924 = vmatprep.subr.mxu0 0.0
        %3925 = vmatpush1.xpose.msra.mxu0 0.0
        %3926 = vmatprep.subr.mxu0 0.0
        %3927 = vmatpush1.xpose.msra.mxu0 0.0
        %3928 = vmatprep.subr.mxu0 0.0
        %3929 = vmatpush1.xpose.msra.mxu0 0.0
        %3930 = vmatprep.subr.mxu0 0.0
        %3931 = vmatpush1.xpose.msra.mxu0 0.0
        %3932 = vmatprep.subr.mxu0 0.0
        %3933 = vmatpush1.xpose.msra.mxu0 0.0
        %3934 = vmatprep.subr.mxu0 0.0
        %3935 = vmatpush1.xpose.msra.mxu0 0.0
        %3936 = vmatprep.subr.mxu0 0.0
        %3937 = vmatpush1.xpose.msra.mxu0 0.0
        %3938 = vmatprep.subr.mxu0 0.0
        %3939 = vmatpush1.xpose.msra.mxu0 0.0
        %3940 = vmatprep.subr.mxu0 0.0
        %3941 = vmatpush1.xpose.msra.mxu0 %v3531
        %3942 = vmatprep.subr.mxu0 0.0
        %3943 = vmatpush1.xpose.msra.mxu0 %v3529
        %3944 = vmatprep.subr.mxu0 0.0
        %3945 = vmatpush2.xpose.msra.mxu0 0.0
        %3946 = vmatprep.subr.mxu0 0.0
        %3947 = vmatpush2.xpose.msra.mxu0 0.0
        %3948 = vmatprep.subr.mxu0 0.0
        %3949 = vmatpush2.xpose.msra.mxu0 0.0
        %3950 = vmatprep.subr.mxu0 0.0
        %3951 = vmatpush2.xpose.msra.mxu0 0.0
        %3952 = vmatprep.subr.mxu0 0.0
        %3953 = vmatpush2.xpose.msra.mxu0 0.0
        %3954 = vmatprep.subr.mxu0 0.0
        %3955 = vmatpush2.xpose.msra.mxu0 0.0
        %3956 = vmatprep.subr.mxu0 0.0
        %3957 = vmatpush2.xpose.msra.mxu0 0.0
        %3958 = vmatprep.subr.mxu0 0.0
        %3959 = vmatpush2.xpose.msra.mxu0 0.0
        %3960 = vmatprep.subr.mxu0 0.0
        %3961 = vmatpush2.xpose.msra.mxu0 0.0
        %3962 = vmatprep.subr.mxu0 0.0
        %3963 = vmatpush2.xpose.msra.mxu0 0.0
        %3964 = vmatprep.subr.mxu0 0.0
        %3965 = vmatpush2.xpose.msra.mxu0 0.0
        %3966 = vmatprep.subr.mxu0 0.0
        %3967 = vmatpush2.xpose.msra.mxu0 0.0
        %3968 = vmatprep.subr.mxu0 0.0
        %3969 = vmatpush2.xpose.msra.mxu0 0.0
        %3970 = vmatprep.subr.mxu0 0.0
        %3971 = vmatpush2.xpose.msra.mxu0 0.0
        %3972 = vmatprep.subr.mxu0 0.0
        %3973 = vmatpush2.xpose.msra.mxu0 0.0
        %3974 = vmatprep.subr.mxu0 0.0
        %3975 = vmatpush2.xpose.msra.mxu0 0.0
        %3976 = vmatprep.mubr.f32.mxu0 0.0
        %3977 = vmatmul.mubr.f32.gmra.mxu0 %v3910
        %v3978 = vpop.f32.mrf.mxu0
        %v3979 = vadd.f32 0.0, %v3978
        %v3980 = vpop.f32.mrf.mxu0
        %3981 = vmatprep.mubr.f32.mxu0 0.0
        %3982 = vmatmul.mubr.f32.gmra.mxu0 %v3911
        %v3983 = vpop.f32.mrf.mxu0
        %v3984 = vadd.f32 0.0, %v3983
        %v3985 = vpop.f32.mrf.mxu0
        %3986 = vdwg.mxu0
        %v3987 = vmul.f32 %v3979, 0.35355338
        %v3988 = vmul.f32 %v3984, 0.35355338
        %v3989 = vsel %vm999, %v3987, -inf
        %3990 = vmax.xlane.f32.xlu0 %v3989
        %v3991 = vpop.xlane.xlu0 %3990
        %v3992 = vsel %vm1003, %v3988, -inf
        %3993 = vmax.xlane.f32.xlu0 %v3992
        %v3994 = vpop.xlane.xlu0 %3993
        %v3995 = vsub.f32 %v3987, %v3991
        %v3996 = vsub.f32 %v3988, %v3994
        %v3997 = vmul.f32 %v3995, 1.442695
        %v3998 = vpow.pop %v3997
        %v3999 = vmul.f32 %v3996, 1.442695
        %v4000 = vpow.pop %v3999
        %v4001 = vsel %vm999, %v3998, 0.0
        %4002 = vadd.xlane.f32.xlu0 %v4001
        %v4003 = vpop.xlane.xlu0 %4002
        %v4004 = vsel %vm1003, %v4000, 0.0
        %4005 = vadd.xlane.f32.xlu0 %v4004
        %v4006 = vpop.xlane.xlu0 %4005
        %v4007 = vrcp.pop %v4003
        %v4008 = vrcp.pop %v4006
        %v4009 = vmul.f32 %v3998, %v4007
        %v4010 = vmul.f32 %v4000, %v4008
        %v4011 = vmul.f32 %v3533, %v676
        %v4012 = vmul.f32 %v3535, %v676
        %v4014 = vsel %vm999, %v4009, 0
        %v4017 = vsel %vm999, %v4010, 0
        %v4020 = vsel %vm1134, %v4012, 0
        %4022 = vmatprep.subr.mxu0 0.0
        %4023 = vmatpush1.msra.mxu0 0.0
        %4024 = vmatprep.subr.mxu0 0.0
        %4025 = vmatpush1.msra.mxu0 0.0
        %4026 = vmatprep.subr.mxu0 0.0
        %4027 = vmatpush1.msra.mxu0 0.0
        %4028 = vmatprep.subr.mxu0 0.0
        %4029 = vmatpush1.msra.mxu0 0.0
        %4030 = vmatprep.subr.mxu0 0.0
        %4031 = vmatpush1.msra.mxu0 0.0
        %4032 = vmatprep.subr.mxu0 0.0
        %4033 = vmatpush1.msra.mxu0 0.0
        %4034 = vmatprep.subr.mxu0 0.0
        %4035 = vmatpush1.msra.mxu0 0.0
        %4036 = vmatprep.subr.mxu0 0.0
        %4037 = vmatpush1.msra.mxu0 0.0
        %4038 = vmatprep.subr.mxu0 0.0
        %4039 = vmatpush1.msra.mxu0 0.0
        %4040 = vmatprep.subr.mxu0 0.0
        %4041 = vmatpush1.msra.mxu0 0.0
        %4042 = vmatprep.subr.mxu0 0.0
        %4043 = vmatpush1.msra.mxu0 0.0
        %4044 = vmatprep.subr.mxu0 0.0
        %4045 = vmatpush1.msra.mxu0 0.0
        %4046 = vmatprep.subr.mxu0 0.0
        %4047 = vmatpush1.msra.mxu0 0.0
        %4048 = vmatprep.subr.mxu0 0.0
        %4049 = vmatpush1.msra.mxu0 0.0
        %4050 = vmatprep.subr.mxu0 0.0
        %4051 = vmatpush1.msra.mxu0 %v4020
        %4052 = vmatprep.subr.mxu0 0.0
        %4053 = vmatpush1.msra.mxu0 %v4011
        %4054 = vmatprep.subr.mxu0 0.0
        %4055 = vmatpush2.msra.mxu0 0.0
        %4056 = vmatprep.subr.mxu0 0.0
        %4057 = vmatpush2.msra.mxu0 0.0
        %4058 = vmatprep.subr.mxu0 0.0
        %4059 = vmatpush2.msra.mxu0 0.0
        %4060 = vmatprep.subr.mxu0 0.0
        %4061 = vmatpush2.msra.mxu0 0.0
        %4062 = vmatprep.subr.mxu0 0.0
        %4063 = vmatpush2.msra.mxu0 0.0
        %4064 = vmatprep.subr.mxu0 0.0
        %4065 = vmatpush2.msra.mxu0 0.0
        %4066 = vmatprep.subr.mxu0 0.0
        %4067 = vmatpush2.msra.mxu0 0.0
        %4068 = vmatprep.subr.mxu0 0.0
        %4069 = vmatpush2.msra.mxu0 0.0
        %4070 = vmatprep.subr.mxu0 0.0
        %4071 = vmatpush2.msra.mxu0 0.0
        %4072 = vmatprep.subr.mxu0 0.0
        %4073 = vmatpush2.msra.mxu0 0.0
        %4074 = vmatprep.subr.mxu0 0.0
        %4075 = vmatpush2.msra.mxu0 0.0
        %4076 = vmatprep.subr.mxu0 0.0
        %4077 = vmatpush2.msra.mxu0 0.0
        %4078 = vmatprep.subr.mxu0 0.0
        %4079 = vmatpush2.msra.mxu0 0.0
        %4080 = vmatprep.subr.mxu0 0.0
        %4081 = vmatpush2.msra.mxu0 0.0
        %4082 = vmatprep.subr.mxu0 0.0
        %4083 = vmatpush2.msra.mxu0 0.0
        %4084 = vmatprep.subr.mxu0 0.0
        %4085 = vmatpush2.msra.mxu0 0.0
        %4086 = vmatprep.mubr.f32.mxu0 0.0
        %4087 = vmatmul.mubr.f32.gmra.mxu0 %v4014
        %v4088 = vpop.f32.mrf.mxu0
        %v4089 = vadd.f32 0.0, %v4088
        %v4090 = vpop.f32.mrf.mxu0
        %4091 = vmatprep.mubr.f32.mxu0 0.0
        %4092 = vmatmul.mubr.f32.gmra.mxu0 %v4017
        %v4093 = vpop.f32.mrf.mxu0
        %v4094 = vadd.f32 0.0, %v4093
        %v4095 = vpop.f32.mrf.mxu0
        %4096 = vdwg.mxu0
        %v4097 = vadd.f32 %v3902, %v4089
        %v4098 = vadd.f32 %v3907, %v4094
        %v4099 = vmul.f32 %v3520, %v680
        %v4100 = vmul.f32 %v3525, %v680
        %4101 = vmatprep.subr.mxu0 0.0
        %4102 = vmatpush1.xpose.msra.mxu0 0.0
        %4103 = vmatprep.subr.mxu0 0.0
        %4104 = vmatpush1.xpose.msra.mxu0 0.0
        %4105 = vmatprep.subr.mxu0 0.0
        %4106 = vmatpush1.xpose.msra.mxu0 0.0
        %4107 = vmatprep.subr.mxu0 0.0
        %4108 = vmatpush1.xpose.msra.mxu0 0.0
        %4109 = vmatprep.subr.mxu0 0.0
        %4110 = vmatpush1.xpose.msra.mxu0 0.0
        %4111 = vmatprep.subr.mxu0 0.0
        %4112 = vmatpush1.xpose.msra.mxu0 0.0
        %4113 = vmatprep.subr.mxu0 0.0
        %4114 = vmatpush1.xpose.msra.mxu0 0.0
        %4115 = vmatprep.subr.mxu0 0.0
        %4116 = vmatpush1.xpose.msra.mxu0 0.0
        %4117 = vmatprep.subr.mxu0 0.0
        %4118 = vmatpush1.xpose.msra.mxu0 0.0
        %4119 = vmatprep.subr.mxu0 0.0
        %4120 = vmatpush1.xpose.msra.mxu0 0.0
        %4121 = vmatprep.subr.mxu0 0.0
        %4122 = vmatpush1.xpose.msra.mxu0 0.0
        %4123 = vmatprep.subr.mxu0 0.0
        %4124 = vmatpush1.xpose.msra.mxu0 0.0
        %4125 = vmatprep.subr.mxu0 0.0
        %4126 = vmatpush1.xpose.msra.mxu0 0.0
        %4127 = vmatprep.subr.mxu0 0.0
        %4128 = vmatpush1.xpose.msra.mxu0 0.0
        %4129 = vmatprep.subr.mxu0 0.0
        %4130 = vmatpush1.xpose.msra.mxu0 %v3531
        %4131 = vmatprep.subr.mxu0 0.0
        %4132 = vmatpush1.xpose.msra.mxu0 %v3529
        %4133 = vmatprep.subr.mxu0 0.0
        %4134 = vmatpush2.xpose.msra.mxu0 0.0
        %4135 = vmatprep.subr.mxu0 0.0
        %4136 = vmatpush2.xpose.msra.mxu0 0.0
        %4137 = vmatprep.subr.mxu0 0.0
        %4138 = vmatpush2.xpose.msra.mxu0 0.0
        %4139 = vmatprep.subr.mxu0 0.0
        %4140 = vmatpush2.xpose.msra.mxu0 0.0
        %4141 = vmatprep.subr.mxu0 0.0
        %4142 = vmatpush2.xpose.msra.mxu0 0.0
        %4143 = vmatprep.subr.mxu0 0.0
        %4144 = vmatpush2.xpose.msra.mxu0 0.0
        %4145 = vmatprep.subr.mxu0 0.0
        %4146 = vmatpush2.xpose.msra.mxu0 0.0
        %4147 = vmatprep.subr.mxu0 0.0
        %4148 = vmatpush2.xpose.msra.mxu0 0.0
        %4149 = vmatprep.subr.mxu0 0.0
        %4150 = vmatpush2.xpose.msra.mxu0 0.0
        %4151 = vmatprep.subr.mxu0 0.0
        %4152 = vmatpush2.xpose.msra.mxu0 0.0
        %4153 = vmatprep.subr.mxu0 0.0
        %4154 = vmatpush2.xpose.msra.mxu0 0.0
        %4155 = vmatprep.subr.mxu0 0.0
        %4156 = vmatpush2.xpose.msra.mxu0 0.0
        %4157 = vmatprep.subr.mxu0 0.0
        %4158 = vmatpush2.xpose.msra.mxu0 0.0
        %4159 = vmatprep.subr.mxu0 0.0
        %4160 = vmatpush2.xpose.msra.mxu0 0.0
        %4161 = vmatprep.subr.mxu0 0.0
        %4162 = vmatpush2.xpose.msra.mxu0 0.0
        %4163 = vmatprep.subr.mxu0 0.0
        %4164 = vmatpush2.xpose.msra.mxu0 0.0
        %4165 = vmatprep.mubr.f32.mxu0 0.0
        %4166 = vmatmul.mubr.f32.gmra.mxu0 %v4099
        %v4167 = vpop.f32.mrf.mxu0
        %v4168 = vadd.f32 0.0, %v4167
        %v4169 = vpop.f32.mrf.mxu0
        %4170 = vmatprep.mubr.f32.mxu0 0.0
        %4171 = vmatmul.mubr.f32.gmra.mxu0 %v4100
        %v4172 = vpop.f32.mrf.mxu0
        %v4173 = vadd.f32 0.0, %v4172
        %v4174 = vpop.f32.mrf.mxu0
        %4175 = vdwg.mxu0
        %v4176 = vmul.f32 %v4168, 0.35355338
        %v4177 = vmul.f32 %v4173, 0.35355338
        %v4178 = vsel %vm999, %v4176, -inf
        %4179 = vmax.xlane.f32.xlu0 %v4178
        %v4180 = vpop.xlane.xlu0 %4179
        %v4181 = vsel %vm1003, %v4177, -inf
        %4182 = vmax.xlane.f32.xlu0 %v4181
        %v4183 = vpop.xlane.xlu0 %4182
        %v4184 = vsub.f32 %v4176, %v4180
        %v4185 = vsub.f32 %v4177, %v4183
        %v4186 = vmul.f32 %v4184, 1.442695
        %v4187 = vpow.pop %v4186
        %v4188 = vmul.f32 %v4185, 1.442695
        %v4189 = vpow.pop %v4188
        %v4190 = vsel %vm999, %v4187, 0.0
        %4191 = vadd.xlane.f32.xlu0 %v4190
        %v4192 = vpop.xlane.xlu0 %4191
        %v4193 = vsel %vm1003, %v4189, 0.0
        %4194 = vadd.xlane.f32.xlu0 %v4193
        %v4195 = vpop.xlane.xlu0 %4194
        %v4196 = vrcp.pop %v4192
        %v4197 = vrcp.pop %v4195
        %v4198 = vmul.f32 %v4187, %v4196
        %v4199 = vmul.f32 %v4189, %v4197
        %v4200 = vmul.f32 %v3533, %v680
        %v4201 = vmul.f32 %v3535, %v680
        %v4203 = vsel %vm999, %v4198, 0
        %v4206 = vsel %vm999, %v4199, 0
        %v4209 = vsel %vm1134, %v4201, 0
        %4211 = vmatprep.subr.mxu0 0.0
        %4212 = vmatpush1.msra.mxu0 0.0
        %4213 = vmatprep.subr.mxu0 0.0
        %4214 = vmatpush1.msra.mxu0 0.0
        %4215 = vmatprep.subr.mxu0 0.0
        %4216 = vmatpush1.msra.mxu0 0.0
        %4217 = vmatprep.subr.mxu0 0.0
        %4218 = vmatpush1.msra.mxu0 0.0
        %4219 = vmatprep.subr.mxu0 0.0
        %4220 = vmatpush1.msra.mxu0 0.0
        %4221 = vmatprep.subr.mxu0 0.0
        %4222 = vmatpush1.msra.mxu0 0.0
        %4223 = vmatprep.subr.mxu0 0.0
        %4224 = vmatpush1.msra.mxu0 0.0
        %4225 = vmatprep.subr.mxu0 0.0
        %4226 = vmatpush1.msra.mxu0 0.0
        %4227 = vmatprep.subr.mxu0 0.0
        %4228 = vmatpush1.msra.mxu0 0.0
        %4229 = vmatprep.subr.mxu0 0.0
        %4230 = vmatpush1.msra.mxu0 0.0
        %4231 = vmatprep.subr.mxu0 0.0
        %4232 = vmatpush1.msra.mxu0 0.0
        %4233 = vmatprep.subr.mxu0 0.0
        %4234 = vmatpush1.msra.mxu0 0.0
        %4235 = vmatprep.subr.mxu0 0.0
        %4236 = vmatpush1.msra.mxu0 0.0
        %4237 = vmatprep.subr.mxu0 0.0
        %4238 = vmatpush1.msra.mxu0 0.0
        %4239 = vmatprep.subr.mxu0 0.0
        %4240 = vmatpush1.msra.mxu0 %v4209
        %4241 = vmatprep.subr.mxu0 0.0
        %4242 = vmatpush1.msra.mxu0 %v4200
        %4243 = vmatprep.subr.mxu0 0.0
        %4244 = vmatpush2.msra.mxu0 0.0
        %4245 = vmatprep.subr.mxu0 0.0
        %4246 = vmatpush2.msra.mxu0 0.0
        %4247 = vmatprep.subr.mxu0 0.0
        %4248 = vmatpush2.msra.mxu0 0.0
        %4249 = vmatprep.subr.mxu0 0.0
        %4250 = vmatpush2.msra.mxu0 0.0
        %4251 = vmatprep.subr.mxu0 0.0
        %4252 = vmatpush2.msra.mxu0 0.0
        %4253 = vmatprep.subr.mxu0 0.0
        %4254 = vmatpush2.msra.mxu0 0.0
        %4255 = vmatprep.subr.mxu0 0.0
        %4256 = vmatpush2.msra.mxu0 0.0
        %4257 = vmatprep.subr.mxu0 0.0
        %4258 = vmatpush2.msra.mxu0 0.0
        %4259 = vmatprep.subr.mxu0 0.0
        %4260 = vmatpush2.msra.mxu0 0.0
        %4261 = vmatprep.subr.mxu0 0.0
        %4262 = vmatpush2.msra.mxu0 0.0
        %4263 = vmatprep.subr.mxu0 0.0
        %4264 = vmatpush2.msra.mxu0 0.0
        %4265 = vmatprep.subr.mxu0 0.0
        %4266 = vmatpush2.msra.mxu0 0.0
        %4267 = vmatprep.subr.mxu0 0.0
        %4268 = vmatpush2.msra.mxu0 0.0
        %4269 = vmatprep.subr.mxu0 0.0
        %4270 = vmatpush2.msra.mxu0 0.0
        %4271 = vmatprep.subr.mxu0 0.0
        %4272 = vmatpush2.msra.mxu0 0.0
        %4273 = vmatprep.subr.mxu0 0.0
        %4274 = vmatpush2.msra.mxu0 0.0
        %4275 = vmatprep.mubr.f32.mxu0 0.0
        %4276 = vmatmul.mubr.f32.gmra.mxu0 %v4203
        %v4277 = vpop.f32.mrf.mxu0
        %v4278 = vadd.f32 0.0, %v4277
        %v4279 = vpop.f32.mrf.mxu0
        %4280 = vmatprep.mubr.f32.mxu0 0.0
        %4281 = vmatmul.mubr.f32.gmra.mxu0 %v4206
        %v4282 = vpop.f32.mrf.mxu0
        %v4283 = vadd.f32 0.0, %v4282
        %v4284 = vpop.f32.mrf.mxu0
        %4285 = vdwg.mxu0
        %v4286 = vadd.f32 %v4097, %v4278
        %v4287 = vadd.f32 %v4098, %v4283
        %s4288 = scalar_lea.vmem [#allocation8], 128
        %v4289 = vld [vmem:[%s4288] sm:$0xf]
        %v4290 = vld [vmem:[%s4288 + $0x4] sm:$0xf]
        %v4291 = vld [vmem:[%s4288 + $0x8] sm:$0xf]
        %v4292 = vld [vmem:[%s4288 + $0xc] sm:$0xf]
        %v4293 = vld [vmem:[%s4288 + $0x10] sm:$0xf]
        %v4294 = vld [vmem:[%s4288 + $0x14] sm:$0xf]
        %v4295 = vld [vmem:[%s4288 + $0x18] sm:$0xf]
        %v4296 = vld [vmem:[%s4288 + $0x1c] sm:$0xf]
        %v4297 = vld [vmem:[%s4288 + $0x20] sm:$0xf]
        %v4298 = vld [vmem:[%s4288 + $0x24] sm:$0xf]
        %v4299 = vld [vmem:[%s4288 + $0x28] sm:$0xf]
        %v4300 = vld [vmem:[%s4288 + $0x2c] sm:$0xf]
        %v4301 = vld [vmem:[%s4288 + $0x30] sm:$0xf]
        %v4302 = vld [vmem:[%s4288 + $0x34] sm:$0xf]
        %v4303 = vld [vmem:[%s4288 + $0x38] sm:$0xf]
        %v4304 = vld [vmem:[%s4288 + $0x3c] sm:$0xf]
        %v4305 = vunpack.c.l.bf16 %v4289
        %v4306 = vunpack.c.l.bf16 %v4290
        %v4307 = vunpack.c.l.bf16 %v4291
        %v4308 = vunpack.c.l.bf16 %v4292
        %v4309 = vunpack.c.l.bf16 %v4293
        %v4310 = vunpack.c.l.bf16 %v4294
        %v4311 = vunpack.c.l.bf16 %v4295
        %v4312 = vunpack.c.l.bf16 %v4296
        %v4313 = vunpack.c.l.bf16 %v4297
        %v4314 = vunpack.c.l.bf16 %v4298
        %v4315 = vunpack.c.l.bf16 %v4299
        %v4316 = vunpack.c.l.bf16 %v4300
        %v4317 = vunpack.c.l.bf16 %v4301
        %v4318 = vunpack.c.l.bf16 %v4302
        %v4319 = vunpack.c.l.bf16 %v4303
        %v4320 = vunpack.c.l.bf16 %v4304
        %v4321 = vlaneseq
        %v4322 = vshrl.u32 %v4321, 7
        %v4323 = vsub.s32 1, %v4322
        %v4324 = vrot.slane %v3415, %v4323
        %4325 = vmatprep.subr.mxu0 0.0
        %4326 = vmatpush1.msra.mxu0 %v4320
        %4327 = vmatprep.subr.mxu0 0.0
        %4328 = vmatpush1.msra.mxu0 %v4319
        %4329 = vmatprep.subr.mxu0 0.0
        %4330 = vmatpush1.msra.mxu0 %v4318
        %4331 = vmatprep.subr.mxu0 0.0
        %4332 = vmatpush1.msra.mxu0 %v4317
        %4333 = vmatprep.subr.mxu0 0.0
        %4334 = vmatpush1.msra.mxu0 %v4316
        %4335 = vmatprep.subr.mxu0 0.0
        %4336 = vmatpush1.msra.mxu0 %v4315
        %4337 = vmatprep.subr.mxu0 0.0
        %4338 = vmatpush1.msra.mxu0 %v4314
        %4339 = vmatprep.subr.mxu0 0.0
        %4340 = vmatpush1.msra.mxu0 %v4313
        %4341 = vmatprep.subr.mxu0 0.0
        %4342 = vmatpush1.msra.mxu0 %v4312
        %4343 = vmatprep.subr.mxu0 0.0
        %4344 = vmatpush1.msra.mxu0 %v4311
        %4345 = vmatprep.subr.mxu0 0.0
        %4346 = vmatpush1.msra.mxu0 %v4310
        %4347 = vmatprep.subr.mxu0 0.0
        %4348 = vmatpush1.msra.mxu0 %v4309
        %4349 = vmatprep.subr.mxu0 0.0
        %4350 = vmatpush1.msra.mxu0 %v4308
        %4351 = vmatprep.subr.mxu0 0.0
        %4352 = vmatpush1.msra.mxu0 %v4307
        %4353 = vmatprep.subr.mxu0 0.0
        %4354 = vmatpush1.msra.mxu0 %v4306
        %4355 = vmatprep.subr.mxu0 0.0
        %4356 = vmatpush1.msra.mxu0 %v4305
        %4357 = vmatprep.subr.mxu0 0.0
        %4358 = vmatpush2.msra.mxu0 0.0
        %4359 = vmatprep.subr.mxu0 0.0
        %4360 = vmatpush2.msra.mxu0 0.0
        %4361 = vmatprep.subr.mxu0 0.0
        %4362 = vmatpush2.msra.mxu0 0.0
        %4363 = vmatprep.subr.mxu0 0.0
        %4364 = vmatpush2.msra.mxu0 0.0
        %4365 = vmatprep.subr.mxu0 0.0
        %4366 = vmatpush2.msra.mxu0 0.0
        %4367 = vmatprep.subr.mxu0 0.0
        %4368 = vmatpush2.msra.mxu0 0.0
        %4369 = vmatprep.subr.mxu0 0.0
        %4370 = vmatpush2.msra.mxu0 0.0
        %4371 = vmatprep.subr.mxu0 0.0
        %4372 = vmatpush2.msra.mxu0 0.0
        %4373 = vmatprep.subr.mxu0 0.0
        %4374 = vmatpush2.msra.mxu0 0.0
        %4375 = vmatprep.subr.mxu0 0.0
        %4376 = vmatpush2.msra.mxu0 0.0
        %4377 = vmatprep.subr.mxu0 0.0
        %4378 = vmatpush2.msra.mxu0 0.0
        %4379 = vmatprep.subr.mxu0 0.0
        %4380 = vmatpush2.msra.mxu0 0.0
        %4381 = vmatprep.subr.mxu0 0.0
        %4382 = vmatpush2.msra.mxu0 0.0
        %4383 = vmatprep.subr.mxu0 0.0
        %4384 = vmatpush2.msra.mxu0 0.0
        %4385 = vmatprep.subr.mxu0 0.0
        %4386 = vmatpush2.msra.mxu0 0.0
        %4387 = vmatprep.subr.mxu0 0.0
        %4388 = vmatpush2.msra.mxu0 0.0
        %4389 = vmatprep.mubr.f32.mxu0 0.0
        %4390 = vmatmul.mubr.f32.gmra.mxu0 %v4286
        %v4391 = vpop.f32.mrf.mxu0
        %v4392 = vadd.f32 %v4324, %v4391
        %v4393 = vpop.f32.mrf.mxu0
        %4394 = vmatprep.mubr.f32.mxu0 0.0
        %4395 = vmatmul.mubr.f32.gmra.mxu0 %v4287
        %v4396 = vpop.f32.mrf.mxu0
        %v4397 = vadd.f32 %v4324, %v4396
        %v4398 = vpop.f32.mrf.mxu0
        %4399 = vdwg.mxu0
        %v4400 = vadd.f32 %v3412, %v4392
        %v4401 = vadd.f32 %v3413, %v4397
        %4402 = vadd.xlane.f32.xlu0 %v4400
        %v4403 = vpop.xlane.xlu0 %4402
        %v4404 = vsel %vm1134, %v4401, 0.0
        %4405 = vadd.xlane.f32.xlu0 %v4404
        %v4406 = vpop.xlane.xlu0 %4405
        %v4407 = vmul.f32 %v4403, 0.03125
        %v4408 = vmul.f32 %v4406, 0.03125
        %v4409 = vsub.f32 %v4400, %v4407
        %v4410 = vsub.f32 %v4401, %v4408
        %v4411 = vmul.f32 %v4409, %v661
        %v4412 = vmul.f32 %v4410, %v661
        %v4413 = vmul.f32 %v4411, %v4411
        %v4414 = vmul.f32 %v4412, %v4412
        %4415 = vadd.xlane.f32.xlu0 %v4413
        %v4416 = vpop.xlane.xlu0 %4415
        %v4417 = vsel %vm1134, %v4414, 0.0
        %4418 = vadd.xlane.f32.xlu0 %v4417
        %v4419 = vpop.xlane.xlu0 %4418
        %v4420 = vmul.f32 %v4416, 0.03125
        %v4421 = vmul.f32 %v4419, 0.03125
        %v4422 = vadd.f32 %v4420, 1e-05
        %v4423 = vadd.f32 %v4421, 1e-05
        %v4424 = vrsqrt.pop %v4422
        %v4425 = vrsqrt.pop %v4423
        %v4426 = vmul.f32 %v4411, %v4424
        %v4427 = vmul.f32 %v4412, %v4425
        %v4428 = vlaneseq
        %v4429 = vshrl.u32 %v4428, 7
        %v4430 = vsub.s32 4, %v4429
        %v4431 = vrot.slane %v3415, %v4430
        %v4432 = vmul.f32 %v4426, %v4431
        %v4433 = vmul.f32 %v4427, %v4431
        %v4434 = vlaneseq
        %v4435 = vshrl.u32 %v4434, 7
        %v4436 = vsub.s32 5, %v4435
        %v4437 = vrot.slane %v3415, %v4436
        %v4438 = vadd.f32 %v4432, %v4437
        %v4439 = vadd.f32 %v4433, %v4437
        %s4440 = scalar_lea.vmem [#allocation9], 128
        %v4441 = vld [vmem:[%s4440] sm:$0xf]
        %v4442 = vld [vmem:[%s4440 + $0x4] sm:$0xf]
        %v4443 = vld [vmem:[%s4440 + $0x8] sm:$0xf]
        %v4444 = vld [vmem:[%s4440 + $0xc] sm:$0xf]
        %v4445 = vld [vmem:[%s4440 + $0x10] sm:$0xf]
        %v4446 = vld [vmem:[%s4440 + $0x14] sm:$0xf]
        %v4447 = vld [vmem:[%s4440 + $0x18] sm:$0xf]
        %v4448 = vld [vmem:[%s4440 + $0x1c] sm:$0xf]
        %v4449 = vld [vmem:[%s4440 + $0x20] sm:$0xf]
        %v4450 = vld [vmem:[%s4440 + $0x24] sm:$0xf]
        %v4451 = vld [vmem:[%s4440 + $0x28] sm:$0xf]
        %v4452 = vld [vmem:[%s4440 + $0x2c] sm:$0xf]
        %v4453 = vld [vmem:[%s4440 + $0x30] sm:$0xf]
        %v4454 = vld [vmem:[%s4440 + $0x34] sm:$0xf]
        %v4455 = vld [vmem:[%s4440 + $0x38] sm:$0xf]
        %v4456 = vld [vmem:[%s4440 + $0x3c] sm:$0xf]
        %v4457 = vunpack.c.l.bf16 %v4441
        %v4458 = vunpack.c.l.bf16 %v4442
        %v4459 = vunpack.c.l.bf16 %v4443
        %v4460 = vunpack.c.l.bf16 %v4444
        %v4461 = vunpack.c.l.bf16 %v4445
        %v4462 = vunpack.c.l.bf16 %v4446
        %v4463 = vunpack.c.l.bf16 %v4447
        %v4464 = vunpack.c.l.bf16 %v4448
        %v4465 = vunpack.c.l.bf16 %v4449
        %v4466 = vunpack.c.l.bf16 %v4450
        %v4467 = vunpack.c.l.bf16 %v4451
        %v4468 = vunpack.c.l.bf16 %v4452
        %v4469 = vunpack.c.l.bf16 %v4453
        %v4470 = vunpack.c.l.bf16 %v4454
        %v4471 = vunpack.c.l.bf16 %v4455
        %v4472 = vunpack.c.l.bf16 %v4456
        %v4473 = vlaneseq
        %v4474 = vshrl.u32 %v4473, 7
        %v4475 = vsub.s32 2, %v4474
        %v4476 = vrot.slane %v3415, %v4475
        %4477 = vmatprep.subr.mxu0 0.0
        %4478 = vmatpush1.msra.mxu0 %v4472
        %4479 = vmatprep.subr.mxu0 0.0
        %4480 = vmatpush1.msra.mxu0 %v4471
        %4481 = vmatprep.subr.mxu0 0.0
        %4482 = vmatpush1.msra.mxu0 %v4470
        %4483 = vmatprep.subr.mxu0 0.0
        %4484 = vmatpush1.msra.mxu0 %v4469
        %4485 = vmatprep.subr.mxu0 0.0
        %4486 = vmatpush1.msra.mxu0 %v4468
        %4487 = vmatprep.subr.mxu0 0.0
        %4488 = vmatpush1.msra.mxu0 %v4467
        %4489 = vmatprep.subr.mxu0 0.0
        %4490 = vmatpush1.msra.mxu0 %v4466
        %4491 = vmatprep.subr.mxu0 0.0
        %4492 = vmatpush1.msra.mxu0 %v4465
        %4493 = vmatprep.subr.mxu0 0.0
        %4494 = vmatpush1.msra.mxu0 %v4464
        %4495 = vmatprep.subr.mxu0 0.0
        %4496 = vmatpush1.msra.mxu0 %v4463
        %4497 = vmatprep.subr.mxu0 0.0
        %4498 = vmatpush1.msra.mxu0 %v4462
        %4499 = vmatprep.subr.mxu0 0.0
        %4500 = vmatpush1.msra.mxu0 %v4461
        %4501 = vmatprep.subr.mxu0 0.0
        %4502 = vmatpush1.msra.mxu0 %v4460
        %4503 = vmatprep.subr.mxu0 0.0
        %4504 = vmatpush1.msra.mxu0 %v4459
        %4505 = vmatprep.subr.mxu0 0.0
        %4506 = vmatpush1.msra.mxu0 %v4458
        %4507 = vmatprep.subr.mxu0 0.0
        %4508 = vmatpush1.msra.mxu0 %v4457
        %4509 = vmatprep.subr.mxu0 0.0
        %4510 = vmatpush2.msra.mxu0 0.0
        %4511 = vmatprep.subr.mxu0 0.0
        %4512 = vmatpush2.msra.mxu0 0.0
        %4513 = vmatprep.subr.mxu0 0.0
        %4514 = vmatpush2.msra.mxu0 0.0
        %4515 = vmatprep.subr.mxu0 0.0
        %4516 = vmatpush2.msra.mxu0 0.0
        %4517 = vmatprep.subr.mxu0 0.0
        %4518 = vmatpush2.msra.mxu0 0.0
        %4519 = vmatprep.subr.mxu0 0.0
        %4520 = vmatpush2.msra.mxu0 0.0
        %4521 = vmatprep.subr.mxu0 0.0
        %4522 = vmatpush2.msra.mxu0 0.0
        %4523 = vmatprep.subr.mxu0 0.0
        %4524 = vmatpush2.msra.mxu0 0.0
        %4525 = vmatprep.subr.mxu0 0.0
        %4526 = vmatpush2.msra.mxu0 0.0
        %4527 = vmatprep.subr.mxu0 0.0
        %4528 = vmatpush2.msra.mxu0 0.0
        %4529 = vmatprep.subr.mxu0 0.0
        %4530 = vmatpush2.msra.mxu0 0.0
        %4531 = vmatprep.subr.mxu0 0.0
        %4532 = vmatpush2.msra.mxu0 0.0
        %4533 = vmatprep.subr.mxu0 0.0
        %4534 = vmatpush2.msra.mxu0 0.0
        %4535 = vmatprep.subr.mxu0 0.0
        %4536 = vmatpush2.msra.mxu0 0.0
        %4537 = vmatprep.subr.mxu0 0.0
        %4538 = vmatpush2.msra.mxu0 0.0
        %4539 = vmatprep.subr.mxu0 0.0
        %4540 = vmatpush2.msra.mxu0 0.0
        %4541 = vmatprep.mubr.f32.mxu0 0.0
        %4542 = vmatmul.mubr.f32.gmra.mxu0 %v4438
        %v4543 = vpop.f32.mrf.mxu0
        %v4544 = vadd.f32 %v4476, %v4543
        %v4545 = vpop.f32.mrf.mxu0
        %4546 = vmatprep.mubr.f32.mxu0 0.0
        %4547 = vmatmul.mubr.f32.gmra.mxu0 %v4439
        %v4548 = vpop.f32.mrf.mxu0
        %v4549 = vadd.f32 %v4476, %v4548
        %v4550 = vpop.f32.mrf.mxu0
        %4551 = vdwg.mxu0
        %v4552 = vmul.f32 %v4544, 0.5
        %v4553 = vmul.f32 %v4549, 0.5
        %v4554 = vmul.f32 %v4544, 0.044715
        %v4555 = vmul.f32 %v4549, 0.044715
        %v4556 = vmul.f32 %v4554, %v4544
        %v4557 = vmul.f32 %v4555, %v4549
        %v4558 = vmul.f32 %v4556, %v4544
        %v4559 = vmul.f32 %v4557, %v4549
        %v4560 = vadd.f32 %v4544, %v4558
        %v4561 = vadd.f32 %v4549, %v4559
        %v4562 = vmul.f32 %v4560, 0.7978846
        %v4563 = vmul.f32 %v4561, 0.7978846
        %v4564 = vtanh.pop %v4562
        %v4565 = vtanh.pop %v4563
        %v4566 = vadd.f32 %v4564, 1.0
        %v4567 = vadd.f32 %v4565, 1.0
        %v4568 = vmul.f32 %v4552, %v4566
        %v4569 = vmul.f32 %v4553, %v4567
        %s4570 = scalar_lea.vmem [#allocation11], 128
        %v4571 = vld [vmem:[%s4570] sm:$0xf]
        %v4572 = vld [vmem:[%s4570 + $0x4] sm:$0xf]
        %v4573 = vld [vmem:[%s4570 + $0x8] sm:$0xf]
        %v4574 = vld [vmem:[%s4570 + $0xc] sm:$0xf]
        %v4575 = vld [vmem:[%s4570 + $0x10] sm:$0xf]
        %v4576 = vld [vmem:[%s4570 + $0x14] sm:$0xf]
        %v4577 = vld [vmem:[%s4570 + $0x18] sm:$0xf]
        %v4578 = vld [vmem:[%s4570 + $0x1c] sm:$0xf]
        %v4579 = vld [vmem:[%s4570 + $0x20] sm:$0xf]
        %v4580 = vld [vmem:[%s4570 + $0x24] sm:$0xf]
        %v4581 = vld [vmem:[%s4570 + $0x28] sm:$0xf]
        %v4582 = vld [vmem:[%s4570 + $0x2c] sm:$0xf]
        %v4583 = vld [vmem:[%s4570 + $0x30] sm:$0xf]
        %v4584 = vld [vmem:[%s4570 + $0x34] sm:$0xf]
        %v4585 = vld [vmem:[%s4570 + $0x38] sm:$0xf]
        %v4586 = vld [vmem:[%s4570 + $0x3c] sm:$0xf]
        %v4587 = vunpack.c.l.bf16 %v4571
        %v4588 = vunpack.c.l.bf16 %v4572
        %v4589 = vunpack.c.l.bf16 %v4573
        %v4590 = vunpack.c.l.bf16 %v4574
        %v4591 = vunpack.c.l.bf16 %v4575
        %v4592 = vunpack.c.l.bf16 %v4576
        %v4593 = vunpack.c.l.bf16 %v4577
        %v4594 = vunpack.c.l.bf16 %v4578
        %v4595 = vunpack.c.l.bf16 %v4579
        %v4596 = vunpack.c.l.bf16 %v4580
        %v4597 = vunpack.c.l.bf16 %v4581
        %v4598 = vunpack.c.l.bf16 %v4582
        %v4599 = vunpack.c.l.bf16 %v4583
        %v4600 = vunpack.c.l.bf16 %v4584
        %v4601 = vunpack.c.l.bf16 %v4585
        %v4602 = vunpack.c.l.bf16 %v4586
        %v4603 = vlaneseq
        %v4604 = vshrl.u32 %v4603, 7
        %v4605 = vsub.s32 3, %v4604
        %v4606 = vrot.slane %v3415, %v4605
        %4607 = vmatprep.subr.mxu0 0.0
        %4608 = vmatpush1.msra.mxu0 %v4602
        %4609 = vmatprep.subr.mxu0 0.0
        %4610 = vmatpush1.msra.mxu0 %v4601
        %4611 = vmatprep.subr.mxu0 0.0
        %4612 = vmatpush1.msra.mxu0 %v4600
        %4613 = vmatprep.subr.mxu0 0.0
        %4614 = vmatpush1.msra.mxu0 %v4599
        %4615 = vmatprep.subr.mxu0 0.0
        %4616 = vmatpush1.msra.mxu0 %v4598
        %4617 = vmatprep.subr.mxu0 0.0
        %4618 = vmatpush1.msra.mxu0 %v4597
        %4619 = vmatprep.subr.mxu0 0.0
        %4620 = vmatpush1.msra.mxu0 %v4596
        %4621 = vmatprep.subr.mxu0 0.0
        %4622 = vmatpush1.msra.mxu0 %v4595
        %4623 = vmatprep.subr.mxu0 0.0
        %4624 = vmatpush1.msra.mxu0 %v4594
        %4625 = vmatprep.subr.mxu0 0.0
        %4626 = vmatpush1.msra.mxu0 %v4593
        %4627 = vmatprep.subr.mxu0 0.0
        %4628 = vmatpush1.msra.mxu0 %v4592
        %4629 = vmatprep.subr.mxu0 0.0
        %4630 = vmatpush1.msra.mxu0 %v4591
        %4631 = vmatprep.subr.mxu0 0.0
        %4632 = vmatpush1.msra.mxu0 %v4590
        %4633 = vmatprep.subr.mxu0 0.0
        %4634 = vmatpush1.msra.mxu0 %v4589
        %4635 = vmatprep.subr.mxu0 0.0
        %4636 = vmatpush1.msra.mxu0 %v4588
        %4637 = vmatprep.subr.mxu0 0.0
        %4638 = vmatpush1.msra.mxu0 %v4587
        %4639 = vmatprep.subr.mxu0 0.0
        %4640 = vmatpush2.msra.mxu0 0.0
        %4641 = vmatprep.subr.mxu0 0.0
        %4642 = vmatpush2.msra.mxu0 0.0
        %4643 = vmatprep.subr.mxu0 0.0
        %4644 = vmatpush2.msra.mxu0 0.0
        %4645 = vmatprep.subr.mxu0 0.0
        %4646 = vmatpush2.msra.mxu0 0.0
        %4647 = vmatprep.subr.mxu0 0.0
        %4648 = vmatpush2.msra.mxu0 0.0
        %4649 = vmatprep.subr.mxu0 0.0
        %4650 = vmatpush2.msra.mxu0 0.0
        %4651 = vmatprep.subr.mxu0 0.0
        %4652 = vmatpush2.msra.mxu0 0.0
        %4653 = vmatprep.subr.mxu0 0.0
        %4654 = vmatpush2.msra.mxu0 0.0
        %4655 = vmatprep.subr.mxu0 0.0
        %4656 = vmatpush2.msra.mxu0 0.0
        %4657 = vmatprep.subr.mxu0 0.0
        %4658 = vmatpush2.msra.mxu0 0.0
        %4659 = vmatprep.subr.mxu0 0.0
        %4660 = vmatpush2.msra.mxu0 0.0
        %4661 = vmatprep.subr.mxu0 0.0
        %4662 = vmatpush2.msra.mxu0 0.0
        %4663 = vmatprep.subr.mxu0 0.0
        %4664 = vmatpush2.msra.mxu0 0.0
        %4665 = vmatprep.subr.mxu0 0.0
        %4666 = vmatpush2.msra.mxu0 0.0
        %4667 = vmatprep.subr.mxu0 0.0
        %4668 = vmatpush2.msra.mxu0 0.0
        %4669 = vmatprep.subr.mxu0 0.0
        %4670 = vmatpush2.msra.mxu0 0.0
        %4671 = vmatprep.mubr.f32.mxu0 0.0
        %4672 = vmatmul.mubr.f32.gmra.mxu0 %v4568
        %v4673 = vpop.f32.mrf.mxu0
        %v4674 = vadd.f32 %v4606, %v4673
        %v4675 = vpop.f32.mrf.mxu0
        %4676 = vmatprep.mubr.f32.mxu0 0.0
        %4677 = vmatmul.mubr.f32.gmra.mxu0 %v4569
        %v4678 = vpop.f32.mrf.mxu0
        %v4679 = vadd.f32 %v4606, %v4678
        %v4680 = vpop.f32.mrf.mxu0
        %4681 = vdwg.mxu0
        %v4682 = vadd.f32 %v4438, %v4674
        %v4683 = vadd.f32 %v4439, %v4679
        %4684 = vadd.xlane.f32.xlu0 %v4682
        %v4685 = vpop.xlane.xlu0 %4684
        %v4686 = vsel %vm1134, %v4683, 0.0
        %4687 = vadd.xlane.f32.xlu0 %v4686
        %v4688 = vpop.xlane.xlu0 %4687
        %v4689 = vmul.f32 %v4685, 0.03125
        %v4690 = vmul.f32 %v4688, 0.03125
        %v4691 = vsub.f32 %v4682, %v4689
        %v4692 = vsub.f32 %v4683, %v4690
        %v4693 = vmul.f32 %v4691, %v661
        %v4694 = vmul.f32 %v4692, %v661
        %v4695 = vmul.f32 %v4693, %v4693
        %v4696 = vmul.f32 %v4694, %v4694
        %4697 = vadd.xlane.f32.xlu0 %v4695
        %v4698 = vpop.xlane.xlu0 %4697
        %v4699 = vsel %vm1134, %v4696, 0.0
        %4700 = vadd.xlane.f32.xlu0 %v4699
        %v4701 = vpop.xlane.xlu0 %4700
        %v4702 = vmul.f32 %v4698, 0.03125
        %v4703 = vmul.f32 %v4701, 0.03125
        %v4704 = vadd.f32 %v4702, 1e-05
        %v4705 = vadd.f32 %v4703, 1e-05
        %v4706 = vrsqrt.pop %v4704
        %v4707 = vrsqrt.pop %v4705
        %v4708 = vmul.f32 %v4693, %v4706
        %v4709 = vmul.f32 %v4694, %v4707
        %v4710 = vlaneseq
        %v4711 = vshrl.u32 %v4710, 7
        %v4712 = vsub.s32 6, %v4711
        %v4713 = vrot.slane %v3415, %v4712
        %v4714 = vmul.f32 %v4708, %v4713
        %v4715 = vmul.f32 %v4709, %v4713
        %v4716 = vlaneseq
        %v4717 = vshrl.u32 %v4716, 7
        %v4718 = vsub.s32 7, %v4717
        %v4719 = vrot.slane %v3415, %v4718
        %v4720 = vadd.f32 %v4714, %v4719
        %v4721 = vadd.f32 %v4715, %v4719
        %s4722 = scalar_lea.vmem [#allocation12], 24
        %v4723 = vld [vmem:[%s4722] sm:$0xff]
        %s4724 = scalar_lea.vmem [#allocation6], 192
        %v4725 = vld [vmem:[%s4724] sm:$0xf]
        %v4726 = vld [vmem:[%s4724 + $0x4] sm:$0xf]
        %v4727 = vld [vmem:[%s4724 + $0x8] sm:$0xf]
        %v4728 = vld [vmem:[%s4724 + $0xc] sm:$0xf]
        %v4729 = vld [vmem:[%s4724 + $0x10] sm:$0xf]
        %v4730 = vld [vmem:[%s4724 + $0x14] sm:$0xf]
        %v4731 = vld [vmem:[%s4724 + $0x18] sm:$0xf]
        %v4732 = vld [vmem:[%s4724 + $0x1c] sm:$0xf]
        %v4733 = vld [vmem:[%s4724 + $0x20] sm:$0xf]
        %v4734 = vld [vmem:[%s4724 + $0x24] sm:$0xf]
        %v4735 = vld [vmem:[%s4724 + $0x28] sm:$0xf]
        %v4736 = vld [vmem:[%s4724 + $0x2c] sm:$0xf]
        %v4737 = vld [vmem:[%s4724 + $0x30] sm:$0xf]
        %v4738 = vld [vmem:[%s4724 + $0x34] sm:$0xf]
        %v4739 = vld [vmem:[%s4724 + $0x38] sm:$0xf]
        %v4740 = vld [vmem:[%s4724 + $0x3c] sm:$0xf]
        %v4741 = vunpack.c.l.bf16 %v4725
        %v4742 = vunpack.c.l.bf16 %v4726
        %v4743 = vunpack.c.l.bf16 %v4727
        %v4744 = vunpack.c.l.bf16 %v4728
        %v4745 = vunpack.c.l.bf16 %v4729
        %v4746 = vunpack.c.l.bf16 %v4730
        %v4747 = vunpack.c.l.bf16 %v4731
        %v4748 = vunpack.c.l.bf16 %v4732
        %v4749 = vunpack.c.l.bf16 %v4733
        %v4750 = vunpack.c.l.bf16 %v4734
        %v4751 = vunpack.c.l.bf16 %v4735
        %v4752 = vunpack.c.l.bf16 %v4736
        %v4753 = vunpack.c.l.bf16 %v4737
        %v4754 = vunpack.c.l.bf16 %v4738
        %v4755 = vunpack.c.l.bf16 %v4739
        %v4756 = vunpack.c.l.bf16 %v4740
        %v4757 = vlaneseq
        %v4758 = vshrl.u32 %v4757, 7
        %v4759 = vsub.s32 0, %v4758
        %v4760 = vrot.slane %v4723, %v4759
        %4761 = vmatprep.subr.mxu0 0.0
        %4762 = vmatpush1.msra.mxu0 %v4756
        %4763 = vmatprep.subr.mxu0 0.0
        %4764 = vmatpush1.msra.mxu0 %v4755
        %4765 = vmatprep.subr.mxu0 0.0
        %4766 = vmatpush1.msra.mxu0 %v4754
        %4767 = vmatprep.subr.mxu0 0.0
        %4768 = vmatpush1.msra.mxu0 %v4753
        %4769 = vmatprep.subr.mxu0 0.0
        %4770 = vmatpush1.msra.mxu0 %v4752
        %4771 = vmatprep.subr.mxu0 0.0
        %4772 = vmatpush1.msra.mxu0 %v4751
        %4773 = vmatprep.subr.mxu0 0.0
        %4774 = vmatpush1.msra.mxu0 %v4750
        %4775 = vmatprep.subr.mxu0 0.0
        %4776 = vmatpush1.msra.mxu0 %v4749
        %4777 = vmatprep.subr.mxu0 0.0
        %4778 = vmatpush1.msra.mxu0 %v4748
        %4779 = vmatprep.subr.mxu0 0.0
        %4780 = vmatpush1.msra.mxu0 %v4747
        %4781 = vmatprep.subr.mxu0 0.0
        %4782 = vmatpush1.msra.mxu0 %v4746
        %4783 = vmatprep.subr.mxu0 0.0
        %4784 = vmatpush1.msra.mxu0 %v4745
        %4785 = vmatprep.subr.mxu0 0.0
        %4786 = vmatpush1.msra.mxu0 %v4744
        %4787 = vmatprep.subr.mxu0 0.0
        %4788 = vmatpush1.msra.mxu0 %v4743
        %4789 = vmatprep.subr.mxu0 0.0
        %4790 = vmatpush1.msra.mxu0 %v4742
        %4791 = vmatprep.subr.mxu0 0.0
        %4792 = vmatpush1.msra.mxu0 %v4741
        %4793 = vmatprep.subr.mxu0 0.0
        %4794 = vmatpush2.msra.mxu0 0.0
        %4795 = vmatprep.subr.mxu0 0.0
        %4796 = vmatpush2.msra.mxu0 0.0
        %4797 = vmatprep.subr.mxu0 0.0
        %4798 = vmatpush2.msra.mxu0 0.0
        %4799 = vmatprep.subr.mxu0 0.0
        %4800 = vmatpush2.msra.mxu0 0.0
        %4801 = vmatprep.subr.mxu0 0.0
        %4802 = vmatpush2.msra.mxu0 0.0
        %4803 = vmatprep.subr.mxu0 0.0
        %4804 = vmatpush2.msra.mxu0 0.0
        %4805 = vmatprep.subr.mxu0 0.0
        %4806 = vmatpush2.msra.mxu0 0.0
        %4807 = vmatprep.subr.mxu0 0.0
        %4808 = vmatpush2.msra.mxu0 0.0
        %4809 = vmatprep.subr.mxu0 0.0
        %4810 = vmatpush2.msra.mxu0 0.0
        %4811 = vmatprep.subr.mxu0 0.0
        %4812 = vmatpush2.msra.mxu0 0.0
        %4813 = vmatprep.subr.mxu0 0.0
        %4814 = vmatpush2.msra.mxu0 0.0
        %4815 = vmatprep.subr.mxu0 0.0
        %4816 = vmatpush2.msra.mxu0 0.0
        %4817 = vmatprep.subr.mxu0 0.0
        %4818 = vmatpush2.msra.mxu0 0.0
        %4819 = vmatprep.subr.mxu0 0.0
        %4820 = vmatpush2.msra.mxu0 0.0
        %4821 = vmatprep.subr.mxu0 0.0
        %4822 = vmatpush2.msra.mxu0 0.0
        %4823 = vmatprep.subr.mxu0 0.0
        %4824 = vmatpush2.msra.mxu0 0.0
        %4825 = vmatprep.mubr.f32.mxu0 0.0
        %4826 = vmatmul.mubr.f32.gmra.mxu0 %v4720
        %v4827 = vpop.f32.mrf.mxu0
        %v4828 = vadd.f32 %v4760, %v4827
        %v4829 = vpop.f32.mrf.mxu0
        %4830 = vmatprep.mubr.f32.mxu0 0.0
        %4831 = vmatmul.mubr.f32.gmra.mxu0 %v4721
        %v4832 = vpop.f32.mrf.mxu0
        %v4833 = vadd.f32 %v4760, %v4832
        %v4834 = vpop.f32.mrf.mxu0
        %4835 = vdwg.mxu0
        %4836 = vrot.lane.b32.xlu0 %v4828, 96
        %v4837 = vpop.permute.xlu0 %4836
        %4838 = vrot.lane.b32.xlu0 %v4833, 96
        %v4839 = vpop.permute.xlu0 %4838
        %4840 = vrot.lane.b32.xlu0 %v4828, 64
        %v4841 = vpop.permute.xlu0 %4840
        %4842 = vrot.lane.b32.xlu0 %v4833, 64
        %v4843 = vpop.permute.xlu0 %4842
        %v4844 = vmul.f32 %v4828, %v666
        %v4845 = vmul.f32 %v4833, %v666
        %4846 = vmatprep.subr.mxu0 0.0
        %4847 = vmatpush1.xpose.msra.mxu0 0.0
        %4848 = vmatprep.subr.mxu0 0.0
        %4849 = vmatpush1.xpose.msra.mxu0 0.0
        %4850 = vmatprep.subr.mxu0 0.0
        %4851 = vmatpush1.xpose.msra.mxu0 0.0
        %4852 = vmatprep.subr.mxu0 0.0
        %4853 = vmatpush1.xpose.msra.mxu0 0.0
        %4854 = vmatprep.subr.mxu0 0.0
        %4855 = vmatpush1.xpose.msra.mxu0 0.0
        %4856 = vmatprep.subr.mxu0 0.0
        %4857 = vmatpush1.xpose.msra.mxu0 0.0
        %4858 = vmatprep.subr.mxu0 0.0
        %4859 = vmatpush1.xpose.msra.mxu0 0.0
        %4860 = vmatprep.subr.mxu0 0.0
        %4861 = vmatpush1.xpose.msra.mxu0 0.0
        %4862 = vmatprep.subr.mxu0 0.0
        %4863 = vmatpush1.xpose.msra.mxu0 0.0
        %4864 = vmatprep.subr.mxu0 0.0
        %4865 = vmatpush1.xpose.msra.mxu0 0.0
        %4866 = vmatprep.subr.mxu0 0.0
        %4867 = vmatpush1.xpose.msra.mxu0 0.0
        %4868 = vmatprep.subr.mxu0 0.0
        %4869 = vmatpush1.xpose.msra.mxu0 0.0
        %4870 = vmatprep.subr.mxu0 0.0
        %4871 = vmatpush1.xpose.msra.mxu0 0.0
        %4872 = vmatprep.subr.mxu0 0.0
        %4873 = vmatpush1.xpose.msra.mxu0 0.0
        %4874 = vmatprep.subr.mxu0 0.0
        %4875 = vmatpush1.xpose.msra.mxu0 %v4839
        %4876 = vmatprep.subr.mxu0 0.0
        %4877 = vmatpush1.xpose.msra.mxu0 %v4837
        %4878 = vmatprep.subr.mxu0 0.0
        %4879 = vmatpush2.xpose.msra.mxu0 0.0
        %4880 = vmatprep.subr.mxu0 0.0
        %4881 = vmatpush2.xpose.msra.mxu0 0.0
        %4882 = vmatprep.subr.mxu0 0.0
        %4883 = vmatpush2.xpose.msra.mxu0 0.0
        %4884 = vmatprep.subr.mxu0 0.0
        %4885 = vmatpush2.xpose.msra.mxu0 0.0
        %4886 = vmatprep.subr.mxu0 0.0
        %4887 = vmatpush2.xpose.msra.mxu0 0.0
        %4888 = vmatprep.subr.mxu0 0.0
        %4889 = vmatpush2.xpose.msra.mxu0 0.0
        %4890 = vmatprep.subr.mxu0 0.0
        %4891 = vmatpush2.xpose.msra.mxu0 0.0
        %4892 = vmatprep.subr.mxu0 0.0
        %4893 = vmatpush2.xpose.msra.mxu0 0.0
        %4894 = vmatprep.subr.mxu0 0.0
        %4895 = vmatpush2.xpose.msra.mxu0 0.0
        %4896 = vmatprep.subr.mxu0 0.0
        %4897 = vmatpush2.xpose.msra.mxu0 0.0
        %4898 = vmatprep.subr.mxu0 0.0
        %4899 = vmatpush2.xpose.msra.mxu0 0.0
        %4900 = vmatprep.subr.mxu0 0.0
        %4901 = vmatpush2.xpose.msra.mxu0 0.0
        %4902 = vmatprep.subr.mxu0 0.0
        %4903 = vmatpush2.xpose.msra.mxu0 0.0
        %4904 = vmatprep.subr.mxu0 0.0
        %4905 = vmatpush2.xpose.msra.mxu0 0.0
        %4906 = vmatprep.subr.mxu0 0.0
        %4907 = vmatpush2.xpose.msra.mxu0 0.0
        %4908 = vmatprep.subr.mxu0 0.0
        %4909 = vmatpush2.xpose.msra.mxu0 0.0
        %4910 = vmatprep.mubr.f32.mxu0 0.0
        %4911 = vmatmul.mubr.f32.gmra.mxu0 %v4844
        %v4912 = vpop.f32.mrf.mxu0
        %v4913 = vadd.f32 0.0, %v4912
        %v4914 = vpop.f32.mrf.mxu0
        %4915 = vmatprep.mubr.f32.mxu0 0.0
        %4916 = vmatmul.mubr.f32.gmra.mxu0 %v4845
        %v4917 = vpop.f32.mrf.mxu0
        %v4918 = vadd.f32 0.0, %v4917
        %v4919 = vpop.f32.mrf.mxu0
        %4920 = vdwg.mxu0
        %v4921 = vmul.f32 %v4913, 0.35355338
        %v4922 = vmul.f32 %v4918, 0.35355338
        %v4923 = vsel %vm999, %v4921, -inf
        %4924 = vmax.xlane.f32.xlu0 %v4923
        %v4925 = vpop.xlane.xlu0 %4924
        %v4926 = vsel %vm1003, %v4922, -inf
        %4927 = vmax.xlane.f32.xlu0 %v4926
        %v4928 = vpop.xlane.xlu0 %4927
        %v4929 = vsub.f32 %v4921, %v4925
        %v4930 = vsub.f32 %v4922, %v4928
        %v4931 = vmul.f32 %v4929, 1.442695
        %v4932 = vpow.pop %v4931
        %v4933 = vmul.f32 %v4930, 1.442695
        %v4934 = vpow.pop %v4933
        %v4935 = vsel %vm999, %v4932, 0.0
        %4936 = vadd.xlane.f32.xlu0 %v4935
        %v4937 = vpop.xlane.xlu0 %4936
        %v4938 = vsel %vm1003, %v4934, 0.0
        %4939 = vadd.xlane.f32.xlu0 %v4938
        %v4940 = vpop.xlane.xlu0 %4939
        %v4941 = vrcp.pop %v4937
        %v4942 = vrcp.pop %v4940
        %v4943 = vmul.f32 %v4932, %v4941
        %v4944 = vmul.f32 %v4934, %v4942
        %v4945 = vmul.f32 %v4841, %v666
        %v4946 = vmul.f32 %v4843, %v666
        %v4947 = vmul.f32 %v4828, %v671
        %v4948 = vmul.f32 %v4833, %v671
        %4949 = vmatprep.subr.mxu0 0.0
        %4950 = vmatpush1.xpose.msra.mxu0 0.0
        %4951 = vmatprep.subr.mxu0 0.0
        %4952 = vmatpush1.xpose.msra.mxu0 0.0
        %4953 = vmatprep.subr.mxu0 0.0
        %4954 = vmatpush1.xpose.msra.mxu0 0.0
        %4955 = vmatprep.subr.mxu0 0.0
        %4956 = vmatpush1.xpose.msra.mxu0 0.0
        %4957 = vmatprep.subr.mxu0 0.0
        %4958 = vmatpush1.xpose.msra.mxu0 0.0
        %4959 = vmatprep.subr.mxu0 0.0
        %4960 = vmatpush1.xpose.msra.mxu0 0.0
        %4961 = vmatprep.subr.mxu0 0.0
        %4962 = vmatpush1.xpose.msra.mxu0 0.0
        %4963 = vmatprep.subr.mxu0 0.0
        %4964 = vmatpush1.xpose.msra.mxu0 0.0
        %4965 = vmatprep.subr.mxu0 0.0
        %4966 = vmatpush1.xpose.msra.mxu0 0.0
        %4967 = vmatprep.subr.mxu0 0.0
        %4968 = vmatpush1.xpose.msra.mxu0 0.0
        %4969 = vmatprep.subr.mxu0 0.0
        %4970 = vmatpush1.xpose.msra.mxu0 0.0
        %4971 = vmatprep.subr.mxu0 0.0
        %4972 = vmatpush1.xpose.msra.mxu0 0.0
        %4973 = vmatprep.subr.mxu0 0.0
        %4974 = vmatpush1.xpose.msra.mxu0 0.0
        %4975 = vmatprep.subr.mxu0 0.0
        %4976 = vmatpush1.xpose.msra.mxu0 0.0
        %4977 = vmatprep.subr.mxu0 0.0
        %4978 = vmatpush1.xpose.msra.mxu0 %v4839
        %4979 = vmatprep.subr.mxu0 0.0
        %4980 = vmatpush1.xpose.msra.mxu0 %v4837
        %4981 = vmatprep.subr.mxu0 0.0
        %4982 = vmatpush2.xpose.msra.mxu0 0.0
        %4983 = vmatprep.subr.mxu0 0.0
        %4984 = vmatpush2.xpose.msra.mxu0 0.0
        %4985 = vmatprep.subr.mxu0 0.0
        %4986 = vmatpush2.xpose.msra.mxu0 0.0
        %4987 = vmatprep.subr.mxu0 0.0
        %4988 = vmatpush2.xpose.msra.mxu0 0.0
        %4989 = vmatprep.subr.mxu0 0.0
        %4990 = vmatpush2.xpose.msra.mxu0 0.0
        %4991 = vmatprep.subr.mxu0 0.0
        %4992 = vmatpush2.xpose.msra.mxu0 0.0
        %4993 = vmatprep.subr.mxu0 0.0
        %4994 = vmatpush2.xpose.msra.mxu0 0.0
        %4995 = vmatprep.subr.mxu0 0.0
        %4996 = vmatpush2.xpose.msra.mxu0 0.0
        %4997 = vmatprep.subr.mxu0 0.0
        %4998 = vmatpush2.xpose.msra.mxu0 0.0
        %4999 = vmatprep.subr.mxu0 0.0
        %5000 = vmatpush2.xpose.msra.mxu0 0.0
        %5001 = vmatprep.subr.mxu0 0.0
        %5002 = vmatpush2.xpose.msra.mxu0 0.0
        %5003 = vmatprep.subr.mxu0 0.0
        %5004 = vmatpush2.xpose.msra.mxu0 0.0
        %5005 = vmatprep.subr.mxu0 0.0
        %5006 = vmatpush2.xpose.msra.mxu0 0.0
        %5007 = vmatprep.subr.mxu0 0.0
        %5008 = vmatpush2.xpose.msra.mxu0 0.0
        %5009 = vmatprep.subr.mxu0 0.0
        %5010 = vmatpush2.xpose.msra.mxu0 0.0
        %5011 = vmatprep.subr.mxu0 0.0
        %5012 = vmatpush2.xpose.msra.mxu0 0.0
        %5013 = vmatprep.mubr.f32.mxu0 0.0
        %5014 = vmatmul.mubr.f32.gmra.mxu0 %v4947
        %v5015 = vpop.f32.mrf.mxu0
        %v5016 = vadd.f32 0.0, %v5015
        %v5017 = vpop.f32.mrf.mxu0
        %5018 = vmatprep.mubr.f32.mxu0 0.0
        %5019 = vmatmul.mubr.f32.gmra.mxu0 %v4948
        %v5020 = vpop.f32.mrf.mxu0
        %v5021 = vadd.f32 0.0, %v5020
        %v5022 = vpop.f32.mrf.mxu0
        %5023 = vdwg.mxu0
        %v5024 = vmul.f32 %v5016, 0.35355338
        %v5025 = vmul.f32 %v5021, 0.35355338
        %v5026 = vsel %vm999, %v5024, -inf
        %5027 = vmax.xlane.f32.xlu0 %v5026
        %v5028 = vpop.xlane.xlu0 %5027
        %v5029 = vsel %vm1003, %v5025, -inf
        %5030 = vmax.xlane.f32.xlu0 %v5029
        %v5031 = vpop.xlane.xlu0 %5030
        %v5032 = vsub.f32 %v5024, %v5028
        %v5033 = vsub.f32 %v5025, %v5031
        %v5034 = vmul.f32 %v5032, 1.442695
        %v5035 = vpow.pop %v5034
        %v5036 = vmul.f32 %v5033, 1.442695
        %v5037 = vpow.pop %v5036
        %v5038 = vsel %vm999, %v5035, 0.0
        %5039 = vadd.xlane.f32.xlu0 %v5038
        %v5040 = vpop.xlane.xlu0 %5039
        %v5041 = vsel %vm1003, %v5037, 0.0
        %5042 = vadd.xlane.f32.xlu0 %v5041
        %v5043 = vpop.xlane.xlu0 %5042
        %v5044 = vrcp.pop %v5040
        %v5045 = vrcp.pop %v5043
        %v5046 = vmul.f32 %v5035, %v5044
        %v5047 = vmul.f32 %v5037, %v5045
        %v5048 = vmul.f32 %v4841, %v671
        %v5049 = vmul.f32 %v4843, %v671
        %v5051 = vsel %vm999, %v5046, 0
        %v5054 = vsel %vm999, %v5047, 0
        %v5057 = vsel %vm1134, %v5049, 0
        %5059 = vmatprep.subr.mxu0 0.0
        %5060 = vmatpush1.msra.mxu0 0.0
        %5061 = vmatprep.subr.mxu0 0.0
        %5062 = vmatpush1.msra.mxu0 0.0
        %5063 = vmatprep.subr.mxu0 0.0
        %5064 = vmatpush1.msra.mxu0 0.0
        %5065 = vmatprep.subr.mxu0 0.0
        %5066 = vmatpush1.msra.mxu0 0.0
        %5067 = vmatprep.subr.mxu0 0.0
        %5068 = vmatpush1.msra.mxu0 0.0
        %5069 = vmatprep.subr.mxu0 0.0
        %5070 = vmatpush1.msra.mxu0 0.0
        %5071 = vmatprep.subr.mxu0 0.0
        %5072 = vmatpush1.msra.mxu0 0.0
        %5073 = vmatprep.subr.mxu0 0.0
        %5074 = vmatpush1.msra.mxu0 0.0
        %5075 = vmatprep.subr.mxu0 0.0
        %5076 = vmatpush1.msra.mxu0 0.0
        %5077 = vmatprep.subr.mxu0 0.0
        %5078 = vmatpush1.msra.mxu0 0.0
        %5079 = vmatprep.subr.mxu0 0.0
        %5080 = vmatpush1.msra.mxu0 0.0
        %5081 = vmatprep.subr.mxu0 0.0
        %5082 = vmatpush1.msra.mxu0 0.0
        %5083 = vmatprep.subr.mxu0 0.0
        %5084 = vmatpush1.msra.mxu0 0.0
        %5085 = vmatprep.subr.mxu0 0.0
        %5086 = vmatpush1.msra.mxu0 0.0
        %5087 = vmatprep.subr.mxu0 0.0
        %5088 = vmatpush1.msra.mxu0 %v5057
        %5089 = vmatprep.subr.mxu0 0.0
        %5090 = vmatpush1.msra.mxu0 %v5048
        %5091 = vmatprep.subr.mxu0 0.0
        %5092 = vmatpush2.msra.mxu0 0.0
        %5093 = vmatprep.subr.mxu0 0.0
        %5094 = vmatpush2.msra.mxu0 0.0
        %5095 = vmatprep.subr.mxu0 0.0
        %5096 = vmatpush2.msra.mxu0 0.0
        %5097 = vmatprep.subr.mxu0 0.0
        %5098 = vmatpush2.msra.mxu0 0.0
        %5099 = vmatprep.subr.mxu0 0.0
        %5100 = vmatpush2.msra.mxu0 0.0
        %5101 = vmatprep.subr.mxu0 0.0
        %5102 = vmatpush2.msra.mxu0 0.0
        %5103 = vmatprep.subr.mxu0 0.0
        %5104 = vmatpush2.msra.mxu0 0.0
        %5105 = vmatprep.subr.mxu0 0.0
        %5106 = vmatpush2.msra.mxu0 0.0
        %5107 = vmatprep.subr.mxu0 0.0
        %5108 = vmatpush2.msra.mxu0 0.0
        %5109 = vmatprep.subr.mxu0 0.0
        %5110 = vmatpush2.msra.mxu0 0.0
        %5111 = vmatprep.subr.mxu0 0.0
        %5112 = vmatpush2.msra.mxu0 0.0
        %5113 = vmatprep.subr.mxu0 0.0
        %5114 = vmatpush2.msra.mxu0 0.0
        %5115 = vmatprep.subr.mxu0 0.0
        %5116 = vmatpush2.msra.mxu0 0.0
        %5117 = vmatprep.subr.mxu0 0.0
        %5118 = vmatpush2.msra.mxu0 0.0
        %5119 = vmatprep.subr.mxu0 0.0
        %5120 = vmatpush2.msra.mxu0 0.0
        %5121 = vmatprep.subr.mxu0 0.0
        %5122 = vmatpush2.msra.mxu0 0.0
        %5123 = vmatprep.mubr.f32.mxu0 0.0
        %5124 = vmatmul.mubr.f32.gmra.mxu0 %v5051
        %v5125 = vpop.f32.mrf.mxu0
        %v5126 = vadd.f32 0.0, %v5125
        %v5127 = vpop.f32.mrf.mxu0
        %5128 = vmatprep.mubr.f32.mxu0 0.0
        %5129 = vmatmul.mubr.f32.gmra.mxu0 %v5054
        %v5130 = vpop.f32.mrf.mxu0
        %v5131 = vadd.f32 0.0, %v5130
        %v5132 = vpop.f32.mrf.mxu0
        %5133 = vdwg.mxu0
        %v5135 = vsel %vm999, %v4943, 0
        %v5138 = vsel %vm999, %v4944, 0
        %v5141 = vsel %vm1134, %v4946, 0
        %5143 = vmatprep.subr.mxu0 0.0
        %5144 = vmatpush1.msra.mxu0 0.0
        %5145 = vmatprep.subr.mxu0 0.0
        %5146 = vmatpush1.msra.mxu0 0.0
        %5147 = vmatprep.subr.mxu0 0.0
        %5148 = vmatpush1.msra.mxu0 0.0
        %5149 = vmatprep.subr.mxu0 0.0
        %5150 = vmatpush1.msra.mxu0 0.0
        %5151 = vmatprep.subr.mxu0 0.0
        %5152 = vmatpush1.msra.mxu0 0.0
        %5153 = vmatprep.subr.mxu0 0.0
        %5154 = vmatpush1.msra.mxu0 0.0
        %5155 = vmatprep.subr.mxu0 0.0
        %5156 = vmatpush1.msra.mxu0 0.0
        %5157 = vmatprep.subr.mxu0 0.0
        %5158 = vmatpush1.msra.mxu0 0.0
        %5159 = vmatprep.subr.mxu0 0.0
        %5160 = vmatpush1.msra.mxu0 0.0
        %5161 = vmatprep.subr.mxu0 0.0
        %5162 = vmatpush1.msra.mxu0 0.0
        %5163 = vmatprep.subr.mxu0 0.0
        %5164 = vmatpush1.msra.mxu0 0.0
        %5165 = vmatprep.subr.mxu0 0.0
        %5166 = vmatpush1.msra.mxu0 0.0
        %5167 = vmatprep.subr.mxu0 0.0
        %5168 = vmatpush1.msra.mxu0 0.0
        %5169 = vmatprep.subr.mxu0 0.0
        %5170 = vmatpush1.msra.mxu0 0.0
        %5171 = vmatprep.subr.mxu0 0.0
        %5172 = vmatpush1.msra.mxu0 %v5141
        %5173 = vmatprep.subr.mxu0 0.0
        %5174 = vmatpush1.msra.mxu0 %v4945
        %5175 = vmatprep.subr.mxu0 0.0
        %5176 = vmatpush2.msra.mxu0 0.0
        %5177 = vmatprep.subr.mxu0 0.0
        %5178 = vmatpush2.msra.mxu0 0.0
        %5179 = vmatprep.subr.mxu0 0.0
        %5180 = vmatpush2.msra.mxu0 0.0
        %5181 = vmatprep.subr.mxu0 0.0
        %5182 = vmatpush2.msra.mxu0 0.0
        %5183 = vmatprep.subr.mxu0 0.0
        %5184 = vmatpush2.msra.mxu0 0.0
        %5185 = vmatprep.subr.mxu0 0.0
        %5186 = vmatpush2.msra.mxu0 0.0
        %5187 = vmatprep.subr.mxu0 0.0
        %5188 = vmatpush2.msra.mxu0 0.0
        %5189 = vmatprep.subr.mxu0 0.0
        %5190 = vmatpush2.msra.mxu0 0.0
        %5191 = vmatprep.subr.mxu0 0.0
        %5192 = vmatpush2.msra.mxu0 0.0
        %5193 = vmatprep.subr.mxu0 0.0
        %5194 = vmatpush2.msra.mxu0 0.0
        %5195 = vmatprep.subr.mxu0 0.0
        %5196 = vmatpush2.msra.mxu0 0.0
        %5197 = vmatprep.subr.mxu0 0.0
        %5198 = vmatpush2.msra.mxu0 0.0
        %5199 = vmatprep.subr.mxu0 0.0
        %5200 = vmatpush2.msra.mxu0 0.0
        %5201 = vmatprep.subr.mxu0 0.0
        %5202 = vmatpush2.msra.mxu0 0.0
        %5203 = vmatprep.subr.mxu0 0.0
        %5204 = vmatpush2.msra.mxu0 0.0
        %5205 = vmatprep.subr.mxu0 0.0
        %5206 = vmatpush2.msra.mxu0 0.0
        %5207 = vmatprep.mubr.f32.mxu0 0.0
        %5208 = vmatmul.mubr.f32.gmra.mxu0 %v5135
        %v5209 = vpop.f32.mrf.mxu0
        %v5210 = vadd.f32 %v5126, %v5209
        %v5211 = vpop.f32.mrf.mxu0
        %5212 = vmatprep.mubr.f32.mxu0 0.0
        %5213 = vmatmul.mubr.f32.gmra.mxu0 %v5138
        %v5214 = vpop.f32.mrf.mxu0
        %v5215 = vadd.f32 %v5131, %v5214
        %v5216 = vpop.f32.mrf.mxu0
        %5217 = vdwg.mxu0
        %v5218 = vmul.f32 %v4828, %v676
        %v5219 = vmul.f32 %v4833, %v676
        %5220 = vmatprep.subr.mxu0 0.0
        %5221 = vmatpush1.xpose.msra.mxu0 0.0
        %5222 = vmatprep.subr.mxu0 0.0
        %5223 = vmatpush1.xpose.msra.mxu0 0.0
        %5224 = vmatprep.subr.mxu0 0.0
        %5225 = vmatpush1.xpose.msra.mxu0 0.0
        %5226 = vmatprep.subr.mxu0 0.0
        %5227 = vmatpush1.xpose.msra.mxu0 0.0
        %5228 = vmatprep.subr.mxu0 0.0
        %5229 = vmatpush1.xpose.msra.mxu0 0.0
        %5230 = vmatprep.subr.mxu0 0.0
        %5231 = vmatpush1.xpose.msra.mxu0 0.0
        %5232 = vmatprep.subr.mxu0 0.0
        %5233 = vmatpush1.xpose.msra.mxu0 0.0
        %5234 = vmatprep.subr.mxu0 0.0
        %5235 = vmatpush1.xpose.msra.mxu0 0.0
        %5236 = vmatprep.subr.mxu0 0.0
        %5237 = vmatpush1.xpose.msra.mxu0 0.0
        %5238 = vmatprep.subr.mxu0 0.0
        %5239 = vmatpush1.xpose.msra.mxu0 0.0
        %5240 = vmatprep.subr.mxu0 0.0
        %5241 = vmatpush1.xpose.msra.mxu0 0.0
        %5242 = vmatprep.subr.mxu0 0.0
        %5243 = vmatpush1.xpose.msra.mxu0 0.0
        %5244 = vmatprep.subr.mxu0 0.0
        %5245 = vmatpush1.xpose.msra.mxu0 0.0
        %5246 = vmatprep.subr.mxu0 0.0
        %5247 = vmatpush1.xpose.msra.mxu0 0.0
        %5248 = vmatprep.subr.mxu0 0.0
        %5249 = vmatpush1.xpose.msra.mxu0 %v4839
        %5250 = vmatprep.subr.mxu0 0.0
        %5251 = vmatpush1.xpose.msra.mxu0 %v4837
        %5252 = vmatprep.subr.mxu0 0.0
        %5253 = vmatpush2.xpose.msra.mxu0 0.0
        %5254 = vmatprep.subr.mxu0 0.0
        %5255 = vmatpush2.xpose.msra.mxu0 0.0
        %5256 = vmatprep.subr.mxu0 0.0
        %5257 = vmatpush2.xpose.msra.mxu0 0.0
        %5258 = vmatprep.subr.mxu0 0.0
        %5259 = vmatpush2.xpose.msra.mxu0 0.0
        %5260 = vmatprep.subr.mxu0 0.0
        %5261 = vmatpush2.xpose.msra.mxu0 0.0
        %5262 = vmatprep.subr.mxu0 0.0
        %5263 = vmatpush2.xpose.msra.mxu0 0.0
        %5264 = vmatprep.subr.mxu0 0.0
        %5265 = vmatpush2.xpose.msra.mxu0 0.0
        %5266 = vmatprep.subr.mxu0 0.0
        %5267 = vmatpush2.xpose.msra.mxu0 0.0
        %5268 = vmatprep.subr.mxu0 0.0
        %5269 = vmatpush2.xpose.msra.mxu0 0.0
        %5270 = vmatprep.subr.mxu0 0.0
        %5271 = vmatpush2.xpose.msra.mxu0 0.0
        %5272 = vmatprep.subr.mxu0 0.0
        %5273 = vmatpush2.xpose.msra.mxu0 0.0
        %5274 = vmatprep.subr.mxu0 0.0
        %5275 = vmatpush2.xpose.msra.mxu0 0.0
        %5276 = vmatprep.subr.mxu0 0.0
        %5277 = vmatpush2.xpose.msra.mxu0 0.0
        %5278 = vmatprep.subr.mxu0 0.0
        %5279 = vmatpush2.xpose.msra.mxu0 0.0
        %5280 = vmatprep.subr.mxu0 0.0
        %5281 = vmatpush2.xpose.msra.mxu0 0.0
        %5282 = vmatprep.subr.mxu0 0.0
        %5283 = vmatpush2.xpose.msra.mxu0 0.0
        %5284 = vmatprep.mubr.f32.mxu0 0.0
        %5285 = vmatmul.mubr.f32.gmra.mxu0 %v5218
        %v5286 = vpop.f32.mrf.mxu0
        %v5287 = vadd.f32 0.0, %v5286
        %v5288 = vpop.f32.mrf.mxu0
        %5289 = vmatprep.mubr.f32.mxu0 0.0
        %5290 = vmatmul.mubr.f32.gmra.mxu0 %v5219
        %v5291 = vpop.f32.mrf.mxu0
        %v5292 = vadd.f32 0.0, %v5291
        %v5293 = vpop.f32.mrf.mxu0
        %5294 = vdwg.mxu0
        %v5295 = vmul.f32 %v5287, 0.35355338
        %v5296 = vmul.f32 %v5292, 0.35355338
        %v5297 = vsel %vm999, %v5295, -inf
        %5298 = vmax.xlane.f32.xlu0 %v5297
        %v5299 = vpop.xlane.xlu0 %5298
        %v5300 = vsel %vm1003, %v5296, -inf
        %5301 = vmax.xlane.f32.xlu0 %v5300
        %v5302 = vpop.xlane.xlu0 %5301
        %v5303 = vsub.f32 %v5295, %v5299
        %v5304 = vsub.f32 %v5296, %v5302
        %v5305 = vmul.f32 %v5303, 1.442695
        %v5306 = vpow.pop %v5305
        %v5307 = vmul.f32 %v5304, 1.442695
        %v5308 = vpow.pop %v5307
        %v5309 = vsel %vm999, %v5306, 0.0
        %5310 = vadd.xlane.f32.xlu0 %v5309
        %v5311 = vpop.xlane.xlu0 %5310
        %v5312 = vsel %vm1003, %v5308, 0.0
        %5313 = vadd.xlane.f32.xlu0 %v5312
        %v5314 = vpop.xlane.xlu0 %5313
        %v5315 = vrcp.pop %v5311
        %v5316 = vrcp.pop %v5314
        %v5317 = vmul.f32 %v5306, %v5315
        %v5318 = vmul.f32 %v5308, %v5316
        %v5319 = vmul.f32 %v4841, %v676
        %v5320 = vmul.f32 %v4843, %v676
        %v5322 = vsel %vm999, %v5317, 0
        %v5325 = vsel %vm999, %v5318, 0
        %v5328 = vsel %vm1134, %v5320, 0
        %5330 = vmatprep.subr.mxu0 0.0
        %5331 = vmatpush1.msra.mxu0 0.0
        %5332 = vmatprep.subr.mxu0 0.0
        %5333 = vmatpush1.msra.mxu0 0.0
        %5334 = vmatprep.subr.mxu0 0.0
        %5335 = vmatpush1.msra.mxu0 0.0
        %5336 = vmatprep.subr.mxu0 0.0
        %5337 = vmatpush1.msra.mxu0 0.0
        %5338 = vmatprep.subr.mxu0 0.0
        %5339 = vmatpush1.msra.mxu0 0.0
        %5340 = vmatprep.subr.mxu0 0.0
        %5341 = vmatpush1.msra.mxu0 0.0
        %5342 = vmatprep.subr.mxu0 0.0
        %5343 = vmatpush1.msra.mxu0 0.0
        %5344 = vmatprep.subr.mxu0 0.0
        %5345 = vmatpush1.msra.mxu0 0.0
        %5346 = vmatprep.subr.mxu0 0.0
        %5347 = vmatpush1.msra.mxu0 0.0
        %5348 = vmatprep.subr.mxu0 0.0
        %5349 = vmatpush1.msra.mxu0 0.0
        %5350 = vmatprep.subr.mxu0 0.0
        %5351 = vmatpush1.msra.mxu0 0.0
        %5352 = vmatprep.subr.mxu0 0.0
        %5353 = vmatpush1.msra.mxu0 0.0
        %5354 = vmatprep.subr.mxu0 0.0
        %5355 = vmatpush1.msra.mxu0 0.0
        %5356 = vmatprep.subr.mxu0 0.0
        %5357 = vmatpush1.msra.mxu0 0.0
        %5358 = vmatprep.subr.mxu0 0.0
        %5359 = vmatpush1.msra.mxu0 %v5328
        %5360 = vmatprep.subr.mxu0 0.0
        %5361 = vmatpush1.msra.mxu0 %v5319
        %5362 = vmatprep.subr.mxu0 0.0
        %5363 = vmatpush2.msra.mxu0 0.0
        %5364 = vmatprep.subr.mxu0 0.0
        %5365 = vmatpush2.msra.mxu0 0.0
        %5366 = vmatprep.subr.mxu0 0.0
        %5367 = vmatpush2.msra.mxu0 0.0
        %5368 = vmatprep.subr.mxu0 0.0
        %5369 = vmatpush2.msra.mxu0 0.0
        %5370 = vmatprep.subr.mxu0 0.0
        %5371 = vmatpush2.msra.mxu0 0.0
        %5372 = vmatprep.subr.mxu0 0.0
        %5373 = vmatpush2.msra.mxu0 0.0
        %5374 = vmatprep.subr.mxu0 0.0
        %5375 = vmatpush2.msra.mxu0 0.0
        %5376 = vmatprep.subr.mxu0 0.0
        %5377 = vmatpush2.msra.mxu0 0.0
        %5378 = vmatprep.subr.mxu0 0.0
        %5379 = vmatpush2.msra.mxu0 0.0
        %5380 = vmatprep.subr.mxu0 0.0
        %5381 = vmatpush2.msra.mxu0 0.0
        %5382 = vmatprep.subr.mxu0 0.0
        %5383 = vmatpush2.msra.mxu0 0.0
        %5384 = vmatprep.subr.mxu0 0.0
        %5385 = vmatpush2.msra.mxu0 0.0
        %5386 = vmatprep.subr.mxu0 0.0
        %5387 = vmatpush2.msra.mxu0 0.0
        %5388 = vmatprep.subr.mxu0 0.0
        %5389 = vmatpush2.msra.mxu0 0.0
        %5390 = vmatprep.subr.mxu0 0.0
        %5391 = vmatpush2.msra.mxu0 0.0
        %5392 = vmatprep.subr.mxu0 0.0
        %5393 = vmatpush2.msra.mxu0 0.0
        %5394 = vmatprep.mubr.f32.mxu0 0.0
        %5395 = vmatmul.mubr.f32.gmra.mxu0 %v5322
        %v5396 = vpop.f32.mrf.mxu0
        %v5397 = vadd.f32 0.0, %v5396
        %v5398 = vpop.f32.mrf.mxu0
        %5399 = vmatprep.mubr.f32.mxu0 0.0
        %5400 = vmatmul.mubr.f32.gmra.mxu0 %v5325
        %v5401 = vpop.f32.mrf.mxu0
        %v5402 = vadd.f32 0.0, %v5401
        %v5403 = vpop.f32.mrf.mxu0
        %5404 = vdwg.mxu0
        %v5405 = vadd.f32 %v5210, %v5397
        %v5406 = vadd.f32 %v5215, %v5402
        %v5407 = vmul.f32 %v4828, %v680
        %v5408 = vmul.f32 %v4833, %v680
        %5409 = vmatprep.subr.mxu0 0.0
        %5410 = vmatpush1.xpose.msra.mxu0 0.0
        %5411 = vmatprep.subr.mxu0 0.0
        %5412 = vmatpush1.xpose.msra.mxu0 0.0
        %5413 = vmatprep.subr.mxu0 0.0
        %5414 = vmatpush1.xpose.msra.mxu0 0.0
        %5415 = vmatprep.subr.mxu0 0.0
        %5416 = vmatpush1.xpose.msra.mxu0 0.0
        %5417 = vmatprep.subr.mxu0 0.0
        %5418 = vmatpush1.xpose.msra.mxu0 0.0
        %5419 = vmatprep.subr.mxu0 0.0
        %5420 = vmatpush1.xpose.msra.mxu0 0.0
        %5421 = vmatprep.subr.mxu0 0.0
        %5422 = vmatpush1.xpose.msra.mxu0 0.0
        %5423 = vmatprep.subr.mxu0 0.0
        %5424 = vmatpush1.xpose.msra.mxu0 0.0
        %5425 = vmatprep.subr.mxu0 0.0
        %5426 = vmatpush1.xpose.msra.mxu0 0.0
        %5427 = vmatprep.subr.mxu0 0.0
        %5428 = vmatpush1.xpose.msra.mxu0 0.0
        %5429 = vmatprep.subr.mxu0 0.0
        %5430 = vmatpush1.xpose.msra.mxu0 0.0
        %5431 = vmatprep.subr.mxu0 0.0
        %5432 = vmatpush1.xpose.msra.mxu0 0.0
        %5433 = vmatprep.subr.mxu0 0.0
        %5434 = vmatpush1.xpose.msra.mxu0 0.0
        %5435 = vmatprep.subr.mxu0 0.0
        %5436 = vmatpush1.xpose.msra.mxu0 0.0
        %5437 = vmatprep.subr.mxu0 0.0
        %5438 = vmatpush1.xpose.msra.mxu0 %v4839
        %5439 = vmatprep.subr.mxu0 0.0
        %5440 = vmatpush1.xpose.msra.mxu0 %v4837
        %5441 = vmatprep.subr.mxu0 0.0
        %5442 = vmatpush2.xpose.msra.mxu0 0.0
        %5443 = vmatprep.subr.mxu0 0.0
        %5444 = vmatpush2.xpose.msra.mxu0 0.0
        %5445 = vmatprep.subr.mxu0 0.0
        %5446 = vmatpush2.xpose.msra.mxu0 0.0
        %5447 = vmatprep.subr.mxu0 0.0
        %5448 = vmatpush2.xpose.msra.mxu0 0.0
        %5449 = vmatprep.subr.mxu0 0.0
        %5450 = vmatpush2.xpose.msra.mxu0 0.0
        %5451 = vmatprep.subr.mxu0 0.0
        %5452 = vmatpush2.xpose.msra.mxu0 0.0
        %5453 = vmatprep.subr.mxu0 0.0
        %5454 = vmatpush2.xpose.msra.mxu0 0.0
        %5455 = vmatprep.subr.mxu0 0.0
        %5456 = vmatpush2.xpose.msra.mxu0 0.0
        %5457 = vmatprep.subr.mxu0 0.0
        %5458 = vmatpush2.xpose.msra.mxu0 0.0
        %5459 = vmatprep.subr.mxu0 0.0
        %5460 = vmatpush2.xpose.msra.mxu0 0.0
        %5461 = vmatprep.subr.mxu0 0.0
        %5462 = vmatpush2.xpose.msra.mxu0 0.0
        %5463 = vmatprep.subr.mxu0 0.0
        %5464 = vmatpush2.xpose.msra.mxu0 0.0
        %5465 = vmatprep.subr.mxu0 0.0
        %5466 = vmatpush2.xpose.msra.mxu0 0.0
        %5467 = vmatprep.subr.mxu0 0.0
        %5468 = vmatpush2.xpose.msra.mxu0 0.0
        %5469 = vmatprep.subr.mxu0 0.0
        %5470 = vmatpush2.xpose.msra.mxu0 0.0
        %5471 = vmatprep.subr.mxu0 0.0
        %5472 = vmatpush2.xpose.msra.mxu0 0.0
        %5473 = vmatprep.mubr.f32.mxu0 0.0
        %5474 = vmatmul.mubr.f32.gmra.mxu0 %v5407
        %v5475 = vpop.f32.mrf.mxu0
        %v5476 = vadd.f32 0.0, %v5475
        %v5477 = vpop.f32.mrf.mxu0
        %5478 = vmatprep.mubr.f32.mxu0 0.0
        %5479 = vmatmul.mubr.f32.gmra.mxu0 %v5408
        %v5480 = vpop.f32.mrf.mxu0
        %v5481 = vadd.f32 0.0, %v5480
        %v5482 = vpop.f32.mrf.mxu0
        %5483 = vdwg.mxu0
        %v5484 = vmul.f32 %v5476, 0.35355338
        %v5485 = vmul.f32 %v5481, 0.35355338
        %v5486 = vsel %vm999, %v5484, -inf
        %5487 = vmax.xlane.f32.xlu0 %v5486
        %v5488 = vpop.xlane.xlu0 %5487
        %v5489 = vsel %vm1003, %v5485, -inf
        %5490 = vmax.xlane.f32.xlu0 %v5489
        %v5491 = vpop.xlane.xlu0 %5490
        %v5492 = vsub.f32 %v5484, %v5488
        %v5493 = vsub.f32 %v5485, %v5491
        %v5494 = vmul.f32 %v5492, 1.442695
        %v5495 = vpow.pop %v5494
        %v5496 = vmul.f32 %v5493, 1.442695
        %v5497 = vpow.pop %v5496
        %v5498 = vsel %vm999, %v5495, 0.0
        %5499 = vadd.xlane.f32.xlu0 %v5498
        %v5500 = vpop.xlane.xlu0 %5499
        %v5501 = vsel %vm1003, %v5497, 0.0
        %5502 = vadd.xlane.f32.xlu0 %v5501
        %v5503 = vpop.xlane.xlu0 %5502
        %v5504 = vrcp.pop %v5500
        %v5505 = vrcp.pop %v5503
        %v5506 = vmul.f32 %v5495, %v5504
        %v5507 = vmul.f32 %v5497, %v5505
        %v5508 = vmul.f32 %v4841, %v680
        %v5509 = vmul.f32 %v4843, %v680
        %v5511 = vsel %vm999, %v5506, 0
        %v5514 = vsel %vm999, %v5507, 0
        %v5517 = vsel %vm1134, %v5509, 0
        %5519 = vmatprep.subr.mxu0 0.0
        %5520 = vmatpush1.msra.mxu0 0.0
        %5521 = vmatprep.subr.mxu0 0.0
        %5522 = vmatpush1.msra.mxu0 0.0
        %5523 = vmatprep.subr.mxu0 0.0
        %5524 = vmatpush1.msra.mxu0 0.0
        %5525 = vmatprep.subr.mxu0 0.0
        %5526 = vmatpush1.msra.mxu0 0.0
        %5527 = vmatprep.subr.mxu0 0.0
        %5528 = vmatpush1.msra.mxu0 0.0
        %5529 = vmatprep.subr.mxu0 0.0
        %5530 = vmatpush1.msra.mxu0 0.0
        %5531 = vmatprep.subr.mxu0 0.0
        %5532 = vmatpush1.msra.mxu0 0.0
        %5533 = vmatprep.subr.mxu0 0.0
        %5534 = vmatpush1.msra.mxu0 0.0
        %5535 = vmatprep.subr.mxu0 0.0
        %5536 = vmatpush1.msra.mxu0 0.0
        %5537 = vmatprep.subr.mxu0 0.0
        %5538 = vmatpush1.msra.mxu0 0.0
        %5539 = vmatprep.subr.mxu0 0.0
        %5540 = vmatpush1.msra.mxu0 0.0
        %5541 = vmatprep.subr.mxu0 0.0
        %5542 = vmatpush1.msra.mxu0 0.0
        %5543 = vmatprep.subr.mxu0 0.0
        %5544 = vmatpush1.msra.mxu0 0.0
        %5545 = vmatprep.subr.mxu0 0.0
        %5546 = vmatpush1.msra.mxu0 0.0
        %5547 = vmatprep.subr.mxu0 0.0
        %5548 = vmatpush1.msra.mxu0 %v5517
        %5549 = vmatprep.subr.mxu0 0.0
        %5550 = vmatpush1.msra.mxu0 %v5508
        %5551 = vmatprep.subr.mxu0 0.0
        %5552 = vmatpush2.msra.mxu0 0.0
        %5553 = vmatprep.subr.mxu0 0.0
        %5554 = vmatpush2.msra.mxu0 0.0
        %5555 = vmatprep.subr.mxu0 0.0
        %5556 = vmatpush2.msra.mxu0 0.0
        %5557 = vmatprep.subr.mxu0 0.0
        %5558 = vmatpush2.msra.mxu0 0.0
        %5559 = vmatprep.subr.mxu0 0.0
        %5560 = vmatpush2.msra.mxu0 0.0
        %5561 = vmatprep.subr.mxu0 0.0
        %5562 = vmatpush2.msra.mxu0 0.0
        %5563 = vmatprep.subr.mxu0 0.0
        %5564 = vmatpush2.msra.mxu0 0.0
        %5565 = vmatprep.subr.mxu0 0.0
        %5566 = vmatpush2.msra.mxu0 0.0
        %5567 = vmatprep.subr.mxu0 0.0
        %5568 = vmatpush2.msra.mxu0 0.0
        %5569 = vmatprep.subr.mxu0 0.0
        %5570 = vmatpush2.msra.mxu0 0.0
        %5571 = vmatprep.subr.mxu0 0.0
        %5572 = vmatpush2.msra.mxu0 0.0
        %5573 = vmatprep.subr.mxu0 0.0
        %5574 = vmatpush2.msra.mxu0 0.0
        %5575 = vmatprep.subr.mxu0 0.0
        %5576 = vmatpush2.msra.mxu0 0.0
        %5577 = vmatprep.subr.mxu0 0.0
        %5578 = vmatpush2.msra.mxu0 0.0
        %5579 = vmatprep.subr.mxu0 0.0
        %5580 = vmatpush2.msra.mxu0 0.0
        %5581 = vmatprep.subr.mxu0 0.0
        %5582 = vmatpush2.msra.mxu0 0.0
        %5583 = vmatprep.mubr.f32.mxu0 0.0
        %5584 = vmatmul.mubr.f32.gmra.mxu0 %v5511
        %v5585 = vpop.f32.mrf.mxu0
        %v5586 = vadd.f32 0.0, %v5585
        %v5587 = vpop.f32.mrf.mxu0
        %5588 = vmatprep.mubr.f32.mxu0 0.0
        %5589 = vmatmul.mubr.f32.gmra.mxu0 %v5514
        %v5590 = vpop.f32.mrf.mxu0
        %v5591 = vadd.f32 0.0, %v5590
        %v5592 = vpop.f32.mrf.mxu0
        %5593 = vdwg.mxu0
        %v5594 = vadd.f32 %v5405, %v5586
        %v5595 = vadd.f32 %v5406, %v5591
        %s5596 = scalar_lea.vmem [#allocation8], 192
        %v5597 = vld [vmem:[%s5596] sm:$0xf]
        %v5598 = vld [vmem:[%s5596 + $0x4] sm:$0xf]
        %v5599 = vld [vmem:[%s5596 + $0x8] sm:$0xf]
        %v5600 = vld [vmem:[%s5596 + $0xc] sm:$0xf]
        %v5601 = vld [vmem:[%s5596 + $0x10] sm:$0xf]
        %v5602 = vld [vmem:[%s5596 + $0x14] sm:$0xf]
        %v5603 = vld [vmem:[%s5596 + $0x18] sm:$0xf]
        %v5604 = vld [vmem:[%s5596 + $0x1c] sm:$0xf]
        %v5605 = vld [vmem:[%s5596 + $0x20] sm:$0xf]
        %v5606 = vld [vmem:[%s5596 + $0x24] sm:$0xf]
        %v5607 = vld [vmem:[%s5596 + $0x28] sm:$0xf]
        %v5608 = vld [vmem:[%s5596 + $0x2c] sm:$0xf]
        %v5609 = vld [vmem:[%s5596 + $0x30] sm:$0xf]
        %v5610 = vld [vmem:[%s5596 + $0x34] sm:$0xf]
        %v5611 = vld [vmem:[%s5596 + $0x38] sm:$0xf]
        %v5612 = vld [vmem:[%s5596 + $0x3c] sm:$0xf]
        %v5613 = vunpack.c.l.bf16 %v5597
        %v5614 = vunpack.c.l.bf16 %v5598
        %v5615 = vunpack.c.l.bf16 %v5599
        %v5616 = vunpack.c.l.bf16 %v5600
        %v5617 = vunpack.c.l.bf16 %v5601
        %v5618 = vunpack.c.l.bf16 %v5602
        %v5619 = vunpack.c.l.bf16 %v5603
        %v5620 = vunpack.c.l.bf16 %v5604
        %v5621 = vunpack.c.l.bf16 %v5605
        %v5622 = vunpack.c.l.bf16 %v5606
        %v5623 = vunpack.c.l.bf16 %v5607
        %v5624 = vunpack.c.l.bf16 %v5608
        %v5625 = vunpack.c.l.bf16 %v5609
        %v5626 = vunpack.c.l.bf16 %v5610
        %v5627 = vunpack.c.l.bf16 %v5611
        %v5628 = vunpack.c.l.bf16 %v5612
        %v5629 = vlaneseq
        %v5630 = vshrl.u32 %v5629, 7
        %v5631 = vsub.s32 1, %v5630
        %v5632 = vrot.slane %v4723, %v5631
        %5633 = vmatprep.subr.mxu0 0.0
        %5634 = vmatpush1.msra.mxu0 %v5628
        %5635 = vmatprep.subr.mxu0 0.0
        %5636 = vmatpush1.msra.mxu0 %v5627
        %5637 = vmatprep.subr.mxu0 0.0
        %5638 = vmatpush1.msra.mxu0 %v5626
        %5639 = vmatprep.subr.mxu0 0.0
        %5640 = vmatpush1.msra.mxu0 %v5625
        %5641 = vmatprep.subr.mxu0 0.0
        %5642 = vmatpush1.msra.mxu0 %v5624
        %5643 = vmatprep.subr.mxu0 0.0
        %5644 = vmatpush1.msra.mxu0 %v5623
        %5645 = vmatprep.subr.mxu0 0.0
        %5646 = vmatpush1.msra.mxu0 %v5622
        %5647 = vmatprep.subr.mxu0 0.0
        %5648 = vmatpush1.msra.mxu0 %v5621
        %5649 = vmatprep.subr.mxu0 0.0
        %5650 = vmatpush1.msra.mxu0 %v5620
        %5651 = vmatprep.subr.mxu0 0.0
        %5652 = vmatpush1.msra.mxu0 %v5619
        %5653 = vmatprep.subr.mxu0 0.0
        %5654 = vmatpush1.msra.mxu0 %v5618
        %5655 = vmatprep.subr.mxu0 0.0
        %5656 = vmatpush1.msra.mxu0 %v5617
        %5657 = vmatprep.subr.mxu0 0.0
        %5658 = vmatpush1.msra.mxu0 %v5616
        %5659 = vmatprep.subr.mxu0 0.0
        %5660 = vmatpush1.msra.mxu0 %v5615
        %5661 = vmatprep.subr.mxu0 0.0
        %5662 = vmatpush1.msra.mxu0 %v5614
        %5663 = vmatprep.subr.mxu0 0.0
        %5664 = vmatpush1.msra.mxu0 %v5613
        %5665 = vmatprep.subr.mxu0 0.0
        %5666 = vmatpush2.msra.mxu0 0.0
        %5667 = vmatprep.subr.mxu0 0.0
        %5668 = vmatpush2.msra.mxu0 0.0
        %5669 = vmatprep.subr.mxu0 0.0
        %5670 = vmatpush2.msra.mxu0 0.0
        %5671 = vmatprep.subr.mxu0 0.0
        %5672 = vmatpush2.msra.mxu0 0.0
        %5673 = vmatprep.subr.mxu0 0.0
        %5674 = vmatpush2.msra.mxu0 0.0
        %5675 = vmatprep.subr.mxu0 0.0
        %5676 = vmatpush2.msra.mxu0 0.0
        %5677 = vmatprep.subr.mxu0 0.0
        %5678 = vmatpush2.msra.mxu0 0.0
        %5679 = vmatprep.subr.mxu0 0.0
        %5680 = vmatpush2.msra.mxu0 0.0
        %5681 = vmatprep.subr.mxu0 0.0
        %5682 = vmatpush2.msra.mxu0 0.0
        %5683 = vmatprep.subr.mxu0 0.0
        %5684 = vmatpush2.msra.mxu0 0.0
        %5685 = vmatprep.subr.mxu0 0.0
        %5686 = vmatpush2.msra.mxu0 0.0
        %5687 = vmatprep.subr.mxu0 0.0
        %5688 = vmatpush2.msra.mxu0 0.0
        %5689 = vmatprep.subr.mxu0 0.0
        %5690 = vmatpush2.msra.mxu0 0.0
        %5691 = vmatprep.subr.mxu0 0.0
        %5692 = vmatpush2.msra.mxu0 0.0
        %5693 = vmatprep.subr.mxu0 0.0
        %5694 = vmatpush2.msra.mxu0 0.0
        %5695 = vmatprep.subr.mxu0 0.0
        %5696 = vmatpush2.msra.mxu0 0.0
        %5697 = vmatprep.mubr.f32.mxu0 0.0
        %5698 = vmatmul.mubr.f32.gmra.mxu0 %v5594
        %v5699 = vpop.f32.mrf.mxu0
        %v5700 = vadd.f32 %v5632, %v5699
        %v5701 = vpop.f32.mrf.mxu0
        %5702 = vmatprep.mubr.f32.mxu0 0.0
        %5703 = vmatmul.mubr.f32.gmra.mxu0 %v5595
        %v5704 = vpop.f32.mrf.mxu0
        %v5705 = vadd.f32 %v5632, %v5704
        %v5706 = vpop.f32.mrf.mxu0
        %5707 = vdwg.mxu0
        %v5708 = vadd.f32 %v4720, %v5700
        %v5709 = vadd.f32 %v4721, %v5705
        %5710 = vadd.xlane.f32.xlu0 %v5708
        %v5711 = vpop.xlane.xlu0 %5710
        %v5712 = vsel %vm1134, %v5709, 0.0
        %5713 = vadd.xlane.f32.xlu0 %v5712
        %v5714 = vpop.xlane.xlu0 %5713
        %v5715 = vmul.f32 %v5711, 0.03125
        %v5716 = vmul.f32 %v5714, 0.03125
        %v5717 = vsub.f32 %v5708, %v5715
        %v5718 = vsub.f32 %v5709, %v5716
        %v5719 = vmul.f32 %v5717, %v661
        %v5720 = vmul.f32 %v5718, %v661
        %v5721 = vmul.f32 %v5719, %v5719
        %v5722 = vmul.f32 %v5720, %v5720
        %5723 = vadd.xlane.f32.xlu0 %v5721
        %v5724 = vpop.xlane.xlu0 %5723
        %v5725 = vsel %vm1134, %v5722, 0.0
        %5726 = vadd.xlane.f32.xlu0 %v5725
        %v5727 = vpop.xlane.xlu0 %5726
        %v5728 = vmul.f32 %v5724, 0.03125
        %v5729 = vmul.f32 %v5727, 0.03125
        %v5730 = vadd.f32 %v5728, 1e-05
        %v5731 = vadd.f32 %v5729, 1e-05
        %v5732 = vrsqrt.pop %v5730
        %v5733 = vrsqrt.pop %v5731
        %v5734 = vmul.f32 %v5719, %v5732
        %v5735 = vmul.f32 %v5720, %v5733
        %v5736 = vlaneseq
        %v5737 = vshrl.u32 %v5736, 7
        %v5738 = vsub.s32 4, %v5737
        %v5739 = vrot.slane %v4723, %v5738
        %v5740 = vmul.f32 %v5734, %v5739
        %v5741 = vmul.f32 %v5735, %v5739
        %v5742 = vlaneseq
        %v5743 = vshrl.u32 %v5742, 7
        %v5744 = vsub.s32 5, %v5743
        %v5745 = vrot.slane %v4723, %v5744
        %v5746 = vadd.f32 %v5740, %v5745
        %v5747 = vadd.f32 %v5741, %v5745
        %s5748 = scalar_lea.vmem [#allocation9], 192
        %v5749 = vld [vmem:[%s5748] sm:$0xf]
        %v5750 = vld [vmem:[%s5748 + $0x4] sm:$0xf]
        %v5751 = vld [vmem:[%s5748 + $0x8] sm:$0xf]
        %v5752 = vld [vmem:[%s5748 + $0xc] sm:$0xf]
        %v5753 = vld [vmem:[%s5748 + $0x10] sm:$0xf]
        %v5754 = vld [vmem:[%s5748 + $0x14] sm:$0xf]
        %v5755 = vld [vmem:[%s5748 + $0x18] sm:$0xf]
        %v5756 = vld [vmem:[%s5748 + $0x1c] sm:$0xf]
        %v5757 = vld [vmem:[%s5748 + $0x20] sm:$0xf]
        %v5758 = vld [vmem:[%s5748 + $0x24] sm:$0xf]
        %v5759 = vld [vmem:[%s5748 + $0x28] sm:$0xf]
        %v5760 = vld [vmem:[%s5748 + $0x2c] sm:$0xf]
        %v5761 = vld [vmem:[%s5748 + $0x30] sm:$0xf]
        %v5762 = vld [vmem:[%s5748 + $0x34] sm:$0xf]
        %v5763 = vld [vmem:[%s5748 + $0x38] sm:$0xf]
        %v5764 = vld [vmem:[%s5748 + $0x3c] sm:$0xf]
        %v5765 = vunpack.c.l.bf16 %v5749
        %v5766 = vunpack.c.l.bf16 %v5750
        %v5767 = vunpack.c.l.bf16 %v5751
        %v5768 = vunpack.c.l.bf16 %v5752
        %v5769 = vunpack.c.l.bf16 %v5753
        %v5770 = vunpack.c.l.bf16 %v5754
        %v5771 = vunpack.c.l.bf16 %v5755
        %v5772 = vunpack.c.l.bf16 %v5756
        %v5773 = vunpack.c.l.bf16 %v5757
        %v5774 = vunpack.c.l.bf16 %v5758
        %v5775 = vunpack.c.l.bf16 %v5759
        %v5776 = vunpack.c.l.bf16 %v5760
        %v5777 = vunpack.c.l.bf16 %v5761
        %v5778 = vunpack.c.l.bf16 %v5762
        %v5779 = vunpack.c.l.bf16 %v5763
        %v5780 = vunpack.c.l.bf16 %v5764
        %v5781 = vlaneseq
        %v5782 = vshrl.u32 %v5781, 7
        %v5783 = vsub.s32 2, %v5782
        %v5784 = vrot.slane %v4723, %v5783
        %5785 = vmatprep.subr.mxu0 0.0
        %5786 = vmatpush1.msra.mxu0 %v5780
        %5787 = vmatprep.subr.mxu0 0.0
        %5788 = vmatpush1.msra.mxu0 %v5779
        %5789 = vmatprep.subr.mxu0 0.0
        %5790 = vmatpush1.msra.mxu0 %v5778
        %5791 = vmatprep.subr.mxu0 0.0
        %5792 = vmatpush1.msra.mxu0 %v5777
        %5793 = vmatprep.subr.mxu0 0.0
        %5794 = vmatpush1.msra.mxu0 %v5776
        %5795 = vmatprep.subr.mxu0 0.0
        %5796 = vmatpush1.msra.mxu0 %v5775
        %5797 = vmatprep.subr.mxu0 0.0
        %5798 = vmatpush1.msra.mxu0 %v5774
        %5799 = vmatprep.subr.mxu0 0.0
        %5800 = vmatpush1.msra.mxu0 %v5773
        %5801 = vmatprep.subr.mxu0 0.0
        %5802 = vmatpush1.msra.mxu0 %v5772
        %5803 = vmatprep.subr.mxu0 0.0
        %5804 = vmatpush1.msra.mxu0 %v5771
        %5805 = vmatprep.subr.mxu0 0.0
        %5806 = vmatpush1.msra.mxu0 %v5770
        %5807 = vmatprep.subr.mxu0 0.0
        %5808 = vmatpush1.msra.mxu0 %v5769
        %5809 = vmatprep.subr.mxu0 0.0
        %5810 = vmatpush1.msra.mxu0 %v5768
        %5811 = vmatprep.subr.mxu0 0.0
        %5812 = vmatpush1.msra.mxu0 %v5767
        %5813 = vmatprep.subr.mxu0 0.0
        %5814 = vmatpush1.msra.mxu0 %v5766
        %5815 = vmatprep.subr.mxu0 0.0
        %5816 = vmatpush1.msra.mxu0 %v5765
        %5817 = vmatprep.subr.mxu0 0.0
        %5818 = vmatpush2.msra.mxu0 0.0
        %5819 = vmatprep.subr.mxu0 0.0
        %5820 = vmatpush2.msra.mxu0 0.0
        %5821 = vmatprep.subr.mxu0 0.0
        %5822 = vmatpush2.msra.mxu0 0.0
        %5823 = vmatprep.subr.mxu0 0.0
        %5824 = vmatpush2.msra.mxu0 0.0
        %5825 = vmatprep.subr.mxu0 0.0
        %5826 = vmatpush2.msra.mxu0 0.0
        %5827 = vmatprep.subr.mxu0 0.0
        %5828 = vmatpush2.msra.mxu0 0.0
        %5829 = vmatprep.subr.mxu0 0.0
        %5830 = vmatpush2.msra.mxu0 0.0
        %5831 = vmatprep.subr.mxu0 0.0
        %5832 = vmatpush2.msra.mxu0 0.0
        %5833 = vmatprep.subr.mxu0 0.0
        %5834 = vmatpush2.msra.mxu0 0.0
        %5835 = vmatprep.subr.mxu0 0.0
        %5836 = vmatpush2.msra.mxu0 0.0
        %5837 = vmatprep.subr.mxu0 0.0
        %5838 = vmatpush2.msra.mxu0 0.0
        %5839 = vmatprep.subr.mxu0 0.0
        %5840 = vmatpush2.msra.mxu0 0.0
        %5841 = vmatprep.subr.mxu0 0.0
        %5842 = vmatpush2.msra.mxu0 0.0
        %5843 = vmatprep.subr.mxu0 0.0
        %5844 = vmatpush2.msra.mxu0 0.0
        %5845 = vmatprep.subr.mxu0 0.0
        %5846 = vmatpush2.msra.mxu0 0.0
        %5847 = vmatprep.subr.mxu0 0.0
        %5848 = vmatpush2.msra.mxu0 0.0
        %5849 = vmatprep.mubr.f32.mxu0 0.0
        %5850 = vmatmul.mubr.f32.gmra.mxu0 %v5746
        %v5851 = vpop.f32.mrf.mxu0
        %v5852 = vadd.f32 %v5784, %v5851
        %v5853 = vpop.f32.mrf.mxu0
        %5854 = vmatprep.mubr.f32.mxu0 0.0
        %5855 = vmatmul.mubr.f32.gmra.mxu0 %v5747
        %v5856 = vpop.f32.mrf.mxu0
        %v5857 = vadd.f32 %v5784, %v5856
        %v5858 = vpop.f32.mrf.mxu0
        %5859 = vdwg.mxu0
        %v5860 = vmul.f32 %v5852, 0.5
        %v5861 = vmul.f32 %v5857, 0.5
        %v5862 = vmul.f32 %v5852, 0.044715
        %v5863 = vmul.f32 %v5857, 0.044715
        %v5864 = vmul.f32 %v5862, %v5852
        %v5865 = vmul.f32 %v5863, %v5857
        %v5866 = vmul.f32 %v5864, %v5852
        %v5867 = vmul.f32 %v5865, %v5857
        %v5868 = vadd.f32 %v5852, %v5866
        %v5869 = vadd.f32 %v5857, %v5867
        %v5870 = vmul.f32 %v5868, 0.7978846
        %v5871 = vmul.f32 %v5869, 0.7978846
        %v5872 = vtanh.pop %v5870
        %v5873 = vtanh.pop %v5871
        %v5874 = vadd.f32 %v5872, 1.0
        %v5875 = vadd.f32 %v5873, 1.0
        %v5876 = vmul.f32 %v5860, %v5874
        %v5877 = vmul.f32 %v5861, %v5875
        %s5878 = scalar_lea.vmem [#allocation11], 192
        %v5879 = vld [vmem:[%s5878] sm:$0xf]
        %v5880 = vld [vmem:[%s5878 + $0x4] sm:$0xf]
        %v5881 = vld [vmem:[%s5878 + $0x8] sm:$0xf]
        %v5882 = vld [vmem:[%s5878 + $0xc] sm:$0xf]
        %v5883 = vld [vmem:[%s5878 + $0x10] sm:$0xf]
        %v5884 = vld [vmem:[%s5878 + $0x14] sm:$0xf]
        %v5885 = vld [vmem:[%s5878 + $0x18] sm:$0xf]
        %v5886 = vld [vmem:[%s5878 + $0x1c] sm:$0xf]
        %v5887 = vld [vmem:[%s5878 + $0x20] sm:$0xf]
        %v5888 = vld [vmem:[%s5878 + $0x24] sm:$0xf]
        %v5889 = vld [vmem:[%s5878 + $0x28] sm:$0xf]
        %v5890 = vld [vmem:[%s5878 + $0x2c] sm:$0xf]
        %v5891 = vld [vmem:[%s5878 + $0x30] sm:$0xf]
        %v5892 = vld [vmem:[%s5878 + $0x34] sm:$0xf]
        %v5893 = vld [vmem:[%s5878 + $0x38] sm:$0xf]
        %v5894 = vld [vmem:[%s5878 + $0x3c] sm:$0xf]
        %v5895 = vunpack.c.l.bf16 %v5879
        %v5896 = vunpack.c.l.bf16 %v5880
        %v5897 = vunpack.c.l.bf16 %v5881
        %v5898 = vunpack.c.l.bf16 %v5882
        %v5899 = vunpack.c.l.bf16 %v5883
        %v5900 = vunpack.c.l.bf16 %v5884
        %v5901 = vunpack.c.l.bf16 %v5885
        %v5902 = vunpack.c.l.bf16 %v5886
        %v5903 = vunpack.c.l.bf16 %v5887
        %v5904 = vunpack.c.l.bf16 %v5888
        %v5905 = vunpack.c.l.bf16 %v5889
        %v5906 = vunpack.c.l.bf16 %v5890
        %v5907 = vunpack.c.l.bf16 %v5891
        %v5908 = vunpack.c.l.bf16 %v5892
        %v5909 = vunpack.c.l.bf16 %v5893
        %v5910 = vunpack.c.l.bf16 %v5894
        %v5911 = vlaneseq
        %v5912 = vshrl.u32 %v5911, 7
        %v5913 = vsub.s32 3, %v5912
        %v5914 = vrot.slane %v4723, %v5913
        %5915 = vmatprep.subr.mxu0 0.0
        %5916 = vmatpush1.msra.mxu0 %v5910
        %5917 = vmatprep.subr.mxu0 0.0
        %5918 = vmatpush1.msra.mxu0 %v5909
        %5919 = vmatprep.subr.mxu0 0.0
        %5920 = vmatpush1.msra.mxu0 %v5908
        %5921 = vmatprep.subr.mxu0 0.0
        %5922 = vmatpush1.msra.mxu0 %v5907
        %5923 = vmatprep.subr.mxu0 0.0
        %5924 = vmatpush1.msra.mxu0 %v5906
        %5925 = vmatprep.subr.mxu0 0.0
        %5926 = vmatpush1.msra.mxu0 %v5905
        %5927 = vmatprep.subr.mxu0 0.0
        %5928 = vmatpush1.msra.mxu0 %v5904
        %5929 = vmatprep.subr.mxu0 0.0
        %5930 = vmatpush1.msra.mxu0 %v5903
        %5931 = vmatprep.subr.mxu0 0.0
        %5932 = vmatpush1.msra.mxu0 %v5902
        %5933 = vmatprep.subr.mxu0 0.0
        %5934 = vmatpush1.msra.mxu0 %v5901
        %5935 = vmatprep.subr.mxu0 0.0
        %5936 = vmatpush1.msra.mxu0 %v5900
        %5937 = vmatprep.subr.mxu0 0.0
        %5938 = vmatpush1.msra.mxu0 %v5899
        %5939 = vmatprep.subr.mxu0 0.0
        %5940 = vmatpush1.msra.mxu0 %v5898
        %5941 = vmatprep.subr.mxu0 0.0
        %5942 = vmatpush1.msra.mxu0 %v5897
        %5943 = vmatprep.subr.mxu0 0.0
        %5944 = vmatpush1.msra.mxu0 %v5896
        %5945 = vmatprep.subr.mxu0 0.0
        %5946 = vmatpush1.msra.mxu0 %v5895
        %5947 = vmatprep.subr.mxu0 0.0
        %5948 = vmatpush2.msra.mxu0 0.0
        %5949 = vmatprep.subr.mxu0 0.0
        %5950 = vmatpush2.msra.mxu0 0.0
        %5951 = vmatprep.subr.mxu0 0.0
        %5952 = vmatpush2.msra.mxu0 0.0
        %5953 = vmatprep.subr.mxu0 0.0
        %5954 = vmatpush2.msra.mxu0 0.0
        %5955 = vmatprep.subr.mxu0 0.0
        %5956 = vmatpush2.msra.mxu0 0.0
        %5957 = vmatprep.subr.mxu0 0.0
        %5958 = vmatpush2.msra.mxu0 0.0
        %5959 = vmatprep.subr.mxu0 0.0
        %5960 = vmatpush2.msra.mxu0 0.0
        %5961 = vmatprep.subr.mxu0 0.0
        %5962 = vmatpush2.msra.mxu0 0.0
        %5963 = vmatprep.subr.mxu0 0.0
        %5964 = vmatpush2.msra.mxu0 0.0
        %5965 = vmatprep.subr.mxu0 0.0
        %5966 = vmatpush2.msra.mxu0 0.0
        %5967 = vmatprep.subr.mxu0 0.0
        %5968 = vmatpush2.msra.mxu0 0.0
        %5969 = vmatprep.subr.mxu0 0.0
        %5970 = vmatpush2.msra.mxu0 0.0
        %5971 = vmatprep.subr.mxu0 0.0
        %5972 = vmatpush2.msra.mxu0 0.0
        %5973 = vmatprep.subr.mxu0 0.0
        %5974 = vmatpush2.msra.mxu0 0.0
        %5975 = vmatprep.subr.mxu0 0.0
        %5976 = vmatpush2.msra.mxu0 0.0
        %5977 = vmatprep.subr.mxu0 0.0
        %5978 = vmatpush2.msra.mxu0 0.0
        %5979 = vmatprep.mubr.f32.mxu0 0.0
        %5980 = vmatmul.mubr.f32.gmra.mxu0 %v5876
        %v5981 = vpop.f32.mrf.mxu0
        %v5982 = vadd.f32 %v5914, %v5981
        %v5983 = vpop.f32.mrf.mxu0
        %5984 = vmatprep.mubr.f32.mxu0 0.0
        %5985 = vmatmul.mubr.f32.gmra.mxu0 %v5877
        %v5986 = vpop.f32.mrf.mxu0
        %v5987 = vpop.f32.mrf.mxu0
        %5988 = vdwg.mxu0
        %v5989 = vadd.f32 %v5746, %v5982
        %5990 = vadd.xlane.f32.xlu0 %v5989
        %v5991 = vpop.xlane.xlu0 %5990
        %v5992 = vmul.f32 %v5991, 0.03125
        %v5993 = vsub.f32 %v5989, %v5992
        %v5994 = vmul.f32 %v5993, %v661
        %v5995 = vmul.f32 %v5994, %v5994
        %5996 = vadd.xlane.f32.xlu0 %v5995
        %v5997 = vpop.xlane.xlu0 %5996
        %v5998 = vmul.f32 %v5997, 0.03125
        %v5999 = vadd.f32 %v5998, 1e-05
        %v6000 = vrsqrt.pop %v5999
        %v6001 = vmul.f32 %v5994, %v6000
        %v6002 = vlaneseq
        %v6003 = vshrl.u32 %v6002, 7
        %v6004 = vsub.s32 6, %v6003
        %v6005 = vrot.slane %v4723, %v6004
        %v6006 = vmul.f32 %v6001, %v6005
        %v6007 = vlaneseq
        %v6008 = vshrl.u32 %v6007, 7
        %v6009 = vsub.s32 7, %v6008
        %v6010 = vrot.slane %v4723, %v6009
        %v6011 = vadd.f32 %v6006, %v6010
        %v6012 = vld [vmem:[#allocation14] sm:$0xf]
        %v6013 = vld [vmem:[#allocation14 + $0x4] sm:$0xf]
        %v6014 = vld [vmem:[#allocation14 + $0x8] sm:$0xf]
        %v6015 = vld [vmem:[#allocation14 + $0xc] sm:$0xf]
        %v6016 = vld [vmem:[#allocation14 + $0x10] sm:$0xf]
        %v6017 = vld [vmem:[#allocation14 + $0x14] sm:$0xf]
        %v6018 = vld [vmem:[#allocation14 + $0x18] sm:$0xf]
        %v6019 = vld [vmem:[#allocation14 + $0x1c] sm:$0xf]
        %v6020 = vld [vmem:[#allocation14 + $0x20] sm:$0xf]
        %v6021 = vld [vmem:[#allocation14 + $0x24] sm:$0xf]
        %v6022 = vld [vmem:[#allocation14 + $0x28] sm:$0xf]
        %v6023 = vld [vmem:[#allocation14 + $0x2c] sm:$0xf]
        %v6024 = vld [vmem:[#allocation14 + $0x30] sm:$0xf]
        %v6025 = vld [vmem:[#allocation14 + $0x34] sm:$0xf]
        %v6026 = vld [vmem:[#allocation14 + $0x38] sm:$0xf]
        %v6027 = vld [vmem:[#allocation14 + $0x3c] sm:$0xf]
        %v6028 = vunpack.c.l.bf16 %v6012
        %v6029 = vunpack.c.l.bf16 %v6013
        %v6030 = vunpack.c.l.bf16 %v6014
        %v6031 = vunpack.c.l.bf16 %v6015
        %v6032 = vunpack.c.l.bf16 %v6016
        %v6033 = vunpack.c.l.bf16 %v6017
        %v6034 = vunpack.c.l.bf16 %v6018
        %v6035 = vunpack.c.l.bf16 %v6019
        %v6036 = vunpack.c.l.bf16 %v6020
        %v6037 = vunpack.c.l.bf16 %v6021
        %v6038 = vunpack.c.l.bf16 %v6022
        %v6039 = vunpack.c.l.bf16 %v6023
        %v6040 = vunpack.c.l.bf16 %v6024
        %v6041 = vunpack.c.l.bf16 %v6025
        %v6042 = vunpack.c.l.bf16 %v6026
        %v6043 = vunpack.c.l.bf16 %v6027
        %v6044 = vld [vmem:[%s12] sm:$0x1]
        %6045 = vmatprep.subr.mxu0 0.0
        %6046 = vmatpush1.msra.mxu0 %v6043
        %6047 = vmatprep.subr.mxu0 0.0
        %6048 = vmatpush1.msra.mxu0 %v6042
        %6049 = vmatprep.subr.mxu0 0.0
        %6050 = vmatpush1.msra.mxu0 %v6041
        %6051 = vmatprep.subr.mxu0 0.0
        %6052 = vmatpush1.msra.mxu0 %v6040
        %6053 = vmatprep.subr.mxu0 0.0
        %6054 = vmatpush1.msra.mxu0 %v6039
        %6055 = vmatprep.subr.mxu0 0.0
        %6056 = vmatpush1.msra.mxu0 %v6038
        %6057 = vmatprep.subr.mxu0 0.0
        %6058 = vmatpush1.msra.mxu0 %v6037
        %6059 = vmatprep.subr.mxu0 0.0
        %6060 = vmatpush1.msra.mxu0 %v6036
        %6061 = vmatprep.subr.mxu0 0.0
        %6062 = vmatpush1.msra.mxu0 %v6035
        %6063 = vmatprep.subr.mxu0 0.0
        %6064 = vmatpush1.msra.mxu0 %v6034
        %6065 = vmatprep.subr.mxu0 0.0
        %6066 = vmatpush1.msra.mxu0 %v6033
        %6067 = vmatprep.subr.mxu0 0.0
        %6068 = vmatpush1.msra.mxu0 %v6032
        %6069 = vmatprep.subr.mxu0 0.0
        %6070 = vmatpush1.msra.mxu0 %v6031
        %6071 = vmatprep.subr.mxu0 0.0
        %6072 = vmatpush1.msra.mxu0 %v6030
        %6073 = vmatprep.subr.mxu0 0.0
        %6074 = vmatpush1.msra.mxu0 %v6029
        %6075 = vmatprep.subr.mxu0 0.0
        %6076 = vmatpush1.msra.mxu0 %v6028
        %6077 = vmatprep.subr.mxu0 0.0
        %6078 = vmatpush2.msra.mxu0 0.0
        %6079 = vmatprep.subr.mxu0 0.0
        %6080 = vmatpush2.msra.mxu0 0.0
        %6081 = vmatprep.subr.mxu0 0.0
        %6082 = vmatpush2.msra.mxu0 0.0
        %6083 = vmatprep.subr.mxu0 0.0
        %6084 = vmatpush2.msra.mxu0 0.0
        %6085 = vmatprep.subr.mxu0 0.0
        %6086 = vmatpush2.msra.mxu0 0.0
        %6087 = vmatprep.subr.mxu0 0.0
        %6088 = vmatpush2.msra.mxu0 0.0
        %6089 = vmatprep.subr.mxu0 0.0
        %6090 = vmatpush2.msra.mxu0 0.0
        %6091 = vmatprep.subr.mxu0 0.0
        %6092 = vmatpush2.msra.mxu0 0.0
        %6093 = vmatprep.subr.mxu0 0.0
        %6094 = vmatpush2.msra.mxu0 0.0
        %6095 = vmatprep.subr.mxu0 0.0
        %6096 = vmatpush2.msra.mxu0 0.0
        %6097 = vmatprep.subr.mxu0 0.0
        %6098 = vmatpush2.msra.mxu0 0.0
        %6099 = vmatprep.subr.mxu0 0.0
        %6100 = vmatpush2.msra.mxu0 0.0
        %6101 = vmatprep.subr.mxu0 0.0
        %6102 = vmatpush2.msra.mxu0 0.0
        %6103 = vmatprep.subr.mxu0 0.0
        %6104 = vmatpush2.msra.mxu0 0.0
        %6105 = vmatprep.subr.mxu0 0.0
        %6106 = vmatpush2.msra.mxu0 0.0
        %6107 = vmatprep.subr.mxu0 0.0
        %6108 = vmatpush2.msra.mxu0 0.0
        %6109 = vmatprep.mubr.f32.mxu0 0.0
        %6110 = vmatmul.mubr.f32.gmra.mxu0 %v6011
        %v6111 = vpop.f32.mrf.mxu0
        %v6112 = vadd.f32 %v6044, %v6111
        %v6113 = vpop.f32.mrf.mxu0
        %6114 = vdwg.mxu0
        %v6115 = vld [vmem:[%s656] sm:$0x1]
        %v6116 = vld [vmem:[#allocation15] sm:$0xf]
        %v6117 = vld [vmem:[#allocation15 + $0x4] sm:$0xf]
        %v6118 = vld [vmem:[#allocation15 + $0x8] sm:$0xf]
        %v6119 = vld [vmem:[#allocation15 + $0xc] sm:$0xf]
        %v6120 = vld [vmem:[#allocation15 + $0x10] sm:$0xf]
        %v6121 = vld [vmem:[#allocation15 + $0x14] sm:$0xf]
        %v6122 = vld [vmem:[#allocation15 + $0x18] sm:$0xf]
        %v6123 = vld [vmem:[#allocation15 + $0x1c] sm:$0xf]
        %v6124 = vld [vmem:[#allocation15 + $0x20] sm:$0xf]
        %v6125 = vld [vmem:[#allocation15 + $0x24] sm:$0xf]
        %v6126 = vld [vmem:[#allocation15 + $0x28] sm:$0xf]
        %v6127 = vld [vmem:[#allocation15 + $0x2c] sm:$0xf]
        %v6128 = vld [vmem:[#allocation15 + $0x30] sm:$0xf]
        %v6129 = vld [vmem:[#allocation15 + $0x34] sm:$0xf]
        %v6130 = vld [vmem:[#allocation15 + $0x38] sm:$0xf]
        %v6131 = vld [vmem:[#allocation15 + $0x3c] sm:$0xf]
        %v6132 = vunpack.c.l.bf16 %v6116
        %v6133 = vunpack.c.l.bf16 %v6117
        %v6134 = vunpack.c.l.bf16 %v6118
        %v6135 = vunpack.c.l.bf16 %v6119
        %v6136 = vunpack.c.l.bf16 %v6120
        %v6137 = vunpack.c.l.bf16 %v6121
        %v6138 = vunpack.c.l.bf16 %v6122
        %v6139 = vunpack.c.l.bf16 %v6123
        %v6140 = vunpack.c.l.bf16 %v6124
        %v6141 = vunpack.c.l.bf16 %v6125
        %v6142 = vunpack.c.l.bf16 %v6126
        %v6143 = vunpack.c.l.bf16 %v6127
        %v6144 = vunpack.c.l.bf16 %v6128
        %v6145 = vunpack.c.l.bf16 %v6129
        %v6146 = vunpack.c.l.bf16 %v6130
        %v6147 = vunpack.c.l.bf16 %v6131
        %v6148 = vld [vmem:[%s14] sm:$0x1]
        %6149 = vmatprep.subr.mxu0 0.0
        %6150 = vmatpush1.msra.mxu0 %v6147
        %6151 = vmatprep.subr.mxu0 0.0
        %6152 = vmatpush1.msra.mxu0 %v6146
        %6153 = vmatprep.subr.mxu0 0.0
        %6154 = vmatpush1.msra.mxu0 %v6145
        %6155 = vmatprep.subr.mxu0 0.0
        %6156 = vmatpush1.msra.mxu0 %v6144
        %6157 = vmatprep.subr.mxu0 0.0
        %6158 = vmatpush1.msra.mxu0 %v6143
        %6159 = vmatprep.subr.mxu0 0.0
        %6160 = vmatpush1.msra.mxu0 %v6142
        %6161 = vmatprep.subr.mxu0 0.0
        %6162 = vmatpush1.msra.mxu0 %v6141
        %6163 = vmatprep.subr.mxu0 0.0
        %6164 = vmatpush1.msra.mxu0 %v6140
        %6165 = vmatprep.subr.mxu0 0.0
        %6166 = vmatpush1.msra.mxu0 %v6139
        %6167 = vmatprep.subr.mxu0 0.0
        %6168 = vmatpush1.msra.mxu0 %v6138
        %6169 = vmatprep.subr.mxu0 0.0
        %6170 = vmatpush1.msra.mxu0 %v6137
        %6171 = vmatprep.subr.mxu0 0.0
        %6172 = vmatpush1.msra.mxu0 %v6136
        %6173 = vmatprep.subr.mxu0 0.0
        %6174 = vmatpush1.msra.mxu0 %v6135
        %6175 = vmatprep.subr.mxu0 0.0
        %6176 = vmatpush1.msra.mxu0 %v6134
        %6177 = vmatprep.subr.mxu0 0.0
        %6178 = vmatpush1.msra.mxu0 %v6133
        %6179 = vmatprep.subr.mxu0 0.0
        %6180 = vmatpush1.msra.mxu0 %v6132
        %6181 = vmatprep.subr.mxu0 0.0
        %6182 = vmatpush2.msra.mxu0 0.0
        %6183 = vmatprep.subr.mxu0 0.0
        %6184 = vmatpush2.msra.mxu0 0.0
        %6185 = vmatprep.subr.mxu0 0.0
        %6186 = vmatpush2.msra.mxu0 0.0
        %6187 = vmatprep.subr.mxu0 0.0
        %6188 = vmatpush2.msra.mxu0 0.0
        %6189 = vmatprep.subr.mxu0 0.0
        %6190 = vmatpush2.msra.mxu0 0.0
        %6191 = vmatprep.subr.mxu0 0.0
        %6192 = vmatpush2.msra.mxu0 0.0
        %6193 = vmatprep.subr.mxu0 0.0
        %6194 = vmatpush2.msra.mxu0 0.0
        %6195 = vmatprep.subr.mxu0 0.0
        %6196 = vmatpush2.msra.mxu0 0.0
        %6197 = vmatprep.subr.mxu0 0.0
        %6198 = vmatpush2.msra.mxu0 0.0
        %6199 = vmatprep.subr.mxu0 0.0
        %6200 = vmatpush2.msra.mxu0 0.0
        %6201 = vmatprep.subr.mxu0 0.0
        %6202 = vmatpush2.msra.mxu0 0.0
        %6203 = vmatprep.subr.mxu0 0.0
        %6204 = vmatpush2.msra.mxu0 0.0
        %6205 = vmatprep.subr.mxu0 0.0
        %6206 = vmatpush2.msra.mxu0 0.0
        %6207 = vmatprep.subr.mxu0 0.0
        %6208 = vmatpush2.msra.mxu0 0.0
        %6209 = vmatprep.subr.mxu0 0.0
        %6210 = vmatpush2.msra.mxu0 0.0
        %6211 = vmatprep.subr.mxu0 0.0
        %6212 = vmatpush2.msra.mxu0 0.0
        %6213 = vmatprep.mubr.f32.mxu0 0.0
        %6214 = vmatmul.mubr.f32.gmra.mxu0 %v6115
        %v6215 = vpop.f32.mrf.mxu0
        %v6216 = vadd.f32 %v6148, %v6215
        %v6217 = vpop.f32.mrf.mxu0
        %6218 = vdwg.mxu0
        %v6219 = vmul.f32 %v6112, %v6112
        %v6220 = vsel %vm1134, %v6219, 0.0
        %6221 = vadd.xlane.f32.xlu0 %v6220
        %v6222 = vpop.xlane.xlu0 %6221
        %v6223 = vmax.f32 %v6222, 1e-24
        %v6224 = vrsqrt.pop %v6223
        %v6225 = vmul.f32 %v6112, %v6224
        %6226 = vst [vmem:[%s643] sm:$0x1] %v6225
        %v6227 = vmul.f32 %v6216, %v6216
        %v6228 = vsel %vm1134, %v6227, 0.0
        %6229 = vadd.xlane.f32.xlu0 %v6228
        %v6230 = vpop.xlane.xlu0 %6229
        %v6231 = vmax.f32 %v6230, 1e-24
        %v6232 = vrsqrt.pop %v6231
        %v6233 = vmul.f32 %v6216, %v6232
        %6234 = vst [vmem:[%s649] sm:$0x1] %v6233
        %s6235 = sand.u32 %s372, 1
        %s6236 = scalar_lea.sflag [#allocation5], %s6235
        %s6237 = sand.u32 %s372, 1
        %s6238 = scalar_lea.vmem [#allocation17], %s6237
        %s6239 = sand.u32 %s398, 1
        %s6240 = scalar_lea.sflag [#allocation19], %s6239
        %s6241 = sand.u32 %s398, 1
        %s6242 = scalar_lea.vmem [#allocation18], %s6241
        // Predicated region
        $region113: #{spectrum_text_clip_forward.1} parent=79 // pred_check
          %p6243 = pneg %p382
        $region114: #{spectrum_text_clip_forward.1} parent=79 // pred_check_branch
          %6245 = sbr.rel (%p6243) target = $region116
        $region115: #{spectrum_text_clip_forward.1} parent=79 // pred_region
          %s6247 = ssub.s32 16, 16
          %6248 = vsyncadd %s6236, %s6247
          %s6249 = smul.addr %s39, 16
          %s6250 = scalar_lea.hbm %s15, %s6249
          %s6252 = sshll.u32 %s6238, 4
          %s6253 = int_to_ptr.vmem [resolvable:$true] %s6252
          %6255 = dma.vmem_to_hbm [thread:$0]  %s6253, 16, %s6250, %s6236
        $region116: #{spectrum_text_clip_forward.1} parent=79 // pred_fallthru
          _
        // Predicated region
        $region117: #{spectrum_text_clip_forward.1} parent=79 // pred_check
          %p6256 = pneg %p408
        $region118: #{spectrum_text_clip_forward.1} parent=79 // pred_check_branch
          %6258 = sbr.rel (%p6256) target = $region120
        $region119: #{spectrum_text_clip_forward.1} parent=79 // pred_region
          %s6260 = ssub.s32 16, 16
          %6261 = vsyncadd %s6240, %s6260
          %s6262 = smul.addr %s39, 16
          %s6263 = scalar_lea.hbm %s16, %s6262
          %s6265 = sshll.u32 %s6242, 4
          %s6266 = int_to_ptr.vmem [resolvable:$true] %s6265
          %6268 = dma.vmem_to_hbm [thread:$0]  %s6266, 16, %s6263, %s6240
        $region120: #{spectrum_text_clip_forward.1} parent=79 // pred_fallthru
          _
      $region80: #{spectrum_text_clip_forward.1} parent=5 // pred_fallthru
        _
      %p6269 = scmp.le.s32.totalorder 2, %s34
      // Predicated region
      $region121: #{spectrum_text_clip_forward.1} parent=5 // pred_check
        %p6270 = pneg %p6269
      $region122: #{spectrum_text_clip_forward.1} parent=5 // pred_check_branch
        %6272 = sbr.rel (%p6270) target = $region124
      $region123: #{spectrum_text_clip_forward.1} parent=5 // pred_region
        %s6273 = ssub.s32 %s34, 2
        // Predicated region
        $region125: #{spectrum_text_clip_forward.1} parent=123 // pred_check
          %p6274 = pneg %p388
        $region126: #{spectrum_text_clip_forward.1} parent=123 // pred_check_branch
          %6276 = sbr.rel (%p6274) target = $region128
        $region127: #{spectrum_text_clip_forward.1} parent=123 // pred_region
          %s6277 = sand.u32 %s373, 1
          %s6278 = scalar_lea.sflag [#allocation5], %s6277
          %s6279 = sand.u32 %s373, 1
          %s6280 = scalar_lea.vmem [#allocation17], %s6279
          %6281 = dma.done %s6278, 16
        $region128: #{spectrum_text_clip_forward.1} parent=123 // pred_fallthru
          _
        // Predicated region
        $region129: #{spectrum_text_clip_forward.1} parent=123 // pred_check
          %p6282 = pneg %p414
        $region130: #{spectrum_text_clip_forward.1} parent=123 // pred_check_branch
          %6284 = sbr.rel (%p6282) target = $region132
        $region131: #{spectrum_text_clip_forward.1} parent=123 // pred_region
          %s6285 = sand.u32 %s399, 1
          %s6286 = scalar_lea.sflag [#allocation19], %s6285
          %s6287 = sand.u32 %s399, 1
          %s6288 = scalar_lea.vmem [#allocation18], %s6287
          %6289 = dma.done %s6286, 16
        $region132: #{spectrum_text_clip_forward.1} parent=123 // pred_fallthru
          _
      $region124: #{spectrum_text_clip_forward.1} parent=5 // pred_fallthru
        _
    $region6: #{spectrum_text_clip_forward.1} parent=1 // loop_footer
      %s38 = sadd.s32 1, %s34
    $region7: #{spectrum_text_clip_forward.1} parent=1 // loop_footer_branch
      %33 = sbr.rel target = $region3
    $region8: #{spectrum_text_clip_forward.1} parent=1 // loop_exit
      _
    %6290 = vsyncpa [#allocation4], 1
    %s6291 = scalar_lea.sflag [#allocation4], 1
    %6292 = vsyncpa %s6291, 1
    %6293 = vsyncpa [#allocation7], 1
    %6294 = vsyncpa [#allocation10], 1
    %6295 = vsyncpa [#allocation13], 1
    %6296 = vsyncpa [#allocation16], 1
    %6297 = vsyncpa [#allocation5], 1
    %s6298 = scalar_lea.sflag [#allocation5], 1
    %6299 = vsyncpa %s6298, 1
    %6300 = vsyncpa [#allocation19], 1
    %s6301 = scalar_lea.sflag [#allocation19], 1
    %6302 = vsyncpa %s6301, 1

</llo_original>
